<compile_context>
chip_gen: v7x
topology: tpu7x:2x2x1
jax: 0.10.0
libtpu: 0.0.40
codegen_flags: <defaults>
</compile_context>

<pallas_src>
import functools

import jax
import jax.numpy as jnp
from jax.experimental import pallas as pl
from jax.experimental.pallas import tpu as pltpu

ESM_DIM = 1280   # hardcoded in FinetuneModel: finetune head input = 1280 * target_len * n_layers
LANE = 128       # pad every MLP hidden / output width to a full lane register


def _round_up(x, m):
    return ((x + m - 1) // m) * m


# --------------------------------------------------------------------------------------
# Synthetic "pretrained model" representation kernel.
# TODO(synk): the real ESM pretrained transformer (esm.pretrained.load_model_and_alphabet)
# is not reproduced; this per-position linear projection is a deterministic stand-in.
# Because the stand-in is position-independent it commutes with the target-residue
# selection, so representations are computed only for the T selected residues.  With a
# real attention model the selection must stay AFTER the transformer.
# --------------------------------------------------------------------------------------
def _rep_kernel(emb_ref, w_ref, b_ref, o_ref):
    acc = jnp.dot(emb_ref[...], w_ref[...], preferred_element_type=jnp.float32)
    o_ref[...] = (acc + b_ref[...]).astype(o_ref.dtype)


def _choose_row_tile(n):
    # Largest tile <= 512 with minimal padding (tn=512 keeps the double-buffered
    # footprint ~12 MiB -> safe under v5e's 16 MiB scoped-VMEM default; v6e/v7x could
    # go to 1024 with vmem_limit_bytes raised, not needed at these sizes).
    n8 = _round_up(max(n, 1), 8)
    if n8 <= 512:
        return n8                                   # single row tile, <= 7 junk rows
    best_tn, best_pad = 512, _round_up(n, 512) - n
    for tn in (512, 384, 256, 128):
        pad = _round_up(n, tn) - n
        if pad < best_pad:
            best_tn, best_pad = tn, pad
    return best_tn


def pallas_layer_reps(emb_sel, w_big, b_big, *, tc=ESM_DIM):
    # emb_sel: [N, D] bf16; w_big: [D, K*D] bf16 (k-major columns); b_big: [1, K*D] f32
    #   -> [N, K*D] bf16, lane-dense, per-row feature order (k, d).
    N, D = emb_sel.shape
    KD = w_big.shape[1]
    assert KD % tc == 0
    tn = _choose_row_tile(N)
    n_pad = _round_up(N, tn)
    if n_pad != N:
        emb_sel = jnp.pad(emb_sel, ((0, n_pad - N), (0, 0)))
    grid = (n_pad // tn, KD // tc)

    cost = pl.CostEstimate(
        flops=2 * n_pad * D * KD,
        transcendentals=0,
        bytes_accessed=n_pad * D * 2 + D * KD * 2 + KD * 4 + n_pad * KD * 2,
    )
    out = pl.pallas_call(
        _rep_kernel,
        out_shape=jax.ShapeDtypeStruct((n_pad, KD), jnp.bfloat16),
        grid=grid,
        in_specs=[
            pl.BlockSpec((tn, D), lambda n, c: (n, 0)),   # emb tile reused across col tiles
            pl.BlockSpec((D, tc), lambda n, c: (0, c)),
            pl.BlockSpec((1, tc), lambda n, c: (0, c)),
        ],
        out_specs=pl.BlockSpec((tn, tc), lambda n, c: (n, c)),
        compiler_params=pltpu.CompilerParams(
            dimension_semantics=("parallel", "parallel")),   # both axes independent -> v7x megacore
        cost_estimate=cost,
    )(emb_sel, w_big, b_big)
    return out[:N]


# --------------------------------------------------------------------------------------
# Fused MLP finetune head.
# drop_prob = 0.0 in the default module config -> dropout is the identity (omitted).
# All hidden / output widths are pre-padded to 128 lanes at init, so every matmul and
# store in here is lane-dense.
# --------------------------------------------------------------------------------------
def _mlp_single_kernel(*refs, n_layers):
    x_ref = refs[0]
    wb = refs[1:1 + 2 * n_layers]
    o_ref = refs[1 + 2 * n_layers]
    h = jnp.dot(x_ref[...], wb[0][...], preferred_element_type=jnp.float32) + wb[1][...]
    for i in range(1, n_layers):
        h = jnp.maximum(h, 0.0)
        w = wb[2 * i][...]
        h = jnp.dot(h.astype(w.dtype), w, preferred_element_type=jnp.float32) + wb[2 * i + 1][...]
    o_ref[...] = h.astype(o_ref.dtype)


def _mlp_tiled_kernel(*refs, n_layers):
    x_ref = refs[0]
    wb = refs[1:1 + 2 * n_layers]
    o_ref = refs[1 + 2 * n_layers]
    acc_ref = refs[2 + 2 * n_layers]
    k = pl.program_id(0)

    @pl.when(k == 0)
    def _():
        acc_ref[...] = jnp.zeros_like(acc_ref)

    acc_ref[...] += jnp.dot(x_ref[...], wb[0][...], preferred_element_type=jnp.float32)

    @pl.when(k == pl.num_programs(0) - 1)
    def _():
        h = acc_ref[...] + wb[1][...]
        for i in range(1, n_layers):
            h = jnp.maximum(h, 0.0)
            w = wb[2 * i][...]
            h = jnp.dot(h.astype(w.dtype), w, preferred_element_type=jnp.float32) + wb[2 * i + 1][...]
        o_ref[...] = h.astype(o_ref.dtype)


def pallas_mlp_head(x, mlp_params, *, single_shot_w0_bytes=8 << 20, tk=ESM_DIM):
    # x: [B, Din] bf16 (Din = T*K*1280); mlp_params: list of (w bf16 [din_pad, dout_pad],
    # b f32 [1, dout_pad]) with every output width padded to a multiple of 128.
    B, Din = x.shape
    n_layers = len(mlp_params)
    d_out = mlp_params[-1][0].shape[1]

    operands = [x]
    flops = 0
    bytes_accessed = x.size * 2 + B * d_out * 4
    for w, b in mlp_params:
        operands += [w, b]
        flops += 2 * B * w.shape[0] * w.shape[1]
        bytes_accessed += w.size * 2 + b.size * 4
    cost = pl.CostEstimate(flops=flops, transcendentals=0, bytes_accessed=bytes_accessed)

    w0 = mlp_params[0][0]
    if w0.size * w0.dtype.itemsize <= single_shot_w0_bytes:
        # Single-shot: W0 (~1.3 MB bf16 here) plus the small padded layers fit VMEM,
        # so the whole head is one grid-less pallas_call — no reduction grid, no
        # accumulator scratch, intermediates never touch HBM.
        # TODO(synk): if B grows large, add an outer "parallel" B-row-tile grid axis
        # so v7x's two TensorCores can split the batch.
        return pl.pallas_call(
            functools.partial(_mlp_single_kernel, n_layers=n_layers),
            out_shape=jax.ShapeDtypeStruct((B, d_out), jnp.float32),
            cost_estimate=cost,
        )(*operands)

    # Fallback for very large Din: tile the first-layer reduction over the grid with an
    # f32 accumulator.  tk=1280 keeps the double-buffered x/W0 tiles tiny (<1 MiB) —
    # safe under v5e's 16 MiB scoped VMEM and v7x's 64 MiB physical VMEM.
    assert Din % tk == 0
    n_steps = Din // tk
    h1 = mlp_params[0][0].shape[1]
    in_specs = [pl.BlockSpec((B, tk), lambda k: (0, k))]
    for i, (w, b) in enumerate(mlp_params):
        if i == 0:
            in_specs.append(pl.BlockSpec((tk, w.shape[1]), lambda k: (k, 0)))
        else:
            in_specs.append(pl.BlockSpec(w.shape, lambda k: (0, 0)))
        in_specs.append(pl.BlockSpec(b.shape, lambda k: (0, 0)))
    return pl.pallas_call(
        functools.partial(_mlp_tiled_kernel, n_layers=n_layers),
        out_shape=jax.ShapeDtypeStruct((B, d_out), jnp.float32),
        grid=(n_steps,),
        in_specs=in_specs,
        out_specs=pl.BlockSpec((B, d_out), lambda k: (0, 0)),
        scratch_shapes=[pltpu.VMEM((B, h1), jnp.float32)],
        compiler_params=pltpu.CompilerParams(dimension_semantics=("arbitrary",)),
        cost_estimate=cost,
    )(*operands)


# --------------------------------------------------------------------------------------
# Parameter init (deterministic, synthetic) and the full forward.
# --------------------------------------------------------------------------------------
def init_params(key, vocab_size, n_repr_layers, target_len, hidden_sizes):
    ks = jax.random.split(key, 3)
    scale = 0.02
    K, T, D = n_repr_layers, target_len, ESM_DIM

    embed = (scale * jax.random.normal(ks[0], (vocab_size, D), jnp.float32)).astype(jnp.bfloat16)

    # K per-layer [D, D] projections folded into one [D, K*D] matrix with k-major
    # columns: W_big[:, k*D + d] == W_k[:, d].  One wide matmul, lane-dense (k, d) out.
    rep_w = scale * jax.random.normal(ks[1], (K, D, D), jnp.float32)
    rep_w = jnp.transpose(rep_w, (1, 0, 2)).reshape(D, K * D).astype(jnp.bfloat16)
    rep_b = jnp.zeros((1, K * D), jnp.float32)

    params = {"embed": embed, "rep_w": rep_w, "rep_b": rep_b}

    # MLPModel(1280 * target_len * K, hidden_sizes, ReLU, drop_prob):
    # Linear+ReLU through hidden_sizes, then a final Linear -> 1 output.
    # Every output width is zero-padded to a multiple of 128 lanes; padded columns,
    # padded biases and the matching rows of the next layer are all zero, so the padded
    # lanes stay exactly 0 through ReLU and contribute nothing downstream.
    dims_real = [D * T * K] + list(hidden_sizes) + [1]
    mlp = []
    in_dim = dims_real[0]                       # first-layer input is never padded
    for i, dout_real in enumerate(dims_real[1:]):
        kw = jax.random.fold_in(ks[2], i)
        w = scale * jax.random.normal(kw, (dims_real[i], dout_real), jnp.float32)
        if i == 0:
            # Reference flattens [B, T, D, K] row-major -> feature order (t, d, k).
            # Our lane-dense activations use (t, k, d); permute weight rows once at
            # init so the math is identical.
            w = w.reshape(T, D, K, dout_real).transpose(0, 2, 1, 3).reshape(T * K * D, dout_real)
        dout_pad = _round_up(dout_real, LANE)
        w = jnp.pad(w, ((0, in_dim - w.shape[0]), (0, dout_pad - dout_real)))
        b = jnp.zeros((1, dout_pad), jnp.float32)
        mlp.append((w.astype(jnp.bfloat16), b))
        in_dim = dout_pad
    params["mlp"] = mlp
    return params


def finetune_forward(params, tokens, target_protein_idxs):
    B, _ = tokens.shape
    KD = params["rep_w"].shape[1]
    T = target_protein_idxs.shape[0]

    # embeddings[:, target_protein_idxs] commutes with the per-position stand-in,
    # so gather the T target tokens first (L/T x less representation work).
    tok_sel = jnp.take(tokens, target_protein_idxs, axis=1)            # [B, T]    (glue: gather)
    emb_sel = jnp.take(params["embed"], tok_sel.reshape(-1), axis=0)   # [B*T, D]  (glue: gather)

    # Pretrained-model stand-in: one fused Pallas matmul over all repr layers, output
    # lane-dense [B*T, K*D] in (t, k, d) feature order.
    reps = pallas_layer_reps(emb_sel, params["rep_w"], params["rep_b"])  # [B*T, K*D] bf16

    # TODO(synk): at production-sized B*T*K, fuse the first MLP contraction into the rep
    # kernel epilogue to avoid the [B*T, K*D] HBM round trip (negligible at demo size).
    x = reps.reshape(B, T * KD)
    y = pallas_mlp_head(x, params["mlp"])                               # [B, 128] (lane-padded)
    return y[:, :1]                                                     # [B, 1]


if __name__ == "__main__":
    B = 2
    seq_len = 8                           # residues per sequence
    L = seq_len + 2                       # BOS + residues + EOS (ESM tokenization)
    vocab_size = 33                       # ESM alphabet size
    pretrained_model_exprs = [5, 6]       # two repr layers -> K = 2
    target_python_idxs = [2, 5]           # -> target_protein_idxs = [3, 6], target_len = 2
    target_protein_idxs = jnp.asarray([i + 1 for i in target_python_idxs], jnp.int32)
    hidden_sizes = [64, 32]

    key = jax.random.PRNGKey(0)
    k_tok, k_par = jax.random.split(key)
    params = init_params(
        k_par, vocab_size, len(pretrained_model_exprs), len(target_python_idxs), hidden_sizes
    )

    residues = jax.random.randint(k_tok, (B, seq_len), 4, 24, dtype=jnp.int32)
    bos = jnp.zeros((B, 1), jnp.int32)
    eos = jnp.full((B, 1), 2, jnp.int32)
    tokens = jnp.concatenate([bos, residues, eos], axis=1)     # [B, L] int32 token ids

    fwd = jax.jit(finetune_forward)
    out = jax.block_until_ready(fwd(params, tokens, target_protein_idxs))
    assert out.shape == (B, 1), out.shape
    print("KERNEL_OK")
</pallas_src>

<mosaic_0001>
module attributes {stable_mosaic.version = 11 : i64} {
  func.func @_rep_kernel(%arg0: i32, %arg1: i32, %arg2: memref<8x1280xbf16, #tpu.memory_space<vmem>>, %arg3: memref<1280x1280xbf16, #tpu.memory_space<vmem>>, %arg4: memref<1x1280xf32, #tpu.memory_space<vmem>>, %arg5: memref<8x1280xbf16, #tpu.memory_space<vmem>>) attributes {dimension_semantics = [#tpu.dimension_semantics<parallel>, #tpu.dimension_semantics<parallel>], iteration_bounds = array<i64: 1, 2>, scalar_prefetch = 0 : i64, scratch_operands = 0 : i64, tpu.core_type = #tpu.core_type<tc>, window_params = [{transform_indices = @transform_0, window_bounds = array<i64: 8, 1280>}, {transform_indices = @transform_1, window_bounds = array<i64: 1280, 1280>}, {transform_indices = @transform_2, window_bounds = array<i64: 1, 1280>}, {transform_indices = @transform_3, window_bounds = array<i64: 8, 1280>}]} {
    %c0 = arith.constant 0 : index
    %c0_0 = arith.constant 0 : index
    %0 = vector.load %arg2[%c0, %c0_0] : memref<8x1280xbf16, #tpu.memory_space<vmem>>, vector<8x1280xbf16>
    %c0_1 = arith.constant 0 : index
    %c0_2 = arith.constant 0 : index
    %1 = vector.load %arg3[%c0_1, %c0_2] : memref<1280x1280xbf16, #tpu.memory_space<vmem>>, vector<1280x1280xbf16>
    %cst = arith.constant dense<0.000000e+00> : vector<8x1280xf32>
    %2 = tpu.matmul %0, %1, %cst {dimension_numbers = #tpu.dot_dimension_numbers<[1], [0], [0], [1], [0, 0, 1, 1], [], []>} : vector<8x1280xbf16>, vector<1280x1280xbf16>, vector<8x1280xf32> -> vector<8x1280xf32>
    %c0_3 = arith.constant 0 : index
    %c0_4 = arith.constant 0 : index
    %3 = vector.load %arg4[%c0_3, %c0_4] : memref<1x1280xf32, #tpu.memory_space<vmem>>, vector<1x1280xf32>
    %4 = vector.broadcast %3 : vector<1x1280xf32> to vector<8x1280xf32>
    %5 = arith.addf %2, %4 : vector<8x1280xf32>
    %6 = arith.truncf %5 : vector<8x1280xf32> to vector<8x1280xbf16>
    %c0_5 = arith.constant 0 : index
    %c0_6 = arith.constant 0 : index
    %7 = vector.load %arg5[%c0_5, %c0_6] : memref<8x1280xbf16, #tpu.memory_space<vmem>>, vector<8x1280xbf16>
    tpu.vector_store %arg5[%c0_5, %c0_6], %6 {strides = array<i32>} : memref<8x1280xbf16, #tpu.memory_space<vmem>>, vector<8x1280xbf16>,
    return
  }
  func.func @transform_0(%arg0: i32, %arg1: i32) -> (i32, i32) {
    %c0_i32 = arith.constant 0 : i32
    %c0_i32_0 = arith.constant 0 : i32
    return %arg0, %c0_i32 : i32, i32
  }
  func.func @transform_1(%arg0: i32, %arg1: i32) -> (i32, i32) {
    %c0_i32 = arith.constant 0 : i32
    %c0_i32_0 = arith.constant 0 : i32
    return %c0_i32, %arg1 : i32, i32
  }
  func.func @transform_2(%arg0: i32, %arg1: i32) -> (i32, i32) {
    %c0_i32 = arith.constant 0 : i32
    %c0_i32_0 = arith.constant 0 : i32
    return %c0_i32, %arg1 : i32, i32
  }
  func.func @transform_3(%arg0: i32, %arg1: i32) -> (i32, i32) {
    %c0_i32 = arith.constant 0 : i32
    return %arg0, %arg1 : i32, i32
  }
}

module attributes {stable_mosaic.version = 11 : i64} {
  func.func @_mlp_single_kernel(%arg0: memref<2x5120xbf16, #tpu.memory_space<vmem>>, %arg1: memref<5120x128xbf16, #tpu.memory_space<vmem>>, %arg2: memref<1x128xf32, #tpu.memory_space<vmem>>, %arg3: memref<128x128xbf16, #tpu.memory_space<vmem>>, %arg4: memref<1x128xf32, #tpu.memory_space<vmem>>, %arg5: memref<128x128xbf16, #tpu.memory_space<vmem>>, %arg6: memref<1x128xf32, #tpu.memory_space<vmem>>, %arg7: memref<2x128xf32, #tpu.memory_space<vmem>>) attributes {dimension_semantics = [], scalar_prefetch = 0 : i64, scratch_operands = 0 : i64, tpu.core_type = #tpu.core_type<tc>} {
    %c0 = arith.constant 0 : index
    %c0_0 = arith.constant 0 : index
    %0 = vector.load %arg0[%c0, %c0_0] : memref<2x5120xbf16, #tpu.memory_space<vmem>>, vector<2x5120xbf16>
    %c0_1 = arith.constant 0 : index
    %c0_2 = arith.constant 0 : index
    %1 = vector.load %arg1[%c0_1, %c0_2] : memref<5120x128xbf16, #tpu.memory_space<vmem>>, vector<5120x128xbf16>
    %cst = arith.constant dense<0.000000e+00> : vector<2x128xf32>
    %2 = tpu.matmul %0, %1, %cst {dimension_numbers = #tpu.dot_dimension_numbers<[1], [0], [0], [1], [0, 0, 1, 1], [], []>} : vector<2x5120xbf16>, vector<5120x128xbf16>, vector<2x128xf32> -> vector<2x128xf32>
    %c0_3 = arith.constant 0 : index
    %c0_4 = arith.constant 0 : index
    %3 = vector.load %arg2[%c0_3, %c0_4] : memref<1x128xf32, #tpu.memory_space<vmem>>, vector<1x128xf32>
    %4 = vector.broadcast %3 : vector<1x128xf32> to vector<2x128xf32>
    %5 = arith.addf %2, %4 : vector<2x128xf32>
    %cst_5 = arith.constant 0.000000e+00 : f32
    %6 = vector.broadcast %cst_5 : f32 to vector<2x128xf32>
    %7 = arith.maximumf %5, %6 : vector<2x128xf32>
    %c0_6 = arith.constant 0 : index
    %c0_7 = arith.constant 0 : index
    %8 = vector.load %arg3[%c0_6, %c0_7] : memref<128x128xbf16, #tpu.memory_space<vmem>>, vector<128x128xbf16>
    %9 = arith.truncf %7 : vector<2x128xf32> to vector<2x128xbf16>
    %cst_8 = arith.constant dense<0.000000e+00> : vector<2x128xf32>
    %10 = tpu.matmul %9, %8, %cst_8 {dimension_numbers = #tpu.dot_dimension_numbers<[1], [0], [0], [1], [0, 0, 1, 1], [], []>} : vector<2x128xbf16>, vector<128x128xbf16>, vector<2x128xf32> -> vector<2x128xf32>
    %c0_9 = arith.constant 0 : index
    %c0_10 = arith.constant 0 : index
    %11 = vector.load %arg4[%c0_9, %c0_10] : memref<1x128xf32, #tpu.memory_space<vmem>>, vector<1x128xf32>
    %12 = vector.broadcast %11 : vector<1x128xf32> to vector<2x128xf32>
    %13 = arith.addf %10, %12 : vector<2x128xf32>
    %cst_11 = arith.constant 0.000000e+00 : f32
    %14 = vector.broadcast %cst_11 : f32 to vector<2x128xf32>
    %15 = arith.maximumf %13, %14 : vector<2x128xf32>
    %c0_12 = arith.constant 0 : index
    %c0_13 = arith.constant 0 : index
    %16 = vector.load %arg5[%c0_12, %c0_13] : memref<128x128xbf16, #tpu.memory_space<vmem>>, vector<128x128xbf16>
    %17 = arith.truncf %15 : vector<2x128xf32> to vector<2x128xbf16>
    %cst_14 = arith.constant dense<0.000000e+00> : vector<2x128xf32>
    %18 = tpu.matmul %17, %16, %cst_14 {dimension_numbers = #tpu.dot_dimension_numbers<[1], [0], [0], [1], [0, 0, 1, 1], [], []>} : vector<2x128xbf16>, vector<128x128xbf16>, vector<2x128xf32> -> vector<2x128xf32>
    %c0_15 = arith.constant 0 : index
    %c0_16 = arith.constant 0 : index
    %19 = vector.load %arg6[%c0_15, %c0_16] : memref<1x128xf32, #tpu.memory_space<vmem>>, vector<1x128xf32>
    %20 = vector.broadcast %19 : vector<1x128xf32> to vector<2x128xf32>
    %21 = arith.addf %18, %20 : vector<2x128xf32>
    %c0_17 = arith.constant 0 : index
    %c0_18 = arith.constant 0 : index
    %22 = vector.load %arg7[%c0_17, %c0_18] : memref<2x128xf32, #tpu.memory_space<vmem>>, vector<2x128xf32>
    tpu.vector_store %arg7[%c0_17, %c0_18], %21 {strides = array<i32>} : memref<2x128xf32, #tpu.memory_space<vmem>>, vector<2x128xf32>,
    return
  }
}

</mosaic_0001>

<llo_original>
// kernel: finetune_forward.3
$region0: #{finetune_forward.3}
  #allocation0 [shape = 'u32[]', space=smem, size = 0x4, offset = 0x4, fixed_abs, tag = 'smem constant byte address 0x4 - core index']
  #allocation1 [shape = 'u32[144,128]{1,0:T(1,128)}', space=vmem, size = 0x12000, scoped, tag = 'internal scratch']
  %s0 = inlined_call_operand.vmem [shape: bf16[2,5120], index: 0, kind: input, shape index: {}]
  %s1 = inlined_call_operand.vmem [shape: bf16[5120,128], index: 1, kind: input, shape index: {}]
  %s2 = inlined_call_operand.vmem [shape: f32[1,128], index: 2, kind: input, shape index: {}]
  %s3 = inlined_call_operand.vmem [shape: bf16[128,128], index: 3, kind: input, shape index: {}]
  %s4 = inlined_call_operand.vmem [shape: f32[1,128], index: 4, kind: input, shape index: {}]
  %s5 = inlined_call_operand.vmem [shape: bf16[128,128], index: 5, kind: input, shape index: {}]
  %s6 = inlined_call_operand.vmem [shape: f32[1,128], index: 6, kind: input, shape index: {}]
  %s7 = inlined_call_operand.vmem [shape: f32[2,128], index: 7, kind: output, shape index: {}]
  %s8 = sld [smem:[#allocation0]]
  $region38: #{finetune_forward.3} parent=0
    _
  %s10 = ssub.s32 1, %s8
  %s11 = scalar_select 0, %s10, %s8
  // Predicated region
  $region2: #{finetune_forward.3} parent=0 // pred_check
    _
  $region3: #{finetune_forward.3} parent=0 // pred_check_branch
    %13 = sbr.rel (0) target = $region5
  $region4: #{finetune_forward.3} parent=0 // pred_region
    _
  $region5: #{finetune_forward.3} parent=0 // pred_fallthru
    _
  // Predicated region
  $region6: #{finetune_forward.3} parent=0 // pred_check
    _
  $region7: #{finetune_forward.3} parent=0 // pred_check_branch
    %15 = sbr.rel (0) target = $region9
  $region8: #{finetune_forward.3} parent=0 // pred_region
    _
  $region9: #{finetune_forward.3} parent=0 // pred_fallthru
    _
  // Predicated region
  $region10: #{finetune_forward.3} parent=0 // pred_check
    _
  $region11: #{finetune_forward.3} parent=0 // pred_check_branch
    %17 = sbr.rel (0) target = $region13
  $region12: #{finetune_forward.3} parent=0 // pred_region
    _
  $region13: #{finetune_forward.3} parent=0 // pred_fallthru
    _
  // Predicated region
  $region14: #{finetune_forward.3} parent=0 // pred_check
    _
  $region15: #{finetune_forward.3} parent=0 // pred_check_branch
    %19 = sbr.rel (0) target = $region17
  $region16: #{finetune_forward.3} parent=0 // pred_region
    _
  $region17: #{finetune_forward.3} parent=0 // pred_fallthru
    _
  // Predicated region
  $region18: #{finetune_forward.3} parent=0 // pred_check
    _
  $region19: #{finetune_forward.3} parent=0 // pred_check_branch
    %21 = sbr.rel (0) target = $region21
  $region20: #{finetune_forward.3} parent=0 // pred_region
    _
  $region21: #{finetune_forward.3} parent=0 // pred_fallthru
    _
  // Predicated region
  $region22: #{finetune_forward.3} parent=0 // pred_check
    _
  $region23: #{finetune_forward.3} parent=0 // pred_check_branch
    %23 = sbr.rel (0) target = $region25
  $region24: #{finetune_forward.3} parent=0 // pred_region
    _
  $region25: #{finetune_forward.3} parent=0 // pred_fallthru
    _
  // Predicated region
  $region26: #{finetune_forward.3} parent=0 // pred_check
    _
  $region27: #{finetune_forward.3} parent=0 // pred_check_branch
    %25 = sbr.rel (0) target = $region29
  $region28: #{finetune_forward.3} parent=0 // pred_region
    _
  $region29: #{finetune_forward.3} parent=0 // pred_fallthru
    _
  %v27 = vld [vmem:[%s0] sm:$0xff]
  %v28 = vld [vmem:[%s0 + $0x8] sm:$0xff]
  %v29 = vld [vmem:[%s0 + $0x10] sm:$0xff]
  %v30 = vld [vmem:[%s0 + $0x18] sm:$0xff]
  %v31 = vld [vmem:[%s0 + $0x20] sm:$0xff]
  %v32 = vld [vmem:[%s1] sm:$0xf]
  %v33 = vld [vmem:[%s1 + $0x4] sm:$0xf]
  %v34 = vld [vmem:[%s1 + $0x8] sm:$0xf]
  %v35 = vld [vmem:[%s1 + $0xc] sm:$0xf]
  %v36 = vld [vmem:[%s1 + $0x10] sm:$0xf]
  %v37 = vld [vmem:[%s1 + $0x14] sm:$0xf]
  %v38 = vld [vmem:[%s1 + $0x18] sm:$0xf]
  %v39 = vld [vmem:[%s1 + $0x1c] sm:$0xf]
  %v40 = vld [vmem:[%s1 + $0x20] sm:$0xf]
  %v41 = vld [vmem:[%s1 + $0x24] sm:$0xf]
  %v42 = vld [vmem:[%s1 + $0x28] sm:$0xf]
  %v43 = vld [vmem:[%s1 + $0x2c] sm:$0xf]
  %v44 = vld [vmem:[%s1 + $0x30] sm:$0xf]
  %v45 = vld [vmem:[%s1 + $0x34] sm:$0xf]
  %v46 = vld [vmem:[%s1 + $0x38] sm:$0xf]
  %v47 = vld [vmem:[%s1 + $0x3c] sm:$0xf]
  %v48 = vld [vmem:[%s1 + $0x40] sm:$0xf]
  %v49 = vld [vmem:[%s1 + $0x44] sm:$0xf]
  %v50 = vld [vmem:[%s1 + $0x48] sm:$0xf]
  %v51 = vld [vmem:[%s1 + $0x4c] sm:$0xf]
  %v52 = vld [vmem:[%s1 + $0x50] sm:$0xf]
  %v53 = vld [vmem:[%s1 + $0x54] sm:$0xf]
  %v54 = vld [vmem:[%s1 + $0x58] sm:$0xf]
  %v55 = vld [vmem:[%s1 + $0x5c] sm:$0xf]
  %v56 = vld [vmem:[%s1 + $0x60] sm:$0xf]
  %v57 = vld [vmem:[%s1 + $0x64] sm:$0xf]
  %v58 = vld [vmem:[%s1 + $0x68] sm:$0xf]
  %v59 = vld [vmem:[%s1 + $0x6c] sm:$0xf]
  %v60 = vld [vmem:[%s1 + $0x70] sm:$0xf]
  %v61 = vld [vmem:[%s1 + $0x74] sm:$0xf]
  %v62 = vld [vmem:[%s1 + $0x78] sm:$0xf]
  %v63 = vld [vmem:[%s1 + $0x7c] sm:$0xf]
  %v64 = vld [vmem:[%s1 + $0x80] sm:$0xf]
  %v65 = vld [vmem:[%s1 + $0x84] sm:$0xf]
  %v66 = vld [vmem:[%s1 + $0x88] sm:$0xf]
  %v67 = vld [vmem:[%s1 + $0x8c] sm:$0xf]
  %v68 = vld [vmem:[%s1 + $0x90] sm:$0xf]
  %v69 = vld [vmem:[%s1 + $0x94] sm:$0xf]
  %v70 = vld [vmem:[%s1 + $0x98] sm:$0xf]
  %v71 = vld [vmem:[%s1 + $0x9c] sm:$0xf]
  %v72 = vld [vmem:[%s1 + $0xa0] sm:$0xf]
  %v73 = vld [vmem:[%s1 + $0xa4] sm:$0xf]
  %v74 = vld [vmem:[%s1 + $0xa8] sm:$0xf]
  %v75 = vld [vmem:[%s1 + $0xac] sm:$0xf]
  %v76 = vld [vmem:[%s1 + $0xb0] sm:$0xf]
  %v77 = vld [vmem:[%s1 + $0xb4] sm:$0xf]
  %v78 = vld [vmem:[%s1 + $0xb8] sm:$0xf]
  %v79 = vld [vmem:[%s1 + $0xbc] sm:$0xf]
  %v80 = vld [vmem:[%s1 + $0xc0] sm:$0xf]
  %v81 = vld [vmem:[%s1 + $0xc4] sm:$0xf]
  %v82 = vld [vmem:[%s1 + $0xc8] sm:$0xf]
  %v83 = vld [vmem:[%s1 + $0xcc] sm:$0xf]
  %v84 = vld [vmem:[%s1 + $0xd0] sm:$0xf]
  %v85 = vld [vmem:[%s1 + $0xd4] sm:$0xf]
  %v86 = vld [vmem:[%s1 + $0xd8] sm:$0xf]
  %v87 = vld [vmem:[%s1 + $0xdc] sm:$0xf]
  %v88 = vld [vmem:[%s1 + $0xe0] sm:$0xf]
  %v89 = vld [vmem:[%s1 + $0xe4] sm:$0xf]
  %v90 = vld [vmem:[%s1 + $0xe8] sm:$0xf]
  %v91 = vld [vmem:[%s1 + $0xec] sm:$0xf]
  %v92 = vld [vmem:[%s1 + $0xf0] sm:$0xf]
  %v93 = vld [vmem:[%s1 + $0xf4] sm:$0xf]
  %v94 = vld [vmem:[%s1 + $0xf8] sm:$0xf]
  %v95 = vld [vmem:[%s1 + $0xfc] sm:$0xf]
  %v96 = vld [vmem:[%s1 + $0x100] sm:$0xf]
  %v97 = vld [vmem:[%s1 + $0x104] sm:$0xf]
  %v98 = vld [vmem:[%s1 + $0x108] sm:$0xf]
  %v99 = vld [vmem:[%s1 + $0x10c] sm:$0xf]
  %v100 = vld [vmem:[%s1 + $0x110] sm:$0xf]
  %v101 = vld [vmem:[%s1 + $0x114] sm:$0xf]
  %v102 = vld [vmem:[%s1 + $0x118] sm:$0xf]
  %v103 = vld [vmem:[%s1 + $0x11c] sm:$0xf]
  %v104 = vld [vmem:[%s1 + $0x120] sm:$0xf]
  %v105 = vld [vmem:[%s1 + $0x124] sm:$0xf]
  %v106 = vld [vmem:[%s1 + $0x128] sm:$0xf]
  %v107 = vld [vmem:[%s1 + $0x12c] sm:$0xf]
  %v108 = vld [vmem:[%s1 + $0x130] sm:$0xf]
  %v109 = vld [vmem:[%s1 + $0x134] sm:$0xf]
  %v110 = vld [vmem:[%s1 + $0x138] sm:$0xf]
  %v111 = vld [vmem:[%s1 + $0x13c] sm:$0xf]
  %v112 = vld [vmem:[%s1 + $0x140] sm:$0xf]
  %v113 = vld [vmem:[%s1 + $0x144] sm:$0xf]
  %v114 = vld [vmem:[%s1 + $0x148] sm:$0xf]
  %v115 = vld [vmem:[%s1 + $0x14c] sm:$0xf]
  %v116 = vld [vmem:[%s1 + $0x150] sm:$0xf]
  %v117 = vld [vmem:[%s1 + $0x154] sm:$0xf]
  %v118 = vld [vmem:[%s1 + $0x158] sm:$0xf]
  %v119 = vld [vmem:[%s1 + $0x15c] sm:$0xf]
  %v120 = vld [vmem:[%s1 + $0x160] sm:$0xf]
  %v121 = vld [vmem:[%s1 + $0x164] sm:$0xf]
  %v122 = vld [vmem:[%s1 + $0x168] sm:$0xf]
  %v123 = vld [vmem:[%s1 + $0x16c] sm:$0xf]
  %v124 = vld [vmem:[%s1 + $0x170] sm:$0xf]
  %v125 = vld [vmem:[%s1 + $0x174] sm:$0xf]
  %v126 = vld [vmem:[%s1 + $0x178] sm:$0xf]
  %v127 = vld [vmem:[%s1 + $0x17c] sm:$0xf]
  %v128 = vld [vmem:[%s1 + $0x180] sm:$0xf]
  %v129 = vld [vmem:[%s1 + $0x184] sm:$0xf]
  %v130 = vld [vmem:[%s1 + $0x188] sm:$0xf]
  %v131 = vld [vmem:[%s1 + $0x18c] sm:$0xf]
  %v132 = vld [vmem:[%s1 + $0x190] sm:$0xf]
  %v133 = vld [vmem:[%s1 + $0x194] sm:$0xf]
  %v134 = vld [vmem:[%s1 + $0x198] sm:$0xf]
  %v135 = vld [vmem:[%s1 + $0x19c] sm:$0xf]
  %v136 = vld [vmem:[%s1 + $0x1a0] sm:$0xf]
  %v137 = vld [vmem:[%s1 + $0x1a4] sm:$0xf]
  %v138 = vld [vmem:[%s1 + $0x1a8] sm:$0xf]
  %v139 = vld [vmem:[%s1 + $0x1ac] sm:$0xf]
  %v140 = vld [vmem:[%s1 + $0x1b0] sm:$0xf]
  %v141 = vld [vmem:[%s1 + $0x1b4] sm:$0xf]
  %v142 = vld [vmem:[%s1 + $0x1b8] sm:$0xf]
  %v143 = vld [vmem:[%s1 + $0x1bc] sm:$0xf]
  %v144 = vld [vmem:[%s1 + $0x1c0] sm:$0xf]
  %v145 = vld [vmem:[%s1 + $0x1c4] sm:$0xf]
  %v146 = vld [vmem:[%s1 + $0x1c8] sm:$0xf]
  %v147 = vld [vmem:[%s1 + $0x1cc] sm:$0xf]
  %v148 = vld [vmem:[%s1 + $0x1d0] sm:$0xf]
  %v149 = vld [vmem:[%s1 + $0x1d4] sm:$0xf]
  %v150 = vld [vmem:[%s1 + $0x1d8] sm:$0xf]
  %v151 = vld [vmem:[%s1 + $0x1dc] sm:$0xf]
  %v152 = vld [vmem:[%s1 + $0x1e0] sm:$0xf]
  %v153 = vld [vmem:[%s1 + $0x1e4] sm:$0xf]
  %v154 = vld [vmem:[%s1 + $0x1e8] sm:$0xf]
  %v155 = vld [vmem:[%s1 + $0x1ec] sm:$0xf]
  %v156 = vld [vmem:[%s1 + $0x1f0] sm:$0xf]
  %v157 = vld [vmem:[%s1 + $0x1f4] sm:$0xf]
  %v158 = vld [vmem:[%s1 + $0x1f8] sm:$0xf]
  %v159 = vld [vmem:[%s1 + $0x1fc] sm:$0xf]
  %v160 = vld [vmem:[%s1 + $0x200] sm:$0xf]
  %v161 = vld [vmem:[%s1 + $0x204] sm:$0xf]
  %v162 = vld [vmem:[%s1 + $0x208] sm:$0xf]
  %v163 = vld [vmem:[%s1 + $0x20c] sm:$0xf]
  %v164 = vld [vmem:[%s1 + $0x210] sm:$0xf]
  %v165 = vld [vmem:[%s1 + $0x214] sm:$0xf]
  %v166 = vld [vmem:[%s1 + $0x218] sm:$0xf]
  %v167 = vld [vmem:[%s1 + $0x21c] sm:$0xf]
  %v168 = vld [vmem:[%s1 + $0x220] sm:$0xf]
  %v169 = vld [vmem:[%s1 + $0x224] sm:$0xf]
  %v170 = vld [vmem:[%s1 + $0x228] sm:$0xf]
  %v171 = vld [vmem:[%s1 + $0x22c] sm:$0xf]
  %v172 = vld [vmem:[%s1 + $0x230] sm:$0xf]
  %v173 = vld [vmem:[%s1 + $0x234] sm:$0xf]
  %v174 = vld [vmem:[%s1 + $0x238] sm:$0xf]
  %v175 = vld [vmem:[%s1 + $0x23c] sm:$0xf]
  %v176 = vld [vmem:[%s1 + $0x240] sm:$0xf]
  %v177 = vld [vmem:[%s1 + $0x244] sm:$0xf]
  %v178 = vld [vmem:[%s1 + $0x248] sm:$0xf]
  %v179 = vld [vmem:[%s1 + $0x24c] sm:$0xf]
  %v180 = vld [vmem:[%s1 + $0x250] sm:$0xf]
  %v181 = vld [vmem:[%s1 + $0x254] sm:$0xf]
  %v182 = vld [vmem:[%s1 + $0x258] sm:$0xf]
  %v183 = vld [vmem:[%s1 + $0x25c] sm:$0xf]
  %v184 = vld [vmem:[%s1 + $0x260] sm:$0xf]
  %v185 = vld [vmem:[%s1 + $0x264] sm:$0xf]
  %v186 = vld [vmem:[%s1 + $0x268] sm:$0xf]
  %v187 = vld [vmem:[%s1 + $0x26c] sm:$0xf]
  %v188 = vld [vmem:[%s1 + $0x270] sm:$0xf]
  %v189 = vld [vmem:[%s1 + $0x274] sm:$0xf]
  %v190 = vld [vmem:[%s1 + $0x278] sm:$0xf]
  %v191 = vld [vmem:[%s1 + $0x27c] sm:$0xf]
  %v192 = vld [vmem:[%s1 + $0x280] sm:$0xf]
  %v193 = vld [vmem:[%s1 + $0x284] sm:$0xf]
  %v194 = vld [vmem:[%s1 + $0x288] sm:$0xf]
  %v195 = vld [vmem:[%s1 + $0x28c] sm:$0xf]
  %v196 = vld [vmem:[%s1 + $0x290] sm:$0xf]
  %v197 = vld [vmem:[%s1 + $0x294] sm:$0xf]
  %v198 = vld [vmem:[%s1 + $0x298] sm:$0xf]
  %v199 = vld [vmem:[%s1 + $0x29c] sm:$0xf]
  %v200 = vld [vmem:[%s1 + $0x2a0] sm:$0xf]
  %v201 = vld [vmem:[%s1 + $0x2a4] sm:$0xf]
  %v202 = vld [vmem:[%s1 + $0x2a8] sm:$0xf]
  %v203 = vld [vmem:[%s1 + $0x2ac] sm:$0xf]
  %v204 = vld [vmem:[%s1 + $0x2b0] sm:$0xf]
  %v205 = vld [vmem:[%s1 + $0x2b4] sm:$0xf]
  %v206 = vld [vmem:[%s1 + $0x2b8] sm:$0xf]
  %v207 = vld [vmem:[%s1 + $0x2bc] sm:$0xf]
  %v208 = vld [vmem:[%s1 + $0x2c0] sm:$0xf]
  %v209 = vld [vmem:[%s1 + $0x2c4] sm:$0xf]
  %v210 = vld [vmem:[%s1 + $0x2c8] sm:$0xf]
  %v211 = vld [vmem:[%s1 + $0x2cc] sm:$0xf]
  %v212 = vld [vmem:[%s1 + $0x2d0] sm:$0xf]
  %v213 = vld [vmem:[%s1 + $0x2d4] sm:$0xf]
  %v214 = vld [vmem:[%s1 + $0x2d8] sm:$0xf]
  %v215 = vld [vmem:[%s1 + $0x2dc] sm:$0xf]
  %v216 = vld [vmem:[%s1 + $0x2e0] sm:$0xf]
  %v217 = vld [vmem:[%s1 + $0x2e4] sm:$0xf]
  %v218 = vld [vmem:[%s1 + $0x2e8] sm:$0xf]
  %v219 = vld [vmem:[%s1 + $0x2ec] sm:$0xf]
  %v220 = vld [vmem:[%s1 + $0x2f0] sm:$0xf]
  %v221 = vld [vmem:[%s1 + $0x2f4] sm:$0xf]
  %v222 = vld [vmem:[%s1 + $0x2f8] sm:$0xf]
  %v223 = vld [vmem:[%s1 + $0x2fc] sm:$0xf]
  %v224 = vld [vmem:[%s1 + $0x300] sm:$0xf]
  %v225 = vld [vmem:[%s1 + $0x304] sm:$0xf]
  %v226 = vld [vmem:[%s1 + $0x308] sm:$0xf]
  %v227 = vld [vmem:[%s1 + $0x30c] sm:$0xf]
  %v228 = vld [vmem:[%s1 + $0x310] sm:$0xf]
  %v229 = vld [vmem:[%s1 + $0x314] sm:$0xf]
  %v230 = vld [vmem:[%s1 + $0x318] sm:$0xf]
  %v231 = vld [vmem:[%s1 + $0x31c] sm:$0xf]
  %v232 = vld [vmem:[%s1 + $0x320] sm:$0xf]
  %v233 = vld [vmem:[%s1 + $0x324] sm:$0xf]
  %v234 = vld [vmem:[%s1 + $0x328] sm:$0xf]
  %v235 = vld [vmem:[%s1 + $0x32c] sm:$0xf]
  %v236 = vld [vmem:[%s1 + $0x330] sm:$0xf]
  %v237 = vld [vmem:[%s1 + $0x334] sm:$0xf]
  %v238 = vld [vmem:[%s1 + $0x338] sm:$0xf]
  %v239 = vld [vmem:[%s1 + $0x33c] sm:$0xf]
  %v240 = vld [vmem:[%s1 + $0x340] sm:$0xf]
  %v241 = vld [vmem:[%s1 + $0x344] sm:$0xf]
  %v242 = vld [vmem:[%s1 + $0x348] sm:$0xf]
  %v243 = vld [vmem:[%s1 + $0x34c] sm:$0xf]
  %v244 = vld [vmem:[%s1 + $0x350] sm:$0xf]
  %v245 = vld [vmem:[%s1 + $0x354] sm:$0xf]
  %v246 = vld [vmem:[%s1 + $0x358] sm:$0xf]
  %v247 = vld [vmem:[%s1 + $0x35c] sm:$0xf]
  %v248 = vld [vmem:[%s1 + $0x360] sm:$0xf]
  %v249 = vld [vmem:[%s1 + $0x364] sm:$0xf]
  %v250 = vld [vmem:[%s1 + $0x368] sm:$0xf]
  %v251 = vld [vmem:[%s1 + $0x36c] sm:$0xf]
  %v252 = vld [vmem:[%s1 + $0x370] sm:$0xf]
  %v253 = vld [vmem:[%s1 + $0x374] sm:$0xf]
  %v254 = vld [vmem:[%s1 + $0x378] sm:$0xf]
  %v255 = vld [vmem:[%s1 + $0x37c] sm:$0xf]
  %v256 = vld [vmem:[%s1 + $0x380] sm:$0xf]
  %v257 = vld [vmem:[%s1 + $0x384] sm:$0xf]
  %v258 = vld [vmem:[%s1 + $0x388] sm:$0xf]
  %v259 = vld [vmem:[%s1 + $0x38c] sm:$0xf]
  %v260 = vld [vmem:[%s1 + $0x390] sm:$0xf]
  %v261 = vld [vmem:[%s1 + $0x394] sm:$0xf]
  %v262 = vld [vmem:[%s1 + $0x398] sm:$0xf]
  %v263 = vld [vmem:[%s1 + $0x39c] sm:$0xf]
  %v264 = vld [vmem:[%s1 + $0x3a0] sm:$0xf]
  %v265 = vld [vmem:[%s1 + $0x3a4] sm:$0xf]
  %v266 = vld [vmem:[%s1 + $0x3a8] sm:$0xf]
  %v267 = vld [vmem:[%s1 + $0x3ac] sm:$0xf]
  %v268 = vld [vmem:[%s1 + $0x3b0] sm:$0xf]
  %v269 = vld [vmem:[%s1 + $0x3b4] sm:$0xf]
  %v270 = vld [vmem:[%s1 + $0x3b8] sm:$0xf]
  %v271 = vld [vmem:[%s1 + $0x3bc] sm:$0xf]
  %v272 = vld [vmem:[%s1 + $0x3c0] sm:$0xf]
  %v273 = vld [vmem:[%s1 + $0x3c4] sm:$0xf]
  %v274 = vld [vmem:[%s1 + $0x3c8] sm:$0xf]
  %v275 = vld [vmem:[%s1 + $0x3cc] sm:$0xf]
  %v276 = vld [vmem:[%s1 + $0x3d0] sm:$0xf]
  %v277 = vld [vmem:[%s1 + $0x3d4] sm:$0xf]
  %v278 = vld [vmem:[%s1 + $0x3d8] sm:$0xf]
  %v279 = vld [vmem:[%s1 + $0x3dc] sm:$0xf]
  %v280 = vld [vmem:[%s1 + $0x3e0] sm:$0xf]
  %v281 = vld [vmem:[%s1 + $0x3e4] sm:$0xf]
  %v282 = vld [vmem:[%s1 + $0x3e8] sm:$0xf]
  %v283 = vld [vmem:[%s1 + $0x3ec] sm:$0xf]
  %v284 = vld [vmem:[%s1 + $0x3f0] sm:$0xf]
  %v285 = vld [vmem:[%s1 + $0x3f4] sm:$0xf]
  %v286 = vld [vmem:[%s1 + $0x3f8] sm:$0xf]
  %v287 = vld [vmem:[%s1 + $0x3fc] sm:$0xf]
  %v288 = vld [vmem:[%s1 + $0x400] sm:$0xf]
  %v289 = vld [vmem:[%s1 + $0x404] sm:$0xf]
  %v290 = vld [vmem:[%s1 + $0x408] sm:$0xf]
  %v291 = vld [vmem:[%s1 + $0x40c] sm:$0xf]
  %v292 = vld [vmem:[%s1 + $0x410] sm:$0xf]
  %v293 = vld [vmem:[%s1 + $0x414] sm:$0xf]
  %v294 = vld [vmem:[%s1 + $0x418] sm:$0xf]
  %v295 = vld [vmem:[%s1 + $0x41c] sm:$0xf]
  %v296 = vld [vmem:[%s1 + $0x420] sm:$0xf]
  %v297 = vld [vmem:[%s1 + $0x424] sm:$0xf]
  %v298 = vld [vmem:[%s1 + $0x428] sm:$0xf]
  %v299 = vld [vmem:[%s1 + $0x42c] sm:$0xf]
  %v300 = vld [vmem:[%s1 + $0x430] sm:$0xf]
  %v301 = vld [vmem:[%s1 + $0x434] sm:$0xf]
  %v302 = vld [vmem:[%s1 + $0x438] sm:$0xf]
  %v303 = vld [vmem:[%s1 + $0x43c] sm:$0xf]
  %v304 = vld [vmem:[%s1 + $0x440] sm:$0xf]
  %v305 = vld [vmem:[%s1 + $0x444] sm:$0xf]
  %v306 = vld [vmem:[%s1 + $0x448] sm:$0xf]
  %v307 = vld [vmem:[%s1 + $0x44c] sm:$0xf]
  %v308 = vld [vmem:[%s1 + $0x450] sm:$0xf]
  %v309 = vld [vmem:[%s1 + $0x454] sm:$0xf]
  %v310 = vld [vmem:[%s1 + $0x458] sm:$0xf]
  %v311 = vld [vmem:[%s1 + $0x45c] sm:$0xf]
  %v312 = vld [vmem:[%s1 + $0x460] sm:$0xf]
  %v313 = vld [vmem:[%s1 + $0x464] sm:$0xf]
  %v314 = vld [vmem:[%s1 + $0x468] sm:$0xf]
  %v315 = vld [vmem:[%s1 + $0x46c] sm:$0xf]
  %v316 = vld [vmem:[%s1 + $0x470] sm:$0xf]
  %v317 = vld [vmem:[%s1 + $0x474] sm:$0xf]
  %v318 = vld [vmem:[%s1 + $0x478] sm:$0xf]
  %v319 = vld [vmem:[%s1 + $0x47c] sm:$0xf]
  %v320 = vld [vmem:[%s1 + $0x480] sm:$0xf]
  %v321 = vld [vmem:[%s1 + $0x484] sm:$0xf]
  %v322 = vld [vmem:[%s1 + $0x488] sm:$0xf]
  %v323 = vld [vmem:[%s1 + $0x48c] sm:$0xf]
  %v324 = vld [vmem:[%s1 + $0x490] sm:$0xf]
  %v325 = vld [vmem:[%s1 + $0x494] sm:$0xf]
  %v326 = vld [vmem:[%s1 + $0x498] sm:$0xf]
  %v327 = vld [vmem:[%s1 + $0x49c] sm:$0xf]
  %v328 = vld [vmem:[%s1 + $0x4a0] sm:$0xf]
  %v329 = vld [vmem:[%s1 + $0x4a4] sm:$0xf]
  %v330 = vld [vmem:[%s1 + $0x4a8] sm:$0xf]
  %v331 = vld [vmem:[%s1 + $0x4ac] sm:$0xf]
  %v332 = vld [vmem:[%s1 + $0x4b0] sm:$0xf]
  %v333 = vld [vmem:[%s1 + $0x4b4] sm:$0xf]
  %v334 = vld [vmem:[%s1 + $0x4b8] sm:$0xf]
  %v335 = vld [vmem:[%s1 + $0x4bc] sm:$0xf]
  %v336 = vld [vmem:[%s1 + $0x4c0] sm:$0xf]
  %v337 = vld [vmem:[%s1 + $0x4c4] sm:$0xf]
  %v338 = vld [vmem:[%s1 + $0x4c8] sm:$0xf]
  %v339 = vld [vmem:[%s1 + $0x4cc] sm:$0xf]
  %v340 = vld [vmem:[%s1 + $0x4d0] sm:$0xf]
  %v341 = vld [vmem:[%s1 + $0x4d4] sm:$0xf]
  %v342 = vld [vmem:[%s1 + $0x4d8] sm:$0xf]
  %v343 = vld [vmem:[%s1 + $0x4dc] sm:$0xf]
  %v344 = vld [vmem:[%s1 + $0x4e0] sm:$0xf]
  %v345 = vld [vmem:[%s1 + $0x4e4] sm:$0xf]
  %v346 = vld [vmem:[%s1 + $0x4e8] sm:$0xf]
  %v347 = vld [vmem:[%s1 + $0x4ec] sm:$0xf]
  %v348 = vld [vmem:[%s1 + $0x4f0] sm:$0xf]
  %v349 = vld [vmem:[%s1 + $0x4f4] sm:$0xf]
  %v350 = vld [vmem:[%s1 + $0x4f8] sm:$0xf]
  %v351 = vld [vmem:[%s1 + $0x4fc] sm:$0xf]
  %v352 = vld [vmem:[%s1 + $0x500] sm:$0xf]
  %v353 = vld [vmem:[%s1 + $0x504] sm:$0xf]
  %v354 = vld [vmem:[%s1 + $0x508] sm:$0xf]
  %v355 = vld [vmem:[%s1 + $0x50c] sm:$0xf]
  %v356 = vld [vmem:[%s1 + $0x510] sm:$0xf]
  %v357 = vld [vmem:[%s1 + $0x514] sm:$0xf]
  %v358 = vld [vmem:[%s1 + $0x518] sm:$0xf]
  %v359 = vld [vmem:[%s1 + $0x51c] sm:$0xf]
  %v360 = vld [vmem:[%s1 + $0x520] sm:$0xf]
  %v361 = vld [vmem:[%s1 + $0x524] sm:$0xf]
  %v362 = vld [vmem:[%s1 + $0x528] sm:$0xf]
  %v363 = vld [vmem:[%s1 + $0x52c] sm:$0xf]
  %v364 = vld [vmem:[%s1 + $0x530] sm:$0xf]
  %v365 = vld [vmem:[%s1 + $0x534] sm:$0xf]
  %v366 = vld [vmem:[%s1 + $0x538] sm:$0xf]
  %v367 = vld [vmem:[%s1 + $0x53c] sm:$0xf]
  %v368 = vld [vmem:[%s1 + $0x540] sm:$0xf]
  %v369 = vld [vmem:[%s1 + $0x544] sm:$0xf]
  %v370 = vld [vmem:[%s1 + $0x548] sm:$0xf]
  %v371 = vld [vmem:[%s1 + $0x54c] sm:$0xf]
  %v372 = vld [vmem:[%s1 + $0x550] sm:$0xf]
  %v373 = vld [vmem:[%s1 + $0x554] sm:$0xf]
  %v374 = vld [vmem:[%s1 + $0x558] sm:$0xf]
  %v375 = vld [vmem:[%s1 + $0x55c] sm:$0xf]
  %v376 = vld [vmem:[%s1 + $0x560] sm:$0xf]
  %v377 = vld [vmem:[%s1 + $0x564] sm:$0xf]
  %v378 = vld [vmem:[%s1 + $0x568] sm:$0xf]
  %v379 = vld [vmem:[%s1 + $0x56c] sm:$0xf]
  %v380 = vld [vmem:[%s1 + $0x570] sm:$0xf]
  %v381 = vld [vmem:[%s1 + $0x574] sm:$0xf]
  %v382 = vld [vmem:[%s1 + $0x578] sm:$0xf]
  %v383 = vld [vmem:[%s1 + $0x57c] sm:$0xf]
  %v384 = vld [vmem:[%s1 + $0x580] sm:$0xf]
  %v385 = vld [vmem:[%s1 + $0x584] sm:$0xf]
  %v386 = vld [vmem:[%s1 + $0x588] sm:$0xf]
  %v387 = vld [vmem:[%s1 + $0x58c] sm:$0xf]
  %v388 = vld [vmem:[%s1 + $0x590] sm:$0xf]
  %v389 = vld [vmem:[%s1 + $0x594] sm:$0xf]
  %v390 = vld [vmem:[%s1 + $0x598] sm:$0xf]
  %v391 = vld [vmem:[%s1 + $0x59c] sm:$0xf]
  %v392 = vld [vmem:[%s1 + $0x5a0] sm:$0xf]
  %v393 = vld [vmem:[%s1 + $0x5a4] sm:$0xf]
  %v394 = vld [vmem:[%s1 + $0x5a8] sm:$0xf]
  %v395 = vld [vmem:[%s1 + $0x5ac] sm:$0xf]
  %v396 = vld [vmem:[%s1 + $0x5b0] sm:$0xf]
  %v397 = vld [vmem:[%s1 + $0x5b4] sm:$0xf]
  %v398 = vld [vmem:[%s1 + $0x5b8] sm:$0xf]
  %v399 = vld [vmem:[%s1 + $0x5bc] sm:$0xf]
  %v400 = vld [vmem:[%s1 + $0x5c0] sm:$0xf]
  %v401 = vld [vmem:[%s1 + $0x5c4] sm:$0xf]
  %v402 = vld [vmem:[%s1 + $0x5c8] sm:$0xf]
  %v403 = vld [vmem:[%s1 + $0x5cc] sm:$0xf]
  %v404 = vld [vmem:[%s1 + $0x5d0] sm:$0xf]
  %v405 = vld [vmem:[%s1 + $0x5d4] sm:$0xf]
  %v406 = vld [vmem:[%s1 + $0x5d8] sm:$0xf]
  %v407 = vld [vmem:[%s1 + $0x5dc] sm:$0xf]
  %v408 = vld [vmem:[%s1 + $0x5e0] sm:$0xf]
  %v409 = vld [vmem:[%s1 + $0x5e4] sm:$0xf]
  %v410 = vld [vmem:[%s1 + $0x5e8] sm:$0xf]
  %v411 = vld [vmem:[%s1 + $0x5ec] sm:$0xf]
  %v412 = vld [vmem:[%s1 + $0x5f0] sm:$0xf]
  %v413 = vld [vmem:[%s1 + $0x5f4] sm:$0xf]
  %v414 = vld [vmem:[%s1 + $0x5f8] sm:$0xf]
  %v415 = vld [vmem:[%s1 + $0x5fc] sm:$0xf]
  %v416 = vld [vmem:[%s1 + $0x600] sm:$0xf]
  %v417 = vld [vmem:[%s1 + $0x604] sm:$0xf]
  %v418 = vld [vmem:[%s1 + $0x608] sm:$0xf]
  %v419 = vld [vmem:[%s1 + $0x60c] sm:$0xf]
  %v420 = vld [vmem:[%s1 + $0x610] sm:$0xf]
  %v421 = vld [vmem:[%s1 + $0x614] sm:$0xf]
  %v422 = vld [vmem:[%s1 + $0x618] sm:$0xf]
  %v423 = vld [vmem:[%s1 + $0x61c] sm:$0xf]
  %v424 = vld [vmem:[%s1 + $0x620] sm:$0xf]
  %v425 = vld [vmem:[%s1 + $0x624] sm:$0xf]
  %v426 = vld [vmem:[%s1 + $0x628] sm:$0xf]
  %v427 = vld [vmem:[%s1 + $0x62c] sm:$0xf]
  %v428 = vld [vmem:[%s1 + $0x630] sm:$0xf]
  %v429 = vld [vmem:[%s1 + $0x634] sm:$0xf]
  %v430 = vld [vmem:[%s1 + $0x638] sm:$0xf]
  %v431 = vld [vmem:[%s1 + $0x63c] sm:$0xf]
  %v432 = vld [vmem:[%s1 + $0x640] sm:$0xf]
  %v433 = vld [vmem:[%s1 + $0x644] sm:$0xf]
  %v434 = vld [vmem:[%s1 + $0x648] sm:$0xf]
  %v435 = vld [vmem:[%s1 + $0x64c] sm:$0xf]
  %v436 = vld [vmem:[%s1 + $0x650] sm:$0xf]
  %v437 = vld [vmem:[%s1 + $0x654] sm:$0xf]
  %v438 = vld [vmem:[%s1 + $0x658] sm:$0xf]
  %v439 = vld [vmem:[%s1 + $0x65c] sm:$0xf]
  %v440 = vld [vmem:[%s1 + $0x660] sm:$0xf]
  %v441 = vld [vmem:[%s1 + $0x664] sm:$0xf]
  %v442 = vld [vmem:[%s1 + $0x668] sm:$0xf]
  %v443 = vld [vmem:[%s1 + $0x66c] sm:$0xf]
  %v444 = vld [vmem:[%s1 + $0x670] sm:$0xf]
  %v445 = vld [vmem:[%s1 + $0x674] sm:$0xf]
  %v446 = vld [vmem:[%s1 + $0x678] sm:$0xf]
  %v447 = vld [vmem:[%s1 + $0x67c] sm:$0xf]
  %v448 = vld [vmem:[%s1 + $0x680] sm:$0xf]
  %v449 = vld [vmem:[%s1 + $0x684] sm:$0xf]
  %v450 = vld [vmem:[%s1 + $0x688] sm:$0xf]
  %v451 = vld [vmem:[%s1 + $0x68c] sm:$0xf]
  %v452 = vld [vmem:[%s1 + $0x690] sm:$0xf]
  %v453 = vld [vmem:[%s1 + $0x694] sm:$0xf]
  %v454 = vld [vmem:[%s1 + $0x698] sm:$0xf]
  %v455 = vld [vmem:[%s1 + $0x69c] sm:$0xf]
  %v456 = vld [vmem:[%s1 + $0x6a0] sm:$0xf]
  %v457 = vld [vmem:[%s1 + $0x6a4] sm:$0xf]
  %v458 = vld [vmem:[%s1 + $0x6a8] sm:$0xf]
  %v459 = vld [vmem:[%s1 + $0x6ac] sm:$0xf]
  %v460 = vld [vmem:[%s1 + $0x6b0] sm:$0xf]
  %v461 = vld [vmem:[%s1 + $0x6b4] sm:$0xf]
  %v462 = vld [vmem:[%s1 + $0x6b8] sm:$0xf]
  %v463 = vld [vmem:[%s1 + $0x6bc] sm:$0xf]
  %v464 = vld [vmem:[%s1 + $0x6c0] sm:$0xf]
  %v465 = vld [vmem:[%s1 + $0x6c4] sm:$0xf]
  %v466 = vld [vmem:[%s1 + $0x6c8] sm:$0xf]
  %v467 = vld [vmem:[%s1 + $0x6cc] sm:$0xf]
  %v468 = vld [vmem:[%s1 + $0x6d0] sm:$0xf]
  %v469 = vld [vmem:[%s1 + $0x6d4] sm:$0xf]
  %v470 = vld [vmem:[%s1 + $0x6d8] sm:$0xf]
  %v471 = vld [vmem:[%s1 + $0x6dc] sm:$0xf]
  %v472 = vld [vmem:[%s1 + $0x6e0] sm:$0xf]
  %v473 = vld [vmem:[%s1 + $0x6e4] sm:$0xf]
  %v474 = vld [vmem:[%s1 + $0x6e8] sm:$0xf]
  %v475 = vld [vmem:[%s1 + $0x6ec] sm:$0xf]
  %v476 = vld [vmem:[%s1 + $0x6f0] sm:$0xf]
  %v477 = vld [vmem:[%s1 + $0x6f4] sm:$0xf]
  %v478 = vld [vmem:[%s1 + $0x6f8] sm:$0xf]
  %v479 = vld [vmem:[%s1 + $0x6fc] sm:$0xf]
  %v480 = vld [vmem:[%s1 + $0x700] sm:$0xf]
  %v481 = vld [vmem:[%s1 + $0x704] sm:$0xf]
  %v482 = vld [vmem:[%s1 + $0x708] sm:$0xf]
  %v483 = vld [vmem:[%s1 + $0x70c] sm:$0xf]
  %v484 = vld [vmem:[%s1 + $0x710] sm:$0xf]
  %v485 = vld [vmem:[%s1 + $0x714] sm:$0xf]
  %v486 = vld [vmem:[%s1 + $0x718] sm:$0xf]
  %v487 = vld [vmem:[%s1 + $0x71c] sm:$0xf]
  %v488 = vld [vmem:[%s1 + $0x720] sm:$0xf]
  %v489 = vld [vmem:[%s1 + $0x724] sm:$0xf]
  %v490 = vld [vmem:[%s1 + $0x728] sm:$0xf]
  %v491 = vld [vmem:[%s1 + $0x72c] sm:$0xf]
  %v492 = vld [vmem:[%s1 + $0x730] sm:$0xf]
  %v493 = vld [vmem:[%s1 + $0x734] sm:$0xf]
  %v494 = vld [vmem:[%s1 + $0x738] sm:$0xf]
  %v495 = vld [vmem:[%s1 + $0x73c] sm:$0xf]
  %v496 = vld [vmem:[%s1 + $0x740] sm:$0xf]
  %v497 = vld [vmem:[%s1 + $0x744] sm:$0xf]
  %v498 = vld [vmem:[%s1 + $0x748] sm:$0xf]
  %v499 = vld [vmem:[%s1 + $0x74c] sm:$0xf]
  %v500 = vld [vmem:[%s1 + $0x750] sm:$0xf]
  %v501 = vld [vmem:[%s1 + $0x754] sm:$0xf]
  %v502 = vld [vmem:[%s1 + $0x758] sm:$0xf]
  %v503 = vld [vmem:[%s1 + $0x75c] sm:$0xf]
  %v504 = vld [vmem:[%s1 + $0x760] sm:$0xf]
  %v505 = vld [vmem:[%s1 + $0x764] sm:$0xf]
  %v506 = vld [vmem:[%s1 + $0x768] sm:$0xf]
  %v507 = vld [vmem:[%s1 + $0x76c] sm:$0xf]
  %v508 = vld [vmem:[%s1 + $0x770] sm:$0xf]
  %v509 = vld [vmem:[%s1 + $0x774] sm:$0xf]
  %v510 = vld [vmem:[%s1 + $0x778] sm:$0xf]
  %v511 = vld [vmem:[%s1 + $0x77c] sm:$0xf]
  %v512 = vld [vmem:[%s1 + $0x780] sm:$0xf]
  %v513 = vld [vmem:[%s1 + $0x784] sm:$0xf]
  %v514 = vld [vmem:[%s1 + $0x788] sm:$0xf]
  %v515 = vld [vmem:[%s1 + $0x78c] sm:$0xf]
  %v516 = vld [vmem:[%s1 + $0x790] sm:$0xf]
  %v517 = vld [vmem:[%s1 + $0x794] sm:$0xf]
  %v518 = vld [vmem:[%s1 + $0x798] sm:$0xf]
  %v519 = vld [vmem:[%s1 + $0x79c] sm:$0xf]
  %v520 = vld [vmem:[%s1 + $0x7a0] sm:$0xf]
  %v521 = vld [vmem:[%s1 + $0x7a4] sm:$0xf]
  %v522 = vld [vmem:[%s1 + $0x7a8] sm:$0xf]
  %v523 = vld [vmem:[%s1 + $0x7ac] sm:$0xf]
  %v524 = vld [vmem:[%s1 + $0x7b0] sm:$0xf]
  %v525 = vld [vmem:[%s1 + $0x7b4] sm:$0xf]
  %v526 = vld [vmem:[%s1 + $0x7b8] sm:$0xf]
  %v527 = vld [vmem:[%s1 + $0x7bc] sm:$0xf]
  %v528 = vld [vmem:[%s1 + $0x7c0] sm:$0xf]
  %v529 = vld [vmem:[%s1 + $0x7c4] sm:$0xf]
  %v530 = vld [vmem:[%s1 + $0x7c8] sm:$0xf]
  %v531 = vld [vmem:[%s1 + $0x7cc] sm:$0xf]
  %v532 = vld [vmem:[%s1 + $0x7d0] sm:$0xf]
  %v533 = vld [vmem:[%s1 + $0x7d4] sm:$0xf]
  %v534 = vld [vmem:[%s1 + $0x7d8] sm:$0xf]
  %v535 = vld [vmem:[%s1 + $0x7dc] sm:$0xf]
  %v536 = vld [vmem:[%s1 + $0x7e0] sm:$0xf]
  %v537 = vld [vmem:[%s1 + $0x7e4] sm:$0xf]
  %v538 = vld [vmem:[%s1 + $0x7e8] sm:$0xf]
  %v539 = vld [vmem:[%s1 + $0x7ec] sm:$0xf]
  %v540 = vld [vmem:[%s1 + $0x7f0] sm:$0xf]
  %v541 = vld [vmem:[%s1 + $0x7f4] sm:$0xf]
  %v542 = vld [vmem:[%s1 + $0x7f8] sm:$0xf]
  %v543 = vld [vmem:[%s1 + $0x7fc] sm:$0xf]
  %v544 = vld [vmem:[%s1 + $0x800] sm:$0xf]
  %v545 = vld [vmem:[%s1 + $0x804] sm:$0xf]
  %v546 = vld [vmem:[%s1 + $0x808] sm:$0xf]
  %v547 = vld [vmem:[%s1 + $0x80c] sm:$0xf]
  %v548 = vld [vmem:[%s1 + $0x810] sm:$0xf]
  %v549 = vld [vmem:[%s1 + $0x814] sm:$0xf]
  %v550 = vld [vmem:[%s1 + $0x818] sm:$0xf]
  %v551 = vld [vmem:[%s1 + $0x81c] sm:$0xf]
  %v552 = vld [vmem:[%s1 + $0x820] sm:$0xf]
  %v553 = vld [vmem:[%s1 + $0x824] sm:$0xf]
  %v554 = vld [vmem:[%s1 + $0x828] sm:$0xf]
  %v555 = vld [vmem:[%s1 + $0x82c] sm:$0xf]
  %v556 = vld [vmem:[%s1 + $0x830] sm:$0xf]
  %v557 = vld [vmem:[%s1 + $0x834] sm:$0xf]
  %v558 = vld [vmem:[%s1 + $0x838] sm:$0xf]
  %v559 = vld [vmem:[%s1 + $0x83c] sm:$0xf]
  %v560 = vld [vmem:[%s1 + $0x840] sm:$0xf]
  %v561 = vld [vmem:[%s1 + $0x844] sm:$0xf]
  %v562 = vld [vmem:[%s1 + $0x848] sm:$0xf]
  %v563 = vld [vmem:[%s1 + $0x84c] sm:$0xf]
  %v564 = vld [vmem:[%s1 + $0x850] sm:$0xf]
  %v565 = vld [vmem:[%s1 + $0x854] sm:$0xf]
  %v566 = vld [vmem:[%s1 + $0x858] sm:$0xf]
  %v567 = vld [vmem:[%s1 + $0x85c] sm:$0xf]
  %v568 = vld [vmem:[%s1 + $0x860] sm:$0xf]
  %v569 = vld [vmem:[%s1 + $0x864] sm:$0xf]
  %v570 = vld [vmem:[%s1 + $0x868] sm:$0xf]
  %v571 = vld [vmem:[%s1 + $0x86c] sm:$0xf]
  %v572 = vld [vmem:[%s1 + $0x870] sm:$0xf]
  %v573 = vld [vmem:[%s1 + $0x874] sm:$0xf]
  %v574 = vld [vmem:[%s1 + $0x878] sm:$0xf]
  %v575 = vld [vmem:[%s1 + $0x87c] sm:$0xf]
  %v576 = vld [vmem:[%s1 + $0x880] sm:$0xf]
  %v577 = vld [vmem:[%s1 + $0x884] sm:$0xf]
  %v578 = vld [vmem:[%s1 + $0x888] sm:$0xf]
  %v579 = vld [vmem:[%s1 + $0x88c] sm:$0xf]
  %v580 = vld [vmem:[%s1 + $0x890] sm:$0xf]
  %v581 = vld [vmem:[%s1 + $0x894] sm:$0xf]
  %v582 = vld [vmem:[%s1 + $0x898] sm:$0xf]
  %v583 = vld [vmem:[%s1 + $0x89c] sm:$0xf]
  %v584 = vld [vmem:[%s1 + $0x8a0] sm:$0xf]
  %v585 = vld [vmem:[%s1 + $0x8a4] sm:$0xf]
  %v586 = vld [vmem:[%s1 + $0x8a8] sm:$0xf]
  %v587 = vld [vmem:[%s1 + $0x8ac] sm:$0xf]
  %v588 = vld [vmem:[%s1 + $0x8b0] sm:$0xf]
  %v589 = vld [vmem:[%s1 + $0x8b4] sm:$0xf]
  %v590 = vld [vmem:[%s1 + $0x8b8] sm:$0xf]
  %v591 = vld [vmem:[%s1 + $0x8bc] sm:$0xf]
  %v592 = vld [vmem:[%s1 + $0x8c0] sm:$0xf]
  %v593 = vld [vmem:[%s1 + $0x8c4] sm:$0xf]
  %v594 = vld [vmem:[%s1 + $0x8c8] sm:$0xf]
  %v595 = vld [vmem:[%s1 + $0x8cc] sm:$0xf]
  %v596 = vld [vmem:[%s1 + $0x8d0] sm:$0xf]
  %v597 = vld [vmem:[%s1 + $0x8d4] sm:$0xf]
  %v598 = vld [vmem:[%s1 + $0x8d8] sm:$0xf]
  %v599 = vld [vmem:[%s1 + $0x8dc] sm:$0xf]
  %v600 = vld [vmem:[%s1 + $0x8e0] sm:$0xf]
  %v601 = vld [vmem:[%s1 + $0x8e4] sm:$0xf]
  %v602 = vld [vmem:[%s1 + $0x8e8] sm:$0xf]
  %v603 = vld [vmem:[%s1 + $0x8ec] sm:$0xf]
  %v604 = vld [vmem:[%s1 + $0x8f0] sm:$0xf]
  %v605 = vld [vmem:[%s1 + $0x8f4] sm:$0xf]
  %v606 = vld [vmem:[%s1 + $0x8f8] sm:$0xf]
  %v607 = vld [vmem:[%s1 + $0x8fc] sm:$0xf]
  %v608 = vld [vmem:[%s1 + $0x900] sm:$0xf]
  %v609 = vld [vmem:[%s1 + $0x904] sm:$0xf]
  %v610 = vld [vmem:[%s1 + $0x908] sm:$0xf]
  %v611 = vld [vmem:[%s1 + $0x90c] sm:$0xf]
  %v612 = vld [vmem:[%s1 + $0x910] sm:$0xf]
  %v613 = vld [vmem:[%s1 + $0x914] sm:$0xf]
  %v614 = vld [vmem:[%s1 + $0x918] sm:$0xf]
  %v615 = vld [vmem:[%s1 + $0x91c] sm:$0xf]
  %v616 = vld [vmem:[%s1 + $0x920] sm:$0xf]
  %v617 = vld [vmem:[%s1 + $0x924] sm:$0xf]
  %v618 = vld [vmem:[%s1 + $0x928] sm:$0xf]
  %v619 = vld [vmem:[%s1 + $0x92c] sm:$0xf]
  %v620 = vld [vmem:[%s1 + $0x930] sm:$0xf]
  %v621 = vld [vmem:[%s1 + $0x934] sm:$0xf]
  %v622 = vld [vmem:[%s1 + $0x938] sm:$0xf]
  %v623 = vld [vmem:[%s1 + $0x93c] sm:$0xf]
  %v624 = vld [vmem:[%s1 + $0x940] sm:$0xf]
  %v625 = vld [vmem:[%s1 + $0x944] sm:$0xf]
  %v626 = vld [vmem:[%s1 + $0x948] sm:$0xf]
  %v627 = vld [vmem:[%s1 + $0x94c] sm:$0xf]
  %v628 = vld [vmem:[%s1 + $0x950] sm:$0xf]
  %v629 = vld [vmem:[%s1 + $0x954] sm:$0xf]
  %v630 = vld [vmem:[%s1 + $0x958] sm:$0xf]
  %v631 = vld [vmem:[%s1 + $0x95c] sm:$0xf]
  %v632 = vld [vmem:[%s1 + $0x960] sm:$0xf]
  %v633 = vld [vmem:[%s1 + $0x964] sm:$0xf]
  %v634 = vld [vmem:[%s1 + $0x968] sm:$0xf]
  %v635 = vld [vmem:[%s1 + $0x96c] sm:$0xf]
  %v636 = vld [vmem:[%s1 + $0x970] sm:$0xf]
  %v637 = vld [vmem:[%s1 + $0x974] sm:$0xf]
  %v638 = vld [vmem:[%s1 + $0x978] sm:$0xf]
  %v639 = vld [vmem:[%s1 + $0x97c] sm:$0xf]
  %v640 = vld [vmem:[%s1 + $0x980] sm:$0xf]
  %v641 = vld [vmem:[%s1 + $0x984] sm:$0xf]
  %v642 = vld [vmem:[%s1 + $0x988] sm:$0xf]
  %v643 = vld [vmem:[%s1 + $0x98c] sm:$0xf]
  %v644 = vld [vmem:[%s1 + $0x990] sm:$0xf]
  %v645 = vld [vmem:[%s1 + $0x994] sm:$0xf]
  %v646 = vld [vmem:[%s1 + $0x998] sm:$0xf]
  %v647 = vld [vmem:[%s1 + $0x99c] sm:$0xf]
  %v648 = vld [vmem:[%s1 + $0x9a0] sm:$0xf]
  %v649 = vld [vmem:[%s1 + $0x9a4] sm:$0xf]
  %v650 = vld [vmem:[%s1 + $0x9a8] sm:$0xf]
  %v651 = vld [vmem:[%s1 + $0x9ac] sm:$0xf]
  %v652 = vld [vmem:[%s1 + $0x9b0] sm:$0xf]
  %v653 = vld [vmem:[%s1 + $0x9b4] sm:$0xf]
  %v654 = vld [vmem:[%s1 + $0x9b8] sm:$0xf]
  %v655 = vld [vmem:[%s1 + $0x9bc] sm:$0xf]
  %v656 = vld [vmem:[%s1 + $0x9c0] sm:$0xf]
  %v657 = vld [vmem:[%s1 + $0x9c4] sm:$0xf]
  %v658 = vld [vmem:[%s1 + $0x9c8] sm:$0xf]
  %v659 = vld [vmem:[%s1 + $0x9cc] sm:$0xf]
  %v660 = vld [vmem:[%s1 + $0x9d0] sm:$0xf]
  %v661 = vld [vmem:[%s1 + $0x9d4] sm:$0xf]
  %v662 = vld [vmem:[%s1 + $0x9d8] sm:$0xf]
  %v663 = vld [vmem:[%s1 + $0x9dc] sm:$0xf]
  %v664 = vld [vmem:[%s1 + $0x9e0] sm:$0xf]
  %v665 = vld [vmem:[%s1 + $0x9e4] sm:$0xf]
  %v666 = vld [vmem:[%s1 + $0x9e8] sm:$0xf]
  %v667 = vld [vmem:[%s1 + $0x9ec] sm:$0xf]
  %v668 = vld [vmem:[%s1 + $0x9f0] sm:$0xf]
  %v669 = vld [vmem:[%s1 + $0x9f4] sm:$0xf]
  %v670 = vld [vmem:[%s1 + $0x9f8] sm:$0xf]
  %v671 = vld [vmem:[%s1 + $0x9fc] sm:$0xf]
  %v672 = vld [vmem:[%s2] sm:$0x1]
  %v674 = vlaneseq
  %v675 = vshrl.u32 %v674, 7
  %v676 = vsub.s32 0, %v675
  %v677 = vrot.slane %v672, %v676
  %v684 = vcombine.high %v27, %v27
  %v686 = vunpack.c.l.s4 1966171168
  %v687 = vunpack.c.0.s8 %v686
  %v688 = vlaneseq
  %v689 = vshrl.u32 %v688, 7
  %v690 = vsub.s32 %v687, %v689
  %v691 = vrot.slane %v27, %v690
  %v693 = vunpack.c.l.s4 1966171168
  %v694 = vunpack.c.0.s8 %v693
  %v695 = vlaneseq
  %v696 = vshrl.u32 %v695, 7
  %v697 = vsub.s32 %v694, %v696
  %v698 = vrot.slane %v684, %v697
  %v699 = vcombine.high %v691, %v691
  %v700 = vcombine.high %v698, %v698
  %v702 = vunpack.c.l.s4 1966171168
  %v703 = vunpack.c.0.s8 %v702
  %v704 = vlaneseq
  %v705 = vshrl.u32 %v704, 7
  %v706 = vsub.s32 %v703, %v705
  %v707 = vrot.slane %v691, %v706
  %v709 = vunpack.c.l.s4 1966171168
  %v710 = vunpack.c.0.s8 %v709
  %v711 = vlaneseq
  %v712 = vshrl.u32 %v711, 7
  %v713 = vsub.s32 %v710, %v712
  %v714 = vrot.slane %v698, %v713
  %v716 = vunpack.c.l.s4 1966171168
  %v717 = vunpack.c.0.s8 %v716
  %v718 = vlaneseq
  %v719 = vshrl.u32 %v718, 7
  %v720 = vsub.s32 %v717, %v719
  %v721 = vrot.slane %v699, %v720
  %v723 = vunpack.c.l.s4 1966171168
  %v724 = vunpack.c.0.s8 %v723
  %v725 = vlaneseq
  %v726 = vshrl.u32 %v725, 7
  %v727 = vsub.s32 %v724, %v726
  %v728 = vrot.slane %v700, %v727
  %v729 = vcombine.high %v707, %v707
  %v730 = vcombine.high %v714, %v714
  %v731 = vcombine.high %v721, %v721
  %v732 = vcombine.high %v728, %v728
  %v733 = vcombine.high %v28, %v28
  %v735 = vunpack.c.l.s4 1966171168
  %v736 = vunpack.c.0.s8 %v735
  %v737 = vlaneseq
  %v738 = vshrl.u32 %v737, 7
  %v739 = vsub.s32 %v736, %v738
  %v740 = vrot.slane %v28, %v739
  %v742 = vunpack.c.l.s4 1966171168
  %v743 = vunpack.c.0.s8 %v742
  %v744 = vlaneseq
  %v745 = vshrl.u32 %v744, 7
  %v746 = vsub.s32 %v743, %v745
  %v747 = vrot.slane %v733, %v746
  %v748 = vcombine.high %v740, %v740
  %v749 = vcombine.high %v747, %v747
  %v751 = vunpack.c.l.s4 1966171168
  %v752 = vunpack.c.0.s8 %v751
  %v753 = vlaneseq
  %v754 = vshrl.u32 %v753, 7
  %v755 = vsub.s32 %v752, %v754
  %v756 = vrot.slane %v740, %v755
  %v758 = vunpack.c.l.s4 1966171168
  %v759 = vunpack.c.0.s8 %v758
  %v760 = vlaneseq
  %v761 = vshrl.u32 %v760, 7
  %v762 = vsub.s32 %v759, %v761
  %v763 = vrot.slane %v747, %v762
  %v765 = vunpack.c.l.s4 1966171168
  %v766 = vunpack.c.0.s8 %v765
  %v767 = vlaneseq
  %v768 = vshrl.u32 %v767, 7
  %v769 = vsub.s32 %v766, %v768
  %v770 = vrot.slane %v748, %v769
  %v772 = vunpack.c.l.s4 1966171168
  %v773 = vunpack.c.0.s8 %v772
  %v774 = vlaneseq
  %v775 = vshrl.u32 %v774, 7
  %v776 = vsub.s32 %v773, %v775
  %v777 = vrot.slane %v749, %v776
  %v778 = vcombine.high %v756, %v756
  %v779 = vcombine.high %v763, %v763
  %v780 = vcombine.high %v770, %v770
  %v781 = vcombine.high %v777, %v777
  %v782 = vcombine.high %v29, %v29
  %v784 = vunpack.c.l.s4 1966171168
  %v785 = vunpack.c.0.s8 %v784
  %v786 = vlaneseq
  %v787 = vshrl.u32 %v786, 7
  %v788 = vsub.s32 %v785, %v787
  %v789 = vrot.slane %v29, %v788
  %v791 = vunpack.c.l.s4 1966171168
  %v792 = vunpack.c.0.s8 %v791
  %v793 = vlaneseq
  %v794 = vshrl.u32 %v793, 7
  %v795 = vsub.s32 %v792, %v794
  %v796 = vrot.slane %v782, %v795
  %v797 = vcombine.high %v789, %v789
  %v798 = vcombine.high %v796, %v796
  %v800 = vunpack.c.l.s4 1966171168
  %v801 = vunpack.c.0.s8 %v800
  %v802 = vlaneseq
  %v803 = vshrl.u32 %v802, 7
  %v804 = vsub.s32 %v801, %v803
  %v805 = vrot.slane %v789, %v804
  %v807 = vunpack.c.l.s4 1966171168
  %v808 = vunpack.c.0.s8 %v807
  %v809 = vlaneseq
  %v810 = vshrl.u32 %v809, 7
  %v811 = vsub.s32 %v808, %v810
  %v812 = vrot.slane %v796, %v811
  %v814 = vunpack.c.l.s4 1966171168
  %v815 = vunpack.c.0.s8 %v814
  %v816 = vlaneseq
  %v817 = vshrl.u32 %v816, 7
  %v818 = vsub.s32 %v815, %v817
  %v819 = vrot.slane %v797, %v818
  %v821 = vunpack.c.l.s4 1966171168
  %v822 = vunpack.c.0.s8 %v821
  %v823 = vlaneseq
  %v824 = vshrl.u32 %v823, 7
  %v825 = vsub.s32 %v822, %v824
  %v826 = vrot.slane %v798, %v825
  %v827 = vcombine.high %v805, %v805
  %v828 = vcombine.high %v812, %v812
  %v829 = vcombine.high %v819, %v819
  %v830 = vcombine.high %v826, %v826
  %v831 = vcombine.high %v30, %v30
  %v833 = vunpack.c.l.s4 1966171168
  %v834 = vunpack.c.0.s8 %v833
  %v835 = vlaneseq
  %v836 = vshrl.u32 %v835, 7
  %v837 = vsub.s32 %v834, %v836
  %v838 = vrot.slane %v30, %v837
  %v840 = vunpack.c.l.s4 1966171168
  %v841 = vunpack.c.0.s8 %v840
  %v842 = vlaneseq
  %v843 = vshrl.u32 %v842, 7
  %v844 = vsub.s32 %v841, %v843
  %v845 = vrot.slane %v831, %v844
  %v846 = vcombine.high %v838, %v838
  %v847 = vcombine.high %v845, %v845
  %v849 = vunpack.c.l.s4 1966171168
  %v850 = vunpack.c.0.s8 %v849
  %v851 = vlaneseq
  %v852 = vshrl.u32 %v851, 7
  %v853 = vsub.s32 %v850, %v852
  %v854 = vrot.slane %v838, %v853
  %v856 = vunpack.c.l.s4 1966171168
  %v857 = vunpack.c.0.s8 %v856
  %v858 = vlaneseq
  %v859 = vshrl.u32 %v858, 7
  %v860 = vsub.s32 %v857, %v859
  %v861 = vrot.slane %v845, %v860
  %v863 = vunpack.c.l.s4 1966171168
  %v864 = vunpack.c.0.s8 %v863
  %v865 = vlaneseq
  %v866 = vshrl.u32 %v865, 7
  %v867 = vsub.s32 %v864, %v866
  %v868 = vrot.slane %v846, %v867
  %v870 = vunpack.c.l.s4 1966171168
  %v871 = vunpack.c.0.s8 %v870
  %v872 = vlaneseq
  %v873 = vshrl.u32 %v872, 7
  %v874 = vsub.s32 %v871, %v873
  %v875 = vrot.slane %v847, %v874
  %v876 = vcombine.high %v854, %v854
  %v877 = vcombine.high %v861, %v861
  %v878 = vcombine.high %v868, %v868
  %v879 = vcombine.high %v875, %v875
  %v880 = vcombine.high %v31, %v31
  %v882 = vunpack.c.l.s4 1966171168
  %v883 = vunpack.c.0.s8 %v882
  %v884 = vlaneseq
  %v885 = vshrl.u32 %v884, 7
  %v886 = vsub.s32 %v883, %v885
  %v887 = vrot.slane %v31, %v886
  %v889 = vunpack.c.l.s4 1966171168
  %v890 = vunpack.c.0.s8 %v889
  %v891 = vlaneseq
  %v892 = vshrl.u32 %v891, 7
  %v893 = vsub.s32 %v890, %v892
  %v894 = vrot.slane %v880, %v893
  %v895 = vcombine.high %v887, %v887
  %v896 = vcombine.high %v894, %v894
  %v898 = vunpack.c.l.s4 1966171168
  %v899 = vunpack.c.0.s8 %v898
  %v900 = vlaneseq
  %v901 = vshrl.u32 %v900, 7
  %v902 = vsub.s32 %v899, %v901
  %v903 = vrot.slane %v887, %v902
  %v905 = vunpack.c.l.s4 1966171168
  %v906 = vunpack.c.0.s8 %v905
  %v907 = vlaneseq
  %v908 = vshrl.u32 %v907, 7
  %v909 = vsub.s32 %v906, %v908
  %v910 = vrot.slane %v894, %v909
  %v912 = vunpack.c.l.s4 1966171168
  %v913 = vunpack.c.0.s8 %v912
  %v914 = vlaneseq
  %v915 = vshrl.u32 %v914, 7
  %v916 = vsub.s32 %v913, %v915
  %v917 = vrot.slane %v895, %v916
  %v919 = vunpack.c.l.s4 1966171168
  %v920 = vunpack.c.0.s8 %v919
  %v921 = vlaneseq
  %v922 = vshrl.u32 %v921, 7
  %v923 = vsub.s32 %v920, %v922
  %v924 = vrot.slane %v896, %v923
  %v925 = vcombine.high %v903, %v903
  %v926 = vcombine.high %v910, %v910
  %v927 = vcombine.high %v917, %v917
  %v928 = vcombine.high %v924, %v924
  %v1609 = vunpack.c.l.b16 %v32
  %v1610 = vunpack.c.l.b16 %v33
  %v1611 = vunpack.c.l.b16 %v34
  %v1612 = vunpack.c.l.b16 %v35
  %v1613 = vunpack.c.l.b16 %v36
  %v1614 = vunpack.c.l.b16 %v37
  %v1615 = vunpack.c.l.b16 %v38
  %v1616 = vunpack.c.l.b16 %v39
  %v1617 = vunpack.c.l.b16 %v40
  %v1618 = vunpack.c.l.b16 %v41
  %v1619 = vunpack.c.l.b16 %v42
  %v1620 = vunpack.c.l.b16 %v43
  %v1621 = vunpack.c.l.b16 %v44
  %v1622 = vunpack.c.l.b16 %v45
  %v1623 = vunpack.c.l.b16 %v46
  %v1624 = vunpack.c.l.b16 %v47
  %v1625 = vunpack.c.l.b16 %v48
  %v1626 = vunpack.c.l.b16 %v49
  %v1627 = vunpack.c.l.b16 %v50
  %v1628 = vunpack.c.l.b16 %v51
  %v1629 = vunpack.c.l.b16 %v52
  %v1630 = vunpack.c.l.b16 %v53
  %v1631 = vunpack.c.l.b16 %v54
  %v1632 = vunpack.c.l.b16 %v55
  %v1633 = vunpack.c.l.b16 %v56
  %v1634 = vunpack.c.l.b16 %v57
  %v1635 = vunpack.c.l.b16 %v58
  %v1636 = vunpack.c.l.b16 %v59
  %v1637 = vunpack.c.l.b16 %v60
  %v1638 = vunpack.c.l.b16 %v61
  %v1639 = vunpack.c.l.b16 %v62
  %v1640 = vunpack.c.l.b16 %v63
  %v1641 = vunpack.c.l.b16 %v64
  %v1642 = vunpack.c.l.b16 %v65
  %v1643 = vunpack.c.l.b16 %v66
  %v1644 = vunpack.c.l.b16 %v67
  %v1645 = vunpack.c.l.b16 %v68
  %v1646 = vunpack.c.l.b16 %v69
  %v1647 = vunpack.c.l.b16 %v70
  %v1648 = vunpack.c.l.b16 %v71
  %v1649 = vunpack.c.l.b16 %v72
  %v1650 = vunpack.c.l.b16 %v73
  %v1651 = vunpack.c.l.b16 %v74
  %v1652 = vunpack.c.l.b16 %v75
  %v1653 = vunpack.c.l.b16 %v76
  %v1654 = vunpack.c.l.b16 %v77
  %v1655 = vunpack.c.l.b16 %v78
  %v1656 = vunpack.c.l.b16 %v79
  %v1657 = vunpack.c.l.b16 %v80
  %v1658 = vunpack.c.l.b16 %v81
  %v1659 = vunpack.c.l.b16 %v82
  %v1660 = vunpack.c.l.b16 %v83
  %v1661 = vunpack.c.l.b16 %v84
  %v1662 = vunpack.c.l.b16 %v85
  %v1663 = vunpack.c.l.b16 %v86
  %v1664 = vunpack.c.l.b16 %v87
  %v1665 = vunpack.c.l.b16 %v88
  %v1666 = vunpack.c.l.b16 %v89
  %v1667 = vunpack.c.l.b16 %v90
  %v1668 = vunpack.c.l.b16 %v91
  %v1669 = vunpack.c.l.b16 %v92
  %v1670 = vunpack.c.l.b16 %v93
  %v1671 = vunpack.c.l.b16 %v94
  %v1672 = vunpack.c.l.b16 %v95
  %v1673 = vunpack.c.l.b16 %v96
  %v1674 = vunpack.c.l.b16 %v97
  %v1675 = vunpack.c.l.b16 %v98
  %v1676 = vunpack.c.l.b16 %v99
  %v1677 = vunpack.c.l.b16 %v100
  %v1678 = vunpack.c.l.b16 %v101
  %v1679 = vunpack.c.l.b16 %v102
  %v1680 = vunpack.c.l.b16 %v103
  %v1681 = vunpack.c.l.b16 %v104
  %v1682 = vunpack.c.l.b16 %v105
  %v1683 = vunpack.c.l.b16 %v106
  %v1684 = vunpack.c.l.b16 %v107
  %v1685 = vunpack.c.l.b16 %v108
  %v1686 = vunpack.c.l.b16 %v109
  %v1687 = vunpack.c.l.b16 %v110
  %v1688 = vunpack.c.l.b16 %v111
  %v1689 = vunpack.c.l.b16 %v112
  %v1690 = vunpack.c.l.b16 %v113
  %v1691 = vunpack.c.l.b16 %v114
  %v1692 = vunpack.c.l.b16 %v115
  %v1693 = vunpack.c.l.b16 %v116
  %v1694 = vunpack.c.l.b16 %v117
  %v1695 = vunpack.c.l.b16 %v118
  %v1696 = vunpack.c.l.b16 %v119
  %v1697 = vunpack.c.l.b16 %v120
  %v1698 = vunpack.c.l.b16 %v121
  %v1699 = vunpack.c.l.b16 %v122
  %v1700 = vunpack.c.l.b16 %v123
  %v1701 = vunpack.c.l.b16 %v124
  %v1702 = vunpack.c.l.b16 %v125
  %v1703 = vunpack.c.l.b16 %v126
  %v1704 = vunpack.c.l.b16 %v127
  %v1705 = vunpack.c.l.b16 %v128
  %v1706 = vunpack.c.l.b16 %v129
  %v1707 = vunpack.c.l.b16 %v130
  %v1708 = vunpack.c.l.b16 %v131
  %v1709 = vunpack.c.l.b16 %v132
  %v1710 = vunpack.c.l.b16 %v133
  %v1711 = vunpack.c.l.b16 %v134
  %v1712 = vunpack.c.l.b16 %v135
  %v1713 = vunpack.c.l.b16 %v136
  %v1714 = vunpack.c.l.b16 %v137
  %v1715 = vunpack.c.l.b16 %v138
  %v1716 = vunpack.c.l.b16 %v139
  %v1717 = vunpack.c.l.b16 %v140
  %v1718 = vunpack.c.l.b16 %v141
  %v1719 = vunpack.c.l.b16 %v142
  %v1720 = vunpack.c.l.b16 %v143
  %v1721 = vunpack.c.l.b16 %v144
  %v1722 = vunpack.c.l.b16 %v145
  %v1723 = vunpack.c.l.b16 %v146
  %v1724 = vunpack.c.l.b16 %v147
  %v1725 = vunpack.c.l.b16 %v148
  %v1726 = vunpack.c.l.b16 %v149
  %v1727 = vunpack.c.l.b16 %v150
  %v1728 = vunpack.c.l.b16 %v151
  %v1729 = vunpack.c.l.b16 %v152
  %v1730 = vunpack.c.l.b16 %v153
  %v1731 = vunpack.c.l.b16 %v154
  %v1732 = vunpack.c.l.b16 %v155
  %v1733 = vunpack.c.l.b16 %v156
  %v1734 = vunpack.c.l.b16 %v157
  %v1735 = vunpack.c.l.b16 %v158
  %v1736 = vunpack.c.l.b16 %v159
  %v1737 = vunpack.c.l.b16 %v160
  %v1738 = vunpack.c.l.b16 %v161
  %v1739 = vunpack.c.l.b16 %v162
  %v1740 = vunpack.c.l.b16 %v163
  %v1741 = vunpack.c.l.b16 %v164
  %v1742 = vunpack.c.l.b16 %v165
  %v1743 = vunpack.c.l.b16 %v166
  %v1744 = vunpack.c.l.b16 %v167
  %v1745 = vunpack.c.l.b16 %v168
  %v1746 = vunpack.c.l.b16 %v169
  %v1747 = vunpack.c.l.b16 %v170
  %v1748 = vunpack.c.l.b16 %v171
  %v1749 = vunpack.c.l.b16 %v172
  %v1750 = vunpack.c.l.b16 %v173
  %v1751 = vunpack.c.l.b16 %v174
  %v1752 = vunpack.c.l.b16 %v175
  %v1753 = vunpack.c.l.b16 %v176
  %v1754 = vunpack.c.l.b16 %v177
  %v1755 = vunpack.c.l.b16 %v178
  %v1756 = vunpack.c.l.b16 %v179
  %v1757 = vunpack.c.l.b16 %v180
  %v1758 = vunpack.c.l.b16 %v181
  %v1759 = vunpack.c.l.b16 %v182
  %v1760 = vunpack.c.l.b16 %v183
  %v1761 = vunpack.c.l.b16 %v184
  %v1762 = vunpack.c.l.b16 %v185
  %v1763 = vunpack.c.l.b16 %v186
  %v1764 = vunpack.c.l.b16 %v187
  %v1765 = vunpack.c.l.b16 %v188
  %v1766 = vunpack.c.l.b16 %v189
  %v1767 = vunpack.c.l.b16 %v190
  %v1768 = vunpack.c.l.b16 %v191
  %v1769 = vunpack.c.l.b16 %v192
  %v1770 = vunpack.c.l.b16 %v193
  %v1771 = vunpack.c.l.b16 %v194
  %v1772 = vunpack.c.l.b16 %v195
  %v1773 = vunpack.c.l.b16 %v196
  %v1774 = vunpack.c.l.b16 %v197
  %v1775 = vunpack.c.l.b16 %v198
  %v1776 = vunpack.c.l.b16 %v199
  %v1777 = vunpack.c.l.b16 %v200
  %v1778 = vunpack.c.l.b16 %v201
  %v1779 = vunpack.c.l.b16 %v202
  %v1780 = vunpack.c.l.b16 %v203
  %v1781 = vunpack.c.l.b16 %v204
  %v1782 = vunpack.c.l.b16 %v205
  %v1783 = vunpack.c.l.b16 %v206
  %v1784 = vunpack.c.l.b16 %v207
  %v1785 = vunpack.c.l.b16 %v208
  %v1786 = vunpack.c.l.b16 %v209
  %v1787 = vunpack.c.l.b16 %v210
  %v1788 = vunpack.c.l.b16 %v211
  %v1789 = vunpack.c.l.b16 %v212
  %v1790 = vunpack.c.l.b16 %v213
  %v1791 = vunpack.c.l.b16 %v214
  %v1792 = vunpack.c.l.b16 %v215
  %v1793 = vunpack.c.l.b16 %v216
  %v1794 = vunpack.c.l.b16 %v217
  %v1795 = vunpack.c.l.b16 %v218
  %v1796 = vunpack.c.l.b16 %v219
  %v1797 = vunpack.c.l.b16 %v220
  %v1798 = vunpack.c.l.b16 %v221
  %v1799 = vunpack.c.l.b16 %v222
  %v1800 = vunpack.c.l.b16 %v223
  %v1801 = vunpack.c.l.b16 %v224
  %v1802 = vunpack.c.l.b16 %v225
  %v1803 = vunpack.c.l.b16 %v226
  %v1804 = vunpack.c.l.b16 %v227
  %v1805 = vunpack.c.l.b16 %v228
  %v1806 = vunpack.c.l.b16 %v229
  %v1807 = vunpack.c.l.b16 %v230
  %v1808 = vunpack.c.l.b16 %v231
  %v1809 = vunpack.c.l.b16 %v232
  %v1810 = vunpack.c.l.b16 %v233
  %v1811 = vunpack.c.l.b16 %v234
  %v1812 = vunpack.c.l.b16 %v235
  %v1813 = vunpack.c.l.b16 %v236
  %v1814 = vunpack.c.l.b16 %v237
  %v1815 = vunpack.c.l.b16 %v238
  %v1816 = vunpack.c.l.b16 %v239
  %v1817 = vunpack.c.l.b16 %v240
  %v1818 = vunpack.c.l.b16 %v241
  %v1819 = vunpack.c.l.b16 %v242
  %v1820 = vunpack.c.l.b16 %v243
  %v1821 = vunpack.c.l.b16 %v244
  %v1822 = vunpack.c.l.b16 %v245
  %v1823 = vunpack.c.l.b16 %v246
  %v1824 = vunpack.c.l.b16 %v247
  %v1825 = vunpack.c.l.b16 %v248
  %v1826 = vunpack.c.l.b16 %v249
  %v1827 = vunpack.c.l.b16 %v250
  %v1828 = vunpack.c.l.b16 %v251
  %v1829 = vunpack.c.l.b16 %v252
  %v1830 = vunpack.c.l.b16 %v253
  %v1831 = vunpack.c.l.b16 %v254
  %v1832 = vunpack.c.l.b16 %v255
  %v1833 = vunpack.c.l.b16 %v256
  %v1834 = vunpack.c.l.b16 %v257
  %v1835 = vunpack.c.l.b16 %v258
  %v1836 = vunpack.c.l.b16 %v259
  %v1837 = vunpack.c.l.b16 %v260
  %v1838 = vunpack.c.l.b16 %v261
  %v1839 = vunpack.c.l.b16 %v262
  %v1840 = vunpack.c.l.b16 %v263
  %v1841 = vunpack.c.l.b16 %v264
  %v1842 = vunpack.c.l.b16 %v265
  %v1843 = vunpack.c.l.b16 %v266
  %v1844 = vunpack.c.l.b16 %v267
  %v1845 = vunpack.c.l.b16 %v268
  %v1846 = vunpack.c.l.b16 %v269
  %v1847 = vunpack.c.l.b16 %v270
  %v1848 = vunpack.c.l.b16 %v271
  %v1849 = vunpack.c.l.b16 %v272
  %v1850 = vunpack.c.l.b16 %v273
  %v1851 = vunpack.c.l.b16 %v274
  %v1852 = vunpack.c.l.b16 %v275
  %v1853 = vunpack.c.l.b16 %v276
  %v1854 = vunpack.c.l.b16 %v277
  %v1855 = vunpack.c.l.b16 %v278
  %v1856 = vunpack.c.l.b16 %v279
  %v1857 = vunpack.c.l.b16 %v280
  %v1858 = vunpack.c.l.b16 %v281
  %v1859 = vunpack.c.l.b16 %v282
  %v1860 = vunpack.c.l.b16 %v283
  %v1861 = vunpack.c.l.b16 %v284
  %v1862 = vunpack.c.l.b16 %v285
  %v1863 = vunpack.c.l.b16 %v286
  %v1864 = vunpack.c.l.b16 %v287
  %v1865 = vunpack.c.l.b16 %v288
  %v1866 = vunpack.c.l.b16 %v289
  %v1867 = vunpack.c.l.b16 %v290
  %v1868 = vunpack.c.l.b16 %v291
  %v1869 = vunpack.c.l.b16 %v292
  %v1870 = vunpack.c.l.b16 %v293
  %v1871 = vunpack.c.l.b16 %v294
  %v1872 = vunpack.c.l.b16 %v295
  %v1873 = vunpack.c.l.b16 %v296
  %v1874 = vunpack.c.l.b16 %v297
  %v1875 = vunpack.c.l.b16 %v298
  %v1876 = vunpack.c.l.b16 %v299
  %v1877 = vunpack.c.l.b16 %v300
  %v1878 = vunpack.c.l.b16 %v301
  %v1879 = vunpack.c.l.b16 %v302
  %v1880 = vunpack.c.l.b16 %v303
  %v1881 = vunpack.c.l.b16 %v304
  %v1882 = vunpack.c.l.b16 %v305
  %v1883 = vunpack.c.l.b16 %v306
  %v1884 = vunpack.c.l.b16 %v307
  %v1885 = vunpack.c.l.b16 %v308
  %v1886 = vunpack.c.l.b16 %v309
  %v1887 = vunpack.c.l.b16 %v310
  %v1888 = vunpack.c.l.b16 %v311
  %v1889 = vunpack.c.l.b16 %v312
  %v1890 = vunpack.c.l.b16 %v313
  %v1891 = vunpack.c.l.b16 %v314
  %v1892 = vunpack.c.l.b16 %v315
  %v1893 = vunpack.c.l.b16 %v316
  %v1894 = vunpack.c.l.b16 %v317
  %v1895 = vunpack.c.l.b16 %v318
  %v1896 = vunpack.c.l.b16 %v319
  %v1897 = vunpack.c.l.b16 %v320
  %v1898 = vunpack.c.l.b16 %v321
  %v1899 = vunpack.c.l.b16 %v322
  %v1900 = vunpack.c.l.b16 %v323
  %v1901 = vunpack.c.l.b16 %v324
  %v1902 = vunpack.c.l.b16 %v325
  %v1903 = vunpack.c.l.b16 %v326
  %v1904 = vunpack.c.l.b16 %v327
  %v1905 = vunpack.c.l.b16 %v328
  %v1906 = vunpack.c.l.b16 %v329
  %v1907 = vunpack.c.l.b16 %v330
  %v1908 = vunpack.c.l.b16 %v331
  %v1909 = vunpack.c.l.b16 %v332
  %v1910 = vunpack.c.l.b16 %v333
  %v1911 = vunpack.c.l.b16 %v334
  %v1912 = vunpack.c.l.b16 %v335
  %v1913 = vunpack.c.l.b16 %v336
  %v1914 = vunpack.c.l.b16 %v337
  %v1915 = vunpack.c.l.b16 %v338
  %v1916 = vunpack.c.l.b16 %v339
  %v1917 = vunpack.c.l.b16 %v340
  %v1918 = vunpack.c.l.b16 %v341
  %v1919 = vunpack.c.l.b16 %v342
  %v1920 = vunpack.c.l.b16 %v343
  %v1921 = vunpack.c.l.b16 %v344
  %v1922 = vunpack.c.l.b16 %v345
  %v1923 = vunpack.c.l.b16 %v346
  %v1924 = vunpack.c.l.b16 %v347
  %v1925 = vunpack.c.l.b16 %v348
  %v1926 = vunpack.c.l.b16 %v349
  %v1927 = vunpack.c.l.b16 %v350
  %v1928 = vunpack.c.l.b16 %v351
  %v1929 = vunpack.c.l.b16 %v352
  %v1930 = vunpack.c.l.b16 %v353
  %v1931 = vunpack.c.l.b16 %v354
  %v1932 = vunpack.c.l.b16 %v355
  %v1933 = vunpack.c.l.b16 %v356
  %v1934 = vunpack.c.l.b16 %v357
  %v1935 = vunpack.c.l.b16 %v358
  %v1936 = vunpack.c.l.b16 %v359
  %v1937 = vunpack.c.l.b16 %v360
  %v1938 = vunpack.c.l.b16 %v361
  %v1939 = vunpack.c.l.b16 %v362
  %v1940 = vunpack.c.l.b16 %v363
  %v1941 = vunpack.c.l.b16 %v364
  %v1942 = vunpack.c.l.b16 %v365
  %v1943 = vunpack.c.l.b16 %v366
  %v1944 = vunpack.c.l.b16 %v367
  %v1945 = vunpack.c.l.b16 %v368
  %v1946 = vunpack.c.l.b16 %v369
  %v1947 = vunpack.c.l.b16 %v370
  %v1948 = vunpack.c.l.b16 %v371
  %v1949 = vunpack.c.l.b16 %v372
  %v1950 = vunpack.c.l.b16 %v373
  %v1951 = vunpack.c.l.b16 %v374
  %v1952 = vunpack.c.l.b16 %v375
  %v1953 = vunpack.c.l.b16 %v376
  %v1954 = vunpack.c.l.b16 %v377
  %v1955 = vunpack.c.l.b16 %v378
  %v1956 = vunpack.c.l.b16 %v379
  %v1957 = vunpack.c.l.b16 %v380
  %v1958 = vunpack.c.l.b16 %v381
  %v1959 = vunpack.c.l.b16 %v382
  %v1960 = vunpack.c.l.b16 %v383
  %v1961 = vunpack.c.l.b16 %v384
  %v1962 = vunpack.c.l.b16 %v385
  %v1963 = vunpack.c.l.b16 %v386
  %v1964 = vunpack.c.l.b16 %v387
  %v1965 = vunpack.c.l.b16 %v388
  %v1966 = vunpack.c.l.b16 %v389
  %v1967 = vunpack.c.l.b16 %v390
  %v1968 = vunpack.c.l.b16 %v391
  %v1969 = vunpack.c.l.b16 %v392
  %v1970 = vunpack.c.l.b16 %v393
  %v1971 = vunpack.c.l.b16 %v394
  %v1972 = vunpack.c.l.b16 %v395
  %v1973 = vunpack.c.l.b16 %v396
  %v1974 = vunpack.c.l.b16 %v397
  %v1975 = vunpack.c.l.b16 %v398
  %v1976 = vunpack.c.l.b16 %v399
  %v1977 = vunpack.c.l.b16 %v400
  %v1978 = vunpack.c.l.b16 %v401
  %v1979 = vunpack.c.l.b16 %v402
  %v1980 = vunpack.c.l.b16 %v403
  %v1981 = vunpack.c.l.b16 %v404
  %v1982 = vunpack.c.l.b16 %v405
  %v1983 = vunpack.c.l.b16 %v406
  %v1984 = vunpack.c.l.b16 %v407
  %v1985 = vunpack.c.l.b16 %v408
  %v1986 = vunpack.c.l.b16 %v409
  %v1987 = vunpack.c.l.b16 %v410
  %v1988 = vunpack.c.l.b16 %v411
  %v1989 = vunpack.c.l.b16 %v412
  %v1990 = vunpack.c.l.b16 %v413
  %v1991 = vunpack.c.l.b16 %v414
  %v1992 = vunpack.c.l.b16 %v415
  %v1993 = vunpack.c.l.b16 %v416
  %v1994 = vunpack.c.l.b16 %v417
  %v1995 = vunpack.c.l.b16 %v418
  %v1996 = vunpack.c.l.b16 %v419
  %v1997 = vunpack.c.l.b16 %v420
  %v1998 = vunpack.c.l.b16 %v421
  %v1999 = vunpack.c.l.b16 %v422
  %v2000 = vunpack.c.l.b16 %v423
  %v2001 = vunpack.c.l.b16 %v424
  %v2002 = vunpack.c.l.b16 %v425
  %v2003 = vunpack.c.l.b16 %v426
  %v2004 = vunpack.c.l.b16 %v427
  %v2005 = vunpack.c.l.b16 %v428
  %v2006 = vunpack.c.l.b16 %v429
  %v2007 = vunpack.c.l.b16 %v430
  %v2008 = vunpack.c.l.b16 %v431
  %v2009 = vunpack.c.l.b16 %v432
  %v2010 = vunpack.c.l.b16 %v433
  %v2011 = vunpack.c.l.b16 %v434
  %v2012 = vunpack.c.l.b16 %v435
  %v2013 = vunpack.c.l.b16 %v436
  %v2014 = vunpack.c.l.b16 %v437
  %v2015 = vunpack.c.l.b16 %v438
  %v2016 = vunpack.c.l.b16 %v439
  %v2017 = vunpack.c.l.b16 %v440
  %v2018 = vunpack.c.l.b16 %v441
  %v2019 = vunpack.c.l.b16 %v442
  %v2020 = vunpack.c.l.b16 %v443
  %v2021 = vunpack.c.l.b16 %v444
  %v2022 = vunpack.c.l.b16 %v445
  %v2023 = vunpack.c.l.b16 %v446
  %v2024 = vunpack.c.l.b16 %v447
  %v2025 = vunpack.c.l.b16 %v448
  %v2026 = vunpack.c.l.b16 %v449
  %v2027 = vunpack.c.l.b16 %v450
  %v2028 = vunpack.c.l.b16 %v451
  %v2029 = vunpack.c.l.b16 %v452
  %v2030 = vunpack.c.l.b16 %v453
  %v2031 = vunpack.c.l.b16 %v454
  %v2032 = vunpack.c.l.b16 %v455
  %v2033 = vunpack.c.l.b16 %v456
  %v2034 = vunpack.c.l.b16 %v457
  %v2035 = vunpack.c.l.b16 %v458
  %v2036 = vunpack.c.l.b16 %v459
  %v2037 = vunpack.c.l.b16 %v460
  %v2038 = vunpack.c.l.b16 %v461
  %v2039 = vunpack.c.l.b16 %v462
  %v2040 = vunpack.c.l.b16 %v463
  %v2041 = vunpack.c.l.b16 %v464
  %v2042 = vunpack.c.l.b16 %v465
  %v2043 = vunpack.c.l.b16 %v466
  %v2044 = vunpack.c.l.b16 %v467
  %v2045 = vunpack.c.l.b16 %v468
  %v2046 = vunpack.c.l.b16 %v469
  %v2047 = vunpack.c.l.b16 %v470
  %v2048 = vunpack.c.l.b16 %v471
  %v2049 = vunpack.c.l.b16 %v472
  %v2050 = vunpack.c.l.b16 %v473
  %v2051 = vunpack.c.l.b16 %v474
  %v2052 = vunpack.c.l.b16 %v475
  %v2053 = vunpack.c.l.b16 %v476
  %v2054 = vunpack.c.l.b16 %v477
  %v2055 = vunpack.c.l.b16 %v478
  %v2056 = vunpack.c.l.b16 %v479
  %v2057 = vunpack.c.l.b16 %v480
  %v2058 = vunpack.c.l.b16 %v481
  %v2059 = vunpack.c.l.b16 %v482
  %v2060 = vunpack.c.l.b16 %v483
  %v2061 = vunpack.c.l.b16 %v484
  %v2062 = vunpack.c.l.b16 %v485
  %v2063 = vunpack.c.l.b16 %v486
  %v2064 = vunpack.c.l.b16 %v487
  %v2065 = vunpack.c.l.b16 %v488
  %v2066 = vunpack.c.l.b16 %v489
  %v2067 = vunpack.c.l.b16 %v490
  %v2068 = vunpack.c.l.b16 %v491
  %v2069 = vunpack.c.l.b16 %v492
  %v2070 = vunpack.c.l.b16 %v493
  %v2071 = vunpack.c.l.b16 %v494
  %v2072 = vunpack.c.l.b16 %v495
  %v2073 = vunpack.c.l.b16 %v496
  %v2074 = vunpack.c.l.b16 %v497
  %v2075 = vunpack.c.l.b16 %v498
  %v2076 = vunpack.c.l.b16 %v499
  %v2077 = vunpack.c.l.b16 %v500
  %v2078 = vunpack.c.l.b16 %v501
  %v2079 = vunpack.c.l.b16 %v502
  %v2080 = vunpack.c.l.b16 %v503
  %v2081 = vunpack.c.l.b16 %v504
  %v2082 = vunpack.c.l.b16 %v505
  %v2083 = vunpack.c.l.b16 %v506
  %v2084 = vunpack.c.l.b16 %v507
  %v2085 = vunpack.c.l.b16 %v508
  %v2086 = vunpack.c.l.b16 %v509
  %v2087 = vunpack.c.l.b16 %v510
  %v2088 = vunpack.c.l.b16 %v511
  %v2089 = vunpack.c.l.b16 %v512
  %v2090 = vunpack.c.l.b16 %v513
  %v2091 = vunpack.c.l.b16 %v514
  %v2092 = vunpack.c.l.b16 %v515
  %v2093 = vunpack.c.l.b16 %v516
  %v2094 = vunpack.c.l.b16 %v517
  %v2095 = vunpack.c.l.b16 %v518
  %v2096 = vunpack.c.l.b16 %v519
  %v2097 = vunpack.c.l.b16 %v520
  %v2098 = vunpack.c.l.b16 %v521
  %v2099 = vunpack.c.l.b16 %v522
  %v2100 = vunpack.c.l.b16 %v523
  %v2101 = vunpack.c.l.b16 %v524
  %v2102 = vunpack.c.l.b16 %v525
  %v2103 = vunpack.c.l.b16 %v526
  %v2104 = vunpack.c.l.b16 %v527
  %v2105 = vunpack.c.l.b16 %v528
  %v2106 = vunpack.c.l.b16 %v529
  %v2107 = vunpack.c.l.b16 %v530
  %v2108 = vunpack.c.l.b16 %v531
  %v2109 = vunpack.c.l.b16 %v532
  %v2110 = vunpack.c.l.b16 %v533
  %v2111 = vunpack.c.l.b16 %v534
  %v2112 = vunpack.c.l.b16 %v535
  %v2113 = vunpack.c.l.b16 %v536
  %v2114 = vunpack.c.l.b16 %v537
  %v2115 = vunpack.c.l.b16 %v538
  %v2116 = vunpack.c.l.b16 %v539
  %v2117 = vunpack.c.l.b16 %v540
  %v2118 = vunpack.c.l.b16 %v541
  %v2119 = vunpack.c.l.b16 %v542
  %v2120 = vunpack.c.l.b16 %v543
  %v2121 = vunpack.c.l.b16 %v544
  %v2122 = vunpack.c.l.b16 %v545
  %v2123 = vunpack.c.l.b16 %v546
  %v2124 = vunpack.c.l.b16 %v547
  %v2125 = vunpack.c.l.b16 %v548
  %v2126 = vunpack.c.l.b16 %v549
  %v2127 = vunpack.c.l.b16 %v550
  %v2128 = vunpack.c.l.b16 %v551
  %v2129 = vunpack.c.l.b16 %v552
  %v2130 = vunpack.c.l.b16 %v553
  %v2131 = vunpack.c.l.b16 %v554
  %v2132 = vunpack.c.l.b16 %v555
  %v2133 = vunpack.c.l.b16 %v556
  %v2134 = vunpack.c.l.b16 %v557
  %v2135 = vunpack.c.l.b16 %v558
  %v2136 = vunpack.c.l.b16 %v559
  %v2137 = vunpack.c.l.b16 %v560
  %v2138 = vunpack.c.l.b16 %v561
  %v2139 = vunpack.c.l.b16 %v562
  %v2140 = vunpack.c.l.b16 %v563
  %v2141 = vunpack.c.l.b16 %v564
  %v2142 = vunpack.c.l.b16 %v565
  %v2143 = vunpack.c.l.b16 %v566
  %v2144 = vunpack.c.l.b16 %v567
  %v2145 = vunpack.c.l.b16 %v568
  %v2146 = vunpack.c.l.b16 %v569
  %v2147 = vunpack.c.l.b16 %v570
  %v2148 = vunpack.c.l.b16 %v571
  %v2149 = vunpack.c.l.b16 %v572
  %v2150 = vunpack.c.l.b16 %v573
  %v2151 = vunpack.c.l.b16 %v574
  %v2152 = vunpack.c.l.b16 %v575
  %v2153 = vunpack.c.l.b16 %v576
  %v2154 = vunpack.c.l.b16 %v577
  %v2155 = vunpack.c.l.b16 %v578
  %v2156 = vunpack.c.l.b16 %v579
  %v2157 = vunpack.c.l.b16 %v580
  %v2158 = vunpack.c.l.b16 %v581
  %v2159 = vunpack.c.l.b16 %v582
  %v2160 = vunpack.c.l.b16 %v583
  %v2161 = vunpack.c.l.b16 %v584
  %v2162 = vunpack.c.l.b16 %v585
  %v2163 = vunpack.c.l.b16 %v586
  %v2164 = vunpack.c.l.b16 %v587
  %v2165 = vunpack.c.l.b16 %v588
  %v2166 = vunpack.c.l.b16 %v589
  %v2167 = vunpack.c.l.b16 %v590
  %v2168 = vunpack.c.l.b16 %v591
  %v2169 = vunpack.c.l.b16 %v592
  %v2170 = vunpack.c.l.b16 %v593
  %v2171 = vunpack.c.l.b16 %v594
  %v2172 = vunpack.c.l.b16 %v595
  %v2173 = vunpack.c.l.b16 %v596
  %v2174 = vunpack.c.l.b16 %v597
  %v2175 = vunpack.c.l.b16 %v598
  %v2176 = vunpack.c.l.b16 %v599
  %v2177 = vunpack.c.l.b16 %v600
  %v2178 = vunpack.c.l.b16 %v601
  %v2179 = vunpack.c.l.b16 %v602
  %v2180 = vunpack.c.l.b16 %v603
  %v2181 = vunpack.c.l.b16 %v604
  %v2182 = vunpack.c.l.b16 %v605
  %v2183 = vunpack.c.l.b16 %v606
  %v2184 = vunpack.c.l.b16 %v607
  %v2185 = vunpack.c.l.b16 %v608
  %v2186 = vunpack.c.l.b16 %v609
  %v2187 = vunpack.c.l.b16 %v610
  %v2188 = vunpack.c.l.b16 %v611
  %v2189 = vunpack.c.l.b16 %v612
  %v2190 = vunpack.c.l.b16 %v613
  %v2191 = vunpack.c.l.b16 %v614
  %v2192 = vunpack.c.l.b16 %v615
  %v2193 = vunpack.c.l.b16 %v616
  %v2194 = vunpack.c.l.b16 %v617
  %v2195 = vunpack.c.l.b16 %v618
  %v2196 = vunpack.c.l.b16 %v619
  %v2197 = vunpack.c.l.b16 %v620
  %v2198 = vunpack.c.l.b16 %v621
  %v2199 = vunpack.c.l.b16 %v622
  %v2200 = vunpack.c.l.b16 %v623
  %v2201 = vunpack.c.l.b16 %v624
  %v2202 = vunpack.c.l.b16 %v625
  %v2203 = vunpack.c.l.b16 %v626
  %v2204 = vunpack.c.l.b16 %v627
  %v2205 = vunpack.c.l.b16 %v628
  %v2206 = vunpack.c.l.b16 %v629
  %v2207 = vunpack.c.l.b16 %v630
  %v2208 = vunpack.c.l.b16 %v631
  %v2209 = vunpack.c.l.b16 %v632
  %v2210 = vunpack.c.l.b16 %v633
  %v2211 = vunpack.c.l.b16 %v634
  %v2212 = vunpack.c.l.b16 %v635
  %v2213 = vunpack.c.l.b16 %v636
  %v2214 = vunpack.c.l.b16 %v637
  %v2215 = vunpack.c.l.b16 %v638
  %v2216 = vunpack.c.l.b16 %v639
  %v2217 = vunpack.c.l.b16 %v640
  %v2218 = vunpack.c.l.b16 %v641
  %v2219 = vunpack.c.l.b16 %v642
  %v2220 = vunpack.c.l.b16 %v643
  %v2221 = vunpack.c.l.b16 %v644
  %v2222 = vunpack.c.l.b16 %v645
  %v2223 = vunpack.c.l.b16 %v646
  %v2224 = vunpack.c.l.b16 %v647
  %v2225 = vunpack.c.l.b16 %v648
  %v2226 = vunpack.c.l.b16 %v649
  %v2227 = vunpack.c.l.b16 %v650
  %v2228 = vunpack.c.l.b16 %v651
  %v2229 = vunpack.c.l.b16 %v652
  %v2230 = vunpack.c.l.b16 %v653
  %v2231 = vunpack.c.l.b16 %v654
  %v2232 = vunpack.c.l.b16 %v655
  %v2233 = vunpack.c.l.b16 %v656
  %v2234 = vunpack.c.l.b16 %v657
  %v2235 = vunpack.c.l.b16 %v658
  %v2236 = vunpack.c.l.b16 %v659
  %v2237 = vunpack.c.l.b16 %v660
  %v2238 = vunpack.c.l.b16 %v661
  %v2239 = vunpack.c.l.b16 %v662
  %v2240 = vunpack.c.l.b16 %v663
  %v2241 = vunpack.c.l.b16 %v664
  %v2242 = vunpack.c.l.b16 %v665
  %v2243 = vunpack.c.l.b16 %v666
  %v2244 = vunpack.c.l.b16 %v667
  %v2245 = vunpack.c.l.b16 %v668
  %v2246 = vunpack.c.l.b16 %v669
  %v2247 = vunpack.c.l.b16 %v670
  %v2248 = vunpack.c.l.b16 %v671
  %v2249 = vpack.c.b16 %v1610, %v1609
  %v2250 = vpack.c.b16 %v1612, %v1611
  %v2251 = vpack.c.b16 %v1614, %v1613
  %v2252 = vpack.c.b16 %v1616, %v1615
  %v2253 = vpack.c.b16 %v1618, %v1617
  %v2254 = vpack.c.b16 %v1620, %v1619
  %v2255 = vpack.c.b16 %v1622, %v1621
  %v2256 = vpack.c.b16 %v1624, %v1623
  %v2257 = vpack.c.b16 %v1626, %v1625
  %v2258 = vpack.c.b16 %v1628, %v1627
  %v2259 = vpack.c.b16 %v1630, %v1629
  %v2260 = vpack.c.b16 %v1632, %v1631
  %v2261 = vpack.c.b16 %v1634, %v1633
  %v2262 = vpack.c.b16 %v1636, %v1635
  %v2263 = vpack.c.b16 %v1638, %v1637
  %v2264 = vpack.c.b16 %v1640, %v1639
  %v2265 = vpack.c.b16 %v1642, %v1641
  %v2266 = vpack.c.b16 %v1644, %v1643
  %v2267 = vpack.c.b16 %v1646, %v1645
  %v2268 = vpack.c.b16 %v1648, %v1647
  %v2269 = vpack.c.b16 %v1650, %v1649
  %v2270 = vpack.c.b16 %v1652, %v1651
  %v2271 = vpack.c.b16 %v1654, %v1653
  %v2272 = vpack.c.b16 %v1656, %v1655
  %v2273 = vpack.c.b16 %v1658, %v1657
  %v2274 = vpack.c.b16 %v1660, %v1659
  %v2275 = vpack.c.b16 %v1662, %v1661
  %v2276 = vpack.c.b16 %v1664, %v1663
  %v2277 = vpack.c.b16 %v1666, %v1665
  %v2278 = vpack.c.b16 %v1668, %v1667
  %v2279 = vpack.c.b16 %v1670, %v1669
  %v2280 = vpack.c.b16 %v1672, %v1671
  %v2281 = vpack.c.b16 %v1674, %v1673
  %v2282 = vpack.c.b16 %v1676, %v1675
  %v2283 = vpack.c.b16 %v1678, %v1677
  %v2284 = vpack.c.b16 %v1680, %v1679
  %v2285 = vpack.c.b16 %v1682, %v1681
  %v2286 = vpack.c.b16 %v1684, %v1683
  %v2287 = vpack.c.b16 %v1686, %v1685
  %v2288 = vpack.c.b16 %v1688, %v1687
  %v2289 = vpack.c.b16 %v1690, %v1689
  %v2290 = vpack.c.b16 %v1692, %v1691
  %v2291 = vpack.c.b16 %v1694, %v1693
  %v2292 = vpack.c.b16 %v1696, %v1695
  %v2293 = vpack.c.b16 %v1698, %v1697
  %v2294 = vpack.c.b16 %v1700, %v1699
  %v2295 = vpack.c.b16 %v1702, %v1701
  %v2296 = vpack.c.b16 %v1704, %v1703
  %v2297 = vpack.c.b16 %v1706, %v1705
  %v2298 = vpack.c.b16 %v1708, %v1707
  %v2299 = vpack.c.b16 %v1710, %v1709
  %v2300 = vpack.c.b16 %v1712, %v1711
  %v2301 = vpack.c.b16 %v1714, %v1713
  %v2302 = vpack.c.b16 %v1716, %v1715
  %v2303 = vpack.c.b16 %v1718, %v1717
  %v2304 = vpack.c.b16 %v1720, %v1719
  %v2305 = vpack.c.b16 %v1722, %v1721
  %v2306 = vpack.c.b16 %v1724, %v1723
  %v2307 = vpack.c.b16 %v1726, %v1725
  %v2308 = vpack.c.b16 %v1728, %v1727
  %v2309 = vpack.c.b16 %v1730, %v1729
  %v2310 = vpack.c.b16 %v1732, %v1731
  %v2311 = vpack.c.b16 %v1734, %v1733
  %v2312 = vpack.c.b16 %v1736, %v1735
  %v2313 = vpack.c.b16 %v1738, %v1737
  %v2314 = vpack.c.b16 %v1740, %v1739
  %v2315 = vpack.c.b16 %v1742, %v1741
  %v2316 = vpack.c.b16 %v1744, %v1743
  %v2317 = vpack.c.b16 %v1746, %v1745
  %v2318 = vpack.c.b16 %v1748, %v1747
  %v2319 = vpack.c.b16 %v1750, %v1749
  %v2320 = vpack.c.b16 %v1752, %v1751
  %v2321 = vpack.c.b16 %v1754, %v1753
  %v2322 = vpack.c.b16 %v1756, %v1755
  %v2323 = vpack.c.b16 %v1758, %v1757
  %v2324 = vpack.c.b16 %v1760, %v1759
  %v2325 = vpack.c.b16 %v1762, %v1761
  %v2326 = vpack.c.b16 %v1764, %v1763
  %v2327 = vpack.c.b16 %v1766, %v1765
  %v2328 = vpack.c.b16 %v1768, %v1767
  %v2329 = vpack.c.b16 %v1770, %v1769
  %v2330 = vpack.c.b16 %v1772, %v1771
  %v2331 = vpack.c.b16 %v1774, %v1773
  %v2332 = vpack.c.b16 %v1776, %v1775
  %v2333 = vpack.c.b16 %v1778, %v1777
  %v2334 = vpack.c.b16 %v1780, %v1779
  %v2335 = vpack.c.b16 %v1782, %v1781
  %v2336 = vpack.c.b16 %v1784, %v1783
  %v2337 = vpack.c.b16 %v1786, %v1785
  %v2338 = vpack.c.b16 %v1788, %v1787
  %v2339 = vpack.c.b16 %v1790, %v1789
  %v2340 = vpack.c.b16 %v1792, %v1791
  %v2341 = vpack.c.b16 %v1794, %v1793
  %v2342 = vpack.c.b16 %v1796, %v1795
  %v2343 = vpack.c.b16 %v1798, %v1797
  %v2344 = vpack.c.b16 %v1800, %v1799
  %v2345 = vpack.c.b16 %v1802, %v1801
  %v2346 = vpack.c.b16 %v1804, %v1803
  %v2347 = vpack.c.b16 %v1806, %v1805
  %v2348 = vpack.c.b16 %v1808, %v1807
  %v2349 = vpack.c.b16 %v1810, %v1809
  %v2350 = vpack.c.b16 %v1812, %v1811
  %v2351 = vpack.c.b16 %v1814, %v1813
  %v2352 = vpack.c.b16 %v1816, %v1815
  %v2353 = vpack.c.b16 %v1818, %v1817
  %v2354 = vpack.c.b16 %v1820, %v1819
  %v2355 = vpack.c.b16 %v1822, %v1821
  %v2356 = vpack.c.b16 %v1824, %v1823
  %v2357 = vpack.c.b16 %v1826, %v1825
  %v2358 = vpack.c.b16 %v1828, %v1827
  %v2359 = vpack.c.b16 %v1830, %v1829
  %v2360 = vpack.c.b16 %v1832, %v1831
  %v2361 = vpack.c.b16 %v1834, %v1833
  %v2362 = vpack.c.b16 %v1836, %v1835
  %v2363 = vpack.c.b16 %v1838, %v1837
  %v2364 = vpack.c.b16 %v1840, %v1839
  %v2365 = vpack.c.b16 %v1842, %v1841
  %v2366 = vpack.c.b16 %v1844, %v1843
  %v2367 = vpack.c.b16 %v1846, %v1845
  %v2368 = vpack.c.b16 %v1848, %v1847
  %v2369 = vpack.c.b16 %v1850, %v1849
  %v2370 = vpack.c.b16 %v1852, %v1851
  %v2371 = vpack.c.b16 %v1854, %v1853
  %v2372 = vpack.c.b16 %v1856, %v1855
  %v2373 = vpack.c.b16 %v1858, %v1857
  %v2374 = vpack.c.b16 %v1860, %v1859
  %v2375 = vpack.c.b16 %v1862, %v1861
  %v2376 = vpack.c.b16 %v1864, %v1863
  %v2377 = vpack.c.b16 %v1866, %v1865
  %v2378 = vpack.c.b16 %v1868, %v1867
  %v2379 = vpack.c.b16 %v1870, %v1869
  %v2380 = vpack.c.b16 %v1872, %v1871
  %v2381 = vpack.c.b16 %v1874, %v1873
  %v2382 = vpack.c.b16 %v1876, %v1875
  %v2383 = vpack.c.b16 %v1878, %v1877
  %v2384 = vpack.c.b16 %v1880, %v1879
  %v2385 = vpack.c.b16 %v1882, %v1881
  %v2386 = vpack.c.b16 %v1884, %v1883
  %v2387 = vpack.c.b16 %v1886, %v1885
  %v2388 = vpack.c.b16 %v1888, %v1887
  %v2389 = vpack.c.b16 %v1890, %v1889
  %v2390 = vpack.c.b16 %v1892, %v1891
  %v2391 = vpack.c.b16 %v1894, %v1893
  %v2392 = vpack.c.b16 %v1896, %v1895
  %v2393 = vpack.c.b16 %v1898, %v1897
  %v2394 = vpack.c.b16 %v1900, %v1899
  %v2395 = vpack.c.b16 %v1902, %v1901
  %v2396 = vpack.c.b16 %v1904, %v1903
  %v2397 = vpack.c.b16 %v1906, %v1905
  %v2398 = vpack.c.b16 %v1908, %v1907
  %v2399 = vpack.c.b16 %v1910, %v1909
  %v2400 = vpack.c.b16 %v1912, %v1911
  %v2401 = vpack.c.b16 %v1914, %v1913
  %v2402 = vpack.c.b16 %v1916, %v1915
  %v2403 = vpack.c.b16 %v1918, %v1917
  %v2404 = vpack.c.b16 %v1920, %v1919
  %v2405 = vpack.c.b16 %v1922, %v1921
  %v2406 = vpack.c.b16 %v1924, %v1923
  %v2407 = vpack.c.b16 %v1926, %v1925
  %v2408 = vpack.c.b16 %v1928, %v1927
  %v2409 = vpack.c.b16 %v1930, %v1929
  %v2410 = vpack.c.b16 %v1932, %v1931
  %v2411 = vpack.c.b16 %v1934, %v1933
  %v2412 = vpack.c.b16 %v1936, %v1935
  %v2413 = vpack.c.b16 %v1938, %v1937
  %v2414 = vpack.c.b16 %v1940, %v1939
  %v2415 = vpack.c.b16 %v1942, %v1941
  %v2416 = vpack.c.b16 %v1944, %v1943
  %v2417 = vpack.c.b16 %v1946, %v1945
  %v2418 = vpack.c.b16 %v1948, %v1947
  %v2419 = vpack.c.b16 %v1950, %v1949
  %v2420 = vpack.c.b16 %v1952, %v1951
  %v2421 = vpack.c.b16 %v1954, %v1953
  %v2422 = vpack.c.b16 %v1956, %v1955
  %v2423 = vpack.c.b16 %v1958, %v1957
  %v2424 = vpack.c.b16 %v1960, %v1959
  %v2425 = vpack.c.b16 %v1962, %v1961
  %v2426 = vpack.c.b16 %v1964, %v1963
  %v2427 = vpack.c.b16 %v1966, %v1965
  %v2428 = vpack.c.b16 %v1968, %v1967
  %v2429 = vpack.c.b16 %v1970, %v1969
  %v2430 = vpack.c.b16 %v1972, %v1971
  %v2431 = vpack.c.b16 %v1974, %v1973
  %v2432 = vpack.c.b16 %v1976, %v1975
  %v2433 = vpack.c.b16 %v1978, %v1977
  %v2434 = vpack.c.b16 %v1980, %v1979
  %v2435 = vpack.c.b16 %v1982, %v1981
  %v2436 = vpack.c.b16 %v1984, %v1983
  %v2437 = vpack.c.b16 %v1986, %v1985
  %v2438 = vpack.c.b16 %v1988, %v1987
  %v2439 = vpack.c.b16 %v1990, %v1989
  %v2440 = vpack.c.b16 %v1992, %v1991
  %v2441 = vpack.c.b16 %v1994, %v1993
  %v2442 = vpack.c.b16 %v1996, %v1995
  %v2443 = vpack.c.b16 %v1998, %v1997
  %v2444 = vpack.c.b16 %v2000, %v1999
  %v2445 = vpack.c.b16 %v2002, %v2001
  %v2446 = vpack.c.b16 %v2004, %v2003
  %v2447 = vpack.c.b16 %v2006, %v2005
  %v2448 = vpack.c.b16 %v2008, %v2007
  %v2449 = vpack.c.b16 %v2010, %v2009
  %v2450 = vpack.c.b16 %v2012, %v2011
  %v2451 = vpack.c.b16 %v2014, %v2013
  %v2452 = vpack.c.b16 %v2016, %v2015
  %v2453 = vpack.c.b16 %v2018, %v2017
  %v2454 = vpack.c.b16 %v2020, %v2019
  %v2455 = vpack.c.b16 %v2022, %v2021
  %v2456 = vpack.c.b16 %v2024, %v2023
  %v2457 = vpack.c.b16 %v2026, %v2025
  %v2458 = vpack.c.b16 %v2028, %v2027
  %v2459 = vpack.c.b16 %v2030, %v2029
  %v2460 = vpack.c.b16 %v2032, %v2031
  %v2461 = vpack.c.b16 %v2034, %v2033
  %v2462 = vpack.c.b16 %v2036, %v2035
  %v2463 = vpack.c.b16 %v2038, %v2037
  %v2464 = vpack.c.b16 %v2040, %v2039
  %v2465 = vpack.c.b16 %v2042, %v2041
  %v2466 = vpack.c.b16 %v2044, %v2043
  %v2467 = vpack.c.b16 %v2046, %v2045
  %v2468 = vpack.c.b16 %v2048, %v2047
  %v2469 = vpack.c.b16 %v2050, %v2049
  %v2470 = vpack.c.b16 %v2052, %v2051
  %v2471 = vpack.c.b16 %v2054, %v2053
  %v2472 = vpack.c.b16 %v2056, %v2055
  %v2473 = vpack.c.b16 %v2058, %v2057
  %v2474 = vpack.c.b16 %v2060, %v2059
  %v2475 = vpack.c.b16 %v2062, %v2061
  %v2476 = vpack.c.b16 %v2064, %v2063
  %v2477 = vpack.c.b16 %v2066, %v2065
  %v2478 = vpack.c.b16 %v2068, %v2067
  %v2479 = vpack.c.b16 %v2070, %v2069
  %v2480 = vpack.c.b16 %v2072, %v2071
  %v2481 = vpack.c.b16 %v2074, %v2073
  %v2482 = vpack.c.b16 %v2076, %v2075
  %v2483 = vpack.c.b16 %v2078, %v2077
  %v2484 = vpack.c.b16 %v2080, %v2079
  %v2485 = vpack.c.b16 %v2082, %v2081
  %v2486 = vpack.c.b16 %v2084, %v2083
  %v2487 = vpack.c.b16 %v2086, %v2085
  %v2488 = vpack.c.b16 %v2088, %v2087
  %v2489 = vpack.c.b16 %v2090, %v2089
  %v2490 = vpack.c.b16 %v2092, %v2091
  %v2491 = vpack.c.b16 %v2094, %v2093
  %v2492 = vpack.c.b16 %v2096, %v2095
  %v2493 = vpack.c.b16 %v2098, %v2097
  %v2494 = vpack.c.b16 %v2100, %v2099
  %v2495 = vpack.c.b16 %v2102, %v2101
  %v2496 = vpack.c.b16 %v2104, %v2103
  %v2497 = vpack.c.b16 %v2106, %v2105
  %v2498 = vpack.c.b16 %v2108, %v2107
  %v2499 = vpack.c.b16 %v2110, %v2109
  %v2500 = vpack.c.b16 %v2112, %v2111
  %v2501 = vpack.c.b16 %v2114, %v2113
  %v2502 = vpack.c.b16 %v2116, %v2115
  %v2503 = vpack.c.b16 %v2118, %v2117
  %v2504 = vpack.c.b16 %v2120, %v2119
  %v2505 = vpack.c.b16 %v2122, %v2121
  %v2506 = vpack.c.b16 %v2124, %v2123
  %v2507 = vpack.c.b16 %v2126, %v2125
  %v2508 = vpack.c.b16 %v2128, %v2127
  %v2509 = vpack.c.b16 %v2130, %v2129
  %v2510 = vpack.c.b16 %v2132, %v2131
  %v2511 = vpack.c.b16 %v2134, %v2133
  %v2512 = vpack.c.b16 %v2136, %v2135
  %v2513 = vpack.c.b16 %v2138, %v2137
  %v2514 = vpack.c.b16 %v2140, %v2139
  %v2515 = vpack.c.b16 %v2142, %v2141
  %v2516 = vpack.c.b16 %v2144, %v2143
  %v2517 = vpack.c.b16 %v2146, %v2145
  %v2518 = vpack.c.b16 %v2148, %v2147
  %v2519 = vpack.c.b16 %v2150, %v2149
  %v2520 = vpack.c.b16 %v2152, %v2151
  %v2521 = vpack.c.b16 %v2154, %v2153
  %v2522 = vpack.c.b16 %v2156, %v2155
  %v2523 = vpack.c.b16 %v2158, %v2157
  %v2524 = vpack.c.b16 %v2160, %v2159
  %v2525 = vpack.c.b16 %v2162, %v2161
  %v2526 = vpack.c.b16 %v2164, %v2163
  %v2527 = vpack.c.b16 %v2166, %v2165
  %v2528 = vpack.c.b16 %v2168, %v2167
  %v2529 = vpack.c.b16 %v2170, %v2169
  %v2530 = vpack.c.b16 %v2172, %v2171
  %v2531 = vpack.c.b16 %v2174, %v2173
  %v2532 = vpack.c.b16 %v2176, %v2175
  %v2533 = vpack.c.b16 %v2178, %v2177
  %v2534 = vpack.c.b16 %v2180, %v2179
  %v2535 = vpack.c.b16 %v2182, %v2181
  %v2536 = vpack.c.b16 %v2184, %v2183
  %v2537 = vpack.c.b16 %v2186, %v2185
  %v2538 = vpack.c.b16 %v2188, %v2187
  %v2539 = vpack.c.b16 %v2190, %v2189
  %v2540 = vpack.c.b16 %v2192, %v2191
  %v2541 = vpack.c.b16 %v2194, %v2193
  %v2542 = vpack.c.b16 %v2196, %v2195
  %v2543 = vpack.c.b16 %v2198, %v2197
  %v2544 = vpack.c.b16 %v2200, %v2199
  %v2545 = vpack.c.b16 %v2202, %v2201
  %v2546 = vpack.c.b16 %v2204, %v2203
  %v2547 = vpack.c.b16 %v2206, %v2205
  %v2548 = vpack.c.b16 %v2208, %v2207
  %v2549 = vpack.c.b16 %v2210, %v2209
  %v2550 = vpack.c.b16 %v2212, %v2211
  %v2551 = vpack.c.b16 %v2214, %v2213
  %v2552 = vpack.c.b16 %v2216, %v2215
  %v2553 = vpack.c.b16 %v2218, %v2217
  %v2554 = vpack.c.b16 %v2220, %v2219
  %v2555 = vpack.c.b16 %v2222, %v2221
  %v2556 = vpack.c.b16 %v2224, %v2223
  %v2557 = vpack.c.b16 %v2226, %v2225
  %v2558 = vpack.c.b16 %v2228, %v2227
  %v2559 = vpack.c.b16 %v2230, %v2229
  %v2560 = vpack.c.b16 %v2232, %v2231
  %v2561 = vpack.c.b16 %v2234, %v2233
  %v2562 = vpack.c.b16 %v2236, %v2235
  %v2563 = vpack.c.b16 %v2238, %v2237
  %v2564 = vpack.c.b16 %v2240, %v2239
  %v2565 = vpack.c.b16 %v2242, %v2241
  %v2566 = vpack.c.b16 %v2244, %v2243
  %v2567 = vpack.c.b16 %v2246, %v2245
  %v2568 = vpack.c.b16 %v2248, %v2247
  %2889 = vmatprep.subr.bf16.mxu0 0
  %2890 = vmatpush1.bf16.msra.mxu0 %v2249
  %2891 = vmatprep.subr.bf16.mxu0 0
  %2892 = vmatpush1.bf16.msra.mxu0 %v2250
  %2893 = vmatprep.subr.bf16.mxu0 0
  %2894 = vmatpush1.bf16.msra.mxu0 %v2251
  %2895 = vmatprep.subr.bf16.mxu0 0
  %2896 = vmatpush1.bf16.msra.mxu0 %v2252
  %2897 = vmatprep.subr.bf16.mxu0 0
  %2898 = vmatpush1.bf16.msra.mxu0 %v2253
  %2899 = vmatprep.subr.bf16.mxu0 0
  %2900 = vmatpush1.bf16.msra.mxu0 %v2254
  %2901 = vmatprep.subr.bf16.mxu0 0
  %2902 = vmatpush1.bf16.msra.mxu0 %v2255
  %2903 = vmatprep.subr.bf16.mxu0 0
  %2904 = vmatpush1.bf16.msra.mxu0 %v2256
  %2905 = vmatprep.subr.bf16.mxu0 0
  %2906 = vmatpush1.bf16.msra.mxu0 %v2257
  %2907 = vmatprep.subr.bf16.mxu0 0
  %2908 = vmatpush1.bf16.msra.mxu0 %v2258
  %2909 = vmatprep.subr.bf16.mxu0 0
  %2910 = vmatpush1.bf16.msra.mxu0 %v2259
  %2911 = vmatprep.subr.bf16.mxu0 0
  %2912 = vmatpush1.bf16.msra.mxu0 %v2260
  %2913 = vmatprep.subr.bf16.mxu0 0
  %2914 = vmatpush1.bf16.msra.mxu0 %v2261
  %2915 = vmatprep.subr.bf16.mxu0 0
  %2916 = vmatpush1.bf16.msra.mxu0 %v2262
  %2917 = vmatprep.subr.bf16.mxu0 0
  %2918 = vmatpush1.bf16.msra.mxu0 %v2263
  %2919 = vmatprep.subr.bf16.mxu0 0
  %2920 = vmatpush1.bf16.msra.mxu0 %v2264
  %2921 = vmatprep.mubr.bf16.mxu0 %v721
  %2922 = vmatmul.mubr.bf16.gmra.mrb[0].mxu0 %v707
  %v2923 = vpop.f32.mrb[0].mxu0
  %v2924 = vadd.f32 %v677, %v2923
  %v2925 = vpop.f32.mrb[0].mxu0
  %v2926 = vpop.f32.mrb[0].mxu0
  %v2927 = vpop.f32.mrb[0].mxu0
  %2928 = vdwg.mxu0
  %2929 = vmatprep.subr.bf16.mxu0 0
  %2930 = vmatpush1.bf16.msra.mxu0 %v2265
  %2931 = vmatprep.subr.bf16.mxu0 0
  %2932 = vmatpush1.bf16.msra.mxu0 %v2266
  %2933 = vmatprep.subr.bf16.mxu0 0
  %2934 = vmatpush1.bf16.msra.mxu0 %v2267
  %2935 = vmatprep.subr.bf16.mxu0 0
  %2936 = vmatpush1.bf16.msra.mxu0 %v2268
  %2937 = vmatprep.subr.bf16.mxu0 0
  %2938 = vmatpush1.bf16.msra.mxu0 %v2269
  %2939 = vmatprep.subr.bf16.mxu0 0
  %2940 = vmatpush1.bf16.msra.mxu0 %v2270
  %2941 = vmatprep.subr.bf16.mxu0 0
  %2942 = vmatpush1.bf16.msra.mxu0 %v2271
  %2943 = vmatprep.subr.bf16.mxu0 0
  %2944 = vmatpush1.bf16.msra.mxu0 %v2272
  %2945 = vmatprep.subr.bf16.mxu0 0
  %2946 = vmatpush1.bf16.msra.mxu0 %v2273
  %2947 = vmatprep.subr.bf16.mxu0 0
  %2948 = vmatpush1.bf16.msra.mxu0 %v2274
  %2949 = vmatprep.subr.bf16.mxu0 0
  %2950 = vmatpush1.bf16.msra.mxu0 %v2275
  %2951 = vmatprep.subr.bf16.mxu0 0
  %2952 = vmatpush1.bf16.msra.mxu0 %v2276
  %2953 = vmatprep.subr.bf16.mxu0 0
  %2954 = vmatpush1.bf16.msra.mxu0 %v2277
  %2955 = vmatprep.subr.bf16.mxu0 0
  %2956 = vmatpush1.bf16.msra.mxu0 %v2278
  %2957 = vmatprep.subr.bf16.mxu0 0
  %2958 = vmatpush1.bf16.msra.mxu0 %v2279
  %2959 = vmatprep.subr.bf16.mxu0 0
  %2960 = vmatpush1.bf16.msra.mxu0 %v2280
  %2961 = vmatprep.mubr.bf16.mxu0 %v731
  %2962 = vmatmul.mubr.bf16.gmra.mrb[0].mxu0 %v729
  %v2963 = vpop.f32.mrb[0].mxu0
  %v2964 = vadd.f32 %v2924, %v2963
  %v2965 = vpop.f32.mrb[0].mxu0
  %v2966 = vpop.f32.mrb[0].mxu0
  %v2967 = vpop.f32.mrb[0].mxu0
  %2968 = vdwg.mxu0
  %2969 = vmatprep.subr.bf16.mxu0 0
  %2970 = vmatpush1.bf16.msra.mxu0 %v2281
  %2971 = vmatprep.subr.bf16.mxu0 0
  %2972 = vmatpush1.bf16.msra.mxu0 %v2282
  %2973 = vmatprep.subr.bf16.mxu0 0
  %2974 = vmatpush1.bf16.msra.mxu0 %v2283
  %2975 = vmatprep.subr.bf16.mxu0 0
  %2976 = vmatpush1.bf16.msra.mxu0 %v2284
  %2977 = vmatprep.subr.bf16.mxu0 0
  %2978 = vmatpush1.bf16.msra.mxu0 %v2285
  %2979 = vmatprep.subr.bf16.mxu0 0
  %2980 = vmatpush1.bf16.msra.mxu0 %v2286
  %2981 = vmatprep.subr.bf16.mxu0 0
  %2982 = vmatpush1.bf16.msra.mxu0 %v2287
  %2983 = vmatprep.subr.bf16.mxu0 0
  %2984 = vmatpush1.bf16.msra.mxu0 %v2288
  %2985 = vmatprep.subr.bf16.mxu0 0
  %2986 = vmatpush1.bf16.msra.mxu0 %v2289
  %2987 = vmatprep.subr.bf16.mxu0 0
  %2988 = vmatpush1.bf16.msra.mxu0 %v2290
  %2989 = vmatprep.subr.bf16.mxu0 0
  %2990 = vmatpush1.bf16.msra.mxu0 %v2291
  %2991 = vmatprep.subr.bf16.mxu0 0
  %2992 = vmatpush1.bf16.msra.mxu0 %v2292
  %2993 = vmatprep.subr.bf16.mxu0 0
  %2994 = vmatpush1.bf16.msra.mxu0 %v2293
  %2995 = vmatprep.subr.bf16.mxu0 0
  %2996 = vmatpush1.bf16.msra.mxu0 %v2294
  %2997 = vmatprep.subr.bf16.mxu0 0
  %2998 = vmatpush1.bf16.msra.mxu0 %v2295
  %2999 = vmatprep.subr.bf16.mxu0 0
  %3000 = vmatpush1.bf16.msra.mxu0 %v2296
  %3001 = vmatprep.mubr.bf16.mxu0 %v728
  %3002 = vmatmul.mubr.bf16.gmra.mrb[0].mxu0 %v714
  %v3003 = vpop.f32.mrb[0].mxu0
  %v3004 = vadd.f32 %v2964, %v3003
  %v3005 = vpop.f32.mrb[0].mxu0
  %v3006 = vpop.f32.mrb[0].mxu0
  %v3007 = vpop.f32.mrb[0].mxu0
  %3008 = vdwg.mxu0
  %3009 = vmatprep.subr.bf16.mxu0 0
  %3010 = vmatpush1.bf16.msra.mxu0 %v2297
  %3011 = vmatprep.subr.bf16.mxu0 0
  %3012 = vmatpush1.bf16.msra.mxu0 %v2298
  %3013 = vmatprep.subr.bf16.mxu0 0
  %3014 = vmatpush1.bf16.msra.mxu0 %v2299
  %3015 = vmatprep.subr.bf16.mxu0 0
  %3016 = vmatpush1.bf16.msra.mxu0 %v2300
  %3017 = vmatprep.subr.bf16.mxu0 0
  %3018 = vmatpush1.bf16.msra.mxu0 %v2301
  %3019 = vmatprep.subr.bf16.mxu0 0
  %3020 = vmatpush1.bf16.msra.mxu0 %v2302
  %3021 = vmatprep.subr.bf16.mxu0 0
  %3022 = vmatpush1.bf16.msra.mxu0 %v2303
  %3023 = vmatprep.subr.bf16.mxu0 0
  %3024 = vmatpush1.bf16.msra.mxu0 %v2304
  %3025 = vmatprep.subr.bf16.mxu0 0
  %3026 = vmatpush1.bf16.msra.mxu0 %v2305
  %3027 = vmatprep.subr.bf16.mxu0 0
  %3028 = vmatpush1.bf16.msra.mxu0 %v2306
  %3029 = vmatprep.subr.bf16.mxu0 0
  %3030 = vmatpush1.bf16.msra.mxu0 %v2307
  %3031 = vmatprep.subr.bf16.mxu0 0
  %3032 = vmatpush1.bf16.msra.mxu0 %v2308
  %3033 = vmatprep.subr.bf16.mxu0 0
  %3034 = vmatpush1.bf16.msra.mxu0 %v2309
  %3035 = vmatprep.subr.bf16.mxu0 0
  %3036 = vmatpush1.bf16.msra.mxu0 %v2310
  %3037 = vmatprep.subr.bf16.mxu0 0
  %3038 = vmatpush1.bf16.msra.mxu0 %v2311
  %3039 = vmatprep.subr.bf16.mxu0 0
  %3040 = vmatpush1.bf16.msra.mxu0 %v2312
  %3041 = vmatprep.mubr.bf16.mxu0 %v732
  %3042 = vmatmul.mubr.bf16.gmra.mrb[0].mxu0 %v730
  %v3043 = vpop.f32.mrb[0].mxu0
  %v3044 = vadd.f32 %v3004, %v3043
  %v3045 = vpop.f32.mrb[0].mxu0
  %v3046 = vpop.f32.mrb[0].mxu0
  %v3047 = vpop.f32.mrb[0].mxu0
  %3048 = vdwg.mxu0
  %3049 = vmatprep.subr.bf16.mxu0 0
  %3050 = vmatpush1.bf16.msra.mxu0 %v2313
  %3051 = vmatprep.subr.bf16.mxu0 0
  %3052 = vmatpush1.bf16.msra.mxu0 %v2314
  %3053 = vmatprep.subr.bf16.mxu0 0
  %3054 = vmatpush1.bf16.msra.mxu0 %v2315
  %3055 = vmatprep.subr.bf16.mxu0 0
  %3056 = vmatpush1.bf16.msra.mxu0 %v2316
  %3057 = vmatprep.subr.bf16.mxu0 0
  %3058 = vmatpush1.bf16.msra.mxu0 %v2317
  %3059 = vmatprep.subr.bf16.mxu0 0
  %3060 = vmatpush1.bf16.msra.mxu0 %v2318
  %3061 = vmatprep.subr.bf16.mxu0 0
  %3062 = vmatpush1.bf16.msra.mxu0 %v2319
  %3063 = vmatprep.subr.bf16.mxu0 0
  %3064 = vmatpush1.bf16.msra.mxu0 %v2320
  %3065 = vmatprep.subr.bf16.mxu0 0
  %3066 = vmatpush1.bf16.msra.mxu0 %v2321
  %3067 = vmatprep.subr.bf16.mxu0 0
  %3068 = vmatpush1.bf16.msra.mxu0 %v2322
  %3069 = vmatprep.subr.bf16.mxu0 0
  %3070 = vmatpush1.bf16.msra.mxu0 %v2323
  %3071 = vmatprep.subr.bf16.mxu0 0
  %3072 = vmatpush1.bf16.msra.mxu0 %v2324
  %3073 = vmatprep.subr.bf16.mxu0 0
  %3074 = vmatpush1.bf16.msra.mxu0 %v2325
  %3075 = vmatprep.subr.bf16.mxu0 0
  %3076 = vmatpush1.bf16.msra.mxu0 %v2326
  %3077 = vmatprep.subr.bf16.mxu0 0
  %3078 = vmatpush1.bf16.msra.mxu0 %v2327
  %3079 = vmatprep.subr.bf16.mxu0 0
  %3080 = vmatpush1.bf16.msra.mxu0 %v2328
  %3081 = vmatprep.mubr.bf16.mxu0 %v770
  %3082 = vmatmul.mubr.bf16.gmra.mrb[0].mxu0 %v756
  %v3083 = vpop.f32.mrb[0].mxu0
  %v3084 = vadd.f32 %v3044, %v3083
  %v3085 = vpop.f32.mrb[0].mxu0
  %v3086 = vpop.f32.mrb[0].mxu0
  %v3087 = vpop.f32.mrb[0].mxu0
  %3088 = vdwg.mxu0
  %3089 = vmatprep.subr.bf16.mxu0 0
  %3090 = vmatpush1.bf16.msra.mxu0 %v2329
  %3091 = vmatprep.subr.bf16.mxu0 0
  %3092 = vmatpush1.bf16.msra.mxu0 %v2330
  %3093 = vmatprep.subr.bf16.mxu0 0
  %3094 = vmatpush1.bf16.msra.mxu0 %v2331
  %3095 = vmatprep.subr.bf16.mxu0 0
  %3096 = vmatpush1.bf16.msra.mxu0 %v2332
  %3097 = vmatprep.subr.bf16.mxu0 0
  %3098 = vmatpush1.bf16.msra.mxu0 %v2333
  %3099 = vmatprep.subr.bf16.mxu0 0
  %3100 = vmatpush1.bf16.msra.mxu0 %v2334
  %3101 = vmatprep.subr.bf16.mxu0 0
  %3102 = vmatpush1.bf16.msra.mxu0 %v2335
  %3103 = vmatprep.subr.bf16.mxu0 0
  %3104 = vmatpush1.bf16.msra.mxu0 %v2336
  %3105 = vmatprep.subr.bf16.mxu0 0
  %3106 = vmatpush1.bf16.msra.mxu0 %v2337
  %3107 = vmatprep.subr.bf16.mxu0 0
  %3108 = vmatpush1.bf16.msra.mxu0 %v2338
  %3109 = vmatprep.subr.bf16.mxu0 0
  %3110 = vmatpush1.bf16.msra.mxu0 %v2339
  %3111 = vmatprep.subr.bf16.mxu0 0
  %3112 = vmatpush1.bf16.msra.mxu0 %v2340
  %3113 = vmatprep.subr.bf16.mxu0 0
  %3114 = vmatpush1.bf16.msra.mxu0 %v2341
  %3115 = vmatprep.subr.bf16.mxu0 0
  %3116 = vmatpush1.bf16.msra.mxu0 %v2342
  %3117 = vmatprep.subr.bf16.mxu0 0
  %3118 = vmatpush1.bf16.msra.mxu0 %v2343
  %3119 = vmatprep.subr.bf16.mxu0 0
  %3120 = vmatpush1.bf16.msra.mxu0 %v2344
  %3121 = vmatprep.mubr.bf16.mxu0 %v780
  %3122 = vmatmul.mubr.bf16.gmra.mrb[0].mxu0 %v778
  %v3123 = vpop.f32.mrb[0].mxu0
  %v3124 = vadd.f32 %v3084, %v3123
  %v3125 = vpop.f32.mrb[0].mxu0
  %v3126 = vpop.f32.mrb[0].mxu0
  %v3127 = vpop.f32.mrb[0].mxu0
  %3128 = vdwg.mxu0
  %3129 = vmatprep.subr.bf16.mxu0 0
  %3130 = vmatpush1.bf16.msra.mxu0 %v2345
  %3131 = vmatprep.subr.bf16.mxu0 0
  %3132 = vmatpush1.bf16.msra.mxu0 %v2346
  %3133 = vmatprep.subr.bf16.mxu0 0
  %3134 = vmatpush1.bf16.msra.mxu0 %v2347
  %3135 = vmatprep.subr.bf16.mxu0 0
  %3136 = vmatpush1.bf16.msra.mxu0 %v2348
  %3137 = vmatprep.subr.bf16.mxu0 0
  %3138 = vmatpush1.bf16.msra.mxu0 %v2349
  %3139 = vmatprep.subr.bf16.mxu0 0
  %3140 = vmatpush1.bf16.msra.mxu0 %v2350
  %3141 = vmatprep.subr.bf16.mxu0 0
  %3142 = vmatpush1.bf16.msra.mxu0 %v2351
  %3143 = vmatprep.subr.bf16.mxu0 0
  %3144 = vmatpush1.bf16.msra.mxu0 %v2352
  %3145 = vmatprep.subr.bf16.mxu0 0
  %3146 = vmatpush1.bf16.msra.mxu0 %v2353
  %3147 = vmatprep.subr.bf16.mxu0 0
  %3148 = vmatpush1.bf16.msra.mxu0 %v2354
  %3149 = vmatprep.subr.bf16.mxu0 0
  %3150 = vmatpush1.bf16.msra.mxu0 %v2355
  %3151 = vmatprep.subr.bf16.mxu0 0
  %3152 = vmatpush1.bf16.msra.mxu0 %v2356
  %3153 = vmatprep.subr.bf16.mxu0 0
  %3154 = vmatpush1.bf16.msra.mxu0 %v2357
  %3155 = vmatprep.subr.bf16.mxu0 0
  %3156 = vmatpush1.bf16.msra.mxu0 %v2358
  %3157 = vmatprep.subr.bf16.mxu0 0
  %3158 = vmatpush1.bf16.msra.mxu0 %v2359
  %3159 = vmatprep.subr.bf16.mxu0 0
  %3160 = vmatpush1.bf16.msra.mxu0 %v2360
  %3161 = vmatprep.mubr.bf16.mxu0 %v777
  %3162 = vmatmul.mubr.bf16.gmra.mrb[0].mxu0 %v763
  %v3163 = vpop.f32.mrb[0].mxu0
  %v3164 = vadd.f32 %v3124, %v3163
  %v3165 = vpop.f32.mrb[0].mxu0
  %v3166 = vpop.f32.mrb[0].mxu0
  %v3167 = vpop.f32.mrb[0].mxu0
  %3168 = vdwg.mxu0
  %3169 = vmatprep.subr.bf16.mxu0 0
  %3170 = vmatpush1.bf16.msra.mxu0 %v2361
  %3171 = vmatprep.subr.bf16.mxu0 0
  %3172 = vmatpush1.bf16.msra.mxu0 %v2362
  %3173 = vmatprep.subr.bf16.mxu0 0
  %3174 = vmatpush1.bf16.msra.mxu0 %v2363
  %3175 = vmatprep.subr.bf16.mxu0 0
  %3176 = vmatpush1.bf16.msra.mxu0 %v2364
  %3177 = vmatprep.subr.bf16.mxu0 0
  %3178 = vmatpush1.bf16.msra.mxu0 %v2365
  %3179 = vmatprep.subr.bf16.mxu0 0
  %3180 = vmatpush1.bf16.msra.mxu0 %v2366
  %3181 = vmatprep.subr.bf16.mxu0 0
  %3182 = vmatpush1.bf16.msra.mxu0 %v2367
  %3183 = vmatprep.subr.bf16.mxu0 0
  %3184 = vmatpush1.bf16.msra.mxu0 %v2368
  %3185 = vmatprep.subr.bf16.mxu0 0
  %3186 = vmatpush1.bf16.msra.mxu0 %v2369
  %3187 = vmatprep.subr.bf16.mxu0 0
  %3188 = vmatpush1.bf16.msra.mxu0 %v2370
  %3189 = vmatprep.subr.bf16.mxu0 0
  %3190 = vmatpush1.bf16.msra.mxu0 %v2371
  %3191 = vmatprep.subr.bf16.mxu0 0
  %3192 = vmatpush1.bf16.msra.mxu0 %v2372
  %3193 = vmatprep.subr.bf16.mxu0 0
  %3194 = vmatpush1.bf16.msra.mxu0 %v2373
  %3195 = vmatprep.subr.bf16.mxu0 0
  %3196 = vmatpush1.bf16.msra.mxu0 %v2374
  %3197 = vmatprep.subr.bf16.mxu0 0
  %3198 = vmatpush1.bf16.msra.mxu0 %v2375
  %3199 = vmatprep.subr.bf16.mxu0 0
  %3200 = vmatpush1.bf16.msra.mxu0 %v2376
  %3201 = vmatprep.mubr.bf16.mxu0 %v781
  %3202 = vmatmul.mubr.bf16.gmra.mrb[0].mxu0 %v779
  %v3203 = vpop.f32.mrb[0].mxu0
  %v3204 = vadd.f32 %v3164, %v3203
  %v3205 = vpop.f32.mrb[0].mxu0
  %v3206 = vpop.f32.mrb[0].mxu0
  %v3207 = vpop.f32.mrb[0].mxu0
  %3208 = vdwg.mxu0
  %3209 = vmatprep.subr.bf16.mxu0 0
  %3210 = vmatpush1.bf16.msra.mxu0 %v2377
  %3211 = vmatprep.subr.bf16.mxu0 0
  %3212 = vmatpush1.bf16.msra.mxu0 %v2378
  %3213 = vmatprep.subr.bf16.mxu0 0
  %3214 = vmatpush1.bf16.msra.mxu0 %v2379
  %3215 = vmatprep.subr.bf16.mxu0 0
  %3216 = vmatpush1.bf16.msra.mxu0 %v2380
  %3217 = vmatprep.subr.bf16.mxu0 0
  %3218 = vmatpush1.bf16.msra.mxu0 %v2381
  %3219 = vmatprep.subr.bf16.mxu0 0
  %3220 = vmatpush1.bf16.msra.mxu0 %v2382
  %3221 = vmatprep.subr.bf16.mxu0 0
  %3222 = vmatpush1.bf16.msra.mxu0 %v2383
  %3223 = vmatprep.subr.bf16.mxu0 0
  %3224 = vmatpush1.bf16.msra.mxu0 %v2384
  %3225 = vmatprep.subr.bf16.mxu0 0
  %3226 = vmatpush1.bf16.msra.mxu0 %v2385
  %3227 = vmatprep.subr.bf16.mxu0 0
  %3228 = vmatpush1.bf16.msra.mxu0 %v2386
  %3229 = vmatprep.subr.bf16.mxu0 0
  %3230 = vmatpush1.bf16.msra.mxu0 %v2387
  %3231 = vmatprep.subr.bf16.mxu0 0
  %3232 = vmatpush1.bf16.msra.mxu0 %v2388
  %3233 = vmatprep.subr.bf16.mxu0 0
  %3234 = vmatpush1.bf16.msra.mxu0 %v2389
  %3235 = vmatprep.subr.bf16.mxu0 0
  %3236 = vmatpush1.bf16.msra.mxu0 %v2390
  %3237 = vmatprep.subr.bf16.mxu0 0
  %3238 = vmatpush1.bf16.msra.mxu0 %v2391
  %3239 = vmatprep.subr.bf16.mxu0 0
  %3240 = vmatpush1.bf16.msra.mxu0 %v2392
  %3241 = vmatprep.mubr.bf16.mxu0 %v819
  %3242 = vmatmul.mubr.bf16.gmra.mrb[0].mxu0 %v805
  %v3243 = vpop.f32.mrb[0].mxu0
  %v3244 = vadd.f32 %v3204, %v3243
  %v3245 = vpop.f32.mrb[0].mxu0
  %v3246 = vpop.f32.mrb[0].mxu0
  %v3247 = vpop.f32.mrb[0].mxu0
  %3248 = vdwg.mxu0
  %3249 = vmatprep.subr.bf16.mxu0 0
  %3250 = vmatpush1.bf16.msra.mxu0 %v2393
  %3251 = vmatprep.subr.bf16.mxu0 0
  %3252 = vmatpush1.bf16.msra.mxu0 %v2394
  %3253 = vmatprep.subr.bf16.mxu0 0
  %3254 = vmatpush1.bf16.msra.mxu0 %v2395
  %3255 = vmatprep.subr.bf16.mxu0 0
  %3256 = vmatpush1.bf16.msra.mxu0 %v2396
  %3257 = vmatprep.subr.bf16.mxu0 0
  %3258 = vmatpush1.bf16.msra.mxu0 %v2397
  %3259 = vmatprep.subr.bf16.mxu0 0
  %3260 = vmatpush1.bf16.msra.mxu0 %v2398
  %3261 = vmatprep.subr.bf16.mxu0 0
  %3262 = vmatpush1.bf16.msra.mxu0 %v2399
  %3263 = vmatprep.subr.bf16.mxu0 0
  %3264 = vmatpush1.bf16.msra.mxu0 %v2400
  %3265 = vmatprep.subr.bf16.mxu0 0
  %3266 = vmatpush1.bf16.msra.mxu0 %v2401
  %3267 = vmatprep.subr.bf16.mxu0 0
  %3268 = vmatpush1.bf16.msra.mxu0 %v2402
  %3269 = vmatprep.subr.bf16.mxu0 0
  %3270 = vmatpush1.bf16.msra.mxu0 %v2403
  %3271 = vmatprep.subr.bf16.mxu0 0
  %3272 = vmatpush1.bf16.msra.mxu0 %v2404
  %3273 = vmatprep.subr.bf16.mxu0 0
  %3274 = vmatpush1.bf16.msra.mxu0 %v2405
  %3275 = vmatprep.subr.bf16.mxu0 0
  %3276 = vmatpush1.bf16.msra.mxu0 %v2406
  %3277 = vmatprep.subr.bf16.mxu0 0
  %3278 = vmatpush1.bf16.msra.mxu0 %v2407
  %3279 = vmatprep.subr.bf16.mxu0 0
  %3280 = vmatpush1.bf16.msra.mxu0 %v2408
  %3281 = vmatprep.mubr.bf16.mxu0 %v829
  %3282 = vmatmul.mubr.bf16.gmra.mrb[0].mxu0 %v827
  %v3283 = vpop.f32.mrb[0].mxu0
  %v3284 = vadd.f32 %v3244, %v3283
  %v3285 = vpop.f32.mrb[0].mxu0
  %v3286 = vpop.f32.mrb[0].mxu0
  %v3287 = vpop.f32.mrb[0].mxu0
  %3288 = vdwg.mxu0
  %3289 = vmatprep.subr.bf16.mxu0 0
  %3290 = vmatpush1.bf16.msra.mxu0 %v2409
  %3291 = vmatprep.subr.bf16.mxu0 0
  %3292 = vmatpush1.bf16.msra.mxu0 %v2410
  %3293 = vmatprep.subr.bf16.mxu0 0
  %3294 = vmatpush1.bf16.msra.mxu0 %v2411
  %3295 = vmatprep.subr.bf16.mxu0 0
  %3296 = vmatpush1.bf16.msra.mxu0 %v2412
  %3297 = vmatprep.subr.bf16.mxu0 0
  %3298 = vmatpush1.bf16.msra.mxu0 %v2413
  %3299 = vmatprep.subr.bf16.mxu0 0
  %3300 = vmatpush1.bf16.msra.mxu0 %v2414
  %3301 = vmatprep.subr.bf16.mxu0 0
  %3302 = vmatpush1.bf16.msra.mxu0 %v2415
  %3303 = vmatprep.subr.bf16.mxu0 0
  %3304 = vmatpush1.bf16.msra.mxu0 %v2416
  %3305 = vmatprep.subr.bf16.mxu0 0
  %3306 = vmatpush1.bf16.msra.mxu0 %v2417
  %3307 = vmatprep.subr.bf16.mxu0 0
  %3308 = vmatpush1.bf16.msra.mxu0 %v2418
  %3309 = vmatprep.subr.bf16.mxu0 0
  %3310 = vmatpush1.bf16.msra.mxu0 %v2419
  %3311 = vmatprep.subr.bf16.mxu0 0
  %3312 = vmatpush1.bf16.msra.mxu0 %v2420
  %3313 = vmatprep.subr.bf16.mxu0 0
  %3314 = vmatpush1.bf16.msra.mxu0 %v2421
  %3315 = vmatprep.subr.bf16.mxu0 0
  %3316 = vmatpush1.bf16.msra.mxu0 %v2422
  %3317 = vmatprep.subr.bf16.mxu0 0
  %3318 = vmatpush1.bf16.msra.mxu0 %v2423
  %3319 = vmatprep.subr.bf16.mxu0 0
  %3320 = vmatpush1.bf16.msra.mxu0 %v2424
  %3321 = vmatprep.mubr.bf16.mxu0 %v826
  %3322 = vmatmul.mubr.bf16.gmra.mrb[0].mxu0 %v812
  %v3323 = vpop.f32.mrb[0].mxu0
  %v3324 = vadd.f32 %v3284, %v3323
  %v3325 = vpop.f32.mrb[0].mxu0
  %v3326 = vpop.f32.mrb[0].mxu0
  %v3327 = vpop.f32.mrb[0].mxu0
  %3328 = vdwg.mxu0
  %3329 = vmatprep.subr.bf16.mxu0 0
  %3330 = vmatpush1.bf16.msra.mxu0 %v2425
  %3331 = vmatprep.subr.bf16.mxu0 0
  %3332 = vmatpush1.bf16.msra.mxu0 %v2426
  %3333 = vmatprep.subr.bf16.mxu0 0
  %3334 = vmatpush1.bf16.msra.mxu0 %v2427
  %3335 = vmatprep.subr.bf16.mxu0 0
  %3336 = vmatpush1.bf16.msra.mxu0 %v2428
  %3337 = vmatprep.subr.bf16.mxu0 0
  %3338 = vmatpush1.bf16.msra.mxu0 %v2429
  %3339 = vmatprep.subr.bf16.mxu0 0
  %3340 = vmatpush1.bf16.msra.mxu0 %v2430
  %3341 = vmatprep.subr.bf16.mxu0 0
  %3342 = vmatpush1.bf16.msra.mxu0 %v2431
  %3343 = vmatprep.subr.bf16.mxu0 0
  %3344 = vmatpush1.bf16.msra.mxu0 %v2432
  %3345 = vmatprep.subr.bf16.mxu0 0
  %3346 = vmatpush1.bf16.msra.mxu0 %v2433
  %3347 = vmatprep.subr.bf16.mxu0 0
  %3348 = vmatpush1.bf16.msra.mxu0 %v2434
  %3349 = vmatprep.subr.bf16.mxu0 0
  %3350 = vmatpush1.bf16.msra.mxu0 %v2435
  %3351 = vmatprep.subr.bf16.mxu0 0
  %3352 = vmatpush1.bf16.msra.mxu0 %v2436
  %3353 = vmatprep.subr.bf16.mxu0 0
  %3354 = vmatpush1.bf16.msra.mxu0 %v2437
  %3355 = vmatprep.subr.bf16.mxu0 0
  %3356 = vmatpush1.bf16.msra.mxu0 %v2438
  %3357 = vmatprep.subr.bf16.mxu0 0
  %3358 = vmatpush1.bf16.msra.mxu0 %v2439
  %3359 = vmatprep.subr.bf16.mxu0 0
  %3360 = vmatpush1.bf16.msra.mxu0 %v2440
  %3361 = vmatprep.mubr.bf16.mxu0 %v830
  %3362 = vmatmul.mubr.bf16.gmra.mrb[0].mxu0 %v828
  %v3363 = vpop.f32.mrb[0].mxu0
  %v3364 = vadd.f32 %v3324, %v3363
  %v3365 = vpop.f32.mrb[0].mxu0
  %v3366 = vpop.f32.mrb[0].mxu0
  %v3367 = vpop.f32.mrb[0].mxu0
  %3368 = vdwg.mxu0
  %3369 = vmatprep.subr.bf16.mxu0 0
  %3370 = vmatpush1.bf16.msra.mxu0 %v2441
  %3371 = vmatprep.subr.bf16.mxu0 0
  %3372 = vmatpush1.bf16.msra.mxu0 %v2442
  %3373 = vmatprep.subr.bf16.mxu0 0
  %3374 = vmatpush1.bf16.msra.mxu0 %v2443
  %3375 = vmatprep.subr.bf16.mxu0 0
  %3376 = vmatpush1.bf16.msra.mxu0 %v2444
  %3377 = vmatprep.subr.bf16.mxu0 0
  %3378 = vmatpush1.bf16.msra.mxu0 %v2445
  %3379 = vmatprep.subr.bf16.mxu0 0
  %3380 = vmatpush1.bf16.msra.mxu0 %v2446
  %3381 = vmatprep.subr.bf16.mxu0 0
  %3382 = vmatpush1.bf16.msra.mxu0 %v2447
  %3383 = vmatprep.subr.bf16.mxu0 0
  %3384 = vmatpush1.bf16.msra.mxu0 %v2448
  %3385 = vmatprep.subr.bf16.mxu0 0
  %3386 = vmatpush1.bf16.msra.mxu0 %v2449
  %3387 = vmatprep.subr.bf16.mxu0 0
  %3388 = vmatpush1.bf16.msra.mxu0 %v2450
  %3389 = vmatprep.subr.bf16.mxu0 0
  %3390 = vmatpush1.bf16.msra.mxu0 %v2451
  %3391 = vmatprep.subr.bf16.mxu0 0
  %3392 = vmatpush1.bf16.msra.mxu0 %v2452
  %3393 = vmatprep.subr.bf16.mxu0 0
  %3394 = vmatpush1.bf16.msra.mxu0 %v2453
  %3395 = vmatprep.subr.bf16.mxu0 0
  %3396 = vmatpush1.bf16.msra.mxu0 %v2454
  %3397 = vmatprep.subr.bf16.mxu0 0
  %3398 = vmatpush1.bf16.msra.mxu0 %v2455
  %3399 = vmatprep.subr.bf16.mxu0 0
  %3400 = vmatpush1.bf16.msra.mxu0 %v2456
  %3401 = vmatprep.mubr.bf16.mxu0 %v868
  %3402 = vmatmul.mubr.bf16.gmra.mrb[0].mxu0 %v854
  %v3403 = vpop.f32.mrb[0].mxu0
  %v3404 = vadd.f32 %v3364, %v3403
  %v3405 = vpop.f32.mrb[0].mxu0
  %v3406 = vpop.f32.mrb[0].mxu0
  %v3407 = vpop.f32.mrb[0].mxu0
  %3408 = vdwg.mxu0
  %3409 = vmatprep.subr.bf16.mxu0 0
  %3410 = vmatpush1.bf16.msra.mxu0 %v2457
  %3411 = vmatprep.subr.bf16.mxu0 0
  %3412 = vmatpush1.bf16.msra.mxu0 %v2458
  %3413 = vmatprep.subr.bf16.mxu0 0
  %3414 = vmatpush1.bf16.msra.mxu0 %v2459
  %3415 = vmatprep.subr.bf16.mxu0 0
  %3416 = vmatpush1.bf16.msra.mxu0 %v2460
  %3417 = vmatprep.subr.bf16.mxu0 0
  %3418 = vmatpush1.bf16.msra.mxu0 %v2461
  %3419 = vmatprep.subr.bf16.mxu0 0
  %3420 = vmatpush1.bf16.msra.mxu0 %v2462
  %3421 = vmatprep.subr.bf16.mxu0 0
  %3422 = vmatpush1.bf16.msra.mxu0 %v2463
  %3423 = vmatprep.subr.bf16.mxu0 0
  %3424 = vmatpush1.bf16.msra.mxu0 %v2464
  %3425 = vmatprep.subr.bf16.mxu0 0
  %3426 = vmatpush1.bf16.msra.mxu0 %v2465
  %3427 = vmatprep.subr.bf16.mxu0 0
  %3428 = vmatpush1.bf16.msra.mxu0 %v2466
  %3429 = vmatprep.subr.bf16.mxu0 0
  %3430 = vmatpush1.bf16.msra.mxu0 %v2467
  %3431 = vmatprep.subr.bf16.mxu0 0
  %3432 = vmatpush1.bf16.msra.mxu0 %v2468
  %3433 = vmatprep.subr.bf16.mxu0 0
  %3434 = vmatpush1.bf16.msra.mxu0 %v2469
  %3435 = vmatprep.subr.bf16.mxu0 0
  %3436 = vmatpush1.bf16.msra.mxu0 %v2470
  %3437 = vmatprep.subr.bf16.mxu0 0
  %3438 = vmatpush1.bf16.msra.mxu0 %v2471
  %3439 = vmatprep.subr.bf16.mxu0 0
  %3440 = vmatpush1.bf16.msra.mxu0 %v2472
  %3441 = vmatprep.mubr.bf16.mxu0 %v878
  %3442 = vmatmul.mubr.bf16.gmra.mrb[0].mxu0 %v876
  %v3443 = vpop.f32.mrb[0].mxu0
  %v3444 = vadd.f32 %v3404, %v3443
  %v3445 = vpop.f32.mrb[0].mxu0
  %v3446 = vpop.f32.mrb[0].mxu0
  %v3447 = vpop.f32.mrb[0].mxu0
  %3448 = vdwg.mxu0
  %3449 = vmatprep.subr.bf16.mxu0 0
  %3450 = vmatpush1.bf16.msra.mxu0 %v2473
  %3451 = vmatprep.subr.bf16.mxu0 0
  %3452 = vmatpush1.bf16.msra.mxu0 %v2474
  %3453 = vmatprep.subr.bf16.mxu0 0
  %3454 = vmatpush1.bf16.msra.mxu0 %v2475
  %3455 = vmatprep.subr.bf16.mxu0 0
  %3456 = vmatpush1.bf16.msra.mxu0 %v2476
  %3457 = vmatprep.subr.bf16.mxu0 0
  %3458 = vmatpush1.bf16.msra.mxu0 %v2477
  %3459 = vmatprep.subr.bf16.mxu0 0
  %3460 = vmatpush1.bf16.msra.mxu0 %v2478
  %3461 = vmatprep.subr.bf16.mxu0 0
  %3462 = vmatpush1.bf16.msra.mxu0 %v2479
  %3463 = vmatprep.subr.bf16.mxu0 0
  %3464 = vmatpush1.bf16.msra.mxu0 %v2480
  %3465 = vmatprep.subr.bf16.mxu0 0
  %3466 = vmatpush1.bf16.msra.mxu0 %v2481
  %3467 = vmatprep.subr.bf16.mxu0 0
  %3468 = vmatpush1.bf16.msra.mxu0 %v2482
  %3469 = vmatprep.subr.bf16.mxu0 0
  %3470 = vmatpush1.bf16.msra.mxu0 %v2483
  %3471 = vmatprep.subr.bf16.mxu0 0
  %3472 = vmatpush1.bf16.msra.mxu0 %v2484
  %3473 = vmatprep.subr.bf16.mxu0 0
  %3474 = vmatpush1.bf16.msra.mxu0 %v2485
  %3475 = vmatprep.subr.bf16.mxu0 0
  %3476 = vmatpush1.bf16.msra.mxu0 %v2486
  %3477 = vmatprep.subr.bf16.mxu0 0
  %3478 = vmatpush1.bf16.msra.mxu0 %v2487
  %3479 = vmatprep.subr.bf16.mxu0 0
  %3480 = vmatpush1.bf16.msra.mxu0 %v2488
  %3481 = vmatprep.mubr.bf16.mxu0 %v875
  %3482 = vmatmul.mubr.bf16.gmra.mrb[0].mxu0 %v861
  %v3483 = vpop.f32.mrb[0].mxu0
  %v3484 = vadd.f32 %v3444, %v3483
  %v3485 = vpop.f32.mrb[0].mxu0
  %v3486 = vpop.f32.mrb[0].mxu0
  %v3487 = vpop.f32.mrb[0].mxu0
  %3488 = vdwg.mxu0
  %3489 = vmatprep.subr.bf16.mxu0 0
  %3490 = vmatpush1.bf16.msra.mxu0 %v2489
  %3491 = vmatprep.subr.bf16.mxu0 0
  %3492 = vmatpush1.bf16.msra.mxu0 %v2490
  %3493 = vmatprep.subr.bf16.mxu0 0
  %3494 = vmatpush1.bf16.msra.mxu0 %v2491
  %3495 = vmatprep.subr.bf16.mxu0 0
  %3496 = vmatpush1.bf16.msra.mxu0 %v2492
  %3497 = vmatprep.subr.bf16.mxu0 0
  %3498 = vmatpush1.bf16.msra.mxu0 %v2493
  %3499 = vmatprep.subr.bf16.mxu0 0
  %3500 = vmatpush1.bf16.msra.mxu0 %v2494
  %3501 = vmatprep.subr.bf16.mxu0 0
  %3502 = vmatpush1.bf16.msra.mxu0 %v2495
  %3503 = vmatprep.subr.bf16.mxu0 0
  %3504 = vmatpush1.bf16.msra.mxu0 %v2496
  %3505 = vmatprep.subr.bf16.mxu0 0
  %3506 = vmatpush1.bf16.msra.mxu0 %v2497
  %3507 = vmatprep.subr.bf16.mxu0 0
  %3508 = vmatpush1.bf16.msra.mxu0 %v2498
  %3509 = vmatprep.subr.bf16.mxu0 0
  %3510 = vmatpush1.bf16.msra.mxu0 %v2499
  %3511 = vmatprep.subr.bf16.mxu0 0
  %3512 = vmatpush1.bf16.msra.mxu0 %v2500
  %3513 = vmatprep.subr.bf16.mxu0 0
  %3514 = vmatpush1.bf16.msra.mxu0 %v2501
  %3515 = vmatprep.subr.bf16.mxu0 0
  %3516 = vmatpush1.bf16.msra.mxu0 %v2502
  %3517 = vmatprep.subr.bf16.mxu0 0
  %3518 = vmatpush1.bf16.msra.mxu0 %v2503
  %3519 = vmatprep.subr.bf16.mxu0 0
  %3520 = vmatpush1.bf16.msra.mxu0 %v2504
  %3521 = vmatprep.mubr.bf16.mxu0 %v879
  %3522 = vmatmul.mubr.bf16.gmra.mrb[0].mxu0 %v877
  %v3523 = vpop.f32.mrb[0].mxu0
  %v3524 = vadd.f32 %v3484, %v3523
  %v3525 = vpop.f32.mrb[0].mxu0
  %v3526 = vpop.f32.mrb[0].mxu0
  %v3527 = vpop.f32.mrb[0].mxu0
  %3528 = vdwg.mxu0
  %3529 = vmatprep.subr.bf16.mxu0 0
  %3530 = vmatpush1.bf16.msra.mxu0 %v2505
  %3531 = vmatprep.subr.bf16.mxu0 0
  %3532 = vmatpush1.bf16.msra.mxu0 %v2506
  %3533 = vmatprep.subr.bf16.mxu0 0
  %3534 = vmatpush1.bf16.msra.mxu0 %v2507
  %3535 = vmatprep.subr.bf16.mxu0 0
  %3536 = vmatpush1.bf16.msra.mxu0 %v2508
  %3537 = vmatprep.subr.bf16.mxu0 0
  %3538 = vmatpush1.bf16.msra.mxu0 %v2509
  %3539 = vmatprep.subr.bf16.mxu0 0
  %3540 = vmatpush1.bf16.msra.mxu0 %v2510
  %3541 = vmatprep.subr.bf16.mxu0 0
  %3542 = vmatpush1.bf16.msra.mxu0 %v2511
  %3543 = vmatprep.subr.bf16.mxu0 0
  %3544 = vmatpush1.bf16.msra.mxu0 %v2512
  %3545 = vmatprep.subr.bf16.mxu0 0
  %3546 = vmatpush1.bf16.msra.mxu0 %v2513
  %3547 = vmatprep.subr.bf16.mxu0 0
  %3548 = vmatpush1.bf16.msra.mxu0 %v2514
  %3549 = vmatprep.subr.bf16.mxu0 0
  %3550 = vmatpush1.bf16.msra.mxu0 %v2515
  %3551 = vmatprep.subr.bf16.mxu0 0
  %3552 = vmatpush1.bf16.msra.mxu0 %v2516
  %3553 = vmatprep.subr.bf16.mxu0 0
  %3554 = vmatpush1.bf16.msra.mxu0 %v2517
  %3555 = vmatprep.subr.bf16.mxu0 0
  %3556 = vmatpush1.bf16.msra.mxu0 %v2518
  %3557 = vmatprep.subr.bf16.mxu0 0
  %3558 = vmatpush1.bf16.msra.mxu0 %v2519
  %3559 = vmatprep.subr.bf16.mxu0 0
  %3560 = vmatpush1.bf16.msra.mxu0 %v2520
  %3561 = vmatprep.mubr.bf16.mxu0 %v917
  %3562 = vmatmul.mubr.bf16.gmra.mrb[0].mxu0 %v903
  %v3563 = vpop.f32.mrb[0].mxu0
  %v3564 = vadd.f32 %v3524, %v3563
  %v3565 = vpop.f32.mrb[0].mxu0
  %v3566 = vpop.f32.mrb[0].mxu0
  %v3567 = vpop.f32.mrb[0].mxu0
  %3568 = vdwg.mxu0
  %3569 = vmatprep.subr.bf16.mxu0 0
  %3570 = vmatpush1.bf16.msra.mxu0 %v2521
  %3571 = vmatprep.subr.bf16.mxu0 0
  %3572 = vmatpush1.bf16.msra.mxu0 %v2522
  %3573 = vmatprep.subr.bf16.mxu0 0
  %3574 = vmatpush1.bf16.msra.mxu0 %v2523
  %3575 = vmatprep.subr.bf16.mxu0 0
  %3576 = vmatpush1.bf16.msra.mxu0 %v2524
  %3577 = vmatprep.subr.bf16.mxu0 0
  %3578 = vmatpush1.bf16.msra.mxu0 %v2525
  %3579 = vmatprep.subr.bf16.mxu0 0
  %3580 = vmatpush1.bf16.msra.mxu0 %v2526
  %3581 = vmatprep.subr.bf16.mxu0 0
  %3582 = vmatpush1.bf16.msra.mxu0 %v2527
  %3583 = vmatprep.subr.bf16.mxu0 0
  %3584 = vmatpush1.bf16.msra.mxu0 %v2528
  %3585 = vmatprep.subr.bf16.mxu0 0
  %3586 = vmatpush1.bf16.msra.mxu0 %v2529
  %3587 = vmatprep.subr.bf16.mxu0 0
  %3588 = vmatpush1.bf16.msra.mxu0 %v2530
  %3589 = vmatprep.subr.bf16.mxu0 0
  %3590 = vmatpush1.bf16.msra.mxu0 %v2531
  %3591 = vmatprep.subr.bf16.mxu0 0
  %3592 = vmatpush1.bf16.msra.mxu0 %v2532
  %3593 = vmatprep.subr.bf16.mxu0 0
  %3594 = vmatpush1.bf16.msra.mxu0 %v2533
  %3595 = vmatprep.subr.bf16.mxu0 0
  %3596 = vmatpush1.bf16.msra.mxu0 %v2534
  %3597 = vmatprep.subr.bf16.mxu0 0
  %3598 = vmatpush1.bf16.msra.mxu0 %v2535
  %3599 = vmatprep.subr.bf16.mxu0 0
  %3600 = vmatpush1.bf16.msra.mxu0 %v2536
  %3601 = vmatprep.mubr.bf16.mxu0 %v927
  %3602 = vmatmul.mubr.bf16.gmra.mrb[0].mxu0 %v925
  %v3603 = vpop.f32.mrb[0].mxu0
  %v3604 = vadd.f32 %v3564, %v3603
  %v3605 = vpop.f32.mrb[0].mxu0
  %v3606 = vpop.f32.mrb[0].mxu0
  %v3607 = vpop.f32.mrb[0].mxu0
  %3608 = vdwg.mxu0
  %3609 = vmatprep.subr.bf16.mxu0 0
  %3610 = vmatpush1.bf16.msra.mxu0 %v2537
  %3611 = vmatprep.subr.bf16.mxu0 0
  %3612 = vmatpush1.bf16.msra.mxu0 %v2538
  %3613 = vmatprep.subr.bf16.mxu0 0
  %3614 = vmatpush1.bf16.msra.mxu0 %v2539
  %3615 = vmatprep.subr.bf16.mxu0 0
  %3616 = vmatpush1.bf16.msra.mxu0 %v2540
  %3617 = vmatprep.subr.bf16.mxu0 0
  %3618 = vmatpush1.bf16.msra.mxu0 %v2541
  %3619 = vmatprep.subr.bf16.mxu0 0
  %3620 = vmatpush1.bf16.msra.mxu0 %v2542
  %3621 = vmatprep.subr.bf16.mxu0 0
  %3622 = vmatpush1.bf16.msra.mxu0 %v2543
  %3623 = vmatprep.subr.bf16.mxu0 0
  %3624 = vmatpush1.bf16.msra.mxu0 %v2544
  %3625 = vmatprep.subr.bf16.mxu0 0
  %3626 = vmatpush1.bf16.msra.mxu0 %v2545
  %3627 = vmatprep.subr.bf16.mxu0 0
  %3628 = vmatpush1.bf16.msra.mxu0 %v2546
  %3629 = vmatprep.subr.bf16.mxu0 0
  %3630 = vmatpush1.bf16.msra.mxu0 %v2547
  %3631 = vmatprep.subr.bf16.mxu0 0
  %3632 = vmatpush1.bf16.msra.mxu0 %v2548
  %3633 = vmatprep.subr.bf16.mxu0 0
  %3634 = vmatpush1.bf16.msra.mxu0 %v2549
  %3635 = vmatprep.subr.bf16.mxu0 0
  %3636 = vmatpush1.bf16.msra.mxu0 %v2550
  %3637 = vmatprep.subr.bf16.mxu0 0
  %3638 = vmatpush1.bf16.msra.mxu0 %v2551
  %3639 = vmatprep.subr.bf16.mxu0 0
  %3640 = vmatpush1.bf16.msra.mxu0 %v2552
  %3641 = vmatprep.mubr.bf16.mxu0 %v924
  %3642 = vmatmul.mubr.bf16.gmra.mrb[0].mxu0 %v910
  %v3643 = vpop.f32.mrb[0].mxu0
  %v3644 = vadd.f32 %v3604, %v3643
  %v3645 = vpop.f32.mrb[0].mxu0
  %v3646 = vpop.f32.mrb[0].mxu0
  %v3647 = vpop.f32.mrb[0].mxu0
  %3648 = vdwg.mxu0
  %3649 = vmatprep.subr.bf16.mxu0 0
  %3650 = vmatpush1.bf16.msra.mxu0 %v2553
  %3651 = vmatprep.subr.bf16.mxu0 0
  %3652 = vmatpush1.bf16.msra.mxu0 %v2554
  %3653 = vmatprep.subr.bf16.mxu0 0
  %3654 = vmatpush1.bf16.msra.mxu0 %v2555
  %3655 = vmatprep.subr.bf16.mxu0 0
  %3656 = vmatpush1.bf16.msra.mxu0 %v2556
  %3657 = vmatprep.subr.bf16.mxu0 0
  %3658 = vmatpush1.bf16.msra.mxu0 %v2557
  %3659 = vmatprep.subr.bf16.mxu0 0
  %3660 = vmatpush1.bf16.msra.mxu0 %v2558
  %3661 = vmatprep.subr.bf16.mxu0 0
  %3662 = vmatpush1.bf16.msra.mxu0 %v2559
  %3663 = vmatprep.subr.bf16.mxu0 0
  %3664 = vmatpush1.bf16.msra.mxu0 %v2560
  %3665 = vmatprep.subr.bf16.mxu0 0
  %3666 = vmatpush1.bf16.msra.mxu0 %v2561
  %3667 = vmatprep.subr.bf16.mxu0 0
  %3668 = vmatpush1.bf16.msra.mxu0 %v2562
  %3669 = vmatprep.subr.bf16.mxu0 0
  %3670 = vmatpush1.bf16.msra.mxu0 %v2563
  %3671 = vmatprep.subr.bf16.mxu0 0
  %3672 = vmatpush1.bf16.msra.mxu0 %v2564
  %3673 = vmatprep.subr.bf16.mxu0 0
  %3674 = vmatpush1.bf16.msra.mxu0 %v2565
  %3675 = vmatprep.subr.bf16.mxu0 0
  %3676 = vmatpush1.bf16.msra.mxu0 %v2566
  %3677 = vmatprep.subr.bf16.mxu0 0
  %3678 = vmatpush1.bf16.msra.mxu0 %v2567
  %3679 = vmatprep.subr.bf16.mxu0 0
  %3680 = vmatpush1.bf16.msra.mxu0 %v2568
  %3681 = vmatprep.mubr.bf16.mxu0 %v928
  %3682 = vmatmul.mubr.bf16.gmra.mrb[0].mxu0 %v926
  %v3683 = vpop.f32.mrb[0].mxu0
  %v3684 = vadd.f32 %v3644, %v3683
  %v3685 = vpop.f32.mrb[0].mxu0
  %v3686 = vpop.f32.mrb[0].mxu0
  %v3687 = vpop.f32.mrb[0].mxu0
  %3688 = vdwg.mxu0
  %v3689 = vmax.f32 %v3684, 0.0
  %v3690 = vld [vmem:[%s3] sm:$0xf]
  %v3691 = vld [vmem:[%s3 + $0x4] sm:$0xf]
  %v3692 = vld [vmem:[%s3 + $0x8] sm:$0xf]
  %v3693 = vld [vmem:[%s3 + $0xc] sm:$0xf]
  %v3694 = vld [vmem:[%s3 + $0x10] sm:$0xf]
  %v3695 = vld [vmem:[%s3 + $0x14] sm:$0xf]
  %v3696 = vld [vmem:[%s3 + $0x18] sm:$0xf]
  %v3697 = vld [vmem:[%s3 + $0x1c] sm:$0xf]
  %v3698 = vld [vmem:[%s3 + $0x20] sm:$0xf]
  %v3699 = vld [vmem:[%s3 + $0x24] sm:$0xf]
  %v3700 = vld [vmem:[%s3 + $0x28] sm:$0xf]
  %v3701 = vld [vmem:[%s3 + $0x2c] sm:$0xf]
  %v3702 = vld [vmem:[%s3 + $0x30] sm:$0xf]
  %v3703 = vld [vmem:[%s3 + $0x34] sm:$0xf]
  %v3704 = vld [vmem:[%s3 + $0x38] sm:$0xf]
  %v3705 = vld [vmem:[%s3 + $0x3c] sm:$0xf]
  %v3706 = vpack.c.bf16 %v3689, %v3689
  %v3707 = vld [vmem:[%s4] sm:$0x1]
  %v3709 = vlaneseq
  %v3710 = vshrl.u32 %v3709, 7
  %v3711 = vsub.s32 0, %v3710
  %v3712 = vrot.slane %v3707, %v3711
  %v3730 = vunpack.c.l.b16 %v3690
  %v3731 = vunpack.c.l.b16 %v3691
  %v3732 = vunpack.c.l.b16 %v3692
  %v3733 = vunpack.c.l.b16 %v3693
  %v3734 = vunpack.c.l.b16 %v3694
  %v3735 = vunpack.c.l.b16 %v3695
  %v3736 = vunpack.c.l.b16 %v3696
  %v3737 = vunpack.c.l.b16 %v3697
  %v3738 = vunpack.c.l.b16 %v3698
  %v3739 = vunpack.c.l.b16 %v3699
  %v3740 = vunpack.c.l.b16 %v3700
  %v3741 = vunpack.c.l.b16 %v3701
  %v3742 = vunpack.c.l.b16 %v3702
  %v3743 = vunpack.c.l.b16 %v3703
  %v3744 = vunpack.c.l.b16 %v3704
  %v3745 = vunpack.c.l.b16 %v3705
  %v3746 = vpack.c.b16 %v3731, %v3730
  %v3747 = vpack.c.b16 %v3733, %v3732
  %v3748 = vpack.c.b16 %v3735, %v3734
  %v3749 = vpack.c.b16 %v3737, %v3736
  %v3750 = vpack.c.b16 %v3739, %v3738
  %v3751 = vpack.c.b16 %v3741, %v3740
  %v3752 = vpack.c.b16 %v3743, %v3742
  %v3753 = vpack.c.b16 %v3745, %v3744
  %3762 = vmatprep.subr.bf16.mxu0 0
  %3763 = vmatpush1.bf16.msra.mxu0 %v3746
  %3764 = vmatprep.subr.bf16.mxu0 0
  %3765 = vmatpush1.bf16.msra.mxu0 %v3747
  %3766 = vmatprep.subr.bf16.mxu0 0
  %3767 = vmatpush1.bf16.msra.mxu0 %v3748
  %3768 = vmatprep.subr.bf16.mxu0 0
  %3769 = vmatpush1.bf16.msra.mxu0 %v3749
  %3770 = vmatprep.subr.bf16.mxu0 0
  %3771 = vmatpush1.bf16.msra.mxu0 %v3750
  %3772 = vmatprep.subr.bf16.mxu0 0
  %3773 = vmatpush1.bf16.msra.mxu0 %v3751
  %3774 = vmatprep.subr.bf16.mxu0 0
  %3775 = vmatpush1.bf16.msra.mxu0 %v3752
  %3776 = vmatprep.subr.bf16.mxu0 0
  %3777 = vmatpush1.bf16.msra.mxu0 %v3753
  %3778 = vmatprep.subr.bf16.mxu0 0
  %3779 = vmatpush1.bf16.msra.mxu0 0
  %3780 = vmatprep.subr.bf16.mxu0 0
  %3781 = vmatpush1.bf16.msra.mxu0 0
  %3782 = vmatprep.subr.bf16.mxu0 0
  %3783 = vmatpush1.bf16.msra.mxu0 0
  %3784 = vmatprep.subr.bf16.mxu0 0
  %3785 = vmatpush1.bf16.msra.mxu0 0
  %3786 = vmatprep.subr.bf16.mxu0 0
  %3787 = vmatpush1.bf16.msra.mxu0 0
  %3788 = vmatprep.subr.bf16.mxu0 0
  %3789 = vmatpush1.bf16.msra.mxu0 0
  %3790 = vmatprep.subr.bf16.mxu0 0
  %3791 = vmatpush1.bf16.msra.mxu0 0
  %3792 = vmatprep.subr.bf16.mxu0 0
  %3793 = vmatpush1.bf16.msra.mxu0 0
  %3794 = vmatprep.mubr.bf16.mxu0 0
  %3795 = vmatmul.mubr.bf16.gmra.mrb[0].mxu0 %v3706
  %v3796 = vpop.f32.mrb[0].mxu0
  %v3797 = vadd.f32 %v3712, %v3796
  %v3798 = vpop.f32.mrb[0].mxu0
  %v3799 = vpop.f32.mrb[0].mxu0
  %v3800 = vpop.f32.mrb[0].mxu0
  %3801 = vdwg.mxu0
  %v3802 = vmax.f32 %v3797, 0.0
  %v3803 = vld [vmem:[%s5] sm:$0xf]
  %v3804 = vld [vmem:[%s5 + $0x4] sm:$0xf]
  %v3805 = vld [vmem:[%s5 + $0x8] sm:$0xf]
  %v3806 = vld [vmem:[%s5 + $0xc] sm:$0xf]
  %v3807 = vld [vmem:[%s5 + $0x10] sm:$0xf]
  %v3808 = vld [vmem:[%s5 + $0x14] sm:$0xf]
  %v3809 = vld [vmem:[%s5 + $0x18] sm:$0xf]
  %v3810 = vld [vmem:[%s5 + $0x1c] sm:$0xf]
  %v3811 = vld [vmem:[%s5 + $0x20] sm:$0xf]
  %v3812 = vld [vmem:[%s5 + $0x24] sm:$0xf]
  %v3813 = vld [vmem:[%s5 + $0x28] sm:$0xf]
  %v3814 = vld [vmem:[%s5 + $0x2c] sm:$0xf]
  %v3815 = vld [vmem:[%s5 + $0x30] sm:$0xf]
  %v3816 = vld [vmem:[%s5 + $0x34] sm:$0xf]
  %v3817 = vld [vmem:[%s5 + $0x38] sm:$0xf]
  %v3818 = vld [vmem:[%s5 + $0x3c] sm:$0xf]
  %v3819 = vpack.c.bf16 %v3802, %v3802
  %v3820 = vld [vmem:[%s6] sm:$0x1]
  %v3822 = vlaneseq
  %v3823 = vshrl.u32 %v3822, 7
  %v3824 = vsub.s32 0, %v3823
  %v3825 = vrot.slane %v3820, %v3824
  %v3843 = vunpack.c.l.b16 %v3803
  %v3844 = vunpack.c.l.b16 %v3804
  %v3845 = vunpack.c.l.b16 %v3805
  %v3846 = vunpack.c.l.b16 %v3806
  %v3847 = vunpack.c.l.b16 %v3807
  %v3848 = vunpack.c.l.b16 %v3808
  %v3849 = vunpack.c.l.b16 %v3809
  %v3850 = vunpack.c.l.b16 %v3810
  %v3851 = vunpack.c.l.b16 %v3811
  %v3852 = vunpack.c.l.b16 %v3812
  %v3853 = vunpack.c.l.b16 %v3813
  %v3854 = vunpack.c.l.b16 %v3814
  %v3855 = vunpack.c.l.b16 %v3815
  %v3856 = vunpack.c.l.b16 %v3816
  %v3857 = vunpack.c.l.b16 %v3817
  %v3858 = vunpack.c.l.b16 %v3818
  %v3859 = vpack.c.b16 %v3844, %v3843
  %v3860 = vpack.c.b16 %v3846, %v3845
  %v3861 = vpack.c.b16 %v3848, %v3847
  %v3862 = vpack.c.b16 %v3850, %v3849
  %v3863 = vpack.c.b16 %v3852, %v3851
  %v3864 = vpack.c.b16 %v3854, %v3853
  %v3865 = vpack.c.b16 %v3856, %v3855
  %v3866 = vpack.c.b16 %v3858, %v3857
  %3875 = vmatprep.subr.bf16.mxu0 0
  %3876 = vmatpush1.bf16.msra.mxu0 %v3859
  %3877 = vmatprep.subr.bf16.mxu0 0
  %3878 = vmatpush1.bf16.msra.mxu0 %v3860
  %3879 = vmatprep.subr.bf16.mxu0 0
  %3880 = vmatpush1.bf16.msra.mxu0 %v3861
  %3881 = vmatprep.subr.bf16.mxu0 0
  %3882 = vmatpush1.bf16.msra.mxu0 %v3862
  %3883 = vmatprep.subr.bf16.mxu0 0
  %3884 = vmatpush1.bf16.msra.mxu0 %v3863
  %3885 = vmatprep.subr.bf16.mxu0 0
  %3886 = vmatpush1.bf16.msra.mxu0 %v3864
  %3887 = vmatprep.subr.bf16.mxu0 0
  %3888 = vmatpush1.bf16.msra.mxu0 %v3865
  %3889 = vmatprep.subr.bf16.mxu0 0
  %3890 = vmatpush1.bf16.msra.mxu0 %v3866
  %3891 = vmatprep.subr.bf16.mxu0 0
  %3892 = vmatpush1.bf16.msra.mxu0 0
  %3893 = vmatprep.subr.bf16.mxu0 0
  %3894 = vmatpush1.bf16.msra.mxu0 0
  %3895 = vmatprep.subr.bf16.mxu0 0
  %3896 = vmatpush1.bf16.msra.mxu0 0
  %3897 = vmatprep.subr.bf16.mxu0 0
  %3898 = vmatpush1.bf16.msra.mxu0 0
  %3899 = vmatprep.subr.bf16.mxu0 0
  %3900 = vmatpush1.bf16.msra.mxu0 0
  %3901 = vmatprep.subr.bf16.mxu0 0
  %3902 = vmatpush1.bf16.msra.mxu0 0
  %3903 = vmatprep.subr.bf16.mxu0 0
  %3904 = vmatpush1.bf16.msra.mxu0 0
  %3905 = vmatprep.subr.bf16.mxu0 0
  %3906 = vmatpush1.bf16.msra.mxu0 0
  %3907 = vmatprep.mubr.bf16.mxu0 0
  %3908 = vmatmul.mubr.bf16.gmra.mrb[0].mxu0 %v3819
  %v3909 = vpop.f32.mrb[0].mxu0
  %v3910 = vadd.f32 %v3825, %v3909
  %v3911 = vpop.f32.mrb[0].mxu0
  %v3912 = vpop.f32.mrb[0].mxu0
  %v3913 = vpop.f32.mrb[0].mxu0
  %3914 = vdwg.mxu0
  %3915 = vst [vmem:[%s7] sm:$0x3] %v3910
  // Predicated region
  $region30: #{finetune_forward.3} parent=0 // pred_check
    _
  $region31: #{finetune_forward.3} parent=0 // pred_check_branch
    %3917 = sbr.rel (0) target = $region33
  $region32: #{finetune_forward.3} parent=0 // pred_region
    _
  $region33: #{finetune_forward.3} parent=0 // pred_fallthru
    _
  // Predicated region
  $region34: #{finetune_forward.3} parent=0 // pred_check
    _
  $region35: #{finetune_forward.3} parent=0 // pred_check_branch
    %3919 = sbr.rel (0) target = $region37
  $region36: #{finetune_forward.3} parent=0 // pred_region
    _
  $region37: #{finetune_forward.3} parent=0 // pred_fallthru
    _

// kernel: finetune_forward.2
$region0: #{finetune_forward.2}
  #allocation0 [shape = 'u32[]', space=smem, size = 0x4, offset = 0x4, fixed_abs, tag = 'smem constant byte address 0x4 - core index']
  #allocation1 [shape = 'u32[144,128]{1,0:T(1,128)}', space=vmem, size = 0x12000, scoped, tag = 'internal scratch']
  %s0 = inlined_call_operand.vmem [shape: bf16[8,1280], index: 0, kind: input, shape index: {}]
  %s1 = inlined_call_operand.hbm [shape: bf16[1280,2560], index: 1, kind: input, shape index: {}]
  %s2 = inlined_call_operand.hbm [shape: f32[1,2560], index: 2, kind: input, shape index: {}]
  %s3 = inlined_call_operand.vmem [shape: bf16[8,2560], index: 3, kind: output, shape index: {}]
  %s4 = sld [smem:[#allocation0]]
  $region53: #{finetune_forward.2} parent=0
    _
  %s6 = ssub.s32 1, %s4
  %s7 = scalar_select 0, %s6, %s4
  $region1: #{finetune_forward.2} parent=0
    #allocation2 [shape = 'u8[6553600]{0}', space=vmem, size = 0x640000, scoped, tag = 'input window, operand 1']
    #allocation3 [shape = 's32[2]{0}', space=sflag, size = 0x8, scoped, tag = 'scoped memory for finetune_forward.2']
    #allocation4 [shape = 'u8[10240]{0}', space=vmem, size = 0x2800, scoped, tag = 'input window, operand 2']
    #allocation5 [shape = 's32[2]{0}', space=sflag, size = 0x8, scoped, tag = 'scoped memory for finetune_forward.2']
    %8 = vsyncpa [#allocation3], 0
    %s9 = scalar_lea.sflag [#allocation3], 1
    %10 = vsyncpa %s9, 0
    %11 = vsyncpa [#allocation5], 0
    %s12 = scalar_lea.sflag [#allocation5], 1
    %13 = vsyncpa %s12, 0
    loop: start=0, step=1, limit=4
    $region2: #{finetune_forward.2} parent=1 // loop_pre_header
      _
    $region3: #{finetune_forward.2} parent=1 // loop_header
      %s15 = sphi 0, %s19
      %p16 = scmp.ge.s32.totalorder %s15, 4
      %s22 = sphi 0, %s34
      %s23 = sphi 0, %s30
      %s24 = sphi 0, %s22
      %s25 = sphi 0, %s23
      %s26 = sphi 0, %s24
      %s27 = sphi 0, %s25
      %s37 = sphi 0, %s39
      %s40 = sphi 0, %s37
      %s41 = sphi 0, %s40
      %s57 = sphi 0, %s41
      %s63 = sphi 0, %s65
      %s66 = sphi 0, %s63
      %s67 = sphi 0, %s66
      %s83 = sphi 0, %s67
      %s89 = sphi 0, %s91
      %s92 = sphi 0, %s89
      %s93 = sphi 0, %s92
      %s109 = sphi 0, %s93
      %s117 = sphi 0, %s119
      %s120 = sphi 0, %s117
      %s121 = sphi 0, %s120
      %s137 = sphi 0, %s121
    $region4: #{finetune_forward.2} parent=1 // loop_header_branch
      %18 = sbr.rel (%p16) target = $region8
    $region5: #{finetune_forward.2} parent=1 // loop_body
      %s20 = ssub.s32 %s15, 1
      %s21 = ssub.s32 %s15, 2
      %s28 = sadd.s32 1, %s23
      %p29 = scmp.ge.s32.totalorder %s28, 2
      %s30 = scalar_select %p29, 0, %s28
      %s31 = sadd.s32 1, %s22
      %s32 = scalar_select %p29, %s31, %s22
      %p33 = scmp.ge.s32.totalorder %s32, 1
      %s34 = scalar_select %p33, 0, %s32
      %s35 = ssub.s32 %s22, %s34
      %p36 = scmp.eq.s32.totalorder %s35, 0
      %s38 = sadd.s32 %s37, 1
      %s39 = scalar_select %p36, %s37, %s38
      %p42 = pneg %p36
      %p43 = scmp.eq.s32.totalorder %s15, 1
      %p44 = por %p42, %p43
      %p45 = scmp.ne.s32.totalorder %s37, %s40
      %p46 = scmp.eq.s32.totalorder %s15, 0
      %p47 = por %p45, %p46
      %p48 = scmp.ne.s32.totalorder %s37, %s40
      %p49 = scmp.eq.s32.totalorder %s20, 1
      %p50 = por %p48, %p49
      %p51 = scmp.ne.s32.totalorder %s40, %s41
      %p52 = scmp.eq.s32.totalorder %s20, 0
      %p53 = por %p51, %p52
      %p54 = scmp.ne.s32.totalorder %s40, %s41
      %p55 = scmp.eq.s32.totalorder %s21, 1
      %p56 = por %p54, %p55
      %p58 = scmp.ne.s32.totalorder %s41, %s57
      %p59 = scmp.eq.s32.totalorder %s21, 0
      %p60 = por %p58, %p59
      %s61 = ssub.s32 %s23, %s30
      %p62 = scmp.eq.s32.totalorder %s61, 0
      %s64 = sadd.s32 %s63, 1
      %s65 = scalar_select %p62, %s63, %s64
      %p68 = pneg %p62
      %p69 = scmp.eq.s32.totalorder %s15, 1
      %p70 = por %p68, %p69
      %p71 = scmp.ne.s32.totalorder %s63, %s66
      %p72 = scmp.eq.s32.totalorder %s15, 0
      %p73 = por %p71, %p72
      %p74 = scmp.ne.s32.totalorder %s63, %s66
      %p75 = scmp.eq.s32.totalorder %s20, 1
      %p76 = por %p74, %p75
      %p77 = scmp.ne.s32.totalorder %s66, %s67
      %p78 = scmp.eq.s32.totalorder %s20, 0
      %p79 = por %p77, %p78
      %p80 = scmp.ne.s32.totalorder %s66, %s67
      %p81 = scmp.eq.s32.totalorder %s21, 1
      %p82 = por %p80, %p81
      %p84 = scmp.ne.s32.totalorder %s67, %s83
      %p85 = scmp.eq.s32.totalorder %s21, 0
      %p86 = por %p84, %p85
      %s87 = ssub.s32 %s23, %s30
      %p88 = scmp.eq.s32.totalorder %s87, 0
      %s90 = sadd.s32 %s89, 1
      %s91 = scalar_select %p88, %s89, %s90
      %p94 = pneg %p88
      %p95 = scmp.eq.s32.totalorder %s15, 1
      %p96 = por %p94, %p95
      %p97 = scmp.ne.s32.totalorder %s89, %s92
      %p98 = scmp.eq.s32.totalorder %s15, 0
      %p99 = por %p97, %p98
      %p100 = scmp.ne.s32.totalorder %s89, %s92
      %p101 = scmp.eq.s32.totalorder %s20, 1
      %p102 = por %p100, %p101
      %p103 = scmp.ne.s32.totalorder %s92, %s93
      %p104 = scmp.eq.s32.totalorder %s20, 0
      %p105 = por %p103, %p104
      %p106 = scmp.ne.s32.totalorder %s92, %s93
      %p107 = scmp.eq.s32.totalorder %s21, 1
      %p108 = por %p106, %p107
      %p110 = scmp.ne.s32.totalorder %s93, %s109
      %p111 = scmp.eq.s32.totalorder %s21, 0
      %p112 = por %p110, %p111
      %s113 = ssub.s32 %s22, %s34
      %s114 = ssub.s32 %s23, %s30
      %s115 = sor.u32 %s113, %s114
      %p116 = scmp.eq.s32.totalorder %s115, 0
      %s118 = sadd.s32 %s117, 1
      %s119 = scalar_select %p116, %s117, %s118
      %p122 = pneg %p116
      %p123 = scmp.eq.s32.totalorder %s15, 1
      %p124 = por %p122, %p123
      %p125 = scmp.ne.s32.totalorder %s117, %s120
      %p126 = scmp.eq.s32.totalorder %s15, 0
      %p127 = por %p125, %p126
      %p128 = scmp.ne.s32.totalorder %s117, %s120
      %p129 = scmp.eq.s32.totalorder %s20, 1
      %p130 = por %p128, %p129
      %p131 = scmp.ne.s32.totalorder %s120, %s121
      %p132 = scmp.eq.s32.totalorder %s20, 0
      %p133 = por %p131, %p132
      %p134 = scmp.ne.s32.totalorder %s120, %s121
      %p135 = scmp.eq.s32.totalorder %s21, 1
      %p136 = por %p134, %p135
      %p138 = scmp.ne.s32.totalorder %s121, %s137
      %p139 = scmp.eq.s32.totalorder %s21, 0
      %p140 = por %p138, %p139
      %p141 = scmp.le.s32.totalorder 1, %s15
      %p142 = scmp.lt.s32.totalorder %s15, 3
      %p143 = pnand %p141, %p142
      %p144 = pneg %p143
      // Predicated region
      $region9: #{finetune_forward.2} parent=5 // pred_check
        _
      $region10: #{finetune_forward.2} parent=5 // pred_check_branch
        %146 = sbr.rel (%p143) target = $region12
      $region11: #{finetune_forward.2} parent=5 // pred_region
        %s147 = ssub.s32 %s15, 1
        // Predicated region
        $region13: #{finetune_forward.2} parent=11 // pred_check
          %p148 = pneg %p53
        $region14: #{finetune_forward.2} parent=11 // pred_check_branch
          %150 = sbr.rel (%p148) target = $region16
        $region15: #{finetune_forward.2} parent=11 // pred_region
          %p151 = scmp.lt.s32.totalorder %s24, 0
          %s152 = scalar_select %p151, %s24, 0
          %s153 = smul.addr %s152, 10
          %s154 = smul.addr %s153, 4
          %s155 = scalar_lea.vmem %s0, %s154
        $region16: #{finetune_forward.2} parent=11 // pred_fallthru
          _
      $region12: #{finetune_forward.2} parent=5 // pred_fallthru
        _
      %p156 = scmp.lt.s32.totalorder %s15, 2
      // Predicated region
      $region17: #{finetune_forward.2} parent=5 // pred_check
        %p157 = pneg %p156
      $region18: #{finetune_forward.2} parent=5 // pred_check_branch
        %159 = sbr.rel (%p157) target = $region20
      $region19: #{finetune_forward.2} parent=5 // pred_region
        // Predicated region
        $region21: #{finetune_forward.2} parent=19 // pred_check
          %p160 = pneg %p73
        $region22: #{finetune_forward.2} parent=19 // pred_check_branch
          %162 = sbr.rel (%p160) target = $region24
        $region23: #{finetune_forward.2} parent=19 // pred_region
          %s163 = sand.u32 %s63, 1
          %s164 = scalar_lea.sflag [#allocation3], %s163
          %s165 = sand.u32 %s63, 1
          %s166 = smul.addr %s165, 6400
          %s167 = scalar_lea.vmem [#allocation2], %s166
          %s168 = smul.u32 10, %s23
          %s170 = ssub.s32 102400, 102400
          %171 = vsyncadd %s164, %s170
          %s172 = smul.addr %s168, 64
          %s173 = scalar_lea.hbm %s1, %s172
          %s174 = sshll.u32 %s167, 4
          %s175 = int_to_ptr.vmem [resolvable:$true] %s174
          %180 = dma.hbm_to_vmem [thread:$0]  %s173, 102400, %s175, %s164, 1280, 640, 40
        $region24: #{finetune_forward.2} parent=19 // pred_fallthru
          _
        // Predicated region
        $region25: #{finetune_forward.2} parent=19 // pred_check
          %p181 = pneg %p99
        $region26: #{finetune_forward.2} parent=19 // pred_check_branch
          %183 = sbr.rel (%p181) target = $region28
        $region27: #{finetune_forward.2} parent=19 // pred_region
          %s184 = sand.u32 %s89, 1
          %s185 = scalar_lea.sflag [#allocation5], %s184
          %s186 = sand.u32 %s89, 1
          %s187 = smul.addr %s186, 10
          %s188 = scalar_lea.vmem [#allocation4], %s187
          %s189 = smul.u32 10, %s23
          %s191 = ssub.s32 160, 160
          %192 = vsyncadd %s185, %s191
          %s193 = smul.addr %s189, 16
          %s194 = scalar_lea.hbm %s2, %s193
          %s196 = sshll.u32 %s188, 4
          %s197 = int_to_ptr.vmem [resolvable:$true] %s196
          %199 = dma.hbm_to_vmem [thread:$0]  %s194, 160, %s197, %s185
        $region28: #{finetune_forward.2} parent=19 // pred_fallthru
          _
      $region20: #{finetune_forward.2} parent=5 // pred_fallthru
        _
      %p200 = scmp.le.s32.totalorder 1, %s15
      %p201 = scmp.lt.s32.totalorder %s15, 3
      %p202 = pnand %p200, %p201
      %p203 = pneg %p202
      // Predicated region
      $region29: #{finetune_forward.2} parent=5 // pred_check
        _
      $region30: #{finetune_forward.2} parent=5 // pred_check_branch
        %205 = sbr.rel (%p202) target = $region32
      $region31: #{finetune_forward.2} parent=5 // pred_region
        %s206 = ssub.s32 %s15, 1
        %s207 = sand.u32 %s66, 1
        %s208 = scalar_lea.sflag [#allocation3], %s207
        %s209 = sand.u32 %s66, 1
        %s210 = smul.addr %s209, 6400
        %s211 = scalar_lea.vmem [#allocation2], %s210
        // Predicated region
        $region33: #{finetune_forward.2} parent=31 // pred_check
          %p212 = pneg %p79
        $region34: #{finetune_forward.2} parent=31 // pred_check_branch
          %214 = sbr.rel (%p212) target = $region36
        $region35: #{finetune_forward.2} parent=31 // pred_region
          %215 = dma.done %s208, 102400
        $region36: #{finetune_forward.2} parent=31 // pred_fallthru
          _
        %s216 = sand.u32 %s92, 1
        %s217 = scalar_lea.sflag [#allocation5], %s216
        %s218 = sand.u32 %s92, 1
        %s219 = smul.addr %s218, 10
        %s220 = scalar_lea.vmem [#allocation4], %s219
        // Predicated region
        $region37: #{finetune_forward.2} parent=31 // pred_check
          %p221 = pneg %p105
        $region38: #{finetune_forward.2} parent=31 // pred_check_branch
          %223 = sbr.rel (%p221) target = $region40
        $region39: #{finetune_forward.2} parent=31 // pred_region
          %224 = dma.done %s217, 160
        $region40: #{finetune_forward.2} parent=31 // pred_fallthru
          _
        %p225 = scmp.lt.s32.totalorder %s24, 0
        %s226 = scalar_select %p225, %s24, 0
        %s227 = smul.addr %s226, 10
        %s228 = smul.addr %s227, 4
        %s229 = scalar_lea.vmem %s0, %s228
        %p230 = pneg %p53
        %p231 = pneg %p50
        %s232 = sand.u32 %s66, 1
        %s233 = scalar_lea.sflag [#allocation3], %s232
        %s234 = sand.u32 %s66, 1
        %s235 = smul.addr %s234, 6400
        %s236 = scalar_lea.vmem [#allocation2], %s235
        %p237 = pneg %p79
        %p238 = pneg %p76
        %s239 = sand.u32 %s92, 1
        %s240 = scalar_lea.sflag [#allocation5], %s239
        %s241 = sand.u32 %s92, 1
        %s242 = smul.addr %s241, 10
        %s243 = scalar_lea.vmem [#allocation4], %s242
        %p244 = pneg %p105
        %p245 = pneg %p102
        %p246 = pneg %p133
        %p247 = pneg %p130
        %s248 = smul.u32 10, %s25
        %p249 = scmp.lt.s32.totalorder %s24, 0
        %s250 = scalar_select %p249, %s24, 0
        %p251 = scmp.lt.s32.totalorder %s248, 19
        %s252 = scalar_select %p251, %s248, 19
        %s253 = smul.addr %s250, 20
        %s254 = sadd.s32 %s252, %s253
        %s255 = smul.addr %s254, 4
        %s256 = scalar_lea.vmem %s3, %s255
        %p257 = scmp.lt.s32.totalorder %s24, 0
        %s258 = scalar_select %p257, %s24, 0
        %s259 = smul.addr %s258, 10
        %s260 = smul.addr %s259, 4
        %s261 = scalar_lea.vmem %s0, %s260
        %s262 = smul.u32 10, %s25
        %s263 = smul.u32 10, %s25
        %s264 = smul.u32 10, %s25
        %p265 = scmp.lt.s32.totalorder %s24, 0
        %s266 = scalar_select %p265, %s24, 0
        %p267 = scmp.lt.s32.totalorder %s264, 19
        %s268 = scalar_select %p267, %s264, 19
        %s269 = smul.addr %s266, 20
        %s270 = sadd.s32 %s268, %s269
        %s271 = smul.addr %s270, 4
        %s272 = scalar_lea.vmem %s3, %s271
        %s273 = smul.u32 10, %s25
        %v274 = vld [vmem:[%s261] sm:$0xff]
        %v275 = vld [vmem:[%s261 + $0x8] sm:$0xff]
        %v276 = vld [vmem:[%s261 + $0x10] sm:$0xff]
        %v277 = vld [vmem:[%s261 + $0x18] sm:$0xff]
        %v278 = vld [vmem:[%s261 + $0x20] sm:$0xff]
        %v279 = vld [vmem:[%s211] sm:$0xff]
        %v280 = vld [vmem:[%s211 + $0x8] sm:$0xff]
        %v281 = vld [vmem:[%s211 + $0x10] sm:$0xff]
        %v282 = vld [vmem:[%s211 + $0x18] sm:$0xff]
        %v283 = vld [vmem:[%s211 + $0x20] sm:$0xff]
        %v284 = vld [vmem:[%s211 + $0x28] sm:$0xff]
        %v285 = vld [vmem:[%s211 + $0x30] sm:$0xff]
        %v286 = vld [vmem:[%s211 + $0x38] sm:$0xff]
        %v287 = vld [vmem:[%s211 + $0x40] sm:$0xff]
        %v288 = vld [vmem:[%s211 + $0x48] sm:$0xff]
        %v289 = vld [vmem:[%s211 + $0x50] sm:$0xff]
        %v290 = vld [vmem:[%s211 + $0x58] sm:$0xff]
        %v291 = vld [vmem:[%s211 + $0x60] sm:$0xff]
        %v292 = vld [vmem:[%s211 + $0x68] sm:$0xff]
        %v293 = vld [vmem:[%s211 + $0x70] sm:$0xff]
        %v294 = vld [vmem:[%s211 + $0x78] sm:$0xff]
        %v295 = vld [vmem:[%s211 + $0x80] sm:$0xff]
        %v296 = vld [vmem:[%s211 + $0x88] sm:$0xff]
        %v297 = vld [vmem:[%s211 + $0x90] sm:$0xff]
        %v298 = vld [vmem:[%s211 + $0x98] sm:$0xff]
        %v299 = vld [vmem:[%s211 + $0xa0] sm:$0xff]
        %v300 = vld [vmem:[%s211 + $0xa8] sm:$0xff]
        %v301 = vld [vmem:[%s211 + $0xb0] sm:$0xff]
        %v302 = vld [vmem:[%s211 + $0xb8] sm:$0xff]
        %v303 = vld [vmem:[%s211 + $0xc0] sm:$0xff]
        %v304 = vld [vmem:[%s211 + $0xc8] sm:$0xff]
        %v305 = vld [vmem:[%s211 + $0xd0] sm:$0xff]
        %v306 = vld [vmem:[%s211 + $0xd8] sm:$0xff]
        %v307 = vld [vmem:[%s211 + $0xe0] sm:$0xff]
        %v308 = vld [vmem:[%s211 + $0xe8] sm:$0xff]
        %v309 = vld [vmem:[%s211 + $0xf0] sm:$0xff]
        %v310 = vld [vmem:[%s211 + $0xf8] sm:$0xff]
        %v311 = vld [vmem:[%s211 + $0x100] sm:$0xff]
        %v312 = vld [vmem:[%s211 + $0x108] sm:$0xff]
        %v313 = vld [vmem:[%s211 + $0x110] sm:$0xff]
        %v314 = vld [vmem:[%s211 + $0x118] sm:$0xff]
        %v315 = vld [vmem:[%s211 + $0x120] sm:$0xff]
        %v316 = vld [vmem:[%s211 + $0x128] sm:$0xff]
        %v317 = vld [vmem:[%s211 + $0x130] sm:$0xff]
        %v318 = vld [vmem:[%s211 + $0x138] sm:$0xff]
        %v319 = vld [vmem:[%s211 + $0x140] sm:$0xff]
        %v320 = vld [vmem:[%s211 + $0x148] sm:$0xff]
        %v321 = vld [vmem:[%s211 + $0x150] sm:$0xff]
        %v322 = vld [vmem:[%s211 + $0x158] sm:$0xff]
        %v323 = vld [vmem:[%s211 + $0x160] sm:$0xff]
        %v324 = vld [vmem:[%s211 + $0x168] sm:$0xff]
        %v325 = vld [vmem:[%s211 + $0x170] sm:$0xff]
        %v326 = vld [vmem:[%s211 + $0x178] sm:$0xff]
        %v327 = vld [vmem:[%s211 + $0x180] sm:$0xff]
        %v328 = vld [vmem:[%s211 + $0x188] sm:$0xff]
        %v329 = vld [vmem:[%s211 + $0x190] sm:$0xff]
        %v330 = vld [vmem:[%s211 + $0x198] sm:$0xff]
        %v331 = vld [vmem:[%s211 + $0x1a0] sm:$0xff]
        %v332 = vld [vmem:[%s211 + $0x1a8] sm:$0xff]
        %v333 = vld [vmem:[%s211 + $0x1b0] sm:$0xff]
        %v334 = vld [vmem:[%s211 + $0x1b8] sm:$0xff]
        %v335 = vld [vmem:[%s211 + $0x1c0] sm:$0xff]
        %v336 = vld [vmem:[%s211 + $0x1c8] sm:$0xff]
        %v337 = vld [vmem:[%s211 + $0x1d0] sm:$0xff]
        %v338 = vld [vmem:[%s211 + $0x1d8] sm:$0xff]
        %v339 = vld [vmem:[%s211 + $0x1e0] sm:$0xff]
        %v340 = vld [vmem:[%s211 + $0x1e8] sm:$0xff]
        %v341 = vld [vmem:[%s211 + $0x1f0] sm:$0xff]
        %v342 = vld [vmem:[%s211 + $0x1f8] sm:$0xff]
        %v343 = vld [vmem:[%s211 + $0x200] sm:$0xff]
        %v344 = vld [vmem:[%s211 + $0x208] sm:$0xff]
        %v345 = vld [vmem:[%s211 + $0x210] sm:$0xff]
        %v346 = vld [vmem:[%s211 + $0x218] sm:$0xff]
        %v347 = vld [vmem:[%s211 + $0x220] sm:$0xff]
        %v348 = vld [vmem:[%s211 + $0x228] sm:$0xff]
        %v349 = vld [vmem:[%s211 + $0x230] sm:$0xff]
        %v350 = vld [vmem:[%s211 + $0x238] sm:$0xff]
        %v351 = vld [vmem:[%s211 + $0x240] sm:$0xff]
        %v352 = vld [vmem:[%s211 + $0x248] sm:$0xff]
        %v353 = vld [vmem:[%s211 + $0x250] sm:$0xff]
        %v354 = vld [vmem:[%s211 + $0x258] sm:$0xff]
        %v355 = vld [vmem:[%s211 + $0x260] sm:$0xff]
        %v356 = vld [vmem:[%s211 + $0x268] sm:$0xff]
        %v357 = vld [vmem:[%s211 + $0x270] sm:$0xff]
        %v358 = vld [vmem:[%s211 + $0x278] sm:$0xff]
        %v359 = vld [vmem:[%s211 + $0x280] sm:$0xff]
        %v360 = vld [vmem:[%s211 + $0x288] sm:$0xff]
        %v361 = vld [vmem:[%s211 + $0x290] sm:$0xff]
        %v362 = vld [vmem:[%s211 + $0x298] sm:$0xff]
        %v363 = vld [vmem:[%s211 + $0x2a0] sm:$0xff]
        %v364 = vld [vmem:[%s211 + $0x2a8] sm:$0xff]
        %v365 = vld [vmem:[%s211 + $0x2b0] sm:$0xff]
        %v366 = vld [vmem:[%s211 + $0x2b8] sm:$0xff]
        %v367 = vld [vmem:[%s211 + $0x2c0] sm:$0xff]
        %v368 = vld [vmem:[%s211 + $0x2c8] sm:$0xff]
        %v369 = vld [vmem:[%s211 + $0x2d0] sm:$0xff]
        %v370 = vld [vmem:[%s211 + $0x2d8] sm:$0xff]
        %v371 = vld [vmem:[%s211 + $0x2e0] sm:$0xff]
        %v372 = vld [vmem:[%s211 + $0x2e8] sm:$0xff]
        %v373 = vld [vmem:[%s211 + $0x2f0] sm:$0xff]
        %v374 = vld [vmem:[%s211 + $0x2f8] sm:$0xff]
        %v375 = vld [vmem:[%s211 + $0x300] sm:$0xff]
        %v376 = vld [vmem:[%s211 + $0x308] sm:$0xff]
        %v377 = vld [vmem:[%s211 + $0x310] sm:$0xff]
        %v378 = vld [vmem:[%s211 + $0x318] sm:$0xff]
        %v379 = vld [vmem:[%s211 + $0x320] sm:$0xff]
        %v380 = vld [vmem:[%s211 + $0x328] sm:$0xff]
        %v381 = vld [vmem:[%s211 + $0x330] sm:$0xff]
        %v382 = vld [vmem:[%s211 + $0x338] sm:$0xff]
        %v383 = vld [vmem:[%s211 + $0x340] sm:$0xff]
        %v384 = vld [vmem:[%s211 + $0x348] sm:$0xff]
        %v385 = vld [vmem:[%s211 + $0x350] sm:$0xff]
        %v386 = vld [vmem:[%s211 + $0x358] sm:$0xff]
        %v387 = vld [vmem:[%s211 + $0x360] sm:$0xff]
        %v388 = vld [vmem:[%s211 + $0x368] sm:$0xff]
        %v389 = vld [vmem:[%s211 + $0x370] sm:$0xff]
        %v390 = vld [vmem:[%s211 + $0x378] sm:$0xff]
        %v391 = vld [vmem:[%s211 + $0x380] sm:$0xff]
        %v392 = vld [vmem:[%s211 + $0x388] sm:$0xff]
        %v393 = vld [vmem:[%s211 + $0x390] sm:$0xff]
        %v394 = vld [vmem:[%s211 + $0x398] sm:$0xff]
        %v395 = vld [vmem:[%s211 + $0x3a0] sm:$0xff]
        %v396 = vld [vmem:[%s211 + $0x3a8] sm:$0xff]
        %v397 = vld [vmem:[%s211 + $0x3b0] sm:$0xff]
        %v398 = vld [vmem:[%s211 + $0x3b8] sm:$0xff]
        %v399 = vld [vmem:[%s211 + $0x3c0] sm:$0xff]
        %v400 = vld [vmem:[%s211 + $0x3c8] sm:$0xff]
        %v401 = vld [vmem:[%s211 + $0x3d0] sm:$0xff]
        %v402 = vld [vmem:[%s211 + $0x3d8] sm:$0xff]
        %v403 = vld [vmem:[%s211 + $0x3e0] sm:$0xff]
        %v404 = vld [vmem:[%s211 + $0x3e8] sm:$0xff]
        %v405 = vld [vmem:[%s211 + $0x3f0] sm:$0xff]
        %v406 = vld [vmem:[%s211 + $0x3f8] sm:$0xff]
        %v407 = vld [vmem:[%s211 + $0x400] sm:$0xff]
        %v408 = vld [vmem:[%s211 + $0x408] sm:$0xff]
        %v409 = vld [vmem:[%s211 + $0x410] sm:$0xff]
        %v410 = vld [vmem:[%s211 + $0x418] sm:$0xff]
        %v411 = vld [vmem:[%s211 + $0x420] sm:$0xff]
        %v412 = vld [vmem:[%s211 + $0x428] sm:$0xff]
        %v413 = vld [vmem:[%s211 + $0x430] sm:$0xff]
        %v414 = vld [vmem:[%s211 + $0x438] sm:$0xff]
        %v415 = vld [vmem:[%s211 + $0x440] sm:$0xff]
        %v416 = vld [vmem:[%s211 + $0x448] sm:$0xff]
        %v417 = vld [vmem:[%s211 + $0x450] sm:$0xff]
        %v418 = vld [vmem:[%s211 + $0x458] sm:$0xff]
        %v419 = vld [vmem:[%s211 + $0x460] sm:$0xff]
        %v420 = vld [vmem:[%s211 + $0x468] sm:$0xff]
        %v421 = vld [vmem:[%s211 + $0x470] sm:$0xff]
        %v422 = vld [vmem:[%s211 + $0x478] sm:$0xff]
        %v423 = vld [vmem:[%s211 + $0x480] sm:$0xff]
        %v424 = vld [vmem:[%s211 + $0x488] sm:$0xff]
        %v425 = vld [vmem:[%s211 + $0x490] sm:$0xff]
        %v426 = vld [vmem:[%s211 + $0x498] sm:$0xff]
        %v427 = vld [vmem:[%s211 + $0x4a0] sm:$0xff]
        %v428 = vld [vmem:[%s211 + $0x4a8] sm:$0xff]
        %v429 = vld [vmem:[%s211 + $0x4b0] sm:$0xff]
        %v430 = vld [vmem:[%s211 + $0x4b8] sm:$0xff]
        %v431 = vld [vmem:[%s211 + $0x4c0] sm:$0xff]
        %v432 = vld [vmem:[%s211 + $0x4c8] sm:$0xff]
        %v433 = vld [vmem:[%s211 + $0x4d0] sm:$0xff]
        %v434 = vld [vmem:[%s211 + $0x4d8] sm:$0xff]
        %v435 = vld [vmem:[%s211 + $0x4e0] sm:$0xff]
        %v436 = vld [vmem:[%s211 + $0x4e8] sm:$0xff]
        %v437 = vld [vmem:[%s211 + $0x4f0] sm:$0xff]
        %v438 = vld [vmem:[%s211 + $0x4f8] sm:$0xff]
        %v439 = vld [vmem:[%s211 + $0x500] sm:$0xff]
        %v440 = vld [vmem:[%s211 + $0x508] sm:$0xff]
        %v441 = vld [vmem:[%s211 + $0x510] sm:$0xff]
        %v442 = vld [vmem:[%s211 + $0x518] sm:$0xff]
        %v443 = vld [vmem:[%s211 + $0x520] sm:$0xff]
        %v444 = vld [vmem:[%s211 + $0x528] sm:$0xff]
        %v445 = vld [vmem:[%s211 + $0x530] sm:$0xff]
        %v446 = vld [vmem:[%s211 + $0x538] sm:$0xff]
        %v447 = vld [vmem:[%s211 + $0x540] sm:$0xff]
        %v448 = vld [vmem:[%s211 + $0x548] sm:$0xff]
        %v449 = vld [vmem:[%s211 + $0x550] sm:$0xff]
        %v450 = vld [vmem:[%s211 + $0x558] sm:$0xff]
        %v451 = vld [vmem:[%s211 + $0x560] sm:$0xff]
        %v452 = vld [vmem:[%s211 + $0x568] sm:$0xff]
        %v453 = vld [vmem:[%s211 + $0x570] sm:$0xff]
        %v454 = vld [vmem:[%s211 + $0x578] sm:$0xff]
        %v455 = vld [vmem:[%s211 + $0x580] sm:$0xff]
        %v456 = vld [vmem:[%s211 + $0x588] sm:$0xff]
        %v457 = vld [vmem:[%s211 + $0x590] sm:$0xff]
        %v458 = vld [vmem:[%s211 + $0x598] sm:$0xff]
        %v459 = vld [vmem:[%s211 + $0x5a0] sm:$0xff]
        %v460 = vld [vmem:[%s211 + $0x5a8] sm:$0xff]
        %v461 = vld [vmem:[%s211 + $0x5b0] sm:$0xff]
        %v462 = vld [vmem:[%s211 + $0x5b8] sm:$0xff]
        %v463 = vld [vmem:[%s211 + $0x5c0] sm:$0xff]
        %v464 = vld [vmem:[%s211 + $0x5c8] sm:$0xff]
        %v465 = vld [vmem:[%s211 + $0x5d0] sm:$0xff]
        %v466 = vld [vmem:[%s211 + $0x5d8] sm:$0xff]
        %v467 = vld [vmem:[%s211 + $0x5e0] sm:$0xff]
        %v468 = vld [vmem:[%s211 + $0x5e8] sm:$0xff]
        %v469 = vld [vmem:[%s211 + $0x5f0] sm:$0xff]
        %v470 = vld [vmem:[%s211 + $0x5f8] sm:$0xff]
        %v471 = vld [vmem:[%s211 + $0x600] sm:$0xff]
        %v472 = vld [vmem:[%s211 + $0x608] sm:$0xff]
        %v473 = vld [vmem:[%s211 + $0x610] sm:$0xff]
        %v474 = vld [vmem:[%s211 + $0x618] sm:$0xff]
        %v475 = vld [vmem:[%s211 + $0x620] sm:$0xff]
        %v476 = vld [vmem:[%s211 + $0x628] sm:$0xff]
        %v477 = vld [vmem:[%s211 + $0x630] sm:$0xff]
        %v478 = vld [vmem:[%s211 + $0x638] sm:$0xff]
        %v479 = vld [vmem:[%s211 + $0x640] sm:$0xff]
        %v480 = vld [vmem:[%s211 + $0x648] sm:$0xff]
        %v481 = vld [vmem:[%s211 + $0x650] sm:$0xff]
        %v482 = vld [vmem:[%s211 + $0x658] sm:$0xff]
        %v483 = vld [vmem:[%s211 + $0x660] sm:$0xff]
        %v484 = vld [vmem:[%s211 + $0x668] sm:$0xff]
        %v485 = vld [vmem:[%s211 + $0x670] sm:$0xff]
        %v486 = vld [vmem:[%s211 + $0x678] sm:$0xff]
        %v487 = vld [vmem:[%s211 + $0x680] sm:$0xff]
        %v488 = vld [vmem:[%s211 + $0x688] sm:$0xff]
        %v489 = vld [vmem:[%s211 + $0x690] sm:$0xff]
        %v490 = vld [vmem:[%s211 + $0x698] sm:$0xff]
        %v491 = vld [vmem:[%s211 + $0x6a0] sm:$0xff]
        %v492 = vld [vmem:[%s211 + $0x6a8] sm:$0xff]
        %v493 = vld [vmem:[%s211 + $0x6b0] sm:$0xff]
        %v494 = vld [vmem:[%s211 + $0x6b8] sm:$0xff]
        %v495 = vld [vmem:[%s211 + $0x6c0] sm:$0xff]
        %v496 = vld [vmem:[%s211 + $0x6c8] sm:$0xff]
        %v497 = vld [vmem:[%s211 + $0x6d0] sm:$0xff]
        %v498 = vld [vmem:[%s211 + $0x6d8] sm:$0xff]
        %v499 = vld [vmem:[%s211 + $0x6e0] sm:$0xff]
        %v500 = vld [vmem:[%s211 + $0x6e8] sm:$0xff]
        %v501 = vld [vmem:[%s211 + $0x6f0] sm:$0xff]
        %v502 = vld [vmem:[%s211 + $0x6f8] sm:$0xff]
        %v503 = vld [vmem:[%s211 + $0x700] sm:$0xff]
        %v504 = vld [vmem:[%s211 + $0x708] sm:$0xff]
        %v505 = vld [vmem:[%s211 + $0x710] sm:$0xff]
        %v506 = vld [vmem:[%s211 + $0x718] sm:$0xff]
        %v507 = vld [vmem:[%s211 + $0x720] sm:$0xff]
        %v508 = vld [vmem:[%s211 + $0x728] sm:$0xff]
        %v509 = vld [vmem:[%s211 + $0x730] sm:$0xff]
        %v510 = vld [vmem:[%s211 + $0x738] sm:$0xff]
        %v511 = vld [vmem:[%s211 + $0x740] sm:$0xff]
        %v512 = vld [vmem:[%s211 + $0x748] sm:$0xff]
        %v513 = vld [vmem:[%s211 + $0x750] sm:$0xff]
        %v514 = vld [vmem:[%s211 + $0x758] sm:$0xff]
        %v515 = vld [vmem:[%s211 + $0x760] sm:$0xff]
        %v516 = vld [vmem:[%s211 + $0x768] sm:$0xff]
        %v517 = vld [vmem:[%s211 + $0x770] sm:$0xff]
        %v518 = vld [vmem:[%s211 + $0x778] sm:$0xff]
        %v519 = vld [vmem:[%s211 + $0x780] sm:$0xff]
        %v520 = vld [vmem:[%s211 + $0x788] sm:$0xff]
        %v521 = vld [vmem:[%s211 + $0x790] sm:$0xff]
        %v522 = vld [vmem:[%s211 + $0x798] sm:$0xff]
        %v523 = vld [vmem:[%s211 + $0x7a0] sm:$0xff]
        %v524 = vld [vmem:[%s211 + $0x7a8] sm:$0xff]
        %v525 = vld [vmem:[%s211 + $0x7b0] sm:$0xff]
        %v526 = vld [vmem:[%s211 + $0x7b8] sm:$0xff]
        %v527 = vld [vmem:[%s211 + $0x7c0] sm:$0xff]
        %v528 = vld [vmem:[%s211 + $0x7c8] sm:$0xff]
        %v529 = vld [vmem:[%s211 + $0x7d0] sm:$0xff]
        %v530 = vld [vmem:[%s211 + $0x7d8] sm:$0xff]
        %v531 = vld [vmem:[%s211 + $0x7e0] sm:$0xff]
        %v532 = vld [vmem:[%s211 + $0x7e8] sm:$0xff]
        %v533 = vld [vmem:[%s211 + $0x7f0] sm:$0xff]
        %v534 = vld [vmem:[%s211 + $0x7f8] sm:$0xff]
        %v535 = vld [vmem:[%s211 + $0x800] sm:$0xff]
        %v536 = vld [vmem:[%s211 + $0x808] sm:$0xff]
        %v537 = vld [vmem:[%s211 + $0x810] sm:$0xff]
        %v538 = vld [vmem:[%s211 + $0x818] sm:$0xff]
        %v539 = vld [vmem:[%s211 + $0x820] sm:$0xff]
        %v540 = vld [vmem:[%s211 + $0x828] sm:$0xff]
        %v541 = vld [vmem:[%s211 + $0x830] sm:$0xff]
        %v542 = vld [vmem:[%s211 + $0x838] sm:$0xff]
        %v543 = vld [vmem:[%s211 + $0x840] sm:$0xff]
        %v544 = vld [vmem:[%s211 + $0x848] sm:$0xff]
        %v545 = vld [vmem:[%s211 + $0x850] sm:$0xff]
        %v546 = vld [vmem:[%s211 + $0x858] sm:$0xff]
        %v547 = vld [vmem:[%s211 + $0x860] sm:$0xff]
        %v548 = vld [vmem:[%s211 + $0x868] sm:$0xff]
        %v549 = vld [vmem:[%s211 + $0x870] sm:$0xff]
        %v550 = vld [vmem:[%s211 + $0x878] sm:$0xff]
        %v551 = vld [vmem:[%s211 + $0x880] sm:$0xff]
        %v552 = vld [vmem:[%s211 + $0x888] sm:$0xff]
        %v553 = vld [vmem:[%s211 + $0x890] sm:$0xff]
        %v554 = vld [vmem:[%s211 + $0x898] sm:$0xff]
        %v555 = vld [vmem:[%s211 + $0x8a0] sm:$0xff]
        %v556 = vld [vmem:[%s211 + $0x8a8] sm:$0xff]
        %v557 = vld [vmem:[%s211 + $0x8b0] sm:$0xff]
        %v558 = vld [vmem:[%s211 + $0x8b8] sm:$0xff]
        %v559 = vld [vmem:[%s211 + $0x8c0] sm:$0xff]
        %v560 = vld [vmem:[%s211 + $0x8c8] sm:$0xff]
        %v561 = vld [vmem:[%s211 + $0x8d0] sm:$0xff]
        %v562 = vld [vmem:[%s211 + $0x8d8] sm:$0xff]
        %v563 = vld [vmem:[%s211 + $0x8e0] sm:$0xff]
        %v564 = vld [vmem:[%s211 + $0x8e8] sm:$0xff]
        %v565 = vld [vmem:[%s211 + $0x8f0] sm:$0xff]
        %v566 = vld [vmem:[%s211 + $0x8f8] sm:$0xff]
        %v567 = vld [vmem:[%s211 + $0x900] sm:$0xff]
        %v568 = vld [vmem:[%s211 + $0x908] sm:$0xff]
        %v569 = vld [vmem:[%s211 + $0x910] sm:$0xff]
        %v570 = vld [vmem:[%s211 + $0x918] sm:$0xff]
        %v571 = vld [vmem:[%s211 + $0x920] sm:$0xff]
        %v572 = vld [vmem:[%s211 + $0x928] sm:$0xff]
        %v573 = vld [vmem:[%s211 + $0x930] sm:$0xff]
        %v574 = vld [vmem:[%s211 + $0x938] sm:$0xff]
        %v575 = vld [vmem:[%s211 + $0x940] sm:$0xff]
        %v576 = vld [vmem:[%s211 + $0x948] sm:$0xff]
        %v577 = vld [vmem:[%s211 + $0x950] sm:$0xff]
        %v578 = vld [vmem:[%s211 + $0x958] sm:$0xff]
        %v579 = vld [vmem:[%s211 + $0x960] sm:$0xff]
        %v580 = vld [vmem:[%s211 + $0x968] sm:$0xff]
        %v581 = vld [vmem:[%s211 + $0x970] sm:$0xff]
        %v582 = vld [vmem:[%s211 + $0x978] sm:$0xff]
        %v583 = vld [vmem:[%s211 + $0x980] sm:$0xff]
        %v584 = vld [vmem:[%s211 + $0x988] sm:$0xff]
        %v585 = vld [vmem:[%s211 + $0x990] sm:$0xff]
        %v586 = vld [vmem:[%s211 + $0x998] sm:$0xff]
        %v587 = vld [vmem:[%s211 + $0x9a0] sm:$0xff]
        %v588 = vld [vmem:[%s211 + $0x9a8] sm:$0xff]
        %v589 = vld [vmem:[%s211 + $0x9b0] sm:$0xff]
        %v590 = vld [vmem:[%s211 + $0x9b8] sm:$0xff]
        %v591 = vld [vmem:[%s211 + $0x9c0] sm:$0xff]
        %v592 = vld [vmem:[%s211 + $0x9c8] sm:$0xff]
        %v593 = vld [vmem:[%s211 + $0x9d0] sm:$0xff]
        %v594 = vld [vmem:[%s211 + $0x9d8] sm:$0xff]
        %v595 = vld [vmem:[%s211 + $0x9e0] sm:$0xff]
        %v596 = vld [vmem:[%s211 + $0x9e8] sm:$0xff]
        %v597 = vld [vmem:[%s211 + $0x9f0] sm:$0xff]
        %v598 = vld [vmem:[%s211 + $0x9f8] sm:$0xff]
        %v599 = vld [vmem:[%s211 + $0xa00] sm:$0xff]
        %v600 = vld [vmem:[%s211 + $0xa08] sm:$0xff]
        %v601 = vld [vmem:[%s211 + $0xa10] sm:$0xff]
        %v602 = vld [vmem:[%s211 + $0xa18] sm:$0xff]
        %v603 = vld [vmem:[%s211 + $0xa20] sm:$0xff]
        %v604 = vld [vmem:[%s211 + $0xa28] sm:$0xff]
        %v605 = vld [vmem:[%s211 + $0xa30] sm:$0xff]
        %v606 = vld [vmem:[%s211 + $0xa38] sm:$0xff]
        %v607 = vld [vmem:[%s211 + $0xa40] sm:$0xff]
        %v608 = vld [vmem:[%s211 + $0xa48] sm:$0xff]
        %v609 = vld [vmem:[%s211 + $0xa50] sm:$0xff]
        %v610 = vld [vmem:[%s211 + $0xa58] sm:$0xff]
        %v611 = vld [vmem:[%s211 + $0xa60] sm:$0xff]
        %v612 = vld [vmem:[%s211 + $0xa68] sm:$0xff]
        %v613 = vld [vmem:[%s211 + $0xa70] sm:$0xff]
        %v614 = vld [vmem:[%s211 + $0xa78] sm:$0xff]
        %v615 = vld [vmem:[%s211 + $0xa80] sm:$0xff]
        %v616 = vld [vmem:[%s211 + $0xa88] sm:$0xff]
        %v617 = vld [vmem:[%s211 + $0xa90] sm:$0xff]
        %v618 = vld [vmem:[%s211 + $0xa98] sm:$0xff]
        %v619 = vld [vmem:[%s211 + $0xaa0] sm:$0xff]
        %v620 = vld [vmem:[%s211 + $0xaa8] sm:$0xff]
        %v621 = vld [vmem:[%s211 + $0xab0] sm:$0xff]
        %v622 = vld [vmem:[%s211 + $0xab8] sm:$0xff]
        %v623 = vld [vmem:[%s211 + $0xac0] sm:$0xff]
        %v624 = vld [vmem:[%s211 + $0xac8] sm:$0xff]
        %v625 = vld [vmem:[%s211 + $0xad0] sm:$0xff]
        %v626 = vld [vmem:[%s211 + $0xad8] sm:$0xff]
        %v627 = vld [vmem:[%s211 + $0xae0] sm:$0xff]
        %v628 = vld [vmem:[%s211 + $0xae8] sm:$0xff]
        %v629 = vld [vmem:[%s211 + $0xaf0] sm:$0xff]
        %v630 = vld [vmem:[%s211 + $0xaf8] sm:$0xff]
        %v631 = vld [vmem:[%s211 + $0xb00] sm:$0xff]
        %v632 = vld [vmem:[%s211 + $0xb08] sm:$0xff]
        %v633 = vld [vmem:[%s211 + $0xb10] sm:$0xff]
        %v634 = vld [vmem:[%s211 + $0xb18] sm:$0xff]
        %v635 = vld [vmem:[%s211 + $0xb20] sm:$0xff]
        %v636 = vld [vmem:[%s211 + $0xb28] sm:$0xff]
        %v637 = vld [vmem:[%s211 + $0xb30] sm:$0xff]
        %v638 = vld [vmem:[%s211 + $0xb38] sm:$0xff]
        %v639 = vld [vmem:[%s211 + $0xb40] sm:$0xff]
        %v640 = vld [vmem:[%s211 + $0xb48] sm:$0xff]
        %v641 = vld [vmem:[%s211 + $0xb50] sm:$0xff]
        %v642 = vld [vmem:[%s211 + $0xb58] sm:$0xff]
        %v643 = vld [vmem:[%s211 + $0xb60] sm:$0xff]
        %v644 = vld [vmem:[%s211 + $0xb68] sm:$0xff]
        %v645 = vld [vmem:[%s211 + $0xb70] sm:$0xff]
        %v646 = vld [vmem:[%s211 + $0xb78] sm:$0xff]
        %v647 = vld [vmem:[%s211 + $0xb80] sm:$0xff]
        %v648 = vld [vmem:[%s211 + $0xb88] sm:$0xff]
        %v649 = vld [vmem:[%s211 + $0xb90] sm:$0xff]
        %v650 = vld [vmem:[%s211 + $0xb98] sm:$0xff]
        %v651 = vld [vmem:[%s211 + $0xba0] sm:$0xff]
        %v652 = vld [vmem:[%s211 + $0xba8] sm:$0xff]
        %v653 = vld [vmem:[%s211 + $0xbb0] sm:$0xff]
        %v654 = vld [vmem:[%s211 + $0xbb8] sm:$0xff]
        %v655 = vld [vmem:[%s211 + $0xbc0] sm:$0xff]
        %v656 = vld [vmem:[%s211 + $0xbc8] sm:$0xff]
        %v657 = vld [vmem:[%s211 + $0xbd0] sm:$0xff]
        %v658 = vld [vmem:[%s211 + $0xbd8] sm:$0xff]
        %v659 = vld [vmem:[%s211 + $0xbe0] sm:$0xff]
        %v660 = vld [vmem:[%s211 + $0xbe8] sm:$0xff]
        %v661 = vld [vmem:[%s211 + $0xbf0] sm:$0xff]
        %v662 = vld [vmem:[%s211 + $0xbf8] sm:$0xff]
        %v663 = vld [vmem:[%s211 + $0xc00] sm:$0xff]
        %v664 = vld [vmem:[%s211 + $0xc08] sm:$0xff]
        %v665 = vld [vmem:[%s211 + $0xc10] sm:$0xff]
        %v666 = vld [vmem:[%s211 + $0xc18] sm:$0xff]
        %v667 = vld [vmem:[%s211 + $0xc20] sm:$0xff]
        %v668 = vld [vmem:[%s211 + $0xc28] sm:$0xff]
        %v669 = vld [vmem:[%s211 + $0xc30] sm:$0xff]
        %v670 = vld [vmem:[%s211 + $0xc38] sm:$0xff]
        %v671 = vld [vmem:[%s211 + $0xc40] sm:$0xff]
        %v672 = vld [vmem:[%s211 + $0xc48] sm:$0xff]
        %v673 = vld [vmem:[%s211 + $0xc50] sm:$0xff]
        %v674 = vld [vmem:[%s211 + $0xc58] sm:$0xff]
        %v675 = vld [vmem:[%s211 + $0xc60] sm:$0xff]
        %v676 = vld [vmem:[%s211 + $0xc68] sm:$0xff]
        %v677 = vld [vmem:[%s211 + $0xc70] sm:$0xff]
        %v678 = vld [vmem:[%s211 + $0xc78] sm:$0xff]
        %v679 = vld [vmem:[%s211 + $0xc80] sm:$0xff]
        %v680 = vld [vmem:[%s211 + $0xc88] sm:$0xff]
        %v681 = vld [vmem:[%s211 + $0xc90] sm:$0xff]
        %v682 = vld [vmem:[%s211 + $0xc98] sm:$0xff]
        %v683 = vld [vmem:[%s211 + $0xca0] sm:$0xff]
        %v684 = vld [vmem:[%s211 + $0xca8] sm:$0xff]
        %v685 = vld [vmem:[%s211 + $0xcb0] sm:$0xff]
        %v686 = vld [vmem:[%s211 + $0xcb8] sm:$0xff]
        %v687 = vld [vmem:[%s211 + $0xcc0] sm:$0xff]
        %v688 = vld [vmem:[%s211 + $0xcc8] sm:$0xff]
        %v689 = vld [vmem:[%s211 + $0xcd0] sm:$0xff]
        %v690 = vld [vmem:[%s211 + $0xcd8] sm:$0xff]
        %v691 = vld [vmem:[%s211 + $0xce0] sm:$0xff]
        %v692 = vld [vmem:[%s211 + $0xce8] sm:$0xff]
        %v693 = vld [vmem:[%s211 + $0xcf0] sm:$0xff]
        %v694 = vld [vmem:[%s211 + $0xcf8] sm:$0xff]
        %v695 = vld [vmem:[%s211 + $0xd00] sm:$0xff]
        %v696 = vld [vmem:[%s211 + $0xd08] sm:$0xff]
        %v697 = vld [vmem:[%s211 + $0xd10] sm:$0xff]
        %v698 = vld [vmem:[%s211 + $0xd18] sm:$0xff]
        %v699 = vld [vmem:[%s211 + $0xd20] sm:$0xff]
        %v700 = vld [vmem:[%s211 + $0xd28] sm:$0xff]
        %v701 = vld [vmem:[%s211 + $0xd30] sm:$0xff]
        %v702 = vld [vmem:[%s211 + $0xd38] sm:$0xff]
        %v703 = vld [vmem:[%s211 + $0xd40] sm:$0xff]
        %v704 = vld [vmem:[%s211 + $0xd48] sm:$0xff]
        %v705 = vld [vmem:[%s211 + $0xd50] sm:$0xff]
        %v706 = vld [vmem:[%s211 + $0xd58] sm:$0xff]
        %v707 = vld [vmem:[%s211 + $0xd60] sm:$0xff]
        %v708 = vld [vmem:[%s211 + $0xd68] sm:$0xff]
        %v709 = vld [vmem:[%s211 + $0xd70] sm:$0xff]
        %v710 = vld [vmem:[%s211 + $0xd78] sm:$0xff]
        %v711 = vld [vmem:[%s211 + $0xd80] sm:$0xff]
        %v712 = vld [vmem:[%s211 + $0xd88] sm:$0xff]
        %v713 = vld [vmem:[%s211 + $0xd90] sm:$0xff]
        %v714 = vld [vmem:[%s211 + $0xd98] sm:$0xff]
        %v715 = vld [vmem:[%s211 + $0xda0] sm:$0xff]
        %v716 = vld [vmem:[%s211 + $0xda8] sm:$0xff]
        %v717 = vld [vmem:[%s211 + $0xdb0] sm:$0xff]
        %v718 = vld [vmem:[%s211 + $0xdb8] sm:$0xff]
        %v719 = vld [vmem:[%s211 + $0xdc0] sm:$0xff]
        %v720 = vld [vmem:[%s211 + $0xdc8] sm:$0xff]
        %v721 = vld [vmem:[%s211 + $0xdd0] sm:$0xff]
        %v722 = vld [vmem:[%s211 + $0xdd8] sm:$0xff]
        %v723 = vld [vmem:[%s211 + $0xde0] sm:$0xff]
        %v724 = vld [vmem:[%s211 + $0xde8] sm:$0xff]
        %v725 = vld [vmem:[%s211 + $0xdf0] sm:$0xff]
        %v726 = vld [vmem:[%s211 + $0xdf8] sm:$0xff]
        %v727 = vld [vmem:[%s211 + $0xe00] sm:$0xff]
        %v728 = vld [vmem:[%s211 + $0xe08] sm:$0xff]
        %v729 = vld [vmem:[%s211 + $0xe10] sm:$0xff]
        %v730 = vld [vmem:[%s211 + $0xe18] sm:$0xff]
        %v731 = vld [vmem:[%s211 + $0xe20] sm:$0xff]
        %v732 = vld [vmem:[%s211 + $0xe28] sm:$0xff]
        %v733 = vld [vmem:[%s211 + $0xe30] sm:$0xff]
        %v734 = vld [vmem:[%s211 + $0xe38] sm:$0xff]
        %v735 = vld [vmem:[%s211 + $0xe40] sm:$0xff]
        %v736 = vld [vmem:[%s211 + $0xe48] sm:$0xff]
        %v737 = vld [vmem:[%s211 + $0xe50] sm:$0xff]
        %v738 = vld [vmem:[%s211 + $0xe58] sm:$0xff]
        %v739 = vld [vmem:[%s211 + $0xe60] sm:$0xff]
        %v740 = vld [vmem:[%s211 + $0xe68] sm:$0xff]
        %v741 = vld [vmem:[%s211 + $0xe70] sm:$0xff]
        %v742 = vld [vmem:[%s211 + $0xe78] sm:$0xff]
        %v743 = vld [vmem:[%s211 + $0xe80] sm:$0xff]
        %v744 = vld [vmem:[%s211 + $0xe88] sm:$0xff]
        %v745 = vld [vmem:[%s211 + $0xe90] sm:$0xff]
        %v746 = vld [vmem:[%s211 + $0xe98] sm:$0xff]
        %v747 = vld [vmem:[%s211 + $0xea0] sm:$0xff]
        %v748 = vld [vmem:[%s211 + $0xea8] sm:$0xff]
        %v749 = vld [vmem:[%s211 + $0xeb0] sm:$0xff]
        %v750 = vld [vmem:[%s211 + $0xeb8] sm:$0xff]
        %v751 = vld [vmem:[%s211 + $0xec0] sm:$0xff]
        %v752 = vld [vmem:[%s211 + $0xec8] sm:$0xff]
        %v753 = vld [vmem:[%s211 + $0xed0] sm:$0xff]
        %v754 = vld [vmem:[%s211 + $0xed8] sm:$0xff]
        %v755 = vld [vmem:[%s211 + $0xee0] sm:$0xff]
        %v756 = vld [vmem:[%s211 + $0xee8] sm:$0xff]
        %v757 = vld [vmem:[%s211 + $0xef0] sm:$0xff]
        %v758 = vld [vmem:[%s211 + $0xef8] sm:$0xff]
        %v759 = vld [vmem:[%s211 + $0xf00] sm:$0xff]
        %v760 = vld [vmem:[%s211 + $0xf08] sm:$0xff]
        %v761 = vld [vmem:[%s211 + $0xf10] sm:$0xff]
        %v762 = vld [vmem:[%s211 + $0xf18] sm:$0xff]
        %v763 = vld [vmem:[%s211 + $0xf20] sm:$0xff]
        %v764 = vld [vmem:[%s211 + $0xf28] sm:$0xff]
        %v765 = vld [vmem:[%s211 + $0xf30] sm:$0xff]
        %v766 = vld [vmem:[%s211 + $0xf38] sm:$0xff]
        %v767 = vld [vmem:[%s211 + $0xf40] sm:$0xff]
        %v768 = vld [vmem:[%s211 + $0xf48] sm:$0xff]
        %v769 = vld [vmem:[%s211 + $0xf50] sm:$0xff]
        %v770 = vld [vmem:[%s211 + $0xf58] sm:$0xff]
        %v771 = vld [vmem:[%s211 + $0xf60] sm:$0xff]
        %v772 = vld [vmem:[%s211 + $0xf68] sm:$0xff]
        %v773 = vld [vmem:[%s211 + $0xf70] sm:$0xff]
        %v774 = vld [vmem:[%s211 + $0xf78] sm:$0xff]
        %v775 = vld [vmem:[%s211 + $0xf80] sm:$0xff]
        %v776 = vld [vmem:[%s211 + $0xf88] sm:$0xff]
        %v777 = vld [vmem:[%s211 + $0xf90] sm:$0xff]
        %v778 = vld [vmem:[%s211 + $0xf98] sm:$0xff]
        %v779 = vld [vmem:[%s211 + $0xfa0] sm:$0xff]
        %v780 = vld [vmem:[%s211 + $0xfa8] sm:$0xff]
        %v781 = vld [vmem:[%s211 + $0xfb0] sm:$0xff]
        %v782 = vld [vmem:[%s211 + $0xfb8] sm:$0xff]
        %v783 = vld [vmem:[%s211 + $0xfc0] sm:$0xff]
        %v784 = vld [vmem:[%s211 + $0xfc8] sm:$0xff]
        %v785 = vld [vmem:[%s211 + $0xfd0] sm:$0xff]
        %v786 = vld [vmem:[%s211 + $0xfd8] sm:$0xff]
        %v787 = vld [vmem:[%s211 + $0xfe0] sm:$0xff]
        %v788 = vld [vmem:[%s211 + $0xfe8] sm:$0xff]
        %v789 = vld [vmem:[%s211 + $0xff0] sm:$0xff]
        %v790 = vld [vmem:[%s211 + $0xff8] sm:$0xff]
        %v791 = vld [vmem:[%s211 + $0x1000] sm:$0xff]
        %v792 = vld [vmem:[%s211 + $0x1008] sm:$0xff]
        %v793 = vld [vmem:[%s211 + $0x1010] sm:$0xff]
        %v794 = vld [vmem:[%s211 + $0x1018] sm:$0xff]
        %v795 = vld [vmem:[%s211 + $0x1020] sm:$0xff]
        %v796 = vld [vmem:[%s211 + $0x1028] sm:$0xff]
        %v797 = vld [vmem:[%s211 + $0x1030] sm:$0xff]
        %v798 = vld [vmem:[%s211 + $0x1038] sm:$0xff]
        %v799 = vld [vmem:[%s211 + $0x1040] sm:$0xff]
        %v800 = vld [vmem:[%s211 + $0x1048] sm:$0xff]
        %v801 = vld [vmem:[%s211 + $0x1050] sm:$0xff]
        %v802 = vld [vmem:[%s211 + $0x1058] sm:$0xff]
        %v803 = vld [vmem:[%s211 + $0x1060] sm:$0xff]
        %v804 = vld [vmem:[%s211 + $0x1068] sm:$0xff]
        %v805 = vld [vmem:[%s211 + $0x1070] sm:$0xff]
        %v806 = vld [vmem:[%s211 + $0x1078] sm:$0xff]
        %v807 = vld [vmem:[%s211 + $0x1080] sm:$0xff]
        %v808 = vld [vmem:[%s211 + $0x1088] sm:$0xff]
        %v809 = vld [vmem:[%s211 + $0x1090] sm:$0xff]
        %v810 = vld [vmem:[%s211 + $0x1098] sm:$0xff]
        %v811 = vld [vmem:[%s211 + $0x10a0] sm:$0xff]
        %v812 = vld [vmem:[%s211 + $0x10a8] sm:$0xff]
        %v813 = vld [vmem:[%s211 + $0x10b0] sm:$0xff]
        %v814 = vld [vmem:[%s211 + $0x10b8] sm:$0xff]
        %v815 = vld [vmem:[%s211 + $0x10c0] sm:$0xff]
        %v816 = vld [vmem:[%s211 + $0x10c8] sm:$0xff]
        %v817 = vld [vmem:[%s211 + $0x10d0] sm:$0xff]
        %v818 = vld [vmem:[%s211 + $0x10d8] sm:$0xff]
        %v819 = vld [vmem:[%s211 + $0x10e0] sm:$0xff]
        %v820 = vld [vmem:[%s211 + $0x10e8] sm:$0xff]
        %v821 = vld [vmem:[%s211 + $0x10f0] sm:$0xff]
        %v822 = vld [vmem:[%s211 + $0x10f8] sm:$0xff]
        %v823 = vld [vmem:[%s211 + $0x1100] sm:$0xff]
        %v824 = vld [vmem:[%s211 + $0x1108] sm:$0xff]
        %v825 = vld [vmem:[%s211 + $0x1110] sm:$0xff]
        %v826 = vld [vmem:[%s211 + $0x1118] sm:$0xff]
        %v827 = vld [vmem:[%s211 + $0x1120] sm:$0xff]
        %v828 = vld [vmem:[%s211 + $0x1128] sm:$0xff]
        %v829 = vld [vmem:[%s211 + $0x1130] sm:$0xff]
        %v830 = vld [vmem:[%s211 + $0x1138] sm:$0xff]
        %v831 = vld [vmem:[%s211 + $0x1140] sm:$0xff]
        %v832 = vld [vmem:[%s211 + $0x1148] sm:$0xff]
        %v833 = vld [vmem:[%s211 + $0x1150] sm:$0xff]
        %v834 = vld [vmem:[%s211 + $0x1158] sm:$0xff]
        %v835 = vld [vmem:[%s211 + $0x1160] sm:$0xff]
        %v836 = vld [vmem:[%s211 + $0x1168] sm:$0xff]
        %v837 = vld [vmem:[%s211 + $0x1170] sm:$0xff]
        %v838 = vld [vmem:[%s211 + $0x1178] sm:$0xff]
        %v839 = vld [vmem:[%s211 + $0x1180] sm:$0xff]
        %v840 = vld [vmem:[%s211 + $0x1188] sm:$0xff]
        %v841 = vld [vmem:[%s211 + $0x1190] sm:$0xff]
        %v842 = vld [vmem:[%s211 + $0x1198] sm:$0xff]
        %v843 = vld [vmem:[%s211 + $0x11a0] sm:$0xff]
        %v844 = vld [vmem:[%s211 + $0x11a8] sm:$0xff]
        %v845 = vld [vmem:[%s211 + $0x11b0] sm:$0xff]
        %v846 = vld [vmem:[%s211 + $0x11b8] sm:$0xff]
        %v847 = vld [vmem:[%s211 + $0x11c0] sm:$0xff]
        %v848 = vld [vmem:[%s211 + $0x11c8] sm:$0xff]
        %v849 = vld [vmem:[%s211 + $0x11d0] sm:$0xff]
        %v850 = vld [vmem:[%s211 + $0x11d8] sm:$0xff]
        %v851 = vld [vmem:[%s211 + $0x11e0] sm:$0xff]
        %v852 = vld [vmem:[%s211 + $0x11e8] sm:$0xff]
        %v853 = vld [vmem:[%s211 + $0x11f0] sm:$0xff]
        %v854 = vld [vmem:[%s211 + $0x11f8] sm:$0xff]
        %v855 = vld [vmem:[%s211 + $0x1200] sm:$0xff]
        %v856 = vld [vmem:[%s211 + $0x1208] sm:$0xff]
        %v857 = vld [vmem:[%s211 + $0x1210] sm:$0xff]
        %v858 = vld [vmem:[%s211 + $0x1218] sm:$0xff]
        %v859 = vld [vmem:[%s211 + $0x1220] sm:$0xff]
        %v860 = vld [vmem:[%s211 + $0x1228] sm:$0xff]
        %v861 = vld [vmem:[%s211 + $0x1230] sm:$0xff]
        %v862 = vld [vmem:[%s211 + $0x1238] sm:$0xff]
        %v863 = vld [vmem:[%s211 + $0x1240] sm:$0xff]
        %v864 = vld [vmem:[%s211 + $0x1248] sm:$0xff]
        %v865 = vld [vmem:[%s211 + $0x1250] sm:$0xff]
        %v866 = vld [vmem:[%s211 + $0x1258] sm:$0xff]
        %v867 = vld [vmem:[%s211 + $0x1260] sm:$0xff]
        %v868 = vld [vmem:[%s211 + $0x1268] sm:$0xff]
        %v869 = vld [vmem:[%s211 + $0x1270] sm:$0xff]
        %v870 = vld [vmem:[%s211 + $0x1278] sm:$0xff]
        %v871 = vld [vmem:[%s211 + $0x1280] sm:$0xff]
        %v872 = vld [vmem:[%s211 + $0x1288] sm:$0xff]
        %v873 = vld [vmem:[%s211 + $0x1290] sm:$0xff]
        %v874 = vld [vmem:[%s211 + $0x1298] sm:$0xff]
        %v875 = vld [vmem:[%s211 + $0x12a0] sm:$0xff]
        %v876 = vld [vmem:[%s211 + $0x12a8] sm:$0xff]
        %v877 = vld [vmem:[%s211 + $0x12b0] sm:$0xff]
        %v878 = vld [vmem:[%s211 + $0x12b8] sm:$0xff]
        %v879 = vld [vmem:[%s211 + $0x12c0] sm:$0xff]
        %v880 = vld [vmem:[%s211 + $0x12c8] sm:$0xff]
        %v881 = vld [vmem:[%s211 + $0x12d0] sm:$0xff]
        %v882 = vld [vmem:[%s211 + $0x12d8] sm:$0xff]
        %v883 = vld [vmem:[%s211 + $0x12e0] sm:$0xff]
        %v884 = vld [vmem:[%s211 + $0x12e8] sm:$0xff]
        %v885 = vld [vmem:[%s211 + $0x12f0] sm:$0xff]
        %v886 = vld [vmem:[%s211 + $0x12f8] sm:$0xff]
        %v887 = vld [vmem:[%s211 + $0x1300] sm:$0xff]
        %v888 = vld [vmem:[%s211 + $0x1308] sm:$0xff]
        %v889 = vld [vmem:[%s211 + $0x1310] sm:$0xff]
        %v890 = vld [vmem:[%s211 + $0x1318] sm:$0xff]
        %v891 = vld [vmem:[%s211 + $0x1320] sm:$0xff]
        %v892 = vld [vmem:[%s211 + $0x1328] sm:$0xff]
        %v893 = vld [vmem:[%s211 + $0x1330] sm:$0xff]
        %v894 = vld [vmem:[%s211 + $0x1338] sm:$0xff]
        %v895 = vld [vmem:[%s211 + $0x1340] sm:$0xff]
        %v896 = vld [vmem:[%s211 + $0x1348] sm:$0xff]
        %v897 = vld [vmem:[%s211 + $0x1350] sm:$0xff]
        %v898 = vld [vmem:[%s211 + $0x1358] sm:$0xff]
        %v899 = vld [vmem:[%s211 + $0x1360] sm:$0xff]
        %v900 = vld [vmem:[%s211 + $0x1368] sm:$0xff]
        %v901 = vld [vmem:[%s211 + $0x1370] sm:$0xff]
        %v902 = vld [vmem:[%s211 + $0x1378] sm:$0xff]
        %v903 = vld [vmem:[%s211 + $0x1380] sm:$0xff]
        %v904 = vld [vmem:[%s211 + $0x1388] sm:$0xff]
        %v905 = vld [vmem:[%s211 + $0x1390] sm:$0xff]
        %v906 = vld [vmem:[%s211 + $0x1398] sm:$0xff]
        %v907 = vld [vmem:[%s211 + $0x13a0] sm:$0xff]
        %v908 = vld [vmem:[%s211 + $0x13a8] sm:$0xff]
        %v909 = vld [vmem:[%s211 + $0x13b0] sm:$0xff]
        %v910 = vld [vmem:[%s211 + $0x13b8] sm:$0xff]
        %v911 = vld [vmem:[%s211 + $0x13c0] sm:$0xff]
        %v912 = vld [vmem:[%s211 + $0x13c8] sm:$0xff]
        %v913 = vld [vmem:[%s211 + $0x13d0] sm:$0xff]
        %v914 = vld [vmem:[%s211 + $0x13d8] sm:$0xff]
        %v915 = vld [vmem:[%s211 + $0x13e0] sm:$0xff]
        %v916 = vld [vmem:[%s211 + $0x13e8] sm:$0xff]
        %v917 = vld [vmem:[%s211 + $0x13f0] sm:$0xff]
        %v918 = vld [vmem:[%s211 + $0x13f8] sm:$0xff]
        %v919 = vld [vmem:[%s211 + $0x1400] sm:$0xff]
        %v920 = vld [vmem:[%s211 + $0x1408] sm:$0xff]
        %v921 = vld [vmem:[%s211 + $0x1410] sm:$0xff]
        %v922 = vld [vmem:[%s211 + $0x1418] sm:$0xff]
        %v923 = vld [vmem:[%s211 + $0x1420] sm:$0xff]
        %v924 = vld [vmem:[%s211 + $0x1428] sm:$0xff]
        %v925 = vld [vmem:[%s211 + $0x1430] sm:$0xff]
        %v926 = vld [vmem:[%s211 + $0x1438] sm:$0xff]
        %v927 = vld [vmem:[%s211 + $0x1440] sm:$0xff]
        %v928 = vld [vmem:[%s211 + $0x1448] sm:$0xff]
        %v929 = vld [vmem:[%s211 + $0x1450] sm:$0xff]
        %v930 = vld [vmem:[%s211 + $0x1458] sm:$0xff]
        %v931 = vld [vmem:[%s211 + $0x1460] sm:$0xff]
        %v932 = vld [vmem:[%s211 + $0x1468] sm:$0xff]
        %v933 = vld [vmem:[%s211 + $0x1470] sm:$0xff]
        %v934 = vld [vmem:[%s211 + $0x1478] sm:$0xff]
        %v935 = vld [vmem:[%s211 + $0x1480] sm:$0xff]
        %v936 = vld [vmem:[%s211 + $0x1488] sm:$0xff]
        %v937 = vld [vmem:[%s211 + $0x1490] sm:$0xff]
        %v938 = vld [vmem:[%s211 + $0x1498] sm:$0xff]
        %v939 = vld [vmem:[%s211 + $0x14a0] sm:$0xff]
        %v940 = vld [vmem:[%s211 + $0x14a8] sm:$0xff]
        %v941 = vld [vmem:[%s211 + $0x14b0] sm:$0xff]
        %v942 = vld [vmem:[%s211 + $0x14b8] sm:$0xff]
        %v943 = vld [vmem:[%s211 + $0x14c0] sm:$0xff]
        %v944 = vld [vmem:[%s211 + $0x14c8] sm:$0xff]
        %v945 = vld [vmem:[%s211 + $0x14d0] sm:$0xff]
        %v946 = vld [vmem:[%s211 + $0x14d8] sm:$0xff]
        %v947 = vld [vmem:[%s211 + $0x14e0] sm:$0xff]
        %v948 = vld [vmem:[%s211 + $0x14e8] sm:$0xff]
        %v949 = vld [vmem:[%s211 + $0x14f0] sm:$0xff]
        %v950 = vld [vmem:[%s211 + $0x14f8] sm:$0xff]
        %v951 = vld [vmem:[%s211 + $0x1500] sm:$0xff]
        %v952 = vld [vmem:[%s211 + $0x1508] sm:$0xff]
        %v953 = vld [vmem:[%s211 + $0x1510] sm:$0xff]
        %v954 = vld [vmem:[%s211 + $0x1518] sm:$0xff]
        %v955 = vld [vmem:[%s211 + $0x1520] sm:$0xff]
        %v956 = vld [vmem:[%s211 + $0x1528] sm:$0xff]
        %v957 = vld [vmem:[%s211 + $0x1530] sm:$0xff]
        %v958 = vld [vmem:[%s211 + $0x1538] sm:$0xff]
        %v959 = vld [vmem:[%s211 + $0x1540] sm:$0xff]
        %v960 = vld [vmem:[%s211 + $0x1548] sm:$0xff]
        %v961 = vld [vmem:[%s211 + $0x1550] sm:$0xff]
        %v962 = vld [vmem:[%s211 + $0x1558] sm:$0xff]
        %v963 = vld [vmem:[%s211 + $0x1560] sm:$0xff]
        %v964 = vld [vmem:[%s211 + $0x1568] sm:$0xff]
        %v965 = vld [vmem:[%s211 + $0x1570] sm:$0xff]
        %v966 = vld [vmem:[%s211 + $0x1578] sm:$0xff]
        %v967 = vld [vmem:[%s211 + $0x1580] sm:$0xff]
        %v968 = vld [vmem:[%s211 + $0x1588] sm:$0xff]
        %v969 = vld [vmem:[%s211 + $0x1590] sm:$0xff]
        %v970 = vld [vmem:[%s211 + $0x1598] sm:$0xff]
        %v971 = vld [vmem:[%s211 + $0x15a0] sm:$0xff]
        %v972 = vld [vmem:[%s211 + $0x15a8] sm:$0xff]
        %v973 = vld [vmem:[%s211 + $0x15b0] sm:$0xff]
        %v974 = vld [vmem:[%s211 + $0x15b8] sm:$0xff]
        %v975 = vld [vmem:[%s211 + $0x15c0] sm:$0xff]
        %v976 = vld [vmem:[%s211 + $0x15c8] sm:$0xff]
        %v977 = vld [vmem:[%s211 + $0x15d0] sm:$0xff]
        %v978 = vld [vmem:[%s211 + $0x15d8] sm:$0xff]
        %v979 = vld [vmem:[%s211 + $0x15e0] sm:$0xff]
        %v980 = vld [vmem:[%s211 + $0x15e8] sm:$0xff]
        %v981 = vld [vmem:[%s211 + $0x15f0] sm:$0xff]
        %v982 = vld [vmem:[%s211 + $0x15f8] sm:$0xff]
        %v983 = vld [vmem:[%s211 + $0x1600] sm:$0xff]
        %v984 = vld [vmem:[%s211 + $0x1608] sm:$0xff]
        %v985 = vld [vmem:[%s211 + $0x1610] sm:$0xff]
        %v986 = vld [vmem:[%s211 + $0x1618] sm:$0xff]
        %v987 = vld [vmem:[%s211 + $0x1620] sm:$0xff]
        %v988 = vld [vmem:[%s211 + $0x1628] sm:$0xff]
        %v989 = vld [vmem:[%s211 + $0x1630] sm:$0xff]
        %v990 = vld [vmem:[%s211 + $0x1638] sm:$0xff]
        %v991 = vld [vmem:[%s211 + $0x1640] sm:$0xff]
        %v992 = vld [vmem:[%s211 + $0x1648] sm:$0xff]
        %v993 = vld [vmem:[%s211 + $0x1650] sm:$0xff]
        %v994 = vld [vmem:[%s211 + $0x1658] sm:$0xff]
        %v995 = vld [vmem:[%s211 + $0x1660] sm:$0xff]
        %v996 = vld [vmem:[%s211 + $0x1668] sm:$0xff]
        %v997 = vld [vmem:[%s211 + $0x1670] sm:$0xff]
        %v998 = vld [vmem:[%s211 + $0x1678] sm:$0xff]
        %v999 = vld [vmem:[%s211 + $0x1680] sm:$0xff]
        %v1000 = vld [vmem:[%s211 + $0x1688] sm:$0xff]
        %v1001 = vld [vmem:[%s211 + $0x1690] sm:$0xff]
        %v1002 = vld [vmem:[%s211 + $0x1698] sm:$0xff]
        %v1003 = vld [vmem:[%s211 + $0x16a0] sm:$0xff]
        %v1004 = vld [vmem:[%s211 + $0x16a8] sm:$0xff]
        %v1005 = vld [vmem:[%s211 + $0x16b0] sm:$0xff]
        %v1006 = vld [vmem:[%s211 + $0x16b8] sm:$0xff]
        %v1007 = vld [vmem:[%s211 + $0x16c0] sm:$0xff]
        %v1008 = vld [vmem:[%s211 + $0x16c8] sm:$0xff]
        %v1009 = vld [vmem:[%s211 + $0x16d0] sm:$0xff]
        %v1010 = vld [vmem:[%s211 + $0x16d8] sm:$0xff]
        %v1011 = vld [vmem:[%s211 + $0x16e0] sm:$0xff]
        %v1012 = vld [vmem:[%s211 + $0x16e8] sm:$0xff]
        %v1013 = vld [vmem:[%s211 + $0x16f0] sm:$0xff]
        %v1014 = vld [vmem:[%s211 + $0x16f8] sm:$0xff]
        %v1015 = vld [vmem:[%s211 + $0x1700] sm:$0xff]
        %v1016 = vld [vmem:[%s211 + $0x1708] sm:$0xff]
        %v1017 = vld [vmem:[%s211 + $0x1710] sm:$0xff]
        %v1018 = vld [vmem:[%s211 + $0x1718] sm:$0xff]
        %v1019 = vld [vmem:[%s211 + $0x1720] sm:$0xff]
        %v1020 = vld [vmem:[%s211 + $0x1728] sm:$0xff]
        %v1021 = vld [vmem:[%s211 + $0x1730] sm:$0xff]
        %v1022 = vld [vmem:[%s211 + $0x1738] sm:$0xff]
        %v1023 = vld [vmem:[%s211 + $0x1740] sm:$0xff]
        %v1024 = vld [vmem:[%s211 + $0x1748] sm:$0xff]
        %v1025 = vld [vmem:[%s211 + $0x1750] sm:$0xff]
        %v1026 = vld [vmem:[%s211 + $0x1758] sm:$0xff]
        %v1027 = vld [vmem:[%s211 + $0x1760] sm:$0xff]
        %v1028 = vld [vmem:[%s211 + $0x1768] sm:$0xff]
        %v1029 = vld [vmem:[%s211 + $0x1770] sm:$0xff]
        %v1030 = vld [vmem:[%s211 + $0x1778] sm:$0xff]
        %v1031 = vld [vmem:[%s211 + $0x1780] sm:$0xff]
        %v1032 = vld [vmem:[%s211 + $0x1788] sm:$0xff]
        %v1033 = vld [vmem:[%s211 + $0x1790] sm:$0xff]
        %v1034 = vld [vmem:[%s211 + $0x1798] sm:$0xff]
        %v1035 = vld [vmem:[%s211 + $0x17a0] sm:$0xff]
        %v1036 = vld [vmem:[%s211 + $0x17a8] sm:$0xff]
        %v1037 = vld [vmem:[%s211 + $0x17b0] sm:$0xff]
        %v1038 = vld [vmem:[%s211 + $0x17b8] sm:$0xff]
        %v1039 = vld [vmem:[%s211 + $0x17c0] sm:$0xff]
        %v1040 = vld [vmem:[%s211 + $0x17c8] sm:$0xff]
        %v1041 = vld [vmem:[%s211 + $0x17d0] sm:$0xff]
        %v1042 = vld [vmem:[%s211 + $0x17d8] sm:$0xff]
        %v1043 = vld [vmem:[%s211 + $0x17e0] sm:$0xff]
        %v1044 = vld [vmem:[%s211 + $0x17e8] sm:$0xff]
        %v1045 = vld [vmem:[%s211 + $0x17f0] sm:$0xff]
        %v1046 = vld [vmem:[%s211 + $0x17f8] sm:$0xff]
        %v1047 = vld [vmem:[%s211 + $0x1800] sm:$0xff]
        %v1048 = vld [vmem:[%s211 + $0x1808] sm:$0xff]
        %v1049 = vld [vmem:[%s211 + $0x1810] sm:$0xff]
        %v1050 = vld [vmem:[%s211 + $0x1818] sm:$0xff]
        %v1051 = vld [vmem:[%s211 + $0x1820] sm:$0xff]
        %v1052 = vld [vmem:[%s211 + $0x1828] sm:$0xff]
        %v1053 = vld [vmem:[%s211 + $0x1830] sm:$0xff]
        %v1054 = vld [vmem:[%s211 + $0x1838] sm:$0xff]
        %v1055 = vld [vmem:[%s211 + $0x1840] sm:$0xff]
        %v1056 = vld [vmem:[%s211 + $0x1848] sm:$0xff]
        %v1057 = vld [vmem:[%s211 + $0x1850] sm:$0xff]
        %v1058 = vld [vmem:[%s211 + $0x1858] sm:$0xff]
        %v1059 = vld [vmem:[%s211 + $0x1860] sm:$0xff]
        %v1060 = vld [vmem:[%s211 + $0x1868] sm:$0xff]
        %v1061 = vld [vmem:[%s211 + $0x1870] sm:$0xff]
        %v1062 = vld [vmem:[%s211 + $0x1878] sm:$0xff]
        %v1063 = vld [vmem:[%s211 + $0x1880] sm:$0xff]
        %v1064 = vld [vmem:[%s211 + $0x1888] sm:$0xff]
        %v1065 = vld [vmem:[%s211 + $0x1890] sm:$0xff]
        %v1066 = vld [vmem:[%s211 + $0x1898] sm:$0xff]
        %v1067 = vld [vmem:[%s211 + $0x18a0] sm:$0xff]
        %v1068 = vld [vmem:[%s211 + $0x18a8] sm:$0xff]
        %v1069 = vld [vmem:[%s211 + $0x18b0] sm:$0xff]
        %v1070 = vld [vmem:[%s211 + $0x18b8] sm:$0xff]
        %v1071 = vld [vmem:[%s211 + $0x18c0] sm:$0xff]
        %v1072 = vld [vmem:[%s211 + $0x18c8] sm:$0xff]
        %v1073 = vld [vmem:[%s211 + $0x18d0] sm:$0xff]
        %v1074 = vld [vmem:[%s211 + $0x18d8] sm:$0xff]
        %v1075 = vld [vmem:[%s211 + $0x18e0] sm:$0xff]
        %v1076 = vld [vmem:[%s211 + $0x18e8] sm:$0xff]
        %v1077 = vld [vmem:[%s211 + $0x18f0] sm:$0xff]
        %v1078 = vld [vmem:[%s211 + $0x18f8] sm:$0xff]
        %v1079 = vld [vmem:[%s220] sm:$0xff]
        %v1080 = vld [vmem:[%s220 + $0x8] sm:$0x3]
        %v1083 = vlaneseq
        %v1084 = vshrl.u32 %v1083, 7
        %v1085 = vsub.s32 0, %v1084
        %v1086 = vrot.slane %v1079, %v1085
        %v1087 = vlaneseq
        %v1088 = vshrl.u32 %v1087, 7
        %v1089 = vsub.s32 1, %v1088
        %v1090 = vrot.slane %v1079, %v1089
        %v1091 = vlaneseq
        %v1092 = vshrl.u32 %v1091, 7
        %v1093 = vsub.s32 2, %v1092
        %v1094 = vrot.slane %v1079, %v1093
        %v1095 = vlaneseq
        %v1096 = vshrl.u32 %v1095, 7
        %v1097 = vsub.s32 3, %v1096
        %v1098 = vrot.slane %v1079, %v1097
        %v1099 = vlaneseq
        %v1100 = vshrl.u32 %v1099, 7
        %v1101 = vsub.s32 4, %v1100
        %v1102 = vrot.slane %v1079, %v1101
        %v1103 = vlaneseq
        %v1104 = vshrl.u32 %v1103, 7
        %v1105 = vsub.s32 5, %v1104
        %v1106 = vrot.slane %v1079, %v1105
        %v1107 = vlaneseq
        %v1108 = vshrl.u32 %v1107, 7
        %v1109 = vsub.s32 6, %v1108
        %v1110 = vrot.slane %v1079, %v1109
        %v1111 = vlaneseq
        %v1112 = vshrl.u32 %v1111, 7
        %v1113 = vsub.s32 7, %v1112
        %v1114 = vrot.slane %v1079, %v1113
        %v1115 = vlaneseq
        %v1116 = vshrl.u32 %v1115, 7
        %v1117 = vsub.s32 0, %v1116
        %v1118 = vrot.slane %v1080, %v1117
        %v1119 = vlaneseq
        %v1120 = vshrl.u32 %v1119, 7
        %v1121 = vsub.s32 1, %v1120
        %v1122 = vrot.slane %v1080, %v1121
        %v1138 = vunpack.c.l.b16 %v274
        %v1139 = vunpack.c.h.b16 %v274
        %v1140 = vunpack.c.l.b16 %v275
        %v1141 = vunpack.c.h.b16 %v275
        %v1142 = vunpack.c.l.b16 %v276
        %v1143 = vunpack.c.h.b16 %v276
        %v1144 = vunpack.c.l.b16 %v277
        %v1145 = vunpack.c.h.b16 %v277
        %v1146 = vunpack.c.l.b16 %v278
        %v1147 = vunpack.c.h.b16 %v278
        %v1148 = vpack.c.b16 %v1138, %v1138
        %v1149 = vpack.c.b16 %v1139, %v1139
        %v1150 = vpack.c.b16 %v1140, %v1140
        %v1151 = vpack.c.b16 %v1141, %v1141
        %v1152 = vpack.c.b16 %v1142, %v1142
        %v1153 = vpack.c.b16 %v1143, %v1143
        %v1154 = vpack.c.b16 %v1144, %v1144
        %v1155 = vpack.c.b16 %v1145, %v1145
        %v1156 = vpack.c.b16 %v1146, %v1146
        %v1157 = vpack.c.b16 %v1147, %v1147
        %v1968 = vunpack.c.l.b16 %v279
        %v1969 = vunpack.c.h.b16 %v279
        %v1970 = vunpack.c.l.b16 %v280
        %v1971 = vunpack.c.h.b16 %v280
        %v1972 = vunpack.c.l.b16 %v281
        %v1973 = vunpack.c.h.b16 %v281
        %v1974 = vunpack.c.l.b16 %v282
        %v1975 = vunpack.c.h.b16 %v282
        %v1976 = vunpack.c.l.b16 %v283
        %v1977 = vunpack.c.h.b16 %v283
        %v1978 = vunpack.c.l.b16 %v284
        %v1979 = vunpack.c.h.b16 %v284
        %v1980 = vunpack.c.l.b16 %v285
        %v1981 = vunpack.c.h.b16 %v285
        %v1982 = vunpack.c.l.b16 %v286
        %v1983 = vunpack.c.h.b16 %v286
        %v1984 = vunpack.c.l.b16 %v287
        %v1985 = vunpack.c.h.b16 %v287
        %v1986 = vunpack.c.l.b16 %v288
        %v1987 = vunpack.c.h.b16 %v288
        %v1988 = vunpack.c.l.b16 %v289
        %v1989 = vunpack.c.h.b16 %v289
        %v1990 = vunpack.c.l.b16 %v290
        %v1991 = vunpack.c.h.b16 %v290
        %v1992 = vunpack.c.l.b16 %v291
        %v1993 = vunpack.c.h.b16 %v291
        %v1994 = vunpack.c.l.b16 %v292
        %v1995 = vunpack.c.h.b16 %v292
        %v1996 = vunpack.c.l.b16 %v293
        %v1997 = vunpack.c.h.b16 %v293
        %v1998 = vunpack.c.l.b16 %v294
        %v1999 = vunpack.c.h.b16 %v294
        %v2000 = vunpack.c.l.b16 %v295
        %v2001 = vunpack.c.h.b16 %v295
        %v2002 = vunpack.c.l.b16 %v296
        %v2003 = vunpack.c.h.b16 %v296
        %v2004 = vunpack.c.l.b16 %v297
        %v2005 = vunpack.c.h.b16 %v297
        %v2006 = vunpack.c.l.b16 %v298
        %v2007 = vunpack.c.h.b16 %v298
        %v2008 = vunpack.c.l.b16 %v299
        %v2009 = vunpack.c.h.b16 %v299
        %v2010 = vunpack.c.l.b16 %v300
        %v2011 = vunpack.c.h.b16 %v300
        %v2012 = vunpack.c.l.b16 %v301
        %v2013 = vunpack.c.h.b16 %v301
        %v2014 = vunpack.c.l.b16 %v302
        %v2015 = vunpack.c.h.b16 %v302
        %v2016 = vunpack.c.l.b16 %v303
        %v2017 = vunpack.c.h.b16 %v303
        %v2018 = vunpack.c.l.b16 %v304
        %v2019 = vunpack.c.h.b16 %v304
        %v2020 = vunpack.c.l.b16 %v305
        %v2021 = vunpack.c.h.b16 %v305
        %v2022 = vunpack.c.l.b16 %v306
        %v2023 = vunpack.c.h.b16 %v306
        %v2024 = vunpack.c.l.b16 %v307
        %v2025 = vunpack.c.h.b16 %v307
        %v2026 = vunpack.c.l.b16 %v308
        %v2027 = vunpack.c.h.b16 %v308
        %v2028 = vunpack.c.l.b16 %v309
        %v2029 = vunpack.c.h.b16 %v309
        %v2030 = vunpack.c.l.b16 %v310
        %v2031 = vunpack.c.h.b16 %v310
        %v2032 = vunpack.c.l.b16 %v311
        %v2033 = vunpack.c.h.b16 %v311
        %v2034 = vunpack.c.l.b16 %v312
        %v2035 = vunpack.c.h.b16 %v312
        %v2036 = vunpack.c.l.b16 %v313
        %v2037 = vunpack.c.h.b16 %v313
        %v2038 = vunpack.c.l.b16 %v314
        %v2039 = vunpack.c.h.b16 %v314
        %v2040 = vunpack.c.l.b16 %v315
        %v2041 = vunpack.c.h.b16 %v315
        %v2042 = vunpack.c.l.b16 %v316
        %v2043 = vunpack.c.h.b16 %v316
        %v2044 = vunpack.c.l.b16 %v317
        %v2045 = vunpack.c.h.b16 %v317
        %v2046 = vunpack.c.l.b16 %v318
        %v2047 = vunpack.c.h.b16 %v318
        %v2048 = vunpack.c.l.b16 %v319
        %v2049 = vunpack.c.h.b16 %v319
        %v2050 = vunpack.c.l.b16 %v320
        %v2051 = vunpack.c.h.b16 %v320
        %v2052 = vunpack.c.l.b16 %v321
        %v2053 = vunpack.c.h.b16 %v321
        %v2054 = vunpack.c.l.b16 %v322
        %v2055 = vunpack.c.h.b16 %v322
        %v2056 = vunpack.c.l.b16 %v323
        %v2057 = vunpack.c.h.b16 %v323
        %v2058 = vunpack.c.l.b16 %v324
        %v2059 = vunpack.c.h.b16 %v324
        %v2060 = vunpack.c.l.b16 %v325
        %v2061 = vunpack.c.h.b16 %v325
        %v2062 = vunpack.c.l.b16 %v326
        %v2063 = vunpack.c.h.b16 %v326
        %v2064 = vunpack.c.l.b16 %v327
        %v2065 = vunpack.c.h.b16 %v327
        %v2066 = vunpack.c.l.b16 %v328
        %v2067 = vunpack.c.h.b16 %v328
        %v2068 = vunpack.c.l.b16 %v329
        %v2069 = vunpack.c.h.b16 %v329
        %v2070 = vunpack.c.l.b16 %v330
        %v2071 = vunpack.c.h.b16 %v330
        %v2072 = vunpack.c.l.b16 %v331
        %v2073 = vunpack.c.h.b16 %v331
        %v2074 = vunpack.c.l.b16 %v332
        %v2075 = vunpack.c.h.b16 %v332
        %v2076 = vunpack.c.l.b16 %v333
        %v2077 = vunpack.c.h.b16 %v333
        %v2078 = vunpack.c.l.b16 %v334
        %v2079 = vunpack.c.h.b16 %v334
        %v2080 = vunpack.c.l.b16 %v335
        %v2081 = vunpack.c.h.b16 %v335
        %v2082 = vunpack.c.l.b16 %v336
        %v2083 = vunpack.c.h.b16 %v336
        %v2084 = vunpack.c.l.b16 %v337
        %v2085 = vunpack.c.h.b16 %v337
        %v2086 = vunpack.c.l.b16 %v338
        %v2087 = vunpack.c.h.b16 %v338
        %v2088 = vunpack.c.l.b16 %v339
        %v2089 = vunpack.c.h.b16 %v339
        %v2090 = vunpack.c.l.b16 %v340
        %v2091 = vunpack.c.h.b16 %v340
        %v2092 = vunpack.c.l.b16 %v341
        %v2093 = vunpack.c.h.b16 %v341
        %v2094 = vunpack.c.l.b16 %v342
        %v2095 = vunpack.c.h.b16 %v342
        %v2096 = vunpack.c.l.b16 %v343
        %v2097 = vunpack.c.h.b16 %v343
        %v2098 = vunpack.c.l.b16 %v344
        %v2099 = vunpack.c.h.b16 %v344
        %v2100 = vunpack.c.l.b16 %v345
        %v2101 = vunpack.c.h.b16 %v345
        %v2102 = vunpack.c.l.b16 %v346
        %v2103 = vunpack.c.h.b16 %v346
        %v2104 = vunpack.c.l.b16 %v347
        %v2105 = vunpack.c.h.b16 %v347
        %v2106 = vunpack.c.l.b16 %v348
        %v2107 = vunpack.c.h.b16 %v348
        %v2108 = vunpack.c.l.b16 %v349
        %v2109 = vunpack.c.h.b16 %v349
        %v2110 = vunpack.c.l.b16 %v350
        %v2111 = vunpack.c.h.b16 %v350
        %v2112 = vunpack.c.l.b16 %v351
        %v2113 = vunpack.c.h.b16 %v351
        %v2114 = vunpack.c.l.b16 %v352
        %v2115 = vunpack.c.h.b16 %v352
        %v2116 = vunpack.c.l.b16 %v353
        %v2117 = vunpack.c.h.b16 %v353
        %v2118 = vunpack.c.l.b16 %v354
        %v2119 = vunpack.c.h.b16 %v354
        %v2120 = vunpack.c.l.b16 %v355
        %v2121 = vunpack.c.h.b16 %v355
        %v2122 = vunpack.c.l.b16 %v356
        %v2123 = vunpack.c.h.b16 %v356
        %v2124 = vunpack.c.l.b16 %v357
        %v2125 = vunpack.c.h.b16 %v357
        %v2126 = vunpack.c.l.b16 %v358
        %v2127 = vunpack.c.h.b16 %v358
        %v2128 = vunpack.c.l.b16 %v359
        %v2129 = vunpack.c.h.b16 %v359
        %v2130 = vunpack.c.l.b16 %v360
        %v2131 = vunpack.c.h.b16 %v360
        %v2132 = vunpack.c.l.b16 %v361
        %v2133 = vunpack.c.h.b16 %v361
        %v2134 = vunpack.c.l.b16 %v362
        %v2135 = vunpack.c.h.b16 %v362
        %v2136 = vunpack.c.l.b16 %v363
        %v2137 = vunpack.c.h.b16 %v363
        %v2138 = vunpack.c.l.b16 %v364
        %v2139 = vunpack.c.h.b16 %v364
        %v2140 = vunpack.c.l.b16 %v365
        %v2141 = vunpack.c.h.b16 %v365
        %v2142 = vunpack.c.l.b16 %v366
        %v2143 = vunpack.c.h.b16 %v366
        %v2144 = vunpack.c.l.b16 %v367
        %v2145 = vunpack.c.h.b16 %v367
        %v2146 = vunpack.c.l.b16 %v368
        %v2147 = vunpack.c.h.b16 %v368
        %v2148 = vunpack.c.l.b16 %v369
        %v2149 = vunpack.c.h.b16 %v369
        %v2150 = vunpack.c.l.b16 %v370
        %v2151 = vunpack.c.h.b16 %v370
        %v2152 = vunpack.c.l.b16 %v371
        %v2153 = vunpack.c.h.b16 %v371
        %v2154 = vunpack.c.l.b16 %v372
        %v2155 = vunpack.c.h.b16 %v372
        %v2156 = vunpack.c.l.b16 %v373
        %v2157 = vunpack.c.h.b16 %v373
        %v2158 = vunpack.c.l.b16 %v374
        %v2159 = vunpack.c.h.b16 %v374
        %v2160 = vunpack.c.l.b16 %v375
        %v2161 = vunpack.c.h.b16 %v375
        %v2162 = vunpack.c.l.b16 %v376
        %v2163 = vunpack.c.h.b16 %v376
        %v2164 = vunpack.c.l.b16 %v377
        %v2165 = vunpack.c.h.b16 %v377
        %v2166 = vunpack.c.l.b16 %v378
        %v2167 = vunpack.c.h.b16 %v378
        %v2168 = vunpack.c.l.b16 %v379
        %v2169 = vunpack.c.h.b16 %v379
        %v2170 = vunpack.c.l.b16 %v380
        %v2171 = vunpack.c.h.b16 %v380
        %v2172 = vunpack.c.l.b16 %v381
        %v2173 = vunpack.c.h.b16 %v381
        %v2174 = vunpack.c.l.b16 %v382
        %v2175 = vunpack.c.h.b16 %v382
        %v2176 = vunpack.c.l.b16 %v383
        %v2177 = vunpack.c.h.b16 %v383
        %v2178 = vunpack.c.l.b16 %v384
        %v2179 = vunpack.c.h.b16 %v384
        %v2180 = vunpack.c.l.b16 %v385
        %v2181 = vunpack.c.h.b16 %v385
        %v2182 = vunpack.c.l.b16 %v386
        %v2183 = vunpack.c.h.b16 %v386
        %v2184 = vunpack.c.l.b16 %v387
        %v2185 = vunpack.c.h.b16 %v387
        %v2186 = vunpack.c.l.b16 %v388
        %v2187 = vunpack.c.h.b16 %v388
        %v2188 = vunpack.c.l.b16 %v389
        %v2189 = vunpack.c.h.b16 %v389
        %v2190 = vunpack.c.l.b16 %v390
        %v2191 = vunpack.c.h.b16 %v390
        %v2192 = vunpack.c.l.b16 %v391
        %v2193 = vunpack.c.h.b16 %v391
        %v2194 = vunpack.c.l.b16 %v392
        %v2195 = vunpack.c.h.b16 %v392
        %v2196 = vunpack.c.l.b16 %v393
        %v2197 = vunpack.c.h.b16 %v393
        %v2198 = vunpack.c.l.b16 %v394
        %v2199 = vunpack.c.h.b16 %v394
        %v2200 = vunpack.c.l.b16 %v395
        %v2201 = vunpack.c.h.b16 %v395
        %v2202 = vunpack.c.l.b16 %v396
        %v2203 = vunpack.c.h.b16 %v396
        %v2204 = vunpack.c.l.b16 %v397
        %v2205 = vunpack.c.h.b16 %v397
        %v2206 = vunpack.c.l.b16 %v398
        %v2207 = vunpack.c.h.b16 %v398
        %v2208 = vunpack.c.l.b16 %v399
        %v2209 = vunpack.c.h.b16 %v399
        %v2210 = vunpack.c.l.b16 %v400
        %v2211 = vunpack.c.h.b16 %v400
        %v2212 = vunpack.c.l.b16 %v401
        %v2213 = vunpack.c.h.b16 %v401
        %v2214 = vunpack.c.l.b16 %v402
        %v2215 = vunpack.c.h.b16 %v402
        %v2216 = vunpack.c.l.b16 %v403
        %v2217 = vunpack.c.h.b16 %v403
        %v2218 = vunpack.c.l.b16 %v404
        %v2219 = vunpack.c.h.b16 %v404
        %v2220 = vunpack.c.l.b16 %v405
        %v2221 = vunpack.c.h.b16 %v405
        %v2222 = vunpack.c.l.b16 %v406
        %v2223 = vunpack.c.h.b16 %v406
        %v2224 = vunpack.c.l.b16 %v407
        %v2225 = vunpack.c.h.b16 %v407
        %v2226 = vunpack.c.l.b16 %v408
        %v2227 = vunpack.c.h.b16 %v408
        %v2228 = vunpack.c.l.b16 %v409
        %v2229 = vunpack.c.h.b16 %v409
        %v2230 = vunpack.c.l.b16 %v410
        %v2231 = vunpack.c.h.b16 %v410
        %v2232 = vunpack.c.l.b16 %v411
        %v2233 = vunpack.c.h.b16 %v411
        %v2234 = vunpack.c.l.b16 %v412
        %v2235 = vunpack.c.h.b16 %v412
        %v2236 = vunpack.c.l.b16 %v413
        %v2237 = vunpack.c.h.b16 %v413
        %v2238 = vunpack.c.l.b16 %v414
        %v2239 = vunpack.c.h.b16 %v414
        %v2240 = vunpack.c.l.b16 %v415
        %v2241 = vunpack.c.h.b16 %v415
        %v2242 = vunpack.c.l.b16 %v416
        %v2243 = vunpack.c.h.b16 %v416
        %v2244 = vunpack.c.l.b16 %v417
        %v2245 = vunpack.c.h.b16 %v417
        %v2246 = vunpack.c.l.b16 %v418
        %v2247 = vunpack.c.h.b16 %v418
        %v2248 = vunpack.c.l.b16 %v419
        %v2249 = vunpack.c.h.b16 %v419
        %v2250 = vunpack.c.l.b16 %v420
        %v2251 = vunpack.c.h.b16 %v420
        %v2252 = vunpack.c.l.b16 %v421
        %v2253 = vunpack.c.h.b16 %v421
        %v2254 = vunpack.c.l.b16 %v422
        %v2255 = vunpack.c.h.b16 %v422
        %v2256 = vunpack.c.l.b16 %v423
        %v2257 = vunpack.c.h.b16 %v423
        %v2258 = vunpack.c.l.b16 %v424
        %v2259 = vunpack.c.h.b16 %v424
        %v2260 = vunpack.c.l.b16 %v425
        %v2261 = vunpack.c.h.b16 %v425
        %v2262 = vunpack.c.l.b16 %v426
        %v2263 = vunpack.c.h.b16 %v426
        %v2264 = vunpack.c.l.b16 %v427
        %v2265 = vunpack.c.h.b16 %v427
        %v2266 = vunpack.c.l.b16 %v428
        %v2267 = vunpack.c.h.b16 %v428
        %v2268 = vunpack.c.l.b16 %v429
        %v2269 = vunpack.c.h.b16 %v429
        %v2270 = vunpack.c.l.b16 %v430
        %v2271 = vunpack.c.h.b16 %v430
        %v2272 = vunpack.c.l.b16 %v431
        %v2273 = vunpack.c.h.b16 %v431
        %v2274 = vunpack.c.l.b16 %v432
        %v2275 = vunpack.c.h.b16 %v432
        %v2276 = vunpack.c.l.b16 %v433
        %v2277 = vunpack.c.h.b16 %v433
        %v2278 = vunpack.c.l.b16 %v434
        %v2279 = vunpack.c.h.b16 %v434
        %v2280 = vunpack.c.l.b16 %v435
        %v2281 = vunpack.c.h.b16 %v435
        %v2282 = vunpack.c.l.b16 %v436
        %v2283 = vunpack.c.h.b16 %v436
        %v2284 = vunpack.c.l.b16 %v437
        %v2285 = vunpack.c.h.b16 %v437
        %v2286 = vunpack.c.l.b16 %v438
        %v2287 = vunpack.c.h.b16 %v438
        %v2288 = vunpack.c.l.b16 %v439
        %v2289 = vunpack.c.h.b16 %v439
        %v2290 = vunpack.c.l.b16 %v440
        %v2291 = vunpack.c.h.b16 %v440
        %v2292 = vunpack.c.l.b16 %v441
        %v2293 = vunpack.c.h.b16 %v441
        %v2294 = vunpack.c.l.b16 %v442
        %v2295 = vunpack.c.h.b16 %v442
        %v2296 = vunpack.c.l.b16 %v443
        %v2297 = vunpack.c.h.b16 %v443
        %v2298 = vunpack.c.l.b16 %v444
        %v2299 = vunpack.c.h.b16 %v444
        %v2300 = vunpack.c.l.b16 %v445
        %v2301 = vunpack.c.h.b16 %v445
        %v2302 = vunpack.c.l.b16 %v446
        %v2303 = vunpack.c.h.b16 %v446
        %v2304 = vunpack.c.l.b16 %v447
        %v2305 = vunpack.c.h.b16 %v447
        %v2306 = vunpack.c.l.b16 %v448
        %v2307 = vunpack.c.h.b16 %v448
        %v2308 = vunpack.c.l.b16 %v449
        %v2309 = vunpack.c.h.b16 %v449
        %v2310 = vunpack.c.l.b16 %v450
        %v2311 = vunpack.c.h.b16 %v450
        %v2312 = vunpack.c.l.b16 %v451
        %v2313 = vunpack.c.h.b16 %v451
        %v2314 = vunpack.c.l.b16 %v452
        %v2315 = vunpack.c.h.b16 %v452
        %v2316 = vunpack.c.l.b16 %v453
        %v2317 = vunpack.c.h.b16 %v453
        %v2318 = vunpack.c.l.b16 %v454
        %v2319 = vunpack.c.h.b16 %v454
        %v2320 = vunpack.c.l.b16 %v455
        %v2321 = vunpack.c.h.b16 %v455
        %v2322 = vunpack.c.l.b16 %v456
        %v2323 = vunpack.c.h.b16 %v456
        %v2324 = vunpack.c.l.b16 %v457
        %v2325 = vunpack.c.h.b16 %v457
        %v2326 = vunpack.c.l.b16 %v458
        %v2327 = vunpack.c.h.b16 %v458
        %v2328 = vunpack.c.l.b16 %v459
        %v2329 = vunpack.c.h.b16 %v459
        %v2330 = vunpack.c.l.b16 %v460
        %v2331 = vunpack.c.h.b16 %v460
        %v2332 = vunpack.c.l.b16 %v461
        %v2333 = vunpack.c.h.b16 %v461
        %v2334 = vunpack.c.l.b16 %v462
        %v2335 = vunpack.c.h.b16 %v462
        %v2336 = vunpack.c.l.b16 %v463
        %v2337 = vunpack.c.h.b16 %v463
        %v2338 = vunpack.c.l.b16 %v464
        %v2339 = vunpack.c.h.b16 %v464
        %v2340 = vunpack.c.l.b16 %v465
        %v2341 = vunpack.c.h.b16 %v465
        %v2342 = vunpack.c.l.b16 %v466
        %v2343 = vunpack.c.h.b16 %v466
        %v2344 = vunpack.c.l.b16 %v467
        %v2345 = vunpack.c.h.b16 %v467
        %v2346 = vunpack.c.l.b16 %v468
        %v2347 = vunpack.c.h.b16 %v468
        %v2348 = vunpack.c.l.b16 %v469
        %v2349 = vunpack.c.h.b16 %v469
        %v2350 = vunpack.c.l.b16 %v470
        %v2351 = vunpack.c.h.b16 %v470
        %v2352 = vunpack.c.l.b16 %v471
        %v2353 = vunpack.c.h.b16 %v471
        %v2354 = vunpack.c.l.b16 %v472
        %v2355 = vunpack.c.h.b16 %v472
        %v2356 = vunpack.c.l.b16 %v473
        %v2357 = vunpack.c.h.b16 %v473
        %v2358 = vunpack.c.l.b16 %v474
        %v2359 = vunpack.c.h.b16 %v474
        %v2360 = vunpack.c.l.b16 %v475
        %v2361 = vunpack.c.h.b16 %v475
        %v2362 = vunpack.c.l.b16 %v476
        %v2363 = vunpack.c.h.b16 %v476
        %v2364 = vunpack.c.l.b16 %v477
        %v2365 = vunpack.c.h.b16 %v477
        %v2366 = vunpack.c.l.b16 %v478
        %v2367 = vunpack.c.h.b16 %v478
        %v2368 = vunpack.c.l.b16 %v479
        %v2369 = vunpack.c.h.b16 %v479
        %v2370 = vunpack.c.l.b16 %v480
        %v2371 = vunpack.c.h.b16 %v480
        %v2372 = vunpack.c.l.b16 %v481
        %v2373 = vunpack.c.h.b16 %v481
        %v2374 = vunpack.c.l.b16 %v482
        %v2375 = vunpack.c.h.b16 %v482
        %v2376 = vunpack.c.l.b16 %v483
        %v2377 = vunpack.c.h.b16 %v483
        %v2378 = vunpack.c.l.b16 %v484
        %v2379 = vunpack.c.h.b16 %v484
        %v2380 = vunpack.c.l.b16 %v485
        %v2381 = vunpack.c.h.b16 %v485
        %v2382 = vunpack.c.l.b16 %v486
        %v2383 = vunpack.c.h.b16 %v486
        %v2384 = vunpack.c.l.b16 %v487
        %v2385 = vunpack.c.h.b16 %v487
        %v2386 = vunpack.c.l.b16 %v488
        %v2387 = vunpack.c.h.b16 %v488
        %v2388 = vunpack.c.l.b16 %v489
        %v2389 = vunpack.c.h.b16 %v489
        %v2390 = vunpack.c.l.b16 %v490
        %v2391 = vunpack.c.h.b16 %v490
        %v2392 = vunpack.c.l.b16 %v491
        %v2393 = vunpack.c.h.b16 %v491
        %v2394 = vunpack.c.l.b16 %v492
        %v2395 = vunpack.c.h.b16 %v492
        %v2396 = vunpack.c.l.b16 %v493
        %v2397 = vunpack.c.h.b16 %v493
        %v2398 = vunpack.c.l.b16 %v494
        %v2399 = vunpack.c.h.b16 %v494
        %v2400 = vunpack.c.l.b16 %v495
        %v2401 = vunpack.c.h.b16 %v495
        %v2402 = vunpack.c.l.b16 %v496
        %v2403 = vunpack.c.h.b16 %v496
        %v2404 = vunpack.c.l.b16 %v497
        %v2405 = vunpack.c.h.b16 %v497
        %v2406 = vunpack.c.l.b16 %v498
        %v2407 = vunpack.c.h.b16 %v498
        %v2408 = vunpack.c.l.b16 %v499
        %v2409 = vunpack.c.h.b16 %v499
        %v2410 = vunpack.c.l.b16 %v500
        %v2411 = vunpack.c.h.b16 %v500
        %v2412 = vunpack.c.l.b16 %v501
        %v2413 = vunpack.c.h.b16 %v501
        %v2414 = vunpack.c.l.b16 %v502
        %v2415 = vunpack.c.h.b16 %v502
        %v2416 = vunpack.c.l.b16 %v503
        %v2417 = vunpack.c.h.b16 %v503
        %v2418 = vunpack.c.l.b16 %v504
        %v2419 = vunpack.c.h.b16 %v504
        %v2420 = vunpack.c.l.b16 %v505
        %v2421 = vunpack.c.h.b16 %v505
        %v2422 = vunpack.c.l.b16 %v506
        %v2423 = vunpack.c.h.b16 %v506
        %v2424 = vunpack.c.l.b16 %v507
        %v2425 = vunpack.c.h.b16 %v507
        %v2426 = vunpack.c.l.b16 %v508
        %v2427 = vunpack.c.h.b16 %v508
        %v2428 = vunpack.c.l.b16 %v509
        %v2429 = vunpack.c.h.b16 %v509
        %v2430 = vunpack.c.l.b16 %v510
        %v2431 = vunpack.c.h.b16 %v510
        %v2432 = vunpack.c.l.b16 %v511
        %v2433 = vunpack.c.h.b16 %v511
        %v2434 = vunpack.c.l.b16 %v512
        %v2435 = vunpack.c.h.b16 %v512
        %v2436 = vunpack.c.l.b16 %v513
        %v2437 = vunpack.c.h.b16 %v513
        %v2438 = vunpack.c.l.b16 %v514
        %v2439 = vunpack.c.h.b16 %v514
        %v2440 = vunpack.c.l.b16 %v515
        %v2441 = vunpack.c.h.b16 %v515
        %v2442 = vunpack.c.l.b16 %v516
        %v2443 = vunpack.c.h.b16 %v516
        %v2444 = vunpack.c.l.b16 %v517
        %v2445 = vunpack.c.h.b16 %v517
        %v2446 = vunpack.c.l.b16 %v518
        %v2447 = vunpack.c.h.b16 %v518
        %v2448 = vunpack.c.l.b16 %v519
        %v2449 = vunpack.c.h.b16 %v519
        %v2450 = vunpack.c.l.b16 %v520
        %v2451 = vunpack.c.h.b16 %v520
        %v2452 = vunpack.c.l.b16 %v521
        %v2453 = vunpack.c.h.b16 %v521
        %v2454 = vunpack.c.l.b16 %v522
        %v2455 = vunpack.c.h.b16 %v522
        %v2456 = vunpack.c.l.b16 %v523
        %v2457 = vunpack.c.h.b16 %v523
        %v2458 = vunpack.c.l.b16 %v524
        %v2459 = vunpack.c.h.b16 %v524
        %v2460 = vunpack.c.l.b16 %v525
        %v2461 = vunpack.c.h.b16 %v525
        %v2462 = vunpack.c.l.b16 %v526
        %v2463 = vunpack.c.h.b16 %v526
        %v2464 = vunpack.c.l.b16 %v527
        %v2465 = vunpack.c.h.b16 %v527
        %v2466 = vunpack.c.l.b16 %v528
        %v2467 = vunpack.c.h.b16 %v528
        %v2468 = vunpack.c.l.b16 %v529
        %v2469 = vunpack.c.h.b16 %v529
        %v2470 = vunpack.c.l.b16 %v530
        %v2471 = vunpack.c.h.b16 %v530
        %v2472 = vunpack.c.l.b16 %v531
        %v2473 = vunpack.c.h.b16 %v531
        %v2474 = vunpack.c.l.b16 %v532
        %v2475 = vunpack.c.h.b16 %v532
        %v2476 = vunpack.c.l.b16 %v533
        %v2477 = vunpack.c.h.b16 %v533
        %v2478 = vunpack.c.l.b16 %v534
        %v2479 = vunpack.c.h.b16 %v534
        %v2480 = vunpack.c.l.b16 %v535
        %v2481 = vunpack.c.h.b16 %v535
        %v2482 = vunpack.c.l.b16 %v536
        %v2483 = vunpack.c.h.b16 %v536
        %v2484 = vunpack.c.l.b16 %v537
        %v2485 = vunpack.c.h.b16 %v537
        %v2486 = vunpack.c.l.b16 %v538
        %v2487 = vunpack.c.h.b16 %v538
        %v2488 = vunpack.c.l.b16 %v539
        %v2489 = vunpack.c.h.b16 %v539
        %v2490 = vunpack.c.l.b16 %v540
        %v2491 = vunpack.c.h.b16 %v540
        %v2492 = vunpack.c.l.b16 %v541
        %v2493 = vunpack.c.h.b16 %v541
        %v2494 = vunpack.c.l.b16 %v542
        %v2495 = vunpack.c.h.b16 %v542
        %v2496 = vunpack.c.l.b16 %v543
        %v2497 = vunpack.c.h.b16 %v543
        %v2498 = vunpack.c.l.b16 %v544
        %v2499 = vunpack.c.h.b16 %v544
        %v2500 = vunpack.c.l.b16 %v545
        %v2501 = vunpack.c.h.b16 %v545
        %v2502 = vunpack.c.l.b16 %v546
        %v2503 = vunpack.c.h.b16 %v546
        %v2504 = vunpack.c.l.b16 %v547
        %v2505 = vunpack.c.h.b16 %v547
        %v2506 = vunpack.c.l.b16 %v548
        %v2507 = vunpack.c.h.b16 %v548
        %v2508 = vunpack.c.l.b16 %v549
        %v2509 = vunpack.c.h.b16 %v549
        %v2510 = vunpack.c.l.b16 %v550
        %v2511 = vunpack.c.h.b16 %v550
        %v2512 = vunpack.c.l.b16 %v551
        %v2513 = vunpack.c.h.b16 %v551
        %v2514 = vunpack.c.l.b16 %v552
        %v2515 = vunpack.c.h.b16 %v552
        %v2516 = vunpack.c.l.b16 %v553
        %v2517 = vunpack.c.h.b16 %v553
        %v2518 = vunpack.c.l.b16 %v554
        %v2519 = vunpack.c.h.b16 %v554
        %v2520 = vunpack.c.l.b16 %v555
        %v2521 = vunpack.c.h.b16 %v555
        %v2522 = vunpack.c.l.b16 %v556
        %v2523 = vunpack.c.h.b16 %v556
        %v2524 = vunpack.c.l.b16 %v557
        %v2525 = vunpack.c.h.b16 %v557
        %v2526 = vunpack.c.l.b16 %v558
        %v2527 = vunpack.c.h.b16 %v558
        %v2528 = vunpack.c.l.b16 %v559
        %v2529 = vunpack.c.h.b16 %v559
        %v2530 = vunpack.c.l.b16 %v560
        %v2531 = vunpack.c.h.b16 %v560
        %v2532 = vunpack.c.l.b16 %v561
        %v2533 = vunpack.c.h.b16 %v561
        %v2534 = vunpack.c.l.b16 %v562
        %v2535 = vunpack.c.h.b16 %v562
        %v2536 = vunpack.c.l.b16 %v563
        %v2537 = vunpack.c.h.b16 %v563
        %v2538 = vunpack.c.l.b16 %v564
        %v2539 = vunpack.c.h.b16 %v564
        %v2540 = vunpack.c.l.b16 %v565
        %v2541 = vunpack.c.h.b16 %v565
        %v2542 = vunpack.c.l.b16 %v566
        %v2543 = vunpack.c.h.b16 %v566
        %v2544 = vunpack.c.l.b16 %v567
        %v2545 = vunpack.c.h.b16 %v567
        %v2546 = vunpack.c.l.b16 %v568
        %v2547 = vunpack.c.h.b16 %v568
        %v2548 = vunpack.c.l.b16 %v569
        %v2549 = vunpack.c.h.b16 %v569
        %v2550 = vunpack.c.l.b16 %v570
        %v2551 = vunpack.c.h.b16 %v570
        %v2552 = vunpack.c.l.b16 %v571
        %v2553 = vunpack.c.h.b16 %v571
        %v2554 = vunpack.c.l.b16 %v572
        %v2555 = vunpack.c.h.b16 %v572
        %v2556 = vunpack.c.l.b16 %v573
        %v2557 = vunpack.c.h.b16 %v573
        %v2558 = vunpack.c.l.b16 %v574
        %v2559 = vunpack.c.h.b16 %v574
        %v2560 = vunpack.c.l.b16 %v575
        %v2561 = vunpack.c.h.b16 %v575
        %v2562 = vunpack.c.l.b16 %v576
        %v2563 = vunpack.c.h.b16 %v576
        %v2564 = vunpack.c.l.b16 %v577
        %v2565 = vunpack.c.h.b16 %v577
        %v2566 = vunpack.c.l.b16 %v578
        %v2567 = vunpack.c.h.b16 %v578
        %v2568 = vunpack.c.l.b16 %v579
        %v2569 = vunpack.c.h.b16 %v579
        %v2570 = vunpack.c.l.b16 %v580
        %v2571 = vunpack.c.h.b16 %v580
        %v2572 = vunpack.c.l.b16 %v581
        %v2573 = vunpack.c.h.b16 %v581
        %v2574 = vunpack.c.l.b16 %v582
        %v2575 = vunpack.c.h.b16 %v582
        %v2576 = vunpack.c.l.b16 %v583
        %v2577 = vunpack.c.h.b16 %v583
        %v2578 = vunpack.c.l.b16 %v584
        %v2579 = vunpack.c.h.b16 %v584
        %v2580 = vunpack.c.l.b16 %v585
        %v2581 = vunpack.c.h.b16 %v585
        %v2582 = vunpack.c.l.b16 %v586
        %v2583 = vunpack.c.h.b16 %v586
        %v2584 = vunpack.c.l.b16 %v587
        %v2585 = vunpack.c.h.b16 %v587
        %v2586 = vunpack.c.l.b16 %v588
        %v2587 = vunpack.c.h.b16 %v588
        %v2588 = vunpack.c.l.b16 %v589
        %v2589 = vunpack.c.h.b16 %v589
        %v2590 = vunpack.c.l.b16 %v590
        %v2591 = vunpack.c.h.b16 %v590
        %v2592 = vunpack.c.l.b16 %v591
        %v2593 = vunpack.c.h.b16 %v591
        %v2594 = vunpack.c.l.b16 %v592
        %v2595 = vunpack.c.h.b16 %v592
        %v2596 = vunpack.c.l.b16 %v593
        %v2597 = vunpack.c.h.b16 %v593
        %v2598 = vunpack.c.l.b16 %v594
        %v2599 = vunpack.c.h.b16 %v594
        %v2600 = vunpack.c.l.b16 %v595
        %v2601 = vunpack.c.h.b16 %v595
        %v2602 = vunpack.c.l.b16 %v596
        %v2603 = vunpack.c.h.b16 %v596
        %v2604 = vunpack.c.l.b16 %v597
        %v2605 = vunpack.c.h.b16 %v597
        %v2606 = vunpack.c.l.b16 %v598
        %v2607 = vunpack.c.h.b16 %v598
        %v2608 = vunpack.c.l.b16 %v599
        %v2609 = vunpack.c.h.b16 %v599
        %v2610 = vunpack.c.l.b16 %v600
        %v2611 = vunpack.c.h.b16 %v600
        %v2612 = vunpack.c.l.b16 %v601
        %v2613 = vunpack.c.h.b16 %v601
        %v2614 = vunpack.c.l.b16 %v602
        %v2615 = vunpack.c.h.b16 %v602
        %v2616 = vunpack.c.l.b16 %v603
        %v2617 = vunpack.c.h.b16 %v603
        %v2618 = vunpack.c.l.b16 %v604
        %v2619 = vunpack.c.h.b16 %v604
        %v2620 = vunpack.c.l.b16 %v605
        %v2621 = vunpack.c.h.b16 %v605
        %v2622 = vunpack.c.l.b16 %v606
        %v2623 = vunpack.c.h.b16 %v606
        %v2624 = vunpack.c.l.b16 %v607
        %v2625 = vunpack.c.h.b16 %v607
        %v2626 = vunpack.c.l.b16 %v608
        %v2627 = vunpack.c.h.b16 %v608
        %v2628 = vunpack.c.l.b16 %v609
        %v2629 = vunpack.c.h.b16 %v609
        %v2630 = vunpack.c.l.b16 %v610
        %v2631 = vunpack.c.h.b16 %v610
        %v2632 = vunpack.c.l.b16 %v611
        %v2633 = vunpack.c.h.b16 %v611
        %v2634 = vunpack.c.l.b16 %v612
        %v2635 = vunpack.c.h.b16 %v612
        %v2636 = vunpack.c.l.b16 %v613
        %v2637 = vunpack.c.h.b16 %v613
        %v2638 = vunpack.c.l.b16 %v614
        %v2639 = vunpack.c.h.b16 %v614
        %v2640 = vunpack.c.l.b16 %v615
        %v2641 = vunpack.c.h.b16 %v615
        %v2642 = vunpack.c.l.b16 %v616
        %v2643 = vunpack.c.h.b16 %v616
        %v2644 = vunpack.c.l.b16 %v617
        %v2645 = vunpack.c.h.b16 %v617
        %v2646 = vunpack.c.l.b16 %v618
        %v2647 = vunpack.c.h.b16 %v618
        %v2648 = vunpack.c.l.b16 %v619
        %v2649 = vunpack.c.h.b16 %v619
        %v2650 = vunpack.c.l.b16 %v620
        %v2651 = vunpack.c.h.b16 %v620
        %v2652 = vunpack.c.l.b16 %v621
        %v2653 = vunpack.c.h.b16 %v621
        %v2654 = vunpack.c.l.b16 %v622
        %v2655 = vunpack.c.h.b16 %v622
        %v2656 = vunpack.c.l.b16 %v623
        %v2657 = vunpack.c.h.b16 %v623
        %v2658 = vunpack.c.l.b16 %v624
        %v2659 = vunpack.c.h.b16 %v624
        %v2660 = vunpack.c.l.b16 %v625
        %v2661 = vunpack.c.h.b16 %v625
        %v2662 = vunpack.c.l.b16 %v626
        %v2663 = vunpack.c.h.b16 %v626
        %v2664 = vunpack.c.l.b16 %v627
        %v2665 = vunpack.c.h.b16 %v627
        %v2666 = vunpack.c.l.b16 %v628
        %v2667 = vunpack.c.h.b16 %v628
        %v2668 = vunpack.c.l.b16 %v629
        %v2669 = vunpack.c.h.b16 %v629
        %v2670 = vunpack.c.l.b16 %v630
        %v2671 = vunpack.c.h.b16 %v630
        %v2672 = vunpack.c.l.b16 %v631
        %v2673 = vunpack.c.h.b16 %v631
        %v2674 = vunpack.c.l.b16 %v632
        %v2675 = vunpack.c.h.b16 %v632
        %v2676 = vunpack.c.l.b16 %v633
        %v2677 = vunpack.c.h.b16 %v633
        %v2678 = vunpack.c.l.b16 %v634
        %v2679 = vunpack.c.h.b16 %v634
        %v2680 = vunpack.c.l.b16 %v635
        %v2681 = vunpack.c.h.b16 %v635
        %v2682 = vunpack.c.l.b16 %v636
        %v2683 = vunpack.c.h.b16 %v636
        %v2684 = vunpack.c.l.b16 %v637
        %v2685 = vunpack.c.h.b16 %v637
        %v2686 = vunpack.c.l.b16 %v638
        %v2687 = vunpack.c.h.b16 %v638
        %v2688 = vunpack.c.l.b16 %v639
        %v2689 = vunpack.c.h.b16 %v639
        %v2690 = vunpack.c.l.b16 %v640
        %v2691 = vunpack.c.h.b16 %v640
        %v2692 = vunpack.c.l.b16 %v641
        %v2693 = vunpack.c.h.b16 %v641
        %v2694 = vunpack.c.l.b16 %v642
        %v2695 = vunpack.c.h.b16 %v642
        %v2696 = vunpack.c.l.b16 %v643
        %v2697 = vunpack.c.h.b16 %v643
        %v2698 = vunpack.c.l.b16 %v644
        %v2699 = vunpack.c.h.b16 %v644
        %v2700 = vunpack.c.l.b16 %v645
        %v2701 = vunpack.c.h.b16 %v645
        %v2702 = vunpack.c.l.b16 %v646
        %v2703 = vunpack.c.h.b16 %v646
        %v2704 = vunpack.c.l.b16 %v647
        %v2705 = vunpack.c.h.b16 %v647
        %v2706 = vunpack.c.l.b16 %v648
        %v2707 = vunpack.c.h.b16 %v648
        %v2708 = vunpack.c.l.b16 %v649
        %v2709 = vunpack.c.h.b16 %v649
        %v2710 = vunpack.c.l.b16 %v650
        %v2711 = vunpack.c.h.b16 %v650
        %v2712 = vunpack.c.l.b16 %v651
        %v2713 = vunpack.c.h.b16 %v651
        %v2714 = vunpack.c.l.b16 %v652
        %v2715 = vunpack.c.h.b16 %v652
        %v2716 = vunpack.c.l.b16 %v653
        %v2717 = vunpack.c.h.b16 %v653
        %v2718 = vunpack.c.l.b16 %v654
        %v2719 = vunpack.c.h.b16 %v654
        %v2720 = vunpack.c.l.b16 %v655
        %v2721 = vunpack.c.h.b16 %v655
        %v2722 = vunpack.c.l.b16 %v656
        %v2723 = vunpack.c.h.b16 %v656
        %v2724 = vunpack.c.l.b16 %v657
        %v2725 = vunpack.c.h.b16 %v657
        %v2726 = vunpack.c.l.b16 %v658
        %v2727 = vunpack.c.h.b16 %v658
        %v2728 = vunpack.c.l.b16 %v659
        %v2729 = vunpack.c.h.b16 %v659
        %v2730 = vunpack.c.l.b16 %v660
        %v2731 = vunpack.c.h.b16 %v660
        %v2732 = vunpack.c.l.b16 %v661
        %v2733 = vunpack.c.h.b16 %v661
        %v2734 = vunpack.c.l.b16 %v662
        %v2735 = vunpack.c.h.b16 %v662
        %v2736 = vunpack.c.l.b16 %v663
        %v2737 = vunpack.c.h.b16 %v663
        %v2738 = vunpack.c.l.b16 %v664
        %v2739 = vunpack.c.h.b16 %v664
        %v2740 = vunpack.c.l.b16 %v665
        %v2741 = vunpack.c.h.b16 %v665
        %v2742 = vunpack.c.l.b16 %v666
        %v2743 = vunpack.c.h.b16 %v666
        %v2744 = vunpack.c.l.b16 %v667
        %v2745 = vunpack.c.h.b16 %v667
        %v2746 = vunpack.c.l.b16 %v668
        %v2747 = vunpack.c.h.b16 %v668
        %v2748 = vunpack.c.l.b16 %v669
        %v2749 = vunpack.c.h.b16 %v669
        %v2750 = vunpack.c.l.b16 %v670
        %v2751 = vunpack.c.h.b16 %v670
        %v2752 = vunpack.c.l.b16 %v671
        %v2753 = vunpack.c.h.b16 %v671
        %v2754 = vunpack.c.l.b16 %v672
        %v2755 = vunpack.c.h.b16 %v672
        %v2756 = vunpack.c.l.b16 %v673
        %v2757 = vunpack.c.h.b16 %v673
        %v2758 = vunpack.c.l.b16 %v674
        %v2759 = vunpack.c.h.b16 %v674
        %v2760 = vunpack.c.l.b16 %v675
        %v2761 = vunpack.c.h.b16 %v675
        %v2762 = vunpack.c.l.b16 %v676
        %v2763 = vunpack.c.h.b16 %v676
        %v2764 = vunpack.c.l.b16 %v677
        %v2765 = vunpack.c.h.b16 %v677
        %v2766 = vunpack.c.l.b16 %v678
        %v2767 = vunpack.c.h.b16 %v678
        %v2768 = vunpack.c.l.b16 %v679
        %v2769 = vunpack.c.h.b16 %v679
        %v2770 = vunpack.c.l.b16 %v680
        %v2771 = vunpack.c.h.b16 %v680
        %v2772 = vunpack.c.l.b16 %v681
        %v2773 = vunpack.c.h.b16 %v681
        %v2774 = vunpack.c.l.b16 %v682
        %v2775 = vunpack.c.h.b16 %v682
        %v2776 = vunpack.c.l.b16 %v683
        %v2777 = vunpack.c.h.b16 %v683
        %v2778 = vunpack.c.l.b16 %v684
        %v2779 = vunpack.c.h.b16 %v684
        %v2780 = vunpack.c.l.b16 %v685
        %v2781 = vunpack.c.h.b16 %v685
        %v2782 = vunpack.c.l.b16 %v686
        %v2783 = vunpack.c.h.b16 %v686
        %v2784 = vunpack.c.l.b16 %v687
        %v2785 = vunpack.c.h.b16 %v687
        %v2786 = vunpack.c.l.b16 %v688
        %v2787 = vunpack.c.h.b16 %v688
        %v2788 = vunpack.c.l.b16 %v689
        %v2789 = vunpack.c.h.b16 %v689
        %v2790 = vunpack.c.l.b16 %v690
        %v2791 = vunpack.c.h.b16 %v690
        %v2792 = vunpack.c.l.b16 %v691
        %v2793 = vunpack.c.h.b16 %v691
        %v2794 = vunpack.c.l.b16 %v692
        %v2795 = vunpack.c.h.b16 %v692
        %v2796 = vunpack.c.l.b16 %v693
        %v2797 = vunpack.c.h.b16 %v693
        %v2798 = vunpack.c.l.b16 %v694
        %v2799 = vunpack.c.h.b16 %v694
        %v2800 = vunpack.c.l.b16 %v695
        %v2801 = vunpack.c.h.b16 %v695
        %v2802 = vunpack.c.l.b16 %v696
        %v2803 = vunpack.c.h.b16 %v696
        %v2804 = vunpack.c.l.b16 %v697
        %v2805 = vunpack.c.h.b16 %v697
        %v2806 = vunpack.c.l.b16 %v698
        %v2807 = vunpack.c.h.b16 %v698
        %v2808 = vunpack.c.l.b16 %v699
        %v2809 = vunpack.c.h.b16 %v699
        %v2810 = vunpack.c.l.b16 %v700
        %v2811 = vunpack.c.h.b16 %v700
        %v2812 = vunpack.c.l.b16 %v701
        %v2813 = vunpack.c.h.b16 %v701
        %v2814 = vunpack.c.l.b16 %v702
        %v2815 = vunpack.c.h.b16 %v702
        %v2816 = vunpack.c.l.b16 %v703
        %v2817 = vunpack.c.h.b16 %v703
        %v2818 = vunpack.c.l.b16 %v704
        %v2819 = vunpack.c.h.b16 %v704
        %v2820 = vunpack.c.l.b16 %v705
        %v2821 = vunpack.c.h.b16 %v705
        %v2822 = vunpack.c.l.b16 %v706
        %v2823 = vunpack.c.h.b16 %v706
        %v2824 = vunpack.c.l.b16 %v707
        %v2825 = vunpack.c.h.b16 %v707
        %v2826 = vunpack.c.l.b16 %v708
        %v2827 = vunpack.c.h.b16 %v708
        %v2828 = vunpack.c.l.b16 %v709
        %v2829 = vunpack.c.h.b16 %v709
        %v2830 = vunpack.c.l.b16 %v710
        %v2831 = vunpack.c.h.b16 %v710
        %v2832 = vunpack.c.l.b16 %v711
        %v2833 = vunpack.c.h.b16 %v711
        %v2834 = vunpack.c.l.b16 %v712
        %v2835 = vunpack.c.h.b16 %v712
        %v2836 = vunpack.c.l.b16 %v713
        %v2837 = vunpack.c.h.b16 %v713
        %v2838 = vunpack.c.l.b16 %v714
        %v2839 = vunpack.c.h.b16 %v714
        %v2840 = vunpack.c.l.b16 %v715
        %v2841 = vunpack.c.h.b16 %v715
        %v2842 = vunpack.c.l.b16 %v716
        %v2843 = vunpack.c.h.b16 %v716
        %v2844 = vunpack.c.l.b16 %v717
        %v2845 = vunpack.c.h.b16 %v717
        %v2846 = vunpack.c.l.b16 %v718
        %v2847 = vunpack.c.h.b16 %v718
        %v2848 = vunpack.c.l.b16 %v719
        %v2849 = vunpack.c.h.b16 %v719
        %v2850 = vunpack.c.l.b16 %v720
        %v2851 = vunpack.c.h.b16 %v720
        %v2852 = vunpack.c.l.b16 %v721
        %v2853 = vunpack.c.h.b16 %v721
        %v2854 = vunpack.c.l.b16 %v722
        %v2855 = vunpack.c.h.b16 %v722
        %v2856 = vunpack.c.l.b16 %v723
        %v2857 = vunpack.c.h.b16 %v723
        %v2858 = vunpack.c.l.b16 %v724
        %v2859 = vunpack.c.h.b16 %v724
        %v2860 = vunpack.c.l.b16 %v725
        %v2861 = vunpack.c.h.b16 %v725
        %v2862 = vunpack.c.l.b16 %v726
        %v2863 = vunpack.c.h.b16 %v726
        %v2864 = vunpack.c.l.b16 %v727
        %v2865 = vunpack.c.h.b16 %v727
        %v2866 = vunpack.c.l.b16 %v728
        %v2867 = vunpack.c.h.b16 %v728
        %v2868 = vunpack.c.l.b16 %v729
        %v2869 = vunpack.c.h.b16 %v729
        %v2870 = vunpack.c.l.b16 %v730
        %v2871 = vunpack.c.h.b16 %v730
        %v2872 = vunpack.c.l.b16 %v731
        %v2873 = vunpack.c.h.b16 %v731
        %v2874 = vunpack.c.l.b16 %v732
        %v2875 = vunpack.c.h.b16 %v732
        %v2876 = vunpack.c.l.b16 %v733
        %v2877 = vunpack.c.h.b16 %v733
        %v2878 = vunpack.c.l.b16 %v734
        %v2879 = vunpack.c.h.b16 %v734
        %v2880 = vunpack.c.l.b16 %v735
        %v2881 = vunpack.c.h.b16 %v735
        %v2882 = vunpack.c.l.b16 %v736
        %v2883 = vunpack.c.h.b16 %v736
        %v2884 = vunpack.c.l.b16 %v737
        %v2885 = vunpack.c.h.b16 %v737
        %v2886 = vunpack.c.l.b16 %v738
        %v2887 = vunpack.c.h.b16 %v738
        %v2888 = vunpack.c.l.b16 %v739
        %v2889 = vunpack.c.h.b16 %v739
        %v2890 = vunpack.c.l.b16 %v740
        %v2891 = vunpack.c.h.b16 %v740
        %v2892 = vunpack.c.l.b16 %v741
        %v2893 = vunpack.c.h.b16 %v741
        %v2894 = vunpack.c.l.b16 %v742
        %v2895 = vunpack.c.h.b16 %v742
        %v2896 = vunpack.c.l.b16 %v743
        %v2897 = vunpack.c.h.b16 %v743
        %v2898 = vunpack.c.l.b16 %v744
        %v2899 = vunpack.c.h.b16 %v744
        %v2900 = vunpack.c.l.b16 %v745
        %v2901 = vunpack.c.h.b16 %v745
        %v2902 = vunpack.c.l.b16 %v746
        %v2903 = vunpack.c.h.b16 %v746
        %v2904 = vunpack.c.l.b16 %v747
        %v2905 = vunpack.c.h.b16 %v747
        %v2906 = vunpack.c.l.b16 %v748
        %v2907 = vunpack.c.h.b16 %v748
        %v2908 = vunpack.c.l.b16 %v749
        %v2909 = vunpack.c.h.b16 %v749
        %v2910 = vunpack.c.l.b16 %v750
        %v2911 = vunpack.c.h.b16 %v750
        %v2912 = vunpack.c.l.b16 %v751
        %v2913 = vunpack.c.h.b16 %v751
        %v2914 = vunpack.c.l.b16 %v752
        %v2915 = vunpack.c.h.b16 %v752
        %v2916 = vunpack.c.l.b16 %v753
        %v2917 = vunpack.c.h.b16 %v753
        %v2918 = vunpack.c.l.b16 %v754
        %v2919 = vunpack.c.h.b16 %v754
        %v2920 = vunpack.c.l.b16 %v755
        %v2921 = vunpack.c.h.b16 %v755
        %v2922 = vunpack.c.l.b16 %v756
        %v2923 = vunpack.c.h.b16 %v756
        %v2924 = vunpack.c.l.b16 %v757
        %v2925 = vunpack.c.h.b16 %v757
        %v2926 = vunpack.c.l.b16 %v758
        %v2927 = vunpack.c.h.b16 %v758
        %v2928 = vunpack.c.l.b16 %v759
        %v2929 = vunpack.c.h.b16 %v759
        %v2930 = vunpack.c.l.b16 %v760
        %v2931 = vunpack.c.h.b16 %v760
        %v2932 = vunpack.c.l.b16 %v761
        %v2933 = vunpack.c.h.b16 %v761
        %v2934 = vunpack.c.l.b16 %v762
        %v2935 = vunpack.c.h.b16 %v762
        %v2936 = vunpack.c.l.b16 %v763
        %v2937 = vunpack.c.h.b16 %v763
        %v2938 = vunpack.c.l.b16 %v764
        %v2939 = vunpack.c.h.b16 %v764
        %v2940 = vunpack.c.l.b16 %v765
        %v2941 = vunpack.c.h.b16 %v765
        %v2942 = vunpack.c.l.b16 %v766
        %v2943 = vunpack.c.h.b16 %v766
        %v2944 = vunpack.c.l.b16 %v767
        %v2945 = vunpack.c.h.b16 %v767
        %v2946 = vunpack.c.l.b16 %v768
        %v2947 = vunpack.c.h.b16 %v768
        %v2948 = vunpack.c.l.b16 %v769
        %v2949 = vunpack.c.h.b16 %v769
        %v2950 = vunpack.c.l.b16 %v770
        %v2951 = vunpack.c.h.b16 %v770
        %v2952 = vunpack.c.l.b16 %v771
        %v2953 = vunpack.c.h.b16 %v771
        %v2954 = vunpack.c.l.b16 %v772
        %v2955 = vunpack.c.h.b16 %v772
        %v2956 = vunpack.c.l.b16 %v773
        %v2957 = vunpack.c.h.b16 %v773
        %v2958 = vunpack.c.l.b16 %v774
        %v2959 = vunpack.c.h.b16 %v774
        %v2960 = vunpack.c.l.b16 %v775
        %v2961 = vunpack.c.h.b16 %v775
        %v2962 = vunpack.c.l.b16 %v776
        %v2963 = vunpack.c.h.b16 %v776
        %v2964 = vunpack.c.l.b16 %v777
        %v2965 = vunpack.c.h.b16 %v777
        %v2966 = vunpack.c.l.b16 %v778
        %v2967 = vunpack.c.h.b16 %v778
        %v2968 = vunpack.c.l.b16 %v779
        %v2969 = vunpack.c.h.b16 %v779
        %v2970 = vunpack.c.l.b16 %v780
        %v2971 = vunpack.c.h.b16 %v780
        %v2972 = vunpack.c.l.b16 %v781
        %v2973 = vunpack.c.h.b16 %v781
        %v2974 = vunpack.c.l.b16 %v782
        %v2975 = vunpack.c.h.b16 %v782
        %v2976 = vunpack.c.l.b16 %v783
        %v2977 = vunpack.c.h.b16 %v783
        %v2978 = vunpack.c.l.b16 %v784
        %v2979 = vunpack.c.h.b16 %v784
        %v2980 = vunpack.c.l.b16 %v785
        %v2981 = vunpack.c.h.b16 %v785
        %v2982 = vunpack.c.l.b16 %v786
        %v2983 = vunpack.c.h.b16 %v786
        %v2984 = vunpack.c.l.b16 %v787
        %v2985 = vunpack.c.h.b16 %v787
        %v2986 = vunpack.c.l.b16 %v788
        %v2987 = vunpack.c.h.b16 %v788
        %v2988 = vunpack.c.l.b16 %v789
        %v2989 = vunpack.c.h.b16 %v789
        %v2990 = vunpack.c.l.b16 %v790
        %v2991 = vunpack.c.h.b16 %v790
        %v2992 = vunpack.c.l.b16 %v791
        %v2993 = vunpack.c.h.b16 %v791
        %v2994 = vunpack.c.l.b16 %v792
        %v2995 = vunpack.c.h.b16 %v792
        %v2996 = vunpack.c.l.b16 %v793
        %v2997 = vunpack.c.h.b16 %v793
        %v2998 = vunpack.c.l.b16 %v794
        %v2999 = vunpack.c.h.b16 %v794
        %v3000 = vunpack.c.l.b16 %v795
        %v3001 = vunpack.c.h.b16 %v795
        %v3002 = vunpack.c.l.b16 %v796
        %v3003 = vunpack.c.h.b16 %v796
        %v3004 = vunpack.c.l.b16 %v797
        %v3005 = vunpack.c.h.b16 %v797
        %v3006 = vunpack.c.l.b16 %v798
        %v3007 = vunpack.c.h.b16 %v798
        %v3008 = vunpack.c.l.b16 %v799
        %v3009 = vunpack.c.h.b16 %v799
        %v3010 = vunpack.c.l.b16 %v800
        %v3011 = vunpack.c.h.b16 %v800
        %v3012 = vunpack.c.l.b16 %v801
        %v3013 = vunpack.c.h.b16 %v801
        %v3014 = vunpack.c.l.b16 %v802
        %v3015 = vunpack.c.h.b16 %v802
        %v3016 = vunpack.c.l.b16 %v803
        %v3017 = vunpack.c.h.b16 %v803
        %v3018 = vunpack.c.l.b16 %v804
        %v3019 = vunpack.c.h.b16 %v804
        %v3020 = vunpack.c.l.b16 %v805
        %v3021 = vunpack.c.h.b16 %v805
        %v3022 = vunpack.c.l.b16 %v806
        %v3023 = vunpack.c.h.b16 %v806
        %v3024 = vunpack.c.l.b16 %v807
        %v3025 = vunpack.c.h.b16 %v807
        %v3026 = vunpack.c.l.b16 %v808
        %v3027 = vunpack.c.h.b16 %v808
        %v3028 = vunpack.c.l.b16 %v809
        %v3029 = vunpack.c.h.b16 %v809
        %v3030 = vunpack.c.l.b16 %v810
        %v3031 = vunpack.c.h.b16 %v810
        %v3032 = vunpack.c.l.b16 %v811
        %v3033 = vunpack.c.h.b16 %v811
        %v3034 = vunpack.c.l.b16 %v812
        %v3035 = vunpack.c.h.b16 %v812
        %v3036 = vunpack.c.l.b16 %v813
        %v3037 = vunpack.c.h.b16 %v813
        %v3038 = vunpack.c.l.b16 %v814
        %v3039 = vunpack.c.h.b16 %v814
        %v3040 = vunpack.c.l.b16 %v815
        %v3041 = vunpack.c.h.b16 %v815
        %v3042 = vunpack.c.l.b16 %v816
        %v3043 = vunpack.c.h.b16 %v816
        %v3044 = vunpack.c.l.b16 %v817
        %v3045 = vunpack.c.h.b16 %v817
        %v3046 = vunpack.c.l.b16 %v818
        %v3047 = vunpack.c.h.b16 %v818
        %v3048 = vunpack.c.l.b16 %v819
        %v3049 = vunpack.c.h.b16 %v819
        %v3050 = vunpack.c.l.b16 %v820
        %v3051 = vunpack.c.h.b16 %v820
        %v3052 = vunpack.c.l.b16 %v821
        %v3053 = vunpack.c.h.b16 %v821
        %v3054 = vunpack.c.l.b16 %v822
        %v3055 = vunpack.c.h.b16 %v822
        %v3056 = vunpack.c.l.b16 %v823
        %v3057 = vunpack.c.h.b16 %v823
        %v3058 = vunpack.c.l.b16 %v824
        %v3059 = vunpack.c.h.b16 %v824
        %v3060 = vunpack.c.l.b16 %v825
        %v3061 = vunpack.c.h.b16 %v825
        %v3062 = vunpack.c.l.b16 %v826
        %v3063 = vunpack.c.h.b16 %v826
        %v3064 = vunpack.c.l.b16 %v827
        %v3065 = vunpack.c.h.b16 %v827
        %v3066 = vunpack.c.l.b16 %v828
        %v3067 = vunpack.c.h.b16 %v828
        %v3068 = vunpack.c.l.b16 %v829
        %v3069 = vunpack.c.h.b16 %v829
        %v3070 = vunpack.c.l.b16 %v830
        %v3071 = vunpack.c.h.b16 %v830
        %v3072 = vunpack.c.l.b16 %v831
        %v3073 = vunpack.c.h.b16 %v831
        %v3074 = vunpack.c.l.b16 %v832
        %v3075 = vunpack.c.h.b16 %v832
        %v3076 = vunpack.c.l.b16 %v833
        %v3077 = vunpack.c.h.b16 %v833
        %v3078 = vunpack.c.l.b16 %v834
        %v3079 = vunpack.c.h.b16 %v834
        %v3080 = vunpack.c.l.b16 %v835
        %v3081 = vunpack.c.h.b16 %v835
        %v3082 = vunpack.c.l.b16 %v836
        %v3083 = vunpack.c.h.b16 %v836
        %v3084 = vunpack.c.l.b16 %v837
        %v3085 = vunpack.c.h.b16 %v837
        %v3086 = vunpack.c.l.b16 %v838
        %v3087 = vunpack.c.h.b16 %v838
        %v3088 = vunpack.c.l.b16 %v839
        %v3089 = vunpack.c.h.b16 %v839
        %v3090 = vunpack.c.l.b16 %v840
        %v3091 = vunpack.c.h.b16 %v840
        %v3092 = vunpack.c.l.b16 %v841
        %v3093 = vunpack.c.h.b16 %v841
        %v3094 = vunpack.c.l.b16 %v842
        %v3095 = vunpack.c.h.b16 %v842
        %v3096 = vunpack.c.l.b16 %v843
        %v3097 = vunpack.c.h.b16 %v843
        %v3098 = vunpack.c.l.b16 %v844
        %v3099 = vunpack.c.h.b16 %v844
        %v3100 = vunpack.c.l.b16 %v845
        %v3101 = vunpack.c.h.b16 %v845
        %v3102 = vunpack.c.l.b16 %v846
        %v3103 = vunpack.c.h.b16 %v846
        %v3104 = vunpack.c.l.b16 %v847
        %v3105 = vunpack.c.h.b16 %v847
        %v3106 = vunpack.c.l.b16 %v848
        %v3107 = vunpack.c.h.b16 %v848
        %v3108 = vunpack.c.l.b16 %v849
        %v3109 = vunpack.c.h.b16 %v849
        %v3110 = vunpack.c.l.b16 %v850
        %v3111 = vunpack.c.h.b16 %v850
        %v3112 = vunpack.c.l.b16 %v851
        %v3113 = vunpack.c.h.b16 %v851
        %v3114 = vunpack.c.l.b16 %v852
        %v3115 = vunpack.c.h.b16 %v852
        %v3116 = vunpack.c.l.b16 %v853
        %v3117 = vunpack.c.h.b16 %v853
        %v3118 = vunpack.c.l.b16 %v854
        %v3119 = vunpack.c.h.b16 %v854
        %v3120 = vunpack.c.l.b16 %v855
        %v3121 = vunpack.c.h.b16 %v855
        %v3122 = vunpack.c.l.b16 %v856
        %v3123 = vunpack.c.h.b16 %v856
        %v3124 = vunpack.c.l.b16 %v857
        %v3125 = vunpack.c.h.b16 %v857
        %v3126 = vunpack.c.l.b16 %v858
        %v3127 = vunpack.c.h.b16 %v858
        %v3128 = vunpack.c.l.b16 %v859
        %v3129 = vunpack.c.h.b16 %v859
        %v3130 = vunpack.c.l.b16 %v860
        %v3131 = vunpack.c.h.b16 %v860
        %v3132 = vunpack.c.l.b16 %v861
        %v3133 = vunpack.c.h.b16 %v861
        %v3134 = vunpack.c.l.b16 %v862
        %v3135 = vunpack.c.h.b16 %v862
        %v3136 = vunpack.c.l.b16 %v863
        %v3137 = vunpack.c.h.b16 %v863
        %v3138 = vunpack.c.l.b16 %v864
        %v3139 = vunpack.c.h.b16 %v864
        %v3140 = vunpack.c.l.b16 %v865
        %v3141 = vunpack.c.h.b16 %v865
        %v3142 = vunpack.c.l.b16 %v866
        %v3143 = vunpack.c.h.b16 %v866
        %v3144 = vunpack.c.l.b16 %v867
        %v3145 = vunpack.c.h.b16 %v867
        %v3146 = vunpack.c.l.b16 %v868
        %v3147 = vunpack.c.h.b16 %v868
        %v3148 = vunpack.c.l.b16 %v869
        %v3149 = vunpack.c.h.b16 %v869
        %v3150 = vunpack.c.l.b16 %v870
        %v3151 = vunpack.c.h.b16 %v870
        %v3152 = vunpack.c.l.b16 %v871
        %v3153 = vunpack.c.h.b16 %v871
        %v3154 = vunpack.c.l.b16 %v872
        %v3155 = vunpack.c.h.b16 %v872
        %v3156 = vunpack.c.l.b16 %v873
        %v3157 = vunpack.c.h.b16 %v873
        %v3158 = vunpack.c.l.b16 %v874
        %v3159 = vunpack.c.h.b16 %v874
        %v3160 = vunpack.c.l.b16 %v875
        %v3161 = vunpack.c.h.b16 %v875
        %v3162 = vunpack.c.l.b16 %v876
        %v3163 = vunpack.c.h.b16 %v876
        %v3164 = vunpack.c.l.b16 %v877
        %v3165 = vunpack.c.h.b16 %v877
        %v3166 = vunpack.c.l.b16 %v878
        %v3167 = vunpack.c.h.b16 %v878
        %v3168 = vunpack.c.l.b16 %v879
        %v3169 = vunpack.c.h.b16 %v879
        %v3170 = vunpack.c.l.b16 %v880
        %v3171 = vunpack.c.h.b16 %v880
        %v3172 = vunpack.c.l.b16 %v881
        %v3173 = vunpack.c.h.b16 %v881
        %v3174 = vunpack.c.l.b16 %v882
        %v3175 = vunpack.c.h.b16 %v882
        %v3176 = vunpack.c.l.b16 %v883
        %v3177 = vunpack.c.h.b16 %v883
        %v3178 = vunpack.c.l.b16 %v884
        %v3179 = vunpack.c.h.b16 %v884
        %v3180 = vunpack.c.l.b16 %v885
        %v3181 = vunpack.c.h.b16 %v885
        %v3182 = vunpack.c.l.b16 %v886
        %v3183 = vunpack.c.h.b16 %v886
        %v3184 = vunpack.c.l.b16 %v887
        %v3185 = vunpack.c.h.b16 %v887
        %v3186 = vunpack.c.l.b16 %v888
        %v3187 = vunpack.c.h.b16 %v888
        %v3188 = vunpack.c.l.b16 %v889
        %v3189 = vunpack.c.h.b16 %v889
        %v3190 = vunpack.c.l.b16 %v890
        %v3191 = vunpack.c.h.b16 %v890
        %v3192 = vunpack.c.l.b16 %v891
        %v3193 = vunpack.c.h.b16 %v891
        %v3194 = vunpack.c.l.b16 %v892
        %v3195 = vunpack.c.h.b16 %v892
        %v3196 = vunpack.c.l.b16 %v893
        %v3197 = vunpack.c.h.b16 %v893
        %v3198 = vunpack.c.l.b16 %v894
        %v3199 = vunpack.c.h.b16 %v894
        %v3200 = vunpack.c.l.b16 %v895
        %v3201 = vunpack.c.h.b16 %v895
        %v3202 = vunpack.c.l.b16 %v896
        %v3203 = vunpack.c.h.b16 %v896
        %v3204 = vunpack.c.l.b16 %v897
        %v3205 = vunpack.c.h.b16 %v897
        %v3206 = vunpack.c.l.b16 %v898
        %v3207 = vunpack.c.h.b16 %v898
        %v3208 = vunpack.c.l.b16 %v899
        %v3209 = vunpack.c.h.b16 %v899
        %v3210 = vunpack.c.l.b16 %v900
        %v3211 = vunpack.c.h.b16 %v900
        %v3212 = vunpack.c.l.b16 %v901
        %v3213 = vunpack.c.h.b16 %v901
        %v3214 = vunpack.c.l.b16 %v902
        %v3215 = vunpack.c.h.b16 %v902
        %v3216 = vunpack.c.l.b16 %v903
        %v3217 = vunpack.c.h.b16 %v903
        %v3218 = vunpack.c.l.b16 %v904
        %v3219 = vunpack.c.h.b16 %v904
        %v3220 = vunpack.c.l.b16 %v905
        %v3221 = vunpack.c.h.b16 %v905
        %v3222 = vunpack.c.l.b16 %v906
        %v3223 = vunpack.c.h.b16 %v906
        %v3224 = vunpack.c.l.b16 %v907
        %v3225 = vunpack.c.h.b16 %v907
        %v3226 = vunpack.c.l.b16 %v908
        %v3227 = vunpack.c.h.b16 %v908
        %v3228 = vunpack.c.l.b16 %v909
        %v3229 = vunpack.c.h.b16 %v909
        %v3230 = vunpack.c.l.b16 %v910
        %v3231 = vunpack.c.h.b16 %v910
        %v3232 = vunpack.c.l.b16 %v911
        %v3233 = vunpack.c.h.b16 %v911
        %v3234 = vunpack.c.l.b16 %v912
        %v3235 = vunpack.c.h.b16 %v912
        %v3236 = vunpack.c.l.b16 %v913
        %v3237 = vunpack.c.h.b16 %v913
        %v3238 = vunpack.c.l.b16 %v914
        %v3239 = vunpack.c.h.b16 %v914
        %v3240 = vunpack.c.l.b16 %v915
        %v3241 = vunpack.c.h.b16 %v915
        %v3242 = vunpack.c.l.b16 %v916
        %v3243 = vunpack.c.h.b16 %v916
        %v3244 = vunpack.c.l.b16 %v917
        %v3245 = vunpack.c.h.b16 %v917
        %v3246 = vunpack.c.l.b16 %v918
        %v3247 = vunpack.c.h.b16 %v918
        %v3248 = vunpack.c.l.b16 %v919
        %v3249 = vunpack.c.h.b16 %v919
        %v3250 = vunpack.c.l.b16 %v920
        %v3251 = vunpack.c.h.b16 %v920
        %v3252 = vunpack.c.l.b16 %v921
        %v3253 = vunpack.c.h.b16 %v921
        %v3254 = vunpack.c.l.b16 %v922
        %v3255 = vunpack.c.h.b16 %v922
        %v3256 = vunpack.c.l.b16 %v923
        %v3257 = vunpack.c.h.b16 %v923
        %v3258 = vunpack.c.l.b16 %v924
        %v3259 = vunpack.c.h.b16 %v924
        %v3260 = vunpack.c.l.b16 %v925
        %v3261 = vunpack.c.h.b16 %v925
        %v3262 = vunpack.c.l.b16 %v926
        %v3263 = vunpack.c.h.b16 %v926
        %v3264 = vunpack.c.l.b16 %v927
        %v3265 = vunpack.c.h.b16 %v927
        %v3266 = vunpack.c.l.b16 %v928
        %v3267 = vunpack.c.h.b16 %v928
        %v3268 = vunpack.c.l.b16 %v929
        %v3269 = vunpack.c.h.b16 %v929
        %v3270 = vunpack.c.l.b16 %v930
        %v3271 = vunpack.c.h.b16 %v930
        %v3272 = vunpack.c.l.b16 %v931
        %v3273 = vunpack.c.h.b16 %v931
        %v3274 = vunpack.c.l.b16 %v932
        %v3275 = vunpack.c.h.b16 %v932
        %v3276 = vunpack.c.l.b16 %v933
        %v3277 = vunpack.c.h.b16 %v933
        %v3278 = vunpack.c.l.b16 %v934
        %v3279 = vunpack.c.h.b16 %v934
        %v3280 = vunpack.c.l.b16 %v935
        %v3281 = vunpack.c.h.b16 %v935
        %v3282 = vunpack.c.l.b16 %v936
        %v3283 = vunpack.c.h.b16 %v936
        %v3284 = vunpack.c.l.b16 %v937
        %v3285 = vunpack.c.h.b16 %v937
        %v3286 = vunpack.c.l.b16 %v938
        %v3287 = vunpack.c.h.b16 %v938
        %v3288 = vunpack.c.l.b16 %v939
        %v3289 = vunpack.c.h.b16 %v939
        %v3290 = vunpack.c.l.b16 %v940
        %v3291 = vunpack.c.h.b16 %v940
        %v3292 = vunpack.c.l.b16 %v941
        %v3293 = vunpack.c.h.b16 %v941
        %v3294 = vunpack.c.l.b16 %v942
        %v3295 = vunpack.c.h.b16 %v942
        %v3296 = vunpack.c.l.b16 %v943
        %v3297 = vunpack.c.h.b16 %v943
        %v3298 = vunpack.c.l.b16 %v944
        %v3299 = vunpack.c.h.b16 %v944
        %v3300 = vunpack.c.l.b16 %v945
        %v3301 = vunpack.c.h.b16 %v945
        %v3302 = vunpack.c.l.b16 %v946
        %v3303 = vunpack.c.h.b16 %v946
        %v3304 = vunpack.c.l.b16 %v947
        %v3305 = vunpack.c.h.b16 %v947
        %v3306 = vunpack.c.l.b16 %v948
        %v3307 = vunpack.c.h.b16 %v948
        %v3308 = vunpack.c.l.b16 %v949
        %v3309 = vunpack.c.h.b16 %v949
        %v3310 = vunpack.c.l.b16 %v950
        %v3311 = vunpack.c.h.b16 %v950
        %v3312 = vunpack.c.l.b16 %v951
        %v3313 = vunpack.c.h.b16 %v951
        %v3314 = vunpack.c.l.b16 %v952
        %v3315 = vunpack.c.h.b16 %v952
        %v3316 = vunpack.c.l.b16 %v953
        %v3317 = vunpack.c.h.b16 %v953
        %v3318 = vunpack.c.l.b16 %v954
        %v3319 = vunpack.c.h.b16 %v954
        %v3320 = vunpack.c.l.b16 %v955
        %v3321 = vunpack.c.h.b16 %v955
        %v3322 = vunpack.c.l.b16 %v956
        %v3323 = vunpack.c.h.b16 %v956
        %v3324 = vunpack.c.l.b16 %v957
        %v3325 = vunpack.c.h.b16 %v957
        %v3326 = vunpack.c.l.b16 %v958
        %v3327 = vunpack.c.h.b16 %v958
        %v3328 = vunpack.c.l.b16 %v959
        %v3329 = vunpack.c.h.b16 %v959
        %v3330 = vunpack.c.l.b16 %v960
        %v3331 = vunpack.c.h.b16 %v960
        %v3332 = vunpack.c.l.b16 %v961
        %v3333 = vunpack.c.h.b16 %v961
        %v3334 = vunpack.c.l.b16 %v962
        %v3335 = vunpack.c.h.b16 %v962
        %v3336 = vunpack.c.l.b16 %v963
        %v3337 = vunpack.c.h.b16 %v963
        %v3338 = vunpack.c.l.b16 %v964
        %v3339 = vunpack.c.h.b16 %v964
        %v3340 = vunpack.c.l.b16 %v965
        %v3341 = vunpack.c.h.b16 %v965
        %v3342 = vunpack.c.l.b16 %v966
        %v3343 = vunpack.c.h.b16 %v966
        %v3344 = vunpack.c.l.b16 %v967
        %v3345 = vunpack.c.h.b16 %v967
        %v3346 = vunpack.c.l.b16 %v968
        %v3347 = vunpack.c.h.b16 %v968
        %v3348 = vunpack.c.l.b16 %v969
        %v3349 = vunpack.c.h.b16 %v969
        %v3350 = vunpack.c.l.b16 %v970
        %v3351 = vunpack.c.h.b16 %v970
        %v3352 = vunpack.c.l.b16 %v971
        %v3353 = vunpack.c.h.b16 %v971
        %v3354 = vunpack.c.l.b16 %v972
        %v3355 = vunpack.c.h.b16 %v972
        %v3356 = vunpack.c.l.b16 %v973
        %v3357 = vunpack.c.h.b16 %v973
        %v3358 = vunpack.c.l.b16 %v974
        %v3359 = vunpack.c.h.b16 %v974
        %v3360 = vunpack.c.l.b16 %v975
        %v3361 = vunpack.c.h.b16 %v975
        %v3362 = vunpack.c.l.b16 %v976
        %v3363 = vunpack.c.h.b16 %v976
        %v3364 = vunpack.c.l.b16 %v977
        %v3365 = vunpack.c.h.b16 %v977
        %v3366 = vunpack.c.l.b16 %v978
        %v3367 = vunpack.c.h.b16 %v978
        %v3368 = vunpack.c.l.b16 %v979
        %v3369 = vunpack.c.h.b16 %v979
        %v3370 = vunpack.c.l.b16 %v980
        %v3371 = vunpack.c.h.b16 %v980
        %v3372 = vunpack.c.l.b16 %v981
        %v3373 = vunpack.c.h.b16 %v981
        %v3374 = vunpack.c.l.b16 %v982
        %v3375 = vunpack.c.h.b16 %v982
        %v3376 = vunpack.c.l.b16 %v983
        %v3377 = vunpack.c.h.b16 %v983
        %v3378 = vunpack.c.l.b16 %v984
        %v3379 = vunpack.c.h.b16 %v984
        %v3380 = vunpack.c.l.b16 %v985
        %v3381 = vunpack.c.h.b16 %v985
        %v3382 = vunpack.c.l.b16 %v986
        %v3383 = vunpack.c.h.b16 %v986
        %v3384 = vunpack.c.l.b16 %v987
        %v3385 = vunpack.c.h.b16 %v987
        %v3386 = vunpack.c.l.b16 %v988
        %v3387 = vunpack.c.h.b16 %v988
        %v3388 = vunpack.c.l.b16 %v989
        %v3389 = vunpack.c.h.b16 %v989
        %v3390 = vunpack.c.l.b16 %v990
        %v3391 = vunpack.c.h.b16 %v990
        %v3392 = vunpack.c.l.b16 %v991
        %v3393 = vunpack.c.h.b16 %v991
        %v3394 = vunpack.c.l.b16 %v992
        %v3395 = vunpack.c.h.b16 %v992
        %v3396 = vunpack.c.l.b16 %v993
        %v3397 = vunpack.c.h.b16 %v993
        %v3398 = vunpack.c.l.b16 %v994
        %v3399 = vunpack.c.h.b16 %v994
        %v3400 = vunpack.c.l.b16 %v995
        %v3401 = vunpack.c.h.b16 %v995
        %v3402 = vunpack.c.l.b16 %v996
        %v3403 = vunpack.c.h.b16 %v996
        %v3404 = vunpack.c.l.b16 %v997
        %v3405 = vunpack.c.h.b16 %v997
        %v3406 = vunpack.c.l.b16 %v998
        %v3407 = vunpack.c.h.b16 %v998
        %v3408 = vunpack.c.l.b16 %v999
        %v3409 = vunpack.c.h.b16 %v999
        %v3410 = vunpack.c.l.b16 %v1000
        %v3411 = vunpack.c.h.b16 %v1000
        %v3412 = vunpack.c.l.b16 %v1001
        %v3413 = vunpack.c.h.b16 %v1001
        %v3414 = vunpack.c.l.b16 %v1002
        %v3415 = vunpack.c.h.b16 %v1002
        %v3416 = vunpack.c.l.b16 %v1003
        %v3417 = vunpack.c.h.b16 %v1003
        %v3418 = vunpack.c.l.b16 %v1004
        %v3419 = vunpack.c.h.b16 %v1004
        %v3420 = vunpack.c.l.b16 %v1005
        %v3421 = vunpack.c.h.b16 %v1005
        %v3422 = vunpack.c.l.b16 %v1006
        %v3423 = vunpack.c.h.b16 %v1006
        %v3424 = vunpack.c.l.b16 %v1007
        %v3425 = vunpack.c.h.b16 %v1007
        %v3426 = vunpack.c.l.b16 %v1008
        %v3427 = vunpack.c.h.b16 %v1008
        %v3428 = vunpack.c.l.b16 %v1009
        %v3429 = vunpack.c.h.b16 %v1009
        %v3430 = vunpack.c.l.b16 %v1010
        %v3431 = vunpack.c.h.b16 %v1010
        %v3432 = vunpack.c.l.b16 %v1011
        %v3433 = vunpack.c.h.b16 %v1011
        %v3434 = vunpack.c.l.b16 %v1012
        %v3435 = vunpack.c.h.b16 %v1012
        %v3436 = vunpack.c.l.b16 %v1013
        %v3437 = vunpack.c.h.b16 %v1013
        %v3438 = vunpack.c.l.b16 %v1014
        %v3439 = vunpack.c.h.b16 %v1014
        %v3440 = vunpack.c.l.b16 %v1015
        %v3441 = vunpack.c.h.b16 %v1015
        %v3442 = vunpack.c.l.b16 %v1016
        %v3443 = vunpack.c.h.b16 %v1016
        %v3444 = vunpack.c.l.b16 %v1017
        %v3445 = vunpack.c.h.b16 %v1017
        %v3446 = vunpack.c.l.b16 %v1018
        %v3447 = vunpack.c.h.b16 %v1018
        %v3448 = vunpack.c.l.b16 %v1019
        %v3449 = vunpack.c.h.b16 %v1019
        %v3450 = vunpack.c.l.b16 %v1020
        %v3451 = vunpack.c.h.b16 %v1020
        %v3452 = vunpack.c.l.b16 %v1021
        %v3453 = vunpack.c.h.b16 %v1021
        %v3454 = vunpack.c.l.b16 %v1022
        %v3455 = vunpack.c.h.b16 %v1022
        %v3456 = vunpack.c.l.b16 %v1023
        %v3457 = vunpack.c.h.b16 %v1023
        %v3458 = vunpack.c.l.b16 %v1024
        %v3459 = vunpack.c.h.b16 %v1024
        %v3460 = vunpack.c.l.b16 %v1025
        %v3461 = vunpack.c.h.b16 %v1025
        %v3462 = vunpack.c.l.b16 %v1026
        %v3463 = vunpack.c.h.b16 %v1026
        %v3464 = vunpack.c.l.b16 %v1027
        %v3465 = vunpack.c.h.b16 %v1027
        %v3466 = vunpack.c.l.b16 %v1028
        %v3467 = vunpack.c.h.b16 %v1028
        %v3468 = vunpack.c.l.b16 %v1029
        %v3469 = vunpack.c.h.b16 %v1029
        %v3470 = vunpack.c.l.b16 %v1030
        %v3471 = vunpack.c.h.b16 %v1030
        %v3472 = vunpack.c.l.b16 %v1031
        %v3473 = vunpack.c.h.b16 %v1031
        %v3474 = vunpack.c.l.b16 %v1032
        %v3475 = vunpack.c.h.b16 %v1032
        %v3476 = vunpack.c.l.b16 %v1033
        %v3477 = vunpack.c.h.b16 %v1033
        %v3478 = vunpack.c.l.b16 %v1034
        %v3479 = vunpack.c.h.b16 %v1034
        %v3480 = vunpack.c.l.b16 %v1035
        %v3481 = vunpack.c.h.b16 %v1035
        %v3482 = vunpack.c.l.b16 %v1036
        %v3483 = vunpack.c.h.b16 %v1036
        %v3484 = vunpack.c.l.b16 %v1037
        %v3485 = vunpack.c.h.b16 %v1037
        %v3486 = vunpack.c.l.b16 %v1038
        %v3487 = vunpack.c.h.b16 %v1038
        %v3488 = vunpack.c.l.b16 %v1039
        %v3489 = vunpack.c.h.b16 %v1039
        %v3490 = vunpack.c.l.b16 %v1040
        %v3491 = vunpack.c.h.b16 %v1040
        %v3492 = vunpack.c.l.b16 %v1041
        %v3493 = vunpack.c.h.b16 %v1041
        %v3494 = vunpack.c.l.b16 %v1042
        %v3495 = vunpack.c.h.b16 %v1042
        %v3496 = vunpack.c.l.b16 %v1043
        %v3497 = vunpack.c.h.b16 %v1043
        %v3498 = vunpack.c.l.b16 %v1044
        %v3499 = vunpack.c.h.b16 %v1044
        %v3500 = vunpack.c.l.b16 %v1045
        %v3501 = vunpack.c.h.b16 %v1045
        %v3502 = vunpack.c.l.b16 %v1046
        %v3503 = vunpack.c.h.b16 %v1046
        %v3504 = vunpack.c.l.b16 %v1047
        %v3505 = vunpack.c.h.b16 %v1047
        %v3506 = vunpack.c.l.b16 %v1048
        %v3507 = vunpack.c.h.b16 %v1048
        %v3508 = vunpack.c.l.b16 %v1049
        %v3509 = vunpack.c.h.b16 %v1049
        %v3510 = vunpack.c.l.b16 %v1050
        %v3511 = vunpack.c.h.b16 %v1050
        %v3512 = vunpack.c.l.b16 %v1051
        %v3513 = vunpack.c.h.b16 %v1051
        %v3514 = vunpack.c.l.b16 %v1052
        %v3515 = vunpack.c.h.b16 %v1052
        %v3516 = vunpack.c.l.b16 %v1053
        %v3517 = vunpack.c.h.b16 %v1053
        %v3518 = vunpack.c.l.b16 %v1054
        %v3519 = vunpack.c.h.b16 %v1054
        %v3520 = vunpack.c.l.b16 %v1055
        %v3521 = vunpack.c.h.b16 %v1055
        %v3522 = vunpack.c.l.b16 %v1056
        %v3523 = vunpack.c.h.b16 %v1056
        %v3524 = vunpack.c.l.b16 %v1057
        %v3525 = vunpack.c.h.b16 %v1057
        %v3526 = vunpack.c.l.b16 %v1058
        %v3527 = vunpack.c.h.b16 %v1058
        %v3528 = vunpack.c.l.b16 %v1059
        %v3529 = vunpack.c.h.b16 %v1059
        %v3530 = vunpack.c.l.b16 %v1060
        %v3531 = vunpack.c.h.b16 %v1060
        %v3532 = vunpack.c.l.b16 %v1061
        %v3533 = vunpack.c.h.b16 %v1061
        %v3534 = vunpack.c.l.b16 %v1062
        %v3535 = vunpack.c.h.b16 %v1062
        %v3536 = vunpack.c.l.b16 %v1063
        %v3537 = vunpack.c.h.b16 %v1063
        %v3538 = vunpack.c.l.b16 %v1064
        %v3539 = vunpack.c.h.b16 %v1064
        %v3540 = vunpack.c.l.b16 %v1065
        %v3541 = vunpack.c.h.b16 %v1065
        %v3542 = vunpack.c.l.b16 %v1066
        %v3543 = vunpack.c.h.b16 %v1066
        %v3544 = vunpack.c.l.b16 %v1067
        %v3545 = vunpack.c.h.b16 %v1067
        %v3546 = vunpack.c.l.b16 %v1068
        %v3547 = vunpack.c.h.b16 %v1068
        %v3548 = vunpack.c.l.b16 %v1069
        %v3549 = vunpack.c.h.b16 %v1069
        %v3550 = vunpack.c.l.b16 %v1070
        %v3551 = vunpack.c.h.b16 %v1070
        %v3552 = vunpack.c.l.b16 %v1071
        %v3553 = vunpack.c.h.b16 %v1071
        %v3554 = vunpack.c.l.b16 %v1072
        %v3555 = vunpack.c.h.b16 %v1072
        %v3556 = vunpack.c.l.b16 %v1073
        %v3557 = vunpack.c.h.b16 %v1073
        %v3558 = vunpack.c.l.b16 %v1074
        %v3559 = vunpack.c.h.b16 %v1074
        %v3560 = vunpack.c.l.b16 %v1075
        %v3561 = vunpack.c.h.b16 %v1075
        %v3562 = vunpack.c.l.b16 %v1076
        %v3563 = vunpack.c.h.b16 %v1076
        %v3564 = vunpack.c.l.b16 %v1077
        %v3565 = vunpack.c.h.b16 %v1077
        %v3566 = vunpack.c.l.b16 %v1078
        %v3567 = vunpack.c.h.b16 %v1078
        %v3568 = vpack.c.b16 %v1978, %v1968
        %v3569 = vpack.c.b16 %v1979, %v1969
        %v3570 = vpack.c.b16 %v1980, %v1970
        %v3571 = vpack.c.b16 %v1981, %v1971
        %v3572 = vpack.c.b16 %v1982, %v1972
        %v3573 = vpack.c.b16 %v1983, %v1973
        %v3574 = vpack.c.b16 %v1984, %v1974
        %v3575 = vpack.c.b16 %v1985, %v1975
        %v3576 = vpack.c.b16 %v1986, %v1976
        %v3577 = vpack.c.b16 %v1987, %v1977
        %v3578 = vpack.c.b16 %v1998, %v1988
        %v3579 = vpack.c.b16 %v1999, %v1989
        %v3580 = vpack.c.b16 %v2000, %v1990
        %v3581 = vpack.c.b16 %v2001, %v1991
        %v3582 = vpack.c.b16 %v2002, %v1992
        %v3583 = vpack.c.b16 %v2003, %v1993
        %v3584 = vpack.c.b16 %v2004, %v1994
        %v3585 = vpack.c.b16 %v2005, %v1995
        %v3586 = vpack.c.b16 %v2006, %v1996
        %v3587 = vpack.c.b16 %v2007, %v1997
        %v3588 = vpack.c.b16 %v2018, %v2008
        %v3589 = vpack.c.b16 %v2019, %v2009
        %v3590 = vpack.c.b16 %v2020, %v2010
        %v3591 = vpack.c.b16 %v2021, %v2011
        %v3592 = vpack.c.b16 %v2022, %v2012
        %v3593 = vpack.c.b16 %v2023, %v2013
        %v3594 = vpack.c.b16 %v2024, %v2014
        %v3595 = vpack.c.b16 %v2025, %v2015
        %v3596 = vpack.c.b16 %v2026, %v2016
        %v3597 = vpack.c.b16 %v2027, %v2017
        %v3598 = vpack.c.b16 %v2038, %v2028
        %v3599 = vpack.c.b16 %v2039, %v2029
        %v3600 = vpack.c.b16 %v2040, %v2030
        %v3601 = vpack.c.b16 %v2041, %v2031
        %v3602 = vpack.c.b16 %v2042, %v2032
        %v3603 = vpack.c.b16 %v2043, %v2033
        %v3604 = vpack.c.b16 %v2044, %v2034
        %v3605 = vpack.c.b16 %v2045, %v2035
        %v3606 = vpack.c.b16 %v2046, %v2036
        %v3607 = vpack.c.b16 %v2047, %v2037
        %v3608 = vpack.c.b16 %v2058, %v2048
        %v3609 = vpack.c.b16 %v2059, %v2049
        %v3610 = vpack.c.b16 %v2060, %v2050
        %v3611 = vpack.c.b16 %v2061, %v2051
        %v3612 = vpack.c.b16 %v2062, %v2052
        %v3613 = vpack.c.b16 %v2063, %v2053
        %v3614 = vpack.c.b16 %v2064, %v2054
        %v3615 = vpack.c.b16 %v2065, %v2055
        %v3616 = vpack.c.b16 %v2066, %v2056
        %v3617 = vpack.c.b16 %v2067, %v2057
        %v3618 = vpack.c.b16 %v2078, %v2068
        %v3619 = vpack.c.b16 %v2079, %v2069
        %v3620 = vpack.c.b16 %v2080, %v2070
        %v3621 = vpack.c.b16 %v2081, %v2071
        %v3622 = vpack.c.b16 %v2082, %v2072
        %v3623 = vpack.c.b16 %v2083, %v2073
        %v3624 = vpack.c.b16 %v2084, %v2074
        %v3625 = vpack.c.b16 %v2085, %v2075
        %v3626 = vpack.c.b16 %v2086, %v2076
        %v3627 = vpack.c.b16 %v2087, %v2077
        %v3628 = vpack.c.b16 %v2098, %v2088
        %v3629 = vpack.c.b16 %v2099, %v2089
        %v3630 = vpack.c.b16 %v2100, %v2090
        %v3631 = vpack.c.b16 %v2101, %v2091
        %v3632 = vpack.c.b16 %v2102, %v2092
        %v3633 = vpack.c.b16 %v2103, %v2093
        %v3634 = vpack.c.b16 %v2104, %v2094
        %v3635 = vpack.c.b16 %v2105, %v2095
        %v3636 = vpack.c.b16 %v2106, %v2096
        %v3637 = vpack.c.b16 %v2107, %v2097
        %v3638 = vpack.c.b16 %v2118, %v2108
        %v3639 = vpack.c.b16 %v2119, %v2109
        %v3640 = vpack.c.b16 %v2120, %v2110
        %v3641 = vpack.c.b16 %v2121, %v2111
        %v3642 = vpack.c.b16 %v2122, %v2112
        %v3643 = vpack.c.b16 %v2123, %v2113
        %v3644 = vpack.c.b16 %v2124, %v2114
        %v3645 = vpack.c.b16 %v2125, %v2115
        %v3646 = vpack.c.b16 %v2126, %v2116
        %v3647 = vpack.c.b16 %v2127, %v2117
        %v3648 = vpack.c.b16 %v2138, %v2128
        %v3649 = vpack.c.b16 %v2139, %v2129
        %v3650 = vpack.c.b16 %v2140, %v2130
        %v3651 = vpack.c.b16 %v2141, %v2131
        %v3652 = vpack.c.b16 %v2142, %v2132
        %v3653 = vpack.c.b16 %v2143, %v2133
        %v3654 = vpack.c.b16 %v2144, %v2134
        %v3655 = vpack.c.b16 %v2145, %v2135
        %v3656 = vpack.c.b16 %v2146, %v2136
        %v3657 = vpack.c.b16 %v2147, %v2137
        %v3658 = vpack.c.b16 %v2158, %v2148
        %v3659 = vpack.c.b16 %v2159, %v2149
        %v3660 = vpack.c.b16 %v2160, %v2150
        %v3661 = vpack.c.b16 %v2161, %v2151
        %v3662 = vpack.c.b16 %v2162, %v2152
        %v3663 = vpack.c.b16 %v2163, %v2153
        %v3664 = vpack.c.b16 %v2164, %v2154
        %v3665 = vpack.c.b16 %v2165, %v2155
        %v3666 = vpack.c.b16 %v2166, %v2156
        %v3667 = vpack.c.b16 %v2167, %v2157
        %v3668 = vpack.c.b16 %v2178, %v2168
        %v3669 = vpack.c.b16 %v2179, %v2169
        %v3670 = vpack.c.b16 %v2180, %v2170
        %v3671 = vpack.c.b16 %v2181, %v2171
        %v3672 = vpack.c.b16 %v2182, %v2172
        %v3673 = vpack.c.b16 %v2183, %v2173
        %v3674 = vpack.c.b16 %v2184, %v2174
        %v3675 = vpack.c.b16 %v2185, %v2175
        %v3676 = vpack.c.b16 %v2186, %v2176
        %v3677 = vpack.c.b16 %v2187, %v2177
        %v3678 = vpack.c.b16 %v2198, %v2188
        %v3679 = vpack.c.b16 %v2199, %v2189
        %v3680 = vpack.c.b16 %v2200, %v2190
        %v3681 = vpack.c.b16 %v2201, %v2191
        %v3682 = vpack.c.b16 %v2202, %v2192
        %v3683 = vpack.c.b16 %v2203, %v2193
        %v3684 = vpack.c.b16 %v2204, %v2194
        %v3685 = vpack.c.b16 %v2205, %v2195
        %v3686 = vpack.c.b16 %v2206, %v2196
        %v3687 = vpack.c.b16 %v2207, %v2197
        %v3688 = vpack.c.b16 %v2218, %v2208
        %v3689 = vpack.c.b16 %v2219, %v2209
        %v3690 = vpack.c.b16 %v2220, %v2210
        %v3691 = vpack.c.b16 %v2221, %v2211
        %v3692 = vpack.c.b16 %v2222, %v2212
        %v3693 = vpack.c.b16 %v2223, %v2213
        %v3694 = vpack.c.b16 %v2224, %v2214
        %v3695 = vpack.c.b16 %v2225, %v2215
        %v3696 = vpack.c.b16 %v2226, %v2216
        %v3697 = vpack.c.b16 %v2227, %v2217
        %v3698 = vpack.c.b16 %v2238, %v2228
        %v3699 = vpack.c.b16 %v2239, %v2229
        %v3700 = vpack.c.b16 %v2240, %v2230
        %v3701 = vpack.c.b16 %v2241, %v2231
        %v3702 = vpack.c.b16 %v2242, %v2232
        %v3703 = vpack.c.b16 %v2243, %v2233
        %v3704 = vpack.c.b16 %v2244, %v2234
        %v3705 = vpack.c.b16 %v2245, %v2235
        %v3706 = vpack.c.b16 %v2246, %v2236
        %v3707 = vpack.c.b16 %v2247, %v2237
        %v3708 = vpack.c.b16 %v2258, %v2248
        %v3709 = vpack.c.b16 %v2259, %v2249
        %v3710 = vpack.c.b16 %v2260, %v2250
        %v3711 = vpack.c.b16 %v2261, %v2251
        %v3712 = vpack.c.b16 %v2262, %v2252
        %v3713 = vpack.c.b16 %v2263, %v2253
        %v3714 = vpack.c.b16 %v2264, %v2254
        %v3715 = vpack.c.b16 %v2265, %v2255
        %v3716 = vpack.c.b16 %v2266, %v2256
        %v3717 = vpack.c.b16 %v2267, %v2257
        %v3718 = vpack.c.b16 %v2278, %v2268
        %v3719 = vpack.c.b16 %v2279, %v2269
        %v3720 = vpack.c.b16 %v2280, %v2270
        %v3721 = vpack.c.b16 %v2281, %v2271
        %v3722 = vpack.c.b16 %v2282, %v2272
        %v3723 = vpack.c.b16 %v2283, %v2273
        %v3724 = vpack.c.b16 %v2284, %v2274
        %v3725 = vpack.c.b16 %v2285, %v2275
        %v3726 = vpack.c.b16 %v2286, %v2276
        %v3727 = vpack.c.b16 %v2287, %v2277
        %v3728 = vpack.c.b16 %v2298, %v2288
        %v3729 = vpack.c.b16 %v2299, %v2289
        %v3730 = vpack.c.b16 %v2300, %v2290
        %v3731 = vpack.c.b16 %v2301, %v2291
        %v3732 = vpack.c.b16 %v2302, %v2292
        %v3733 = vpack.c.b16 %v2303, %v2293
        %v3734 = vpack.c.b16 %v2304, %v2294
        %v3735 = vpack.c.b16 %v2305, %v2295
        %v3736 = vpack.c.b16 %v2306, %v2296
        %v3737 = vpack.c.b16 %v2307, %v2297
        %v3738 = vpack.c.b16 %v2318, %v2308
        %v3739 = vpack.c.b16 %v2319, %v2309
        %v3740 = vpack.c.b16 %v2320, %v2310
        %v3741 = vpack.c.b16 %v2321, %v2311
        %v3742 = vpack.c.b16 %v2322, %v2312
        %v3743 = vpack.c.b16 %v2323, %v2313
        %v3744 = vpack.c.b16 %v2324, %v2314
        %v3745 = vpack.c.b16 %v2325, %v2315
        %v3746 = vpack.c.b16 %v2326, %v2316
        %v3747 = vpack.c.b16 %v2327, %v2317
        %v3748 = vpack.c.b16 %v2338, %v2328
        %v3749 = vpack.c.b16 %v2339, %v2329
        %v3750 = vpack.c.b16 %v2340, %v2330
        %v3751 = vpack.c.b16 %v2341, %v2331
        %v3752 = vpack.c.b16 %v2342, %v2332
        %v3753 = vpack.c.b16 %v2343, %v2333
        %v3754 = vpack.c.b16 %v2344, %v2334
        %v3755 = vpack.c.b16 %v2345, %v2335
        %v3756 = vpack.c.b16 %v2346, %v2336
        %v3757 = vpack.c.b16 %v2347, %v2337
        %v3758 = vpack.c.b16 %v2358, %v2348
        %v3759 = vpack.c.b16 %v2359, %v2349
        %v3760 = vpack.c.b16 %v2360, %v2350
        %v3761 = vpack.c.b16 %v2361, %v2351
        %v3762 = vpack.c.b16 %v2362, %v2352
        %v3763 = vpack.c.b16 %v2363, %v2353
        %v3764 = vpack.c.b16 %v2364, %v2354
        %v3765 = vpack.c.b16 %v2365, %v2355
        %v3766 = vpack.c.b16 %v2366, %v2356
        %v3767 = vpack.c.b16 %v2367, %v2357
        %v3768 = vpack.c.b16 %v2378, %v2368
        %v3769 = vpack.c.b16 %v2379, %v2369
        %v3770 = vpack.c.b16 %v2380, %v2370
        %v3771 = vpack.c.b16 %v2381, %v2371
        %v3772 = vpack.c.b16 %v2382, %v2372
        %v3773 = vpack.c.b16 %v2383, %v2373
        %v3774 = vpack.c.b16 %v2384, %v2374
        %v3775 = vpack.c.b16 %v2385, %v2375
        %v3776 = vpack.c.b16 %v2386, %v2376
        %v3777 = vpack.c.b16 %v2387, %v2377
        %v3778 = vpack.c.b16 %v2398, %v2388
        %v3779 = vpack.c.b16 %v2399, %v2389
        %v3780 = vpack.c.b16 %v2400, %v2390
        %v3781 = vpack.c.b16 %v2401, %v2391
        %v3782 = vpack.c.b16 %v2402, %v2392
        %v3783 = vpack.c.b16 %v2403, %v2393
        %v3784 = vpack.c.b16 %v2404, %v2394
        %v3785 = vpack.c.b16 %v2405, %v2395
        %v3786 = vpack.c.b16 %v2406, %v2396
        %v3787 = vpack.c.b16 %v2407, %v2397
        %v3788 = vpack.c.b16 %v2418, %v2408
        %v3789 = vpack.c.b16 %v2419, %v2409
        %v3790 = vpack.c.b16 %v2420, %v2410
        %v3791 = vpack.c.b16 %v2421, %v2411
        %v3792 = vpack.c.b16 %v2422, %v2412
        %v3793 = vpack.c.b16 %v2423, %v2413
        %v3794 = vpack.c.b16 %v2424, %v2414
        %v3795 = vpack.c.b16 %v2425, %v2415
        %v3796 = vpack.c.b16 %v2426, %v2416
        %v3797 = vpack.c.b16 %v2427, %v2417
        %v3798 = vpack.c.b16 %v2438, %v2428
        %v3799 = vpack.c.b16 %v2439, %v2429
        %v3800 = vpack.c.b16 %v2440, %v2430
        %v3801 = vpack.c.b16 %v2441, %v2431
        %v3802 = vpack.c.b16 %v2442, %v2432
        %v3803 = vpack.c.b16 %v2443, %v2433
        %v3804 = vpack.c.b16 %v2444, %v2434
        %v3805 = vpack.c.b16 %v2445, %v2435
        %v3806 = vpack.c.b16 %v2446, %v2436
        %v3807 = vpack.c.b16 %v2447, %v2437
        %v3808 = vpack.c.b16 %v2458, %v2448
        %v3809 = vpack.c.b16 %v2459, %v2449
        %v3810 = vpack.c.b16 %v2460, %v2450
        %v3811 = vpack.c.b16 %v2461, %v2451
        %v3812 = vpack.c.b16 %v2462, %v2452
        %v3813 = vpack.c.b16 %v2463, %v2453
        %v3814 = vpack.c.b16 %v2464, %v2454
        %v3815 = vpack.c.b16 %v2465, %v2455
        %v3816 = vpack.c.b16 %v2466, %v2456
        %v3817 = vpack.c.b16 %v2467, %v2457
        %v3818 = vpack.c.b16 %v2478, %v2468
        %v3819 = vpack.c.b16 %v2479, %v2469
        %v3820 = vpack.c.b16 %v2480, %v2470
        %v3821 = vpack.c.b16 %v2481, %v2471
        %v3822 = vpack.c.b16 %v2482, %v2472
        %v3823 = vpack.c.b16 %v2483, %v2473
        %v3824 = vpack.c.b16 %v2484, %v2474
        %v3825 = vpack.c.b16 %v2485, %v2475
        %v3826 = vpack.c.b16 %v2486, %v2476
        %v3827 = vpack.c.b16 %v2487, %v2477
        %v3828 = vpack.c.b16 %v2498, %v2488
        %v3829 = vpack.c.b16 %v2499, %v2489
        %v3830 = vpack.c.b16 %v2500, %v2490
        %v3831 = vpack.c.b16 %v2501, %v2491
        %v3832 = vpack.c.b16 %v2502, %v2492
        %v3833 = vpack.c.b16 %v2503, %v2493
        %v3834 = vpack.c.b16 %v2504, %v2494
        %v3835 = vpack.c.b16 %v2505, %v2495
        %v3836 = vpack.c.b16 %v2506, %v2496
        %v3837 = vpack.c.b16 %v2507, %v2497
        %v3838 = vpack.c.b16 %v2518, %v2508
        %v3839 = vpack.c.b16 %v2519, %v2509
        %v3840 = vpack.c.b16 %v2520, %v2510
        %v3841 = vpack.c.b16 %v2521, %v2511
        %v3842 = vpack.c.b16 %v2522, %v2512
        %v3843 = vpack.c.b16 %v2523, %v2513
        %v3844 = vpack.c.b16 %v2524, %v2514
        %v3845 = vpack.c.b16 %v2525, %v2515
        %v3846 = vpack.c.b16 %v2526, %v2516
        %v3847 = vpack.c.b16 %v2527, %v2517
        %v3848 = vpack.c.b16 %v2538, %v2528
        %v3849 = vpack.c.b16 %v2539, %v2529
        %v3850 = vpack.c.b16 %v2540, %v2530
        %v3851 = vpack.c.b16 %v2541, %v2531
        %v3852 = vpack.c.b16 %v2542, %v2532
        %v3853 = vpack.c.b16 %v2543, %v2533
        %v3854 = vpack.c.b16 %v2544, %v2534
        %v3855 = vpack.c.b16 %v2545, %v2535
        %v3856 = vpack.c.b16 %v2546, %v2536
        %v3857 = vpack.c.b16 %v2547, %v2537
        %v3858 = vpack.c.b16 %v2558, %v2548
        %v3859 = vpack.c.b16 %v2559, %v2549
        %v3860 = vpack.c.b16 %v2560, %v2550
        %v3861 = vpack.c.b16 %v2561, %v2551
        %v3862 = vpack.c.b16 %v2562, %v2552
        %v3863 = vpack.c.b16 %v2563, %v2553
        %v3864 = vpack.c.b16 %v2564, %v2554
        %v3865 = vpack.c.b16 %v2565, %v2555
        %v3866 = vpack.c.b16 %v2566, %v2556
        %v3867 = vpack.c.b16 %v2567, %v2557
        %v3868 = vpack.c.b16 %v2578, %v2568
        %v3869 = vpack.c.b16 %v2579, %v2569
        %v3870 = vpack.c.b16 %v2580, %v2570
        %v3871 = vpack.c.b16 %v2581, %v2571
        %v3872 = vpack.c.b16 %v2582, %v2572
        %v3873 = vpack.c.b16 %v2583, %v2573
        %v3874 = vpack.c.b16 %v2584, %v2574
        %v3875 = vpack.c.b16 %v2585, %v2575
        %v3876 = vpack.c.b16 %v2586, %v2576
        %v3877 = vpack.c.b16 %v2587, %v2577
        %v3878 = vpack.c.b16 %v2598, %v2588
        %v3879 = vpack.c.b16 %v2599, %v2589
        %v3880 = vpack.c.b16 %v2600, %v2590
        %v3881 = vpack.c.b16 %v2601, %v2591
        %v3882 = vpack.c.b16 %v2602, %v2592
        %v3883 = vpack.c.b16 %v2603, %v2593
        %v3884 = vpack.c.b16 %v2604, %v2594
        %v3885 = vpack.c.b16 %v2605, %v2595
        %v3886 = vpack.c.b16 %v2606, %v2596
        %v3887 = vpack.c.b16 %v2607, %v2597
        %v3888 = vpack.c.b16 %v2618, %v2608
        %v3889 = vpack.c.b16 %v2619, %v2609
        %v3890 = vpack.c.b16 %v2620, %v2610
        %v3891 = vpack.c.b16 %v2621, %v2611
        %v3892 = vpack.c.b16 %v2622, %v2612
        %v3893 = vpack.c.b16 %v2623, %v2613
        %v3894 = vpack.c.b16 %v2624, %v2614
        %v3895 = vpack.c.b16 %v2625, %v2615
        %v3896 = vpack.c.b16 %v2626, %v2616
        %v3897 = vpack.c.b16 %v2627, %v2617
        %v3898 = vpack.c.b16 %v2638, %v2628
        %v3899 = vpack.c.b16 %v2639, %v2629
        %v3900 = vpack.c.b16 %v2640, %v2630
        %v3901 = vpack.c.b16 %v2641, %v2631
        %v3902 = vpack.c.b16 %v2642, %v2632
        %v3903 = vpack.c.b16 %v2643, %v2633
        %v3904 = vpack.c.b16 %v2644, %v2634
        %v3905 = vpack.c.b16 %v2645, %v2635
        %v3906 = vpack.c.b16 %v2646, %v2636
        %v3907 = vpack.c.b16 %v2647, %v2637
        %v3908 = vpack.c.b16 %v2658, %v2648
        %v3909 = vpack.c.b16 %v2659, %v2649
        %v3910 = vpack.c.b16 %v2660, %v2650
        %v3911 = vpack.c.b16 %v2661, %v2651
        %v3912 = vpack.c.b16 %v2662, %v2652
        %v3913 = vpack.c.b16 %v2663, %v2653
        %v3914 = vpack.c.b16 %v2664, %v2654
        %v3915 = vpack.c.b16 %v2665, %v2655
        %v3916 = vpack.c.b16 %v2666, %v2656
        %v3917 = vpack.c.b16 %v2667, %v2657
        %v3918 = vpack.c.b16 %v2678, %v2668
        %v3919 = vpack.c.b16 %v2679, %v2669
        %v3920 = vpack.c.b16 %v2680, %v2670
        %v3921 = vpack.c.b16 %v2681, %v2671
        %v3922 = vpack.c.b16 %v2682, %v2672
        %v3923 = vpack.c.b16 %v2683, %v2673
        %v3924 = vpack.c.b16 %v2684, %v2674
        %v3925 = vpack.c.b16 %v2685, %v2675
        %v3926 = vpack.c.b16 %v2686, %v2676
        %v3927 = vpack.c.b16 %v2687, %v2677
        %v3928 = vpack.c.b16 %v2698, %v2688
        %v3929 = vpack.c.b16 %v2699, %v2689
        %v3930 = vpack.c.b16 %v2700, %v2690
        %v3931 = vpack.c.b16 %v2701, %v2691
        %v3932 = vpack.c.b16 %v2702, %v2692
        %v3933 = vpack.c.b16 %v2703, %v2693
        %v3934 = vpack.c.b16 %v2704, %v2694
        %v3935 = vpack.c.b16 %v2705, %v2695
        %v3936 = vpack.c.b16 %v2706, %v2696
        %v3937 = vpack.c.b16 %v2707, %v2697
        %v3938 = vpack.c.b16 %v2718, %v2708
        %v3939 = vpack.c.b16 %v2719, %v2709
        %v3940 = vpack.c.b16 %v2720, %v2710
        %v3941 = vpack.c.b16 %v2721, %v2711
        %v3942 = vpack.c.b16 %v2722, %v2712
        %v3943 = vpack.c.b16 %v2723, %v2713
        %v3944 = vpack.c.b16 %v2724, %v2714
        %v3945 = vpack.c.b16 %v2725, %v2715
        %v3946 = vpack.c.b16 %v2726, %v2716
        %v3947 = vpack.c.b16 %v2727, %v2717
        %v3948 = vpack.c.b16 %v2738, %v2728
        %v3949 = vpack.c.b16 %v2739, %v2729
        %v3950 = vpack.c.b16 %v2740, %v2730
        %v3951 = vpack.c.b16 %v2741, %v2731
        %v3952 = vpack.c.b16 %v2742, %v2732
        %v3953 = vpack.c.b16 %v2743, %v2733
        %v3954 = vpack.c.b16 %v2744, %v2734
        %v3955 = vpack.c.b16 %v2745, %v2735
        %v3956 = vpack.c.b16 %v2746, %v2736
        %v3957 = vpack.c.b16 %v2747, %v2737
        %v3958 = vpack.c.b16 %v2758, %v2748
        %v3959 = vpack.c.b16 %v2759, %v2749
        %v3960 = vpack.c.b16 %v2760, %v2750
        %v3961 = vpack.c.b16 %v2761, %v2751
        %v3962 = vpack.c.b16 %v2762, %v2752
        %v3963 = vpack.c.b16 %v2763, %v2753
        %v3964 = vpack.c.b16 %v2764, %v2754
        %v3965 = vpack.c.b16 %v2765, %v2755
        %v3966 = vpack.c.b16 %v2766, %v2756
        %v3967 = vpack.c.b16 %v2767, %v2757
        %v3968 = vpack.c.b16 %v2778, %v2768
        %v3969 = vpack.c.b16 %v2779, %v2769
        %v3970 = vpack.c.b16 %v2780, %v2770
        %v3971 = vpack.c.b16 %v2781, %v2771
        %v3972 = vpack.c.b16 %v2782, %v2772
        %v3973 = vpack.c.b16 %v2783, %v2773
        %v3974 = vpack.c.b16 %v2784, %v2774
        %v3975 = vpack.c.b16 %v2785, %v2775
        %v3976 = vpack.c.b16 %v2786, %v2776
        %v3977 = vpack.c.b16 %v2787, %v2777
        %v3978 = vpack.c.b16 %v2798, %v2788
        %v3979 = vpack.c.b16 %v2799, %v2789
        %v3980 = vpack.c.b16 %v2800, %v2790
        %v3981 = vpack.c.b16 %v2801, %v2791
        %v3982 = vpack.c.b16 %v2802, %v2792
        %v3983 = vpack.c.b16 %v2803, %v2793
        %v3984 = vpack.c.b16 %v2804, %v2794
        %v3985 = vpack.c.b16 %v2805, %v2795
        %v3986 = vpack.c.b16 %v2806, %v2796
        %v3987 = vpack.c.b16 %v2807, %v2797
        %v3988 = vpack.c.b16 %v2818, %v2808
        %v3989 = vpack.c.b16 %v2819, %v2809
        %v3990 = vpack.c.b16 %v2820, %v2810
        %v3991 = vpack.c.b16 %v2821, %v2811
        %v3992 = vpack.c.b16 %v2822, %v2812
        %v3993 = vpack.c.b16 %v2823, %v2813
        %v3994 = vpack.c.b16 %v2824, %v2814
        %v3995 = vpack.c.b16 %v2825, %v2815
        %v3996 = vpack.c.b16 %v2826, %v2816
        %v3997 = vpack.c.b16 %v2827, %v2817
        %v3998 = vpack.c.b16 %v2838, %v2828
        %v3999 = vpack.c.b16 %v2839, %v2829
        %v4000 = vpack.c.b16 %v2840, %v2830
        %v4001 = vpack.c.b16 %v2841, %v2831
        %v4002 = vpack.c.b16 %v2842, %v2832
        %v4003 = vpack.c.b16 %v2843, %v2833
        %v4004 = vpack.c.b16 %v2844, %v2834
        %v4005 = vpack.c.b16 %v2845, %v2835
        %v4006 = vpack.c.b16 %v2846, %v2836
        %v4007 = vpack.c.b16 %v2847, %v2837
        %v4008 = vpack.c.b16 %v2858, %v2848
        %v4009 = vpack.c.b16 %v2859, %v2849
        %v4010 = vpack.c.b16 %v2860, %v2850
        %v4011 = vpack.c.b16 %v2861, %v2851
        %v4012 = vpack.c.b16 %v2862, %v2852
        %v4013 = vpack.c.b16 %v2863, %v2853
        %v4014 = vpack.c.b16 %v2864, %v2854
        %v4015 = vpack.c.b16 %v2865, %v2855
        %v4016 = vpack.c.b16 %v2866, %v2856
        %v4017 = vpack.c.b16 %v2867, %v2857
        %v4018 = vpack.c.b16 %v2878, %v2868
        %v4019 = vpack.c.b16 %v2879, %v2869
        %v4020 = vpack.c.b16 %v2880, %v2870
        %v4021 = vpack.c.b16 %v2881, %v2871
        %v4022 = vpack.c.b16 %v2882, %v2872
        %v4023 = vpack.c.b16 %v2883, %v2873
        %v4024 = vpack.c.b16 %v2884, %v2874
        %v4025 = vpack.c.b16 %v2885, %v2875
        %v4026 = vpack.c.b16 %v2886, %v2876
        %v4027 = vpack.c.b16 %v2887, %v2877
        %v4028 = vpack.c.b16 %v2898, %v2888
        %v4029 = vpack.c.b16 %v2899, %v2889
        %v4030 = vpack.c.b16 %v2900, %v2890
        %v4031 = vpack.c.b16 %v2901, %v2891
        %v4032 = vpack.c.b16 %v2902, %v2892
        %v4033 = vpack.c.b16 %v2903, %v2893
        %v4034 = vpack.c.b16 %v2904, %v2894
        %v4035 = vpack.c.b16 %v2905, %v2895
        %v4036 = vpack.c.b16 %v2906, %v2896
        %v4037 = vpack.c.b16 %v2907, %v2897
        %v4038 = vpack.c.b16 %v2918, %v2908
        %v4039 = vpack.c.b16 %v2919, %v2909
        %v4040 = vpack.c.b16 %v2920, %v2910
        %v4041 = vpack.c.b16 %v2921, %v2911
        %v4042 = vpack.c.b16 %v2922, %v2912
        %v4043 = vpack.c.b16 %v2923, %v2913
        %v4044 = vpack.c.b16 %v2924, %v2914
        %v4045 = vpack.c.b16 %v2925, %v2915
        %v4046 = vpack.c.b16 %v2926, %v2916
        %v4047 = vpack.c.b16 %v2927, %v2917
        %v4048 = vpack.c.b16 %v2938, %v2928
        %v4049 = vpack.c.b16 %v2939, %v2929
        %v4050 = vpack.c.b16 %v2940, %v2930
        %v4051 = vpack.c.b16 %v2941, %v2931
        %v4052 = vpack.c.b16 %v2942, %v2932
        %v4053 = vpack.c.b16 %v2943, %v2933
        %v4054 = vpack.c.b16 %v2944, %v2934
        %v4055 = vpack.c.b16 %v2945, %v2935
        %v4056 = vpack.c.b16 %v2946, %v2936
        %v4057 = vpack.c.b16 %v2947, %v2937
        %v4058 = vpack.c.b16 %v2958, %v2948
        %v4059 = vpack.c.b16 %v2959, %v2949
        %v4060 = vpack.c.b16 %v2960, %v2950
        %v4061 = vpack.c.b16 %v2961, %v2951
        %v4062 = vpack.c.b16 %v2962, %v2952
        %v4063 = vpack.c.b16 %v2963, %v2953
        %v4064 = vpack.c.b16 %v2964, %v2954
        %v4065 = vpack.c.b16 %v2965, %v2955
        %v4066 = vpack.c.b16 %v2966, %v2956
        %v4067 = vpack.c.b16 %v2967, %v2957
        %v4068 = vpack.c.b16 %v2978, %v2968
        %v4069 = vpack.c.b16 %v2979, %v2969
        %v4070 = vpack.c.b16 %v2980, %v2970
        %v4071 = vpack.c.b16 %v2981, %v2971
        %v4072 = vpack.c.b16 %v2982, %v2972
        %v4073 = vpack.c.b16 %v2983, %v2973
        %v4074 = vpack.c.b16 %v2984, %v2974
        %v4075 = vpack.c.b16 %v2985, %v2975
        %v4076 = vpack.c.b16 %v2986, %v2976
        %v4077 = vpack.c.b16 %v2987, %v2977
        %v4078 = vpack.c.b16 %v2998, %v2988
        %v4079 = vpack.c.b16 %v2999, %v2989
        %v4080 = vpack.c.b16 %v3000, %v2990
        %v4081 = vpack.c.b16 %v3001, %v2991
        %v4082 = vpack.c.b16 %v3002, %v2992
        %v4083 = vpack.c.b16 %v3003, %v2993
        %v4084 = vpack.c.b16 %v3004, %v2994
        %v4085 = vpack.c.b16 %v3005, %v2995
        %v4086 = vpack.c.b16 %v3006, %v2996
        %v4087 = vpack.c.b16 %v3007, %v2997
        %v4088 = vpack.c.b16 %v3018, %v3008
        %v4089 = vpack.c.b16 %v3019, %v3009
        %v4090 = vpack.c.b16 %v3020, %v3010
        %v4091 = vpack.c.b16 %v3021, %v3011
        %v4092 = vpack.c.b16 %v3022, %v3012
        %v4093 = vpack.c.b16 %v3023, %v3013
        %v4094 = vpack.c.b16 %v3024, %v3014
        %v4095 = vpack.c.b16 %v3025, %v3015
        %v4096 = vpack.c.b16 %v3026, %v3016
        %v4097 = vpack.c.b16 %v3027, %v3017
        %v4098 = vpack.c.b16 %v3038, %v3028
        %v4099 = vpack.c.b16 %v3039, %v3029
        %v4100 = vpack.c.b16 %v3040, %v3030
        %v4101 = vpack.c.b16 %v3041, %v3031
        %v4102 = vpack.c.b16 %v3042, %v3032
        %v4103 = vpack.c.b16 %v3043, %v3033
        %v4104 = vpack.c.b16 %v3044, %v3034
        %v4105 = vpack.c.b16 %v3045, %v3035
        %v4106 = vpack.c.b16 %v3046, %v3036
        %v4107 = vpack.c.b16 %v3047, %v3037
        %v4108 = vpack.c.b16 %v3058, %v3048
        %v4109 = vpack.c.b16 %v3059, %v3049
        %v4110 = vpack.c.b16 %v3060, %v3050
        %v4111 = vpack.c.b16 %v3061, %v3051
        %v4112 = vpack.c.b16 %v3062, %v3052
        %v4113 = vpack.c.b16 %v3063, %v3053
        %v4114 = vpack.c.b16 %v3064, %v3054
        %v4115 = vpack.c.b16 %v3065, %v3055
        %v4116 = vpack.c.b16 %v3066, %v3056
        %v4117 = vpack.c.b16 %v3067, %v3057
        %v4118 = vpack.c.b16 %v3078, %v3068
        %v4119 = vpack.c.b16 %v3079, %v3069
        %v4120 = vpack.c.b16 %v3080, %v3070
        %v4121 = vpack.c.b16 %v3081, %v3071
        %v4122 = vpack.c.b16 %v3082, %v3072
        %v4123 = vpack.c.b16 %v3083, %v3073
        %v4124 = vpack.c.b16 %v3084, %v3074
        %v4125 = vpack.c.b16 %v3085, %v3075
        %v4126 = vpack.c.b16 %v3086, %v3076
        %v4127 = vpack.c.b16 %v3087, %v3077
        %v4128 = vpack.c.b16 %v3098, %v3088
        %v4129 = vpack.c.b16 %v3099, %v3089
        %v4130 = vpack.c.b16 %v3100, %v3090
        %v4131 = vpack.c.b16 %v3101, %v3091
        %v4132 = vpack.c.b16 %v3102, %v3092
        %v4133 = vpack.c.b16 %v3103, %v3093
        %v4134 = vpack.c.b16 %v3104, %v3094
        %v4135 = vpack.c.b16 %v3105, %v3095
        %v4136 = vpack.c.b16 %v3106, %v3096
        %v4137 = vpack.c.b16 %v3107, %v3097
        %v4138 = vpack.c.b16 %v3118, %v3108
        %v4139 = vpack.c.b16 %v3119, %v3109
        %v4140 = vpack.c.b16 %v3120, %v3110
        %v4141 = vpack.c.b16 %v3121, %v3111
        %v4142 = vpack.c.b16 %v3122, %v3112
        %v4143 = vpack.c.b16 %v3123, %v3113
        %v4144 = vpack.c.b16 %v3124, %v3114
        %v4145 = vpack.c.b16 %v3125, %v3115
        %v4146 = vpack.c.b16 %v3126, %v3116
        %v4147 = vpack.c.b16 %v3127, %v3117
        %v4148 = vpack.c.b16 %v3138, %v3128
        %v4149 = vpack.c.b16 %v3139, %v3129
        %v4150 = vpack.c.b16 %v3140, %v3130
        %v4151 = vpack.c.b16 %v3141, %v3131
        %v4152 = vpack.c.b16 %v3142, %v3132
        %v4153 = vpack.c.b16 %v3143, %v3133
        %v4154 = vpack.c.b16 %v3144, %v3134
        %v4155 = vpack.c.b16 %v3145, %v3135
        %v4156 = vpack.c.b16 %v3146, %v3136
        %v4157 = vpack.c.b16 %v3147, %v3137
        %v4158 = vpack.c.b16 %v3158, %v3148
        %v4159 = vpack.c.b16 %v3159, %v3149
        %v4160 = vpack.c.b16 %v3160, %v3150
        %v4161 = vpack.c.b16 %v3161, %v3151
        %v4162 = vpack.c.b16 %v3162, %v3152
        %v4163 = vpack.c.b16 %v3163, %v3153
        %v4164 = vpack.c.b16 %v3164, %v3154
        %v4165 = vpack.c.b16 %v3165, %v3155
        %v4166 = vpack.c.b16 %v3166, %v3156
        %v4167 = vpack.c.b16 %v3167, %v3157
        %v4168 = vpack.c.b16 %v3178, %v3168
        %v4169 = vpack.c.b16 %v3179, %v3169
        %v4170 = vpack.c.b16 %v3180, %v3170
        %v4171 = vpack.c.b16 %v3181, %v3171
        %v4172 = vpack.c.b16 %v3182, %v3172
        %v4173 = vpack.c.b16 %v3183, %v3173
        %v4174 = vpack.c.b16 %v3184, %v3174
        %v4175 = vpack.c.b16 %v3185, %v3175
        %v4176 = vpack.c.b16 %v3186, %v3176
        %v4177 = vpack.c.b16 %v3187, %v3177
        %v4178 = vpack.c.b16 %v3198, %v3188
        %v4179 = vpack.c.b16 %v3199, %v3189
        %v4180 = vpack.c.b16 %v3200, %v3190
        %v4181 = vpack.c.b16 %v3201, %v3191
        %v4182 = vpack.c.b16 %v3202, %v3192
        %v4183 = vpack.c.b16 %v3203, %v3193
        %v4184 = vpack.c.b16 %v3204, %v3194
        %v4185 = vpack.c.b16 %v3205, %v3195
        %v4186 = vpack.c.b16 %v3206, %v3196
        %v4187 = vpack.c.b16 %v3207, %v3197
        %v4188 = vpack.c.b16 %v3218, %v3208
        %v4189 = vpack.c.b16 %v3219, %v3209
        %v4190 = vpack.c.b16 %v3220, %v3210
        %v4191 = vpack.c.b16 %v3221, %v3211
        %v4192 = vpack.c.b16 %v3222, %v3212
        %v4193 = vpack.c.b16 %v3223, %v3213
        %v4194 = vpack.c.b16 %v3224, %v3214
        %v4195 = vpack.c.b16 %v3225, %v3215
        %v4196 = vpack.c.b16 %v3226, %v3216
        %v4197 = vpack.c.b16 %v3227, %v3217
        %v4198 = vpack.c.b16 %v3238, %v3228
        %v4199 = vpack.c.b16 %v3239, %v3229
        %v4200 = vpack.c.b16 %v3240, %v3230
        %v4201 = vpack.c.b16 %v3241, %v3231
        %v4202 = vpack.c.b16 %v3242, %v3232
        %v4203 = vpack.c.b16 %v3243, %v3233
        %v4204 = vpack.c.b16 %v3244, %v3234
        %v4205 = vpack.c.b16 %v3245, %v3235
        %v4206 = vpack.c.b16 %v3246, %v3236
        %v4207 = vpack.c.b16 %v3247, %v3237
        %v4208 = vpack.c.b16 %v3258, %v3248
        %v4209 = vpack.c.b16 %v3259, %v3249
        %v4210 = vpack.c.b16 %v3260, %v3250
        %v4211 = vpack.c.b16 %v3261, %v3251
        %v4212 = vpack.c.b16 %v3262, %v3252
        %v4213 = vpack.c.b16 %v3263, %v3253
        %v4214 = vpack.c.b16 %v3264, %v3254
        %v4215 = vpack.c.b16 %v3265, %v3255
        %v4216 = vpack.c.b16 %v3266, %v3256
        %v4217 = vpack.c.b16 %v3267, %v3257
        %v4218 = vpack.c.b16 %v3278, %v3268
        %v4219 = vpack.c.b16 %v3279, %v3269
        %v4220 = vpack.c.b16 %v3280, %v3270
        %v4221 = vpack.c.b16 %v3281, %v3271
        %v4222 = vpack.c.b16 %v3282, %v3272
        %v4223 = vpack.c.b16 %v3283, %v3273
        %v4224 = vpack.c.b16 %v3284, %v3274
        %v4225 = vpack.c.b16 %v3285, %v3275
        %v4226 = vpack.c.b16 %v3286, %v3276
        %v4227 = vpack.c.b16 %v3287, %v3277
        %v4228 = vpack.c.b16 %v3298, %v3288
        %v4229 = vpack.c.b16 %v3299, %v3289
        %v4230 = vpack.c.b16 %v3300, %v3290
        %v4231 = vpack.c.b16 %v3301, %v3291
        %v4232 = vpack.c.b16 %v3302, %v3292
        %v4233 = vpack.c.b16 %v3303, %v3293
        %v4234 = vpack.c.b16 %v3304, %v3294
        %v4235 = vpack.c.b16 %v3305, %v3295
        %v4236 = vpack.c.b16 %v3306, %v3296
        %v4237 = vpack.c.b16 %v3307, %v3297
        %v4238 = vpack.c.b16 %v3318, %v3308
        %v4239 = vpack.c.b16 %v3319, %v3309
        %v4240 = vpack.c.b16 %v3320, %v3310
        %v4241 = vpack.c.b16 %v3321, %v3311
        %v4242 = vpack.c.b16 %v3322, %v3312
        %v4243 = vpack.c.b16 %v3323, %v3313
        %v4244 = vpack.c.b16 %v3324, %v3314
        %v4245 = vpack.c.b16 %v3325, %v3315
        %v4246 = vpack.c.b16 %v3326, %v3316
        %v4247 = vpack.c.b16 %v3327, %v3317
        %v4248 = vpack.c.b16 %v3338, %v3328
        %v4249 = vpack.c.b16 %v3339, %v3329
        %v4250 = vpack.c.b16 %v3340, %v3330
        %v4251 = vpack.c.b16 %v3341, %v3331
        %v4252 = vpack.c.b16 %v3342, %v3332
        %v4253 = vpack.c.b16 %v3343, %v3333
        %v4254 = vpack.c.b16 %v3344, %v3334
        %v4255 = vpack.c.b16 %v3345, %v3335
        %v4256 = vpack.c.b16 %v3346, %v3336
        %v4257 = vpack.c.b16 %v3347, %v3337
        %v4258 = vpack.c.b16 %v3358, %v3348
        %v4259 = vpack.c.b16 %v3359, %v3349
        %v4260 = vpack.c.b16 %v3360, %v3350
        %v4261 = vpack.c.b16 %v3361, %v3351
        %v4262 = vpack.c.b16 %v3362, %v3352
        %v4263 = vpack.c.b16 %v3363, %v3353
        %v4264 = vpack.c.b16 %v3364, %v3354
        %v4265 = vpack.c.b16 %v3365, %v3355
        %v4266 = vpack.c.b16 %v3366, %v3356
        %v4267 = vpack.c.b16 %v3367, %v3357
        %v4268 = vpack.c.b16 %v3378, %v3368
        %v4269 = vpack.c.b16 %v3379, %v3369
        %v4270 = vpack.c.b16 %v3380, %v3370
        %v4271 = vpack.c.b16 %v3381, %v3371
        %v4272 = vpack.c.b16 %v3382, %v3372
        %v4273 = vpack.c.b16 %v3383, %v3373
        %v4274 = vpack.c.b16 %v3384, %v3374
        %v4275 = vpack.c.b16 %v3385, %v3375
        %v4276 = vpack.c.b16 %v3386, %v3376
        %v4277 = vpack.c.b16 %v3387, %v3377
        %v4278 = vpack.c.b16 %v3398, %v3388
        %v4279 = vpack.c.b16 %v3399, %v3389
        %v4280 = vpack.c.b16 %v3400, %v3390
        %v4281 = vpack.c.b16 %v3401, %v3391
        %v4282 = vpack.c.b16 %v3402, %v3392
        %v4283 = vpack.c.b16 %v3403, %v3393
        %v4284 = vpack.c.b16 %v3404, %v3394
        %v4285 = vpack.c.b16 %v3405, %v3395
        %v4286 = vpack.c.b16 %v3406, %v3396
        %v4287 = vpack.c.b16 %v3407, %v3397
        %v4288 = vpack.c.b16 %v3418, %v3408
        %v4289 = vpack.c.b16 %v3419, %v3409
        %v4290 = vpack.c.b16 %v3420, %v3410
        %v4291 = vpack.c.b16 %v3421, %v3411
        %v4292 = vpack.c.b16 %v3422, %v3412
        %v4293 = vpack.c.b16 %v3423, %v3413
        %v4294 = vpack.c.b16 %v3424, %v3414
        %v4295 = vpack.c.b16 %v3425, %v3415
        %v4296 = vpack.c.b16 %v3426, %v3416
        %v4297 = vpack.c.b16 %v3427, %v3417
        %v4298 = vpack.c.b16 %v3438, %v3428
        %v4299 = vpack.c.b16 %v3439, %v3429
        %v4300 = vpack.c.b16 %v3440, %v3430
        %v4301 = vpack.c.b16 %v3441, %v3431
        %v4302 = vpack.c.b16 %v3442, %v3432
        %v4303 = vpack.c.b16 %v3443, %v3433
        %v4304 = vpack.c.b16 %v3444, %v3434
        %v4305 = vpack.c.b16 %v3445, %v3435
        %v4306 = vpack.c.b16 %v3446, %v3436
        %v4307 = vpack.c.b16 %v3447, %v3437
        %v4308 = vpack.c.b16 %v3458, %v3448
        %v4309 = vpack.c.b16 %v3459, %v3449
        %v4310 = vpack.c.b16 %v3460, %v3450
        %v4311 = vpack.c.b16 %v3461, %v3451
        %v4312 = vpack.c.b16 %v3462, %v3452
        %v4313 = vpack.c.b16 %v3463, %v3453
        %v4314 = vpack.c.b16 %v3464, %v3454
        %v4315 = vpack.c.b16 %v3465, %v3455
        %v4316 = vpack.c.b16 %v3466, %v3456
        %v4317 = vpack.c.b16 %v3467, %v3457
        %v4318 = vpack.c.b16 %v3478, %v3468
        %v4319 = vpack.c.b16 %v3479, %v3469
        %v4320 = vpack.c.b16 %v3480, %v3470
        %v4321 = vpack.c.b16 %v3481, %v3471
        %v4322 = vpack.c.b16 %v3482, %v3472
        %v4323 = vpack.c.b16 %v3483, %v3473
        %v4324 = vpack.c.b16 %v3484, %v3474
        %v4325 = vpack.c.b16 %v3485, %v3475
        %v4326 = vpack.c.b16 %v3486, %v3476
        %v4327 = vpack.c.b16 %v3487, %v3477
        %v4328 = vpack.c.b16 %v3498, %v3488
        %v4329 = vpack.c.b16 %v3499, %v3489
        %v4330 = vpack.c.b16 %v3500, %v3490
        %v4331 = vpack.c.b16 %v3501, %v3491
        %v4332 = vpack.c.b16 %v3502, %v3492
        %v4333 = vpack.c.b16 %v3503, %v3493
        %v4334 = vpack.c.b16 %v3504, %v3494
        %v4335 = vpack.c.b16 %v3505, %v3495
        %v4336 = vpack.c.b16 %v3506, %v3496
        %v4337 = vpack.c.b16 %v3507, %v3497
        %v4338 = vpack.c.b16 %v3518, %v3508
        %v4339 = vpack.c.b16 %v3519, %v3509
        %v4340 = vpack.c.b16 %v3520, %v3510
        %v4341 = vpack.c.b16 %v3521, %v3511
        %v4342 = vpack.c.b16 %v3522, %v3512
        %v4343 = vpack.c.b16 %v3523, %v3513
        %v4344 = vpack.c.b16 %v3524, %v3514
        %v4345 = vpack.c.b16 %v3525, %v3515
        %v4346 = vpack.c.b16 %v3526, %v3516
        %v4347 = vpack.c.b16 %v3527, %v3517
        %v4348 = vpack.c.b16 %v3538, %v3528
        %v4349 = vpack.c.b16 %v3539, %v3529
        %v4350 = vpack.c.b16 %v3540, %v3530
        %v4351 = vpack.c.b16 %v3541, %v3531
        %v4352 = vpack.c.b16 %v3542, %v3532
        %v4353 = vpack.c.b16 %v3543, %v3533
        %v4354 = vpack.c.b16 %v3544, %v3534
        %v4355 = vpack.c.b16 %v3545, %v3535
        %v4356 = vpack.c.b16 %v3546, %v3536
        %v4357 = vpack.c.b16 %v3547, %v3537
        %v4358 = vpack.c.b16 %v3558, %v3548
        %v4359 = vpack.c.b16 %v3559, %v3549
        %v4360 = vpack.c.b16 %v3560, %v3550
        %v4361 = vpack.c.b16 %v3561, %v3551
        %v4362 = vpack.c.b16 %v3562, %v3552
        %v4363 = vpack.c.b16 %v3563, %v3553
        %v4364 = vpack.c.b16 %v3564, %v3554
        %v4365 = vpack.c.b16 %v3565, %v3555
        %v4366 = vpack.c.b16 %v3566, %v3556
        %v4367 = vpack.c.b16 %v3567, %v3557
        %5168 = vmatprep.subr.bf16.mxu0 %v3569
        %5169 = vmatpush1.bf16.msra.mxu0 %v3568
        %5170 = vmatprep.subr.bf16.mxu0 %v3579
        %5171 = vmatpush1.bf16.msra.mxu0 %v3578
        %5172 = vmatprep.subr.bf16.mxu0 %v3589
        %5173 = vmatpush1.bf16.msra.mxu0 %v3588
        %5174 = vmatprep.subr.bf16.mxu0 %v3599
        %5175 = vmatpush1.bf16.msra.mxu0 %v3598
        %5176 = vmatprep.subr.bf16.mxu0 %v3609
        %5177 = vmatpush1.bf16.msra.mxu0 %v3608
        %5178 = vmatprep.subr.bf16.mxu0 %v3619
        %5179 = vmatpush1.bf16.msra.mxu0 %v3618
        %5180 = vmatprep.subr.bf16.mxu0 %v3629
        %5181 = vmatpush1.bf16.msra.mxu0 %v3628
        %5182 = vmatprep.subr.bf16.mxu0 %v3639
        %5183 = vmatpush1.bf16.msra.mxu0 %v3638
        %5184 = vmatprep.subr.bf16.mxu0 %v3649
        %5185 = vmatpush1.bf16.msra.mxu0 %v3648
        %5186 = vmatprep.subr.bf16.mxu0 %v3659
        %5187 = vmatpush1.bf16.msra.mxu0 %v3658
        %5188 = vmatprep.subr.bf16.mxu0 %v3669
        %5189 = vmatpush1.bf16.msra.mxu0 %v3668
        %5190 = vmatprep.subr.bf16.mxu0 %v3679
        %5191 = vmatpush1.bf16.msra.mxu0 %v3678
        %5192 = vmatprep.subr.bf16.mxu0 %v3689
        %5193 = vmatpush1.bf16.msra.mxu0 %v3688
        %5194 = vmatprep.subr.bf16.mxu0 %v3699
        %5195 = vmatpush1.bf16.msra.mxu0 %v3698
        %5196 = vmatprep.subr.bf16.mxu0 %v3709
        %5197 = vmatpush1.bf16.msra.mxu0 %v3708
        %5198 = vmatprep.subr.bf16.mxu0 %v3719
        %5199 = vmatpush1.bf16.msra.mxu0 %v3718
        %5200 = vmatprep.mubr.bf16.mxu0 %v1149
        %5201 = vmatmul.mubr.bf16.gmra.mrb[0].mxu0 %v1148
        %v5202 = vpop.f32.mrb[0].mxu0
        %v5203 = vadd.f32 %v1086, %v5202
        %v5204 = vpop.f32.mrb[0].mxu0
        %v5205 = vadd.f32 %v1090, %v5204
        %v5206 = vpop.f32.mrb[0].mxu0
        %v5207 = vpop.f32.mrb[0].mxu0
        %5208 = vdwg.mxu0
        %5209 = vmatprep.subr.bf16.mxu0 %v3729
        %5210 = vmatpush1.bf16.msra.mxu0 %v3728
        %5211 = vmatprep.subr.bf16.mxu0 %v3739
        %5212 = vmatpush1.bf16.msra.mxu0 %v3738
        %5213 = vmatprep.subr.bf16.mxu0 %v3749
        %5214 = vmatpush1.bf16.msra.mxu0 %v3748
        %5215 = vmatprep.subr.bf16.mxu0 %v3759
        %5216 = vmatpush1.bf16.msra.mxu0 %v3758
        %5217 = vmatprep.subr.bf16.mxu0 %v3769
        %5218 = vmatpush1.bf16.msra.mxu0 %v3768
        %5219 = vmatprep.subr.bf16.mxu0 %v3779
        %5220 = vmatpush1.bf16.msra.mxu0 %v3778
        %5221 = vmatprep.subr.bf16.mxu0 %v3789
        %5222 = vmatpush1.bf16.msra.mxu0 %v3788
        %5223 = vmatprep.subr.bf16.mxu0 %v3799
        %5224 = vmatpush1.bf16.msra.mxu0 %v3798
        %5225 = vmatprep.subr.bf16.mxu0 %v3809
        %5226 = vmatpush1.bf16.msra.mxu0 %v3808
        %5227 = vmatprep.subr.bf16.mxu0 %v3819
        %5228 = vmatpush1.bf16.msra.mxu0 %v3818
        %5229 = vmatprep.subr.bf16.mxu0 %v3829
        %5230 = vmatpush1.bf16.msra.mxu0 %v3828
        %5231 = vmatprep.subr.bf16.mxu0 %v3839
        %5232 = vmatpush1.bf16.msra.mxu0 %v3838
        %5233 = vmatprep.subr.bf16.mxu0 %v3849
        %5234 = vmatpush1.bf16.msra.mxu0 %v3848
        %5235 = vmatprep.subr.bf16.mxu0 %v3859
        %5236 = vmatpush1.bf16.msra.mxu0 %v3858
        %5237 = vmatprep.subr.bf16.mxu0 %v3869
        %5238 = vmatpush1.bf16.msra.mxu0 %v3868
        %5239 = vmatprep.subr.bf16.mxu0 %v3879
        %5240 = vmatpush1.bf16.msra.mxu0 %v3878
        %5241 = vmatprep.mubr.bf16.mxu0 %v1151
        %5242 = vmatmul.mubr.bf16.gmra.mrb[0].mxu0 %v1150
        %v5243 = vpop.f32.mrb[0].mxu0
        %v5244 = vadd.f32 %v5203, %v5243
        %v5245 = vpop.f32.mrb[0].mxu0
        %v5246 = vadd.f32 %v5205, %v5245
        %v5247 = vpop.f32.mrb[0].mxu0
        %v5248 = vpop.f32.mrb[0].mxu0
        %5249 = vdwg.mxu0
        %5250 = vmatprep.subr.bf16.mxu0 %v3889
        %5251 = vmatpush1.bf16.msra.mxu0 %v3888
        %5252 = vmatprep.subr.bf16.mxu0 %v3899
        %5253 = vmatpush1.bf16.msra.mxu0 %v3898
        %5254 = vmatprep.subr.bf16.mxu0 %v3909
        %5255 = vmatpush1.bf16.msra.mxu0 %v3908
        %5256 = vmatprep.subr.bf16.mxu0 %v3919
        %5257 = vmatpush1.bf16.msra.mxu0 %v3918
        %5258 = vmatprep.subr.bf16.mxu0 %v3929
        %5259 = vmatpush1.bf16.msra.mxu0 %v3928
        %5260 = vmatprep.subr.bf16.mxu0 %v3939
        %5261 = vmatpush1.bf16.msra.mxu0 %v3938
        %5262 = vmatprep.subr.bf16.mxu0 %v3949
        %5263 = vmatpush1.bf16.msra.mxu0 %v3948
        %5264 = vmatprep.subr.bf16.mxu0 %v3959
        %5265 = vmatpush1.bf16.msra.mxu0 %v3958
        %5266 = vmatprep.subr.bf16.mxu0 %v3969
        %5267 = vmatpush1.bf16.msra.mxu0 %v3968
        %5268 = vmatprep.subr.bf16.mxu0 %v3979
        %5269 = vmatpush1.bf16.msra.mxu0 %v3978
        %5270 = vmatprep.subr.bf16.mxu0 %v3989
        %5271 = vmatpush1.bf16.msra.mxu0 %v3988
        %5272 = vmatprep.subr.bf16.mxu0 %v3999
        %5273 = vmatpush1.bf16.msra.mxu0 %v3998
        %5274 = vmatprep.subr.bf16.mxu0 %v4009
        %5275 = vmatpush1.bf16.msra.mxu0 %v4008
        %5276 = vmatprep.subr.bf16.mxu0 %v4019
        %5277 = vmatpush1.bf16.msra.mxu0 %v4018
        %5278 = vmatprep.subr.bf16.mxu0 %v4029
        %5279 = vmatpush1.bf16.msra.mxu0 %v4028
        %5280 = vmatprep.subr.bf16.mxu0 %v4039
        %5281 = vmatpush1.bf16.msra.mxu0 %v4038
        %5282 = vmatprep.mubr.bf16.mxu0 %v1153
        %5283 = vmatmul.mubr.bf16.gmra.mrb[0].mxu0 %v1152
        %v5284 = vpop.f32.mrb[0].mxu0
        %v5285 = vadd.f32 %v5244, %v5284
        %v5286 = vpop.f32.mrb[0].mxu0
        %v5287 = vadd.f32 %v5246, %v5286
        %v5288 = vpop.f32.mrb[0].mxu0
        %v5289 = vpop.f32.mrb[0].mxu0
        %5290 = vdwg.mxu0
        %5291 = vmatprep.subr.bf16.mxu0 %v4049
        %5292 = vmatpush1.bf16.msra.mxu0 %v4048
        %5293 = vmatprep.subr.bf16.mxu0 %v4059
        %5294 = vmatpush1.bf16.msra.mxu0 %v4058
        %5295 = vmatprep.subr.bf16.mxu0 %v4069
        %5296 = vmatpush1.bf16.msra.mxu0 %v4068
        %5297 = vmatprep.subr.bf16.mxu0 %v4079
        %5298 = vmatpush1.bf16.msra.mxu0 %v4078
        %5299 = vmatprep.subr.bf16.mxu0 %v4089
        %5300 = vmatpush1.bf16.msra.mxu0 %v4088
        %5301 = vmatprep.subr.bf16.mxu0 %v4099
        %5302 = vmatpush1.bf16.msra.mxu0 %v4098
        %5303 = vmatprep.subr.bf16.mxu0 %v4109
        %5304 = vmatpush1.bf16.msra.mxu0 %v4108
        %5305 = vmatprep.subr.bf16.mxu0 %v4119
        %5306 = vmatpush1.bf16.msra.mxu0 %v4118
        %5307 = vmatprep.subr.bf16.mxu0 %v4129
        %5308 = vmatpush1.bf16.msra.mxu0 %v4128
        %5309 = vmatprep.subr.bf16.mxu0 %v4139
        %5310 = vmatpush1.bf16.msra.mxu0 %v4138
        %5311 = vmatprep.subr.bf16.mxu0 %v4149
        %5312 = vmatpush1.bf16.msra.mxu0 %v4148
        %5313 = vmatprep.subr.bf16.mxu0 %v4159
        %5314 = vmatpush1.bf16.msra.mxu0 %v4158
        %5315 = vmatprep.subr.bf16.mxu0 %v4169
        %5316 = vmatpush1.bf16.msra.mxu0 %v4168
        %5317 = vmatprep.subr.bf16.mxu0 %v4179
        %5318 = vmatpush1.bf16.msra.mxu0 %v4178
        %5319 = vmatprep.subr.bf16.mxu0 %v4189
        %5320 = vmatpush1.bf16.msra.mxu0 %v4188
        %5321 = vmatprep.subr.bf16.mxu0 %v4199
        %5322 = vmatpush1.bf16.msra.mxu0 %v4198
        %5323 = vmatprep.mubr.bf16.mxu0 %v1155
        %5324 = vmatmul.mubr.bf16.gmra.mrb[0].mxu0 %v1154
        %v5325 = vpop.f32.mrb[0].mxu0
        %v5326 = vadd.f32 %v5285, %v5325
        %v5327 = vpop.f32.mrb[0].mxu0
        %v5328 = vadd.f32 %v5287, %v5327
        %v5329 = vpop.f32.mrb[0].mxu0
        %v5330 = vpop.f32.mrb[0].mxu0
        %5331 = vdwg.mxu0
        %5332 = vmatprep.subr.bf16.mxu0 %v4209
        %5333 = vmatpush1.bf16.msra.mxu0 %v4208
        %5334 = vmatprep.subr.bf16.mxu0 %v4219
        %5335 = vmatpush1.bf16.msra.mxu0 %v4218
        %5336 = vmatprep.subr.bf16.mxu0 %v4229
        %5337 = vmatpush1.bf16.msra.mxu0 %v4228
        %5338 = vmatprep.subr.bf16.mxu0 %v4239
        %5339 = vmatpush1.bf16.msra.mxu0 %v4238
        %5340 = vmatprep.subr.bf16.mxu0 %v4249
        %5341 = vmatpush1.bf16.msra.mxu0 %v4248
        %5342 = vmatprep.subr.bf16.mxu0 %v4259
        %5343 = vmatpush1.bf16.msra.mxu0 %v4258
        %5344 = vmatprep.subr.bf16.mxu0 %v4269
        %5345 = vmatpush1.bf16.msra.mxu0 %v4268
        %5346 = vmatprep.subr.bf16.mxu0 %v4279
        %5347 = vmatpush1.bf16.msra.mxu0 %v4278
        %5348 = vmatprep.subr.bf16.mxu0 %v4289
        %5349 = vmatpush1.bf16.msra.mxu0 %v4288
        %5350 = vmatprep.subr.bf16.mxu0 %v4299
        %5351 = vmatpush1.bf16.msra.mxu0 %v4298
        %5352 = vmatprep.subr.bf16.mxu0 %v4309
        %5353 = vmatpush1.bf16.msra.mxu0 %v4308
        %5354 = vmatprep.subr.bf16.mxu0 %v4319
        %5355 = vmatpush1.bf16.msra.mxu0 %v4318
        %5356 = vmatprep.subr.bf16.mxu0 %v4329
        %5357 = vmatpush1.bf16.msra.mxu0 %v4328
        %5358 = vmatprep.subr.bf16.mxu0 %v4339
        %5359 = vmatpush1.bf16.msra.mxu0 %v4338
        %5360 = vmatprep.subr.bf16.mxu0 %v4349
        %5361 = vmatpush1.bf16.msra.mxu0 %v4348
        %5362 = vmatprep.subr.bf16.mxu0 %v4359
        %5363 = vmatpush1.bf16.msra.mxu0 %v4358
        %5364 = vmatprep.mubr.bf16.mxu0 %v1157
        %5365 = vmatmul.mubr.bf16.gmra.mrb[0].mxu0 %v1156
        %v5366 = vpop.f32.mrb[0].mxu0
        %v5367 = vadd.f32 %v5326, %v5366
        %v5368 = vpop.f32.mrb[0].mxu0
        %v5369 = vadd.f32 %v5328, %v5368
        %v5370 = vpop.f32.mrb[0].mxu0
        %v5371 = vpop.f32.mrb[0].mxu0
        %5372 = vdwg.mxu0
        %5373 = vmatprep.subr.bf16.mxu0 %v3571
        %5374 = vmatpush1.bf16.msra.mxu0 %v3570
        %5375 = vmatprep.subr.bf16.mxu0 %v3581
        %5376 = vmatpush1.bf16.msra.mxu0 %v3580
        %5377 = vmatprep.subr.bf16.mxu0 %v3591
        %5378 = vmatpush1.bf16.msra.mxu0 %v3590
        %5379 = vmatprep.subr.bf16.mxu0 %v3601
        %5380 = vmatpush1.bf16.msra.mxu0 %v3600
        %5381 = vmatprep.subr.bf16.mxu0 %v3611
        %5382 = vmatpush1.bf16.msra.mxu0 %v3610
        %5383 = vmatprep.subr.bf16.mxu0 %v3621
        %5384 = vmatpush1.bf16.msra.mxu0 %v3620
        %5385 = vmatprep.subr.bf16.mxu0 %v3631
        %5386 = vmatpush1.bf16.msra.mxu0 %v3630
        %5387 = vmatprep.subr.bf16.mxu0 %v3641
        %5388 = vmatpush1.bf16.msra.mxu0 %v3640
        %5389 = vmatprep.subr.bf16.mxu0 %v3651
        %5390 = vmatpush1.bf16.msra.mxu0 %v3650
        %5391 = vmatprep.subr.bf16.mxu0 %v3661
        %5392 = vmatpush1.bf16.msra.mxu0 %v3660
        %5393 = vmatprep.subr.bf16.mxu0 %v3671
        %5394 = vmatpush1.bf16.msra.mxu0 %v3670
        %5395 = vmatprep.subr.bf16.mxu0 %v3681
        %5396 = vmatpush1.bf16.msra.mxu0 %v3680
        %5397 = vmatprep.subr.bf16.mxu0 %v3691
        %5398 = vmatpush1.bf16.msra.mxu0 %v3690
        %5399 = vmatprep.subr.bf16.mxu0 %v3701
        %5400 = vmatpush1.bf16.msra.mxu0 %v3700
        %5401 = vmatprep.subr.bf16.mxu0 %v3711
        %5402 = vmatpush1.bf16.msra.mxu0 %v3710
        %5403 = vmatprep.subr.bf16.mxu0 %v3721
        %5404 = vmatpush1.bf16.msra.mxu0 %v3720
        %5405 = vmatprep.mubr.bf16.mxu0 %v1149
        %5406 = vmatmul.mubr.bf16.gmra.mrb[0].mxu0 %v1148
        %v5407 = vpop.f32.mrb[0].mxu0
        %v5408 = vadd.f32 %v1094, %v5407
        %v5409 = vpop.f32.mrb[0].mxu0
        %v5410 = vadd.f32 %v1098, %v5409
        %v5411 = vpop.f32.mrb[0].mxu0
        %v5412 = vpop.f32.mrb[0].mxu0
        %5413 = vdwg.mxu0
        %5414 = vmatprep.subr.bf16.mxu0 %v3731
        %5415 = vmatpush1.bf16.msra.mxu0 %v3730
        %5416 = vmatprep.subr.bf16.mxu0 %v3741
        %5417 = vmatpush1.bf16.msra.mxu0 %v3740
        %5418 = vmatprep.subr.bf16.mxu0 %v3751
        %5419 = vmatpush1.bf16.msra.mxu0 %v3750
        %5420 = vmatprep.subr.bf16.mxu0 %v3761
        %5421 = vmatpush1.bf16.msra.mxu0 %v3760
        %5422 = vmatprep.subr.bf16.mxu0 %v3771
        %5423 = vmatpush1.bf16.msra.mxu0 %v3770
        %5424 = vmatprep.subr.bf16.mxu0 %v3781
        %5425 = vmatpush1.bf16.msra.mxu0 %v3780
        %5426 = vmatprep.subr.bf16.mxu0 %v3791
        %5427 = vmatpush1.bf16.msra.mxu0 %v3790
        %5428 = vmatprep.subr.bf16.mxu0 %v3801
        %5429 = vmatpush1.bf16.msra.mxu0 %v3800
        %5430 = vmatprep.subr.bf16.mxu0 %v3811
        %5431 = vmatpush1.bf16.msra.mxu0 %v3810
        %5432 = vmatprep.subr.bf16.mxu0 %v3821
        %5433 = vmatpush1.bf16.msra.mxu0 %v3820
        %5434 = vmatprep.subr.bf16.mxu0 %v3831
        %5435 = vmatpush1.bf16.msra.mxu0 %v3830
        %5436 = vmatprep.subr.bf16.mxu0 %v3841
        %5437 = vmatpush1.bf16.msra.mxu0 %v3840
        %5438 = vmatprep.subr.bf16.mxu0 %v3851
        %5439 = vmatpush1.bf16.msra.mxu0 %v3850
        %5440 = vmatprep.subr.bf16.mxu0 %v3861
        %5441 = vmatpush1.bf16.msra.mxu0 %v3860
        %5442 = vmatprep.subr.bf16.mxu0 %v3871
        %5443 = vmatpush1.bf16.msra.mxu0 %v3870
        %5444 = vmatprep.subr.bf16.mxu0 %v3881
        %5445 = vmatpush1.bf16.msra.mxu0 %v3880
        %5446 = vmatprep.mubr.bf16.mxu0 %v1151
        %5447 = vmatmul.mubr.bf16.gmra.mrb[0].mxu0 %v1150
        %v5448 = vpop.f32.mrb[0].mxu0
        %v5449 = vadd.f32 %v5408, %v5448
        %v5450 = vpop.f32.mrb[0].mxu0
        %v5451 = vadd.f32 %v5410, %v5450
        %v5452 = vpop.f32.mrb[0].mxu0
        %v5453 = vpop.f32.mrb[0].mxu0
        %5454 = vdwg.mxu0
        %5455 = vmatprep.subr.bf16.mxu0 %v3891
        %5456 = vmatpush1.bf16.msra.mxu0 %v3890
        %5457 = vmatprep.subr.bf16.mxu0 %v3901
        %5458 = vmatpush1.bf16.msra.mxu0 %v3900
        %5459 = vmatprep.subr.bf16.mxu0 %v3911
        %5460 = vmatpush1.bf16.msra.mxu0 %v3910
        %5461 = vmatprep.subr.bf16.mxu0 %v3921
        %5462 = vmatpush1.bf16.msra.mxu0 %v3920
        %5463 = vmatprep.subr.bf16.mxu0 %v3931
        %5464 = vmatpush1.bf16.msra.mxu0 %v3930
        %5465 = vmatprep.subr.bf16.mxu0 %v3941
        %5466 = vmatpush1.bf16.msra.mxu0 %v3940
        %5467 = vmatprep.subr.bf16.mxu0 %v3951
        %5468 = vmatpush1.bf16.msra.mxu0 %v3950
        %5469 = vmatprep.subr.bf16.mxu0 %v3961
        %5470 = vmatpush1.bf16.msra.mxu0 %v3960
        %5471 = vmatprep.subr.bf16.mxu0 %v3971
        %5472 = vmatpush1.bf16.msra.mxu0 %v3970
        %5473 = vmatprep.subr.bf16.mxu0 %v3981
        %5474 = vmatpush1.bf16.msra.mxu0 %v3980
        %5475 = vmatprep.subr.bf16.mxu0 %v3991
        %5476 = vmatpush1.bf16.msra.mxu0 %v3990
        %5477 = vmatprep.subr.bf16.mxu0 %v4001
        %5478 = vmatpush1.bf16.msra.mxu0 %v4000
        %5479 = vmatprep.subr.bf16.mxu0 %v4011
        %5480 = vmatpush1.bf16.msra.mxu0 %v4010
        %5481 = vmatprep.subr.bf16.mxu0 %v4021
        %5482 = vmatpush1.bf16.msra.mxu0 %v4020
        %5483 = vmatprep.subr.bf16.mxu0 %v4031
        %5484 = vmatpush1.bf16.msra.mxu0 %v4030
        %5485 = vmatprep.subr.bf16.mxu0 %v4041
        %5486 = vmatpush1.bf16.msra.mxu0 %v4040
        %5487 = vmatprep.mubr.bf16.mxu0 %v1153
        %5488 = vmatmul.mubr.bf16.gmra.mrb[0].mxu0 %v1152
        %v5489 = vpop.f32.mrb[0].mxu0
        %v5490 = vadd.f32 %v5449, %v5489
        %v5491 = vpop.f32.mrb[0].mxu0
        %v5492 = vadd.f32 %v5451, %v5491
        %v5493 = vpop.f32.mrb[0].mxu0
        %v5494 = vpop.f32.mrb[0].mxu0
        %5495 = vdwg.mxu0
        %5496 = vmatprep.subr.bf16.mxu0 %v4051
        %5497 = vmatpush1.bf16.msra.mxu0 %v4050
        %5498 = vmatprep.subr.bf16.mxu0 %v4061
        %5499 = vmatpush1.bf16.msra.mxu0 %v4060
        %5500 = vmatprep.subr.bf16.mxu0 %v4071
        %5501 = vmatpush1.bf16.msra.mxu0 %v4070
        %5502 = vmatprep.subr.bf16.mxu0 %v4081
        %5503 = vmatpush1.bf16.msra.mxu0 %v4080
        %5504 = vmatprep.subr.bf16.mxu0 %v4091
        %5505 = vmatpush1.bf16.msra.mxu0 %v4090
        %5506 = vmatprep.subr.bf16.mxu0 %v4101
        %5507 = vmatpush1.bf16.msra.mxu0 %v4100
        %5508 = vmatprep.subr.bf16.mxu0 %v4111
        %5509 = vmatpush1.bf16.msra.mxu0 %v4110
        %5510 = vmatprep.subr.bf16.mxu0 %v4121
        %5511 = vmatpush1.bf16.msra.mxu0 %v4120
        %5512 = vmatprep.subr.bf16.mxu0 %v4131
        %5513 = vmatpush1.bf16.msra.mxu0 %v4130
        %5514 = vmatprep.subr.bf16.mxu0 %v4141
        %5515 = vmatpush1.bf16.msra.mxu0 %v4140
        %5516 = vmatprep.subr.bf16.mxu0 %v4151
        %5517 = vmatpush1.bf16.msra.mxu0 %v4150
        %5518 = vmatprep.subr.bf16.mxu0 %v4161
        %5519 = vmatpush1.bf16.msra.mxu0 %v4160
        %5520 = vmatprep.subr.bf16.mxu0 %v4171
        %5521 = vmatpush1.bf16.msra.mxu0 %v4170
        %5522 = vmatprep.subr.bf16.mxu0 %v4181
        %5523 = vmatpush1.bf16.msra.mxu0 %v4180
        %5524 = vmatprep.subr.bf16.mxu0 %v4191
        %5525 = vmatpush1.bf16.msra.mxu0 %v4190
        %5526 = vmatprep.subr.bf16.mxu0 %v4201
        %5527 = vmatpush1.bf16.msra.mxu0 %v4200
        %5528 = vmatprep.mubr.bf16.mxu0 %v1155
        %5529 = vmatmul.mubr.bf16.gmra.mrb[0].mxu0 %v1154
        %v5530 = vpop.f32.mrb[0].mxu0
        %v5531 = vadd.f32 %v5490, %v5530
        %v5532 = vpop.f32.mrb[0].mxu0
        %v5533 = vadd.f32 %v5492, %v5532
        %v5534 = vpop.f32.mrb[0].mxu0
        %v5535 = vpop.f32.mrb[0].mxu0
        %5536 = vdwg.mxu0
        %5537 = vmatprep.subr.bf16.mxu0 %v4211
        %5538 = vmatpush1.bf16.msra.mxu0 %v4210
        %5539 = vmatprep.subr.bf16.mxu0 %v4221
        %5540 = vmatpush1.bf16.msra.mxu0 %v4220
        %5541 = vmatprep.subr.bf16.mxu0 %v4231
        %5542 = vmatpush1.bf16.msra.mxu0 %v4230
        %5543 = vmatprep.subr.bf16.mxu0 %v4241
        %5544 = vmatpush1.bf16.msra.mxu0 %v4240
        %5545 = vmatprep.subr.bf16.mxu0 %v4251
        %5546 = vmatpush1.bf16.msra.mxu0 %v4250
        %5547 = vmatprep.subr.bf16.mxu0 %v4261
        %5548 = vmatpush1.bf16.msra.mxu0 %v4260
        %5549 = vmatprep.subr.bf16.mxu0 %v4271
        %5550 = vmatpush1.bf16.msra.mxu0 %v4270
        %5551 = vmatprep.subr.bf16.mxu0 %v4281
        %5552 = vmatpush1.bf16.msra.mxu0 %v4280
        %5553 = vmatprep.subr.bf16.mxu0 %v4291
        %5554 = vmatpush1.bf16.msra.mxu0 %v4290
        %5555 = vmatprep.subr.bf16.mxu0 %v4301
        %5556 = vmatpush1.bf16.msra.mxu0 %v4300
        %5557 = vmatprep.subr.bf16.mxu0 %v4311
        %5558 = vmatpush1.bf16.msra.mxu0 %v4310
        %5559 = vmatprep.subr.bf16.mxu0 %v4321
        %5560 = vmatpush1.bf16.msra.mxu0 %v4320
        %5561 = vmatprep.subr.bf16.mxu0 %v4331
        %5562 = vmatpush1.bf16.msra.mxu0 %v4330
        %5563 = vmatprep.subr.bf16.mxu0 %v4341
        %5564 = vmatpush1.bf16.msra.mxu0 %v4340
        %5565 = vmatprep.subr.bf16.mxu0 %v4351
        %5566 = vmatpush1.bf16.msra.mxu0 %v4350
        %5567 = vmatprep.subr.bf16.mxu0 %v4361
        %5568 = vmatpush1.bf16.msra.mxu0 %v4360
        %5569 = vmatprep.mubr.bf16.mxu0 %v1157
        %5570 = vmatmul.mubr.bf16.gmra.mrb[0].mxu0 %v1156
        %v5571 = vpop.f32.mrb[0].mxu0
        %v5572 = vadd.f32 %v5531, %v5571
        %v5573 = vpop.f32.mrb[0].mxu0
        %v5574 = vadd.f32 %v5533, %v5573
        %v5575 = vpop.f32.mrb[0].mxu0
        %v5576 = vpop.f32.mrb[0].mxu0
        %5577 = vdwg.mxu0
        %5578 = vmatprep.subr.bf16.mxu0 %v3573
        %5579 = vmatpush1.bf16.msra.mxu0 %v3572
        %5580 = vmatprep.subr.bf16.mxu0 %v3583
        %5581 = vmatpush1.bf16.msra.mxu0 %v3582
        %5582 = vmatprep.subr.bf16.mxu0 %v3593
        %5583 = vmatpush1.bf16.msra.mxu0 %v3592
        %5584 = vmatprep.subr.bf16.mxu0 %v3603
        %5585 = vmatpush1.bf16.msra.mxu0 %v3602
        %5586 = vmatprep.subr.bf16.mxu0 %v3613
        %5587 = vmatpush1.bf16.msra.mxu0 %v3612
        %5588 = vmatprep.subr.bf16.mxu0 %v3623
        %5589 = vmatpush1.bf16.msra.mxu0 %v3622
        %5590 = vmatprep.subr.bf16.mxu0 %v3633
        %5591 = vmatpush1.bf16.msra.mxu0 %v3632
        %5592 = vmatprep.subr.bf16.mxu0 %v3643
        %5593 = vmatpush1.bf16.msra.mxu0 %v3642
        %5594 = vmatprep.subr.bf16.mxu0 %v3653
        %5595 = vmatpush1.bf16.msra.mxu0 %v3652
        %5596 = vmatprep.subr.bf16.mxu0 %v3663
        %5597 = vmatpush1.bf16.msra.mxu0 %v3662
        %5598 = vmatprep.subr.bf16.mxu0 %v3673
        %5599 = vmatpush1.bf16.msra.mxu0 %v3672
        %5600 = vmatprep.subr.bf16.mxu0 %v3683
        %5601 = vmatpush1.bf16.msra.mxu0 %v3682
        %5602 = vmatprep.subr.bf16.mxu0 %v3693
        %5603 = vmatpush1.bf16.msra.mxu0 %v3692
        %5604 = vmatprep.subr.bf16.mxu0 %v3703
        %5605 = vmatpush1.bf16.msra.mxu0 %v3702
        %5606 = vmatprep.subr.bf16.mxu0 %v3713
        %5607 = vmatpush1.bf16.msra.mxu0 %v3712
        %5608 = vmatprep.subr.bf16.mxu0 %v3723
        %5609 = vmatpush1.bf16.msra.mxu0 %v3722
        %5610 = vmatprep.mubr.bf16.mxu0 %v1149
        %5611 = vmatmul.mubr.bf16.gmra.mrb[0].mxu0 %v1148
        %v5612 = vpop.f32.mrb[0].mxu0
        %v5613 = vadd.f32 %v1102, %v5612
        %v5614 = vpop.f32.mrb[0].mxu0
        %v5615 = vadd.f32 %v1106, %v5614
        %v5616 = vpop.f32.mrb[0].mxu0
        %v5617 = vpop.f32.mrb[0].mxu0
        %5618 = vdwg.mxu0
        %5619 = vmatprep.subr.bf16.mxu0 %v3733
        %5620 = vmatpush1.bf16.msra.mxu0 %v3732
        %5621 = vmatprep.subr.bf16.mxu0 %v3743
        %5622 = vmatpush1.bf16.msra.mxu0 %v3742
        %5623 = vmatprep.subr.bf16.mxu0 %v3753
        %5624 = vmatpush1.bf16.msra.mxu0 %v3752
        %5625 = vmatprep.subr.bf16.mxu0 %v3763
        %5626 = vmatpush1.bf16.msra.mxu0 %v3762
        %5627 = vmatprep.subr.bf16.mxu0 %v3773
        %5628 = vmatpush1.bf16.msra.mxu0 %v3772
        %5629 = vmatprep.subr.bf16.mxu0 %v3783
        %5630 = vmatpush1.bf16.msra.mxu0 %v3782
        %5631 = vmatprep.subr.bf16.mxu0 %v3793
        %5632 = vmatpush1.bf16.msra.mxu0 %v3792
        %5633 = vmatprep.subr.bf16.mxu0 %v3803
        %5634 = vmatpush1.bf16.msra.mxu0 %v3802
        %5635 = vmatprep.subr.bf16.mxu0 %v3813
        %5636 = vmatpush1.bf16.msra.mxu0 %v3812
        %5637 = vmatprep.subr.bf16.mxu0 %v3823
        %5638 = vmatpush1.bf16.msra.mxu0 %v3822
        %5639 = vmatprep.subr.bf16.mxu0 %v3833
        %5640 = vmatpush1.bf16.msra.mxu0 %v3832
        %5641 = vmatprep.subr.bf16.mxu0 %v3843
        %5642 = vmatpush1.bf16.msra.mxu0 %v3842
        %5643 = vmatprep.subr.bf16.mxu0 %v3853
        %5644 = vmatpush1.bf16.msra.mxu0 %v3852
        %5645 = vmatprep.subr.bf16.mxu0 %v3863
        %5646 = vmatpush1.bf16.msra.mxu0 %v3862
        %5647 = vmatprep.subr.bf16.mxu0 %v3873
        %5648 = vmatpush1.bf16.msra.mxu0 %v3872
        %5649 = vmatprep.subr.bf16.mxu0 %v3883
        %5650 = vmatpush1.bf16.msra.mxu0 %v3882
        %5651 = vmatprep.mubr.bf16.mxu0 %v1151
        %5652 = vmatmul.mubr.bf16.gmra.mrb[0].mxu0 %v1150
        %v5653 = vpop.f32.mrb[0].mxu0
        %v5654 = vadd.f32 %v5613, %v5653
        %v5655 = vpop.f32.mrb[0].mxu0
        %v5656 = vadd.f32 %v5615, %v5655
        %v5657 = vpop.f32.mrb[0].mxu0
        %v5658 = vpop.f32.mrb[0].mxu0
        %5659 = vdwg.mxu0
        %5660 = vmatprep.subr.bf16.mxu0 %v3893
        %5661 = vmatpush1.bf16.msra.mxu0 %v3892
        %5662 = vmatprep.subr.bf16.mxu0 %v3903
        %5663 = vmatpush1.bf16.msra.mxu0 %v3902
        %5664 = vmatprep.subr.bf16.mxu0 %v3913
        %5665 = vmatpush1.bf16.msra.mxu0 %v3912
        %5666 = vmatprep.subr.bf16.mxu0 %v3923
        %5667 = vmatpush1.bf16.msra.mxu0 %v3922
        %5668 = vmatprep.subr.bf16.mxu0 %v3933
        %5669 = vmatpush1.bf16.msra.mxu0 %v3932
        %5670 = vmatprep.subr.bf16.mxu0 %v3943
        %5671 = vmatpush1.bf16.msra.mxu0 %v3942
        %5672 = vmatprep.subr.bf16.mxu0 %v3953
        %5673 = vmatpush1.bf16.msra.mxu0 %v3952
        %5674 = vmatprep.subr.bf16.mxu0 %v3963
        %5675 = vmatpush1.bf16.msra.mxu0 %v3962
        %5676 = vmatprep.subr.bf16.mxu0 %v3973
        %5677 = vmatpush1.bf16.msra.mxu0 %v3972
        %5678 = vmatprep.subr.bf16.mxu0 %v3983
        %5679 = vmatpush1.bf16.msra.mxu0 %v3982
        %5680 = vmatprep.subr.bf16.mxu0 %v3993
        %5681 = vmatpush1.bf16.msra.mxu0 %v3992
        %5682 = vmatprep.subr.bf16.mxu0 %v4003
        %5683 = vmatpush1.bf16.msra.mxu0 %v4002
        %5684 = vmatprep.subr.bf16.mxu0 %v4013
        %5685 = vmatpush1.bf16.msra.mxu0 %v4012
        %5686 = vmatprep.subr.bf16.mxu0 %v4023
        %5687 = vmatpush1.bf16.msra.mxu0 %v4022
        %5688 = vmatprep.subr.bf16.mxu0 %v4033
        %5689 = vmatpush1.bf16.msra.mxu0 %v4032
        %5690 = vmatprep.subr.bf16.mxu0 %v4043
        %5691 = vmatpush1.bf16.msra.mxu0 %v4042
        %5692 = vmatprep.mubr.bf16.mxu0 %v1153
        %5693 = vmatmul.mubr.bf16.gmra.mrb[0].mxu0 %v1152
        %v5694 = vpop.f32.mrb[0].mxu0
        %v5695 = vadd.f32 %v5654, %v5694
        %v5696 = vpop.f32.mrb[0].mxu0
        %v5697 = vadd.f32 %v5656, %v5696
        %v5698 = vpop.f32.mrb[0].mxu0
        %v5699 = vpop.f32.mrb[0].mxu0
        %5700 = vdwg.mxu0
        %5701 = vmatprep.subr.bf16.mxu0 %v4053
        %5702 = vmatpush1.bf16.msra.mxu0 %v4052
        %5703 = vmatprep.subr.bf16.mxu0 %v4063
        %5704 = vmatpush1.bf16.msra.mxu0 %v4062
        %5705 = vmatprep.subr.bf16.mxu0 %v4073
        %5706 = vmatpush1.bf16.msra.mxu0 %v4072
        %5707 = vmatprep.subr.bf16.mxu0 %v4083
        %5708 = vmatpush1.bf16.msra.mxu0 %v4082
        %5709 = vmatprep.subr.bf16.mxu0 %v4093
        %5710 = vmatpush1.bf16.msra.mxu0 %v4092
        %5711 = vmatprep.subr.bf16.mxu0 %v4103
        %5712 = vmatpush1.bf16.msra.mxu0 %v4102
        %5713 = vmatprep.subr.bf16.mxu0 %v4113
        %5714 = vmatpush1.bf16.msra.mxu0 %v4112
        %5715 = vmatprep.subr.bf16.mxu0 %v4123
        %5716 = vmatpush1.bf16.msra.mxu0 %v4122
        %5717 = vmatprep.subr.bf16.mxu0 %v4133
        %5718 = vmatpush1.bf16.msra.mxu0 %v4132
        %5719 = vmatprep.subr.bf16.mxu0 %v4143
        %5720 = vmatpush1.bf16.msra.mxu0 %v4142
        %5721 = vmatprep.subr.bf16.mxu0 %v4153
        %5722 = vmatpush1.bf16.msra.mxu0 %v4152
        %5723 = vmatprep.subr.bf16.mxu0 %v4163
        %5724 = vmatpush1.bf16.msra.mxu0 %v4162
        %5725 = vmatprep.subr.bf16.mxu0 %v4173
        %5726 = vmatpush1.bf16.msra.mxu0 %v4172
        %5727 = vmatprep.subr.bf16.mxu0 %v4183
        %5728 = vmatpush1.bf16.msra.mxu0 %v4182
        %5729 = vmatprep.subr.bf16.mxu0 %v4193
        %5730 = vmatpush1.bf16.msra.mxu0 %v4192
        %5731 = vmatprep.subr.bf16.mxu0 %v4203
        %5732 = vmatpush1.bf16.msra.mxu0 %v4202
        %5733 = vmatprep.mubr.bf16.mxu0 %v1155
        %5734 = vmatmul.mubr.bf16.gmra.mrb[0].mxu0 %v1154
        %v5735 = vpop.f32.mrb[0].mxu0
        %v5736 = vadd.f32 %v5695, %v5735
        %v5737 = vpop.f32.mrb[0].mxu0
        %v5738 = vadd.f32 %v5697, %v5737
        %v5739 = vpop.f32.mrb[0].mxu0
        %v5740 = vpop.f32.mrb[0].mxu0
        %5741 = vdwg.mxu0
        %5742 = vmatprep.subr.bf16.mxu0 %v4213
        %5743 = vmatpush1.bf16.msra.mxu0 %v4212
        %5744 = vmatprep.subr.bf16.mxu0 %v4223
        %5745 = vmatpush1.bf16.msra.mxu0 %v4222
        %5746 = vmatprep.subr.bf16.mxu0 %v4233
        %5747 = vmatpush1.bf16.msra.mxu0 %v4232
        %5748 = vmatprep.subr.bf16.mxu0 %v4243
        %5749 = vmatpush1.bf16.msra.mxu0 %v4242
        %5750 = vmatprep.subr.bf16.mxu0 %v4253
        %5751 = vmatpush1.bf16.msra.mxu0 %v4252
        %5752 = vmatprep.subr.bf16.mxu0 %v4263
        %5753 = vmatpush1.bf16.msra.mxu0 %v4262
        %5754 = vmatprep.subr.bf16.mxu0 %v4273
        %5755 = vmatpush1.bf16.msra.mxu0 %v4272
        %5756 = vmatprep.subr.bf16.mxu0 %v4283
        %5757 = vmatpush1.bf16.msra.mxu0 %v4282
        %5758 = vmatprep.subr.bf16.mxu0 %v4293
        %5759 = vmatpush1.bf16.msra.mxu0 %v4292
        %5760 = vmatprep.subr.bf16.mxu0 %v4303
        %5761 = vmatpush1.bf16.msra.mxu0 %v4302
        %5762 = vmatprep.subr.bf16.mxu0 %v4313
        %5763 = vmatpush1.bf16.msra.mxu0 %v4312
        %5764 = vmatprep.subr.bf16.mxu0 %v4323
        %5765 = vmatpush1.bf16.msra.mxu0 %v4322
        %5766 = vmatprep.subr.bf16.mxu0 %v4333
        %5767 = vmatpush1.bf16.msra.mxu0 %v4332
        %5768 = vmatprep.subr.bf16.mxu0 %v4343
        %5769 = vmatpush1.bf16.msra.mxu0 %v4342
        %5770 = vmatprep.subr.bf16.mxu0 %v4353
        %5771 = vmatpush1.bf16.msra.mxu0 %v4352
        %5772 = vmatprep.subr.bf16.mxu0 %v4363
        %5773 = vmatpush1.bf16.msra.mxu0 %v4362
        %5774 = vmatprep.mubr.bf16.mxu0 %v1157
        %5775 = vmatmul.mubr.bf16.gmra.mrb[0].mxu0 %v1156
        %v5776 = vpop.f32.mrb[0].mxu0
        %v5777 = vadd.f32 %v5736, %v5776
        %v5778 = vpop.f32.mrb[0].mxu0
        %v5779 = vadd.f32 %v5738, %v5778
        %v5780 = vpop.f32.mrb[0].mxu0
        %v5781 = vpop.f32.mrb[0].mxu0
        %5782 = vdwg.mxu0
        %5783 = vmatprep.subr.bf16.mxu0 %v3575
        %5784 = vmatpush1.bf16.msra.mxu0 %v3574
        %5785 = vmatprep.subr.bf16.mxu0 %v3585
        %5786 = vmatpush1.bf16.msra.mxu0 %v3584
        %5787 = vmatprep.subr.bf16.mxu0 %v3595
        %5788 = vmatpush1.bf16.msra.mxu0 %v3594
        %5789 = vmatprep.subr.bf16.mxu0 %v3605
        %5790 = vmatpush1.bf16.msra.mxu0 %v3604
        %5791 = vmatprep.subr.bf16.mxu0 %v3615
        %5792 = vmatpush1.bf16.msra.mxu0 %v3614
        %5793 = vmatprep.subr.bf16.mxu0 %v3625
        %5794 = vmatpush1.bf16.msra.mxu0 %v3624
        %5795 = vmatprep.subr.bf16.mxu0 %v3635
        %5796 = vmatpush1.bf16.msra.mxu0 %v3634
        %5797 = vmatprep.subr.bf16.mxu0 %v3645
        %5798 = vmatpush1.bf16.msra.mxu0 %v3644
        %5799 = vmatprep.subr.bf16.mxu0 %v3655
        %5800 = vmatpush1.bf16.msra.mxu0 %v3654
        %5801 = vmatprep.subr.bf16.mxu0 %v3665
        %5802 = vmatpush1.bf16.msra.mxu0 %v3664
        %5803 = vmatprep.subr.bf16.mxu0 %v3675
        %5804 = vmatpush1.bf16.msra.mxu0 %v3674
        %5805 = vmatprep.subr.bf16.mxu0 %v3685
        %5806 = vmatpush1.bf16.msra.mxu0 %v3684
        %5807 = vmatprep.subr.bf16.mxu0 %v3695
        %5808 = vmatpush1.bf16.msra.mxu0 %v3694
        %5809 = vmatprep.subr.bf16.mxu0 %v3705
        %5810 = vmatpush1.bf16.msra.mxu0 %v3704
        %5811 = vmatprep.subr.bf16.mxu0 %v3715
        %5812 = vmatpush1.bf16.msra.mxu0 %v3714
        %5813 = vmatprep.subr.bf16.mxu0 %v3725
        %5814 = vmatpush1.bf16.msra.mxu0 %v3724
        %5815 = vmatprep.mubr.bf16.mxu0 %v1149
        %5816 = vmatmul.mubr.bf16.gmra.mrb[0].mxu0 %v1148
        %v5817 = vpop.f32.mrb[0].mxu0
        %v5818 = vadd.f32 %v1110, %v5817
        %v5819 = vpop.f32.mrb[0].mxu0
        %v5820 = vadd.f32 %v1114, %v5819
        %v5821 = vpop.f32.mrb[0].mxu0
        %v5822 = vpop.f32.mrb[0].mxu0
        %5823 = vdwg.mxu0
        %5824 = vmatprep.subr.bf16.mxu0 %v3735
        %5825 = vmatpush1.bf16.msra.mxu0 %v3734
        %5826 = vmatprep.subr.bf16.mxu0 %v3745
        %5827 = vmatpush1.bf16.msra.mxu0 %v3744
        %5828 = vmatprep.subr.bf16.mxu0 %v3755
        %5829 = vmatpush1.bf16.msra.mxu0 %v3754
        %5830 = vmatprep.subr.bf16.mxu0 %v3765
        %5831 = vmatpush1.bf16.msra.mxu0 %v3764
        %5832 = vmatprep.subr.bf16.mxu0 %v3775
        %5833 = vmatpush1.bf16.msra.mxu0 %v3774
        %5834 = vmatprep.subr.bf16.mxu0 %v3785
        %5835 = vmatpush1.bf16.msra.mxu0 %v3784
        %5836 = vmatprep.subr.bf16.mxu0 %v3795
        %5837 = vmatpush1.bf16.msra.mxu0 %v3794
        %5838 = vmatprep.subr.bf16.mxu0 %v3805
        %5839 = vmatpush1.bf16.msra.mxu0 %v3804
        %5840 = vmatprep.subr.bf16.mxu0 %v3815
        %5841 = vmatpush1.bf16.msra.mxu0 %v3814
        %5842 = vmatprep.subr.bf16.mxu0 %v3825
        %5843 = vmatpush1.bf16.msra.mxu0 %v3824
        %5844 = vmatprep.subr.bf16.mxu0 %v3835
        %5845 = vmatpush1.bf16.msra.mxu0 %v3834
        %5846 = vmatprep.subr.bf16.mxu0 %v3845
        %5847 = vmatpush1.bf16.msra.mxu0 %v3844
        %5848 = vmatprep.subr.bf16.mxu0 %v3855
        %5849 = vmatpush1.bf16.msra.mxu0 %v3854
        %5850 = vmatprep.subr.bf16.mxu0 %v3865
        %5851 = vmatpush1.bf16.msra.mxu0 %v3864
        %5852 = vmatprep.subr.bf16.mxu0 %v3875
        %5853 = vmatpush1.bf16.msra.mxu0 %v3874
        %5854 = vmatprep.subr.bf16.mxu0 %v3885
        %5855 = vmatpush1.bf16.msra.mxu0 %v3884
        %5856 = vmatprep.mubr.bf16.mxu0 %v1151
        %5857 = vmatmul.mubr.bf16.gmra.mrb[0].mxu0 %v1150
        %v5858 = vpop.f32.mrb[0].mxu0
        %v5859 = vadd.f32 %v5818, %v5858
        %v5860 = vpop.f32.mrb[0].mxu0
        %v5861 = vadd.f32 %v5820, %v5860
        %v5862 = vpop.f32.mrb[0].mxu0
        %v5863 = vpop.f32.mrb[0].mxu0
        %5864 = vdwg.mxu0
        %5865 = vmatprep.subr.bf16.mxu0 %v3895
        %5866 = vmatpush1.bf16.msra.mxu0 %v3894
        %5867 = vmatprep.subr.bf16.mxu0 %v3905
        %5868 = vmatpush1.bf16.msra.mxu0 %v3904
        %5869 = vmatprep.subr.bf16.mxu0 %v3915
        %5870 = vmatpush1.bf16.msra.mxu0 %v3914
        %5871 = vmatprep.subr.bf16.mxu0 %v3925
        %5872 = vmatpush1.bf16.msra.mxu0 %v3924
        %5873 = vmatprep.subr.bf16.mxu0 %v3935
        %5874 = vmatpush1.bf16.msra.mxu0 %v3934
        %5875 = vmatprep.subr.bf16.mxu0 %v3945
        %5876 = vmatpush1.bf16.msra.mxu0 %v3944
        %5877 = vmatprep.subr.bf16.mxu0 %v3955
        %5878 = vmatpush1.bf16.msra.mxu0 %v3954
        %5879 = vmatprep.subr.bf16.mxu0 %v3965
        %5880 = vmatpush1.bf16.msra.mxu0 %v3964
        %5881 = vmatprep.subr.bf16.mxu0 %v3975
        %5882 = vmatpush1.bf16.msra.mxu0 %v3974
        %5883 = vmatprep.subr.bf16.mxu0 %v3985
        %5884 = vmatpush1.bf16.msra.mxu0 %v3984
        %5885 = vmatprep.subr.bf16.mxu0 %v3995
        %5886 = vmatpush1.bf16.msra.mxu0 %v3994
        %5887 = vmatprep.subr.bf16.mxu0 %v4005
        %5888 = vmatpush1.bf16.msra.mxu0 %v4004
        %5889 = vmatprep.subr.bf16.mxu0 %v4015
        %5890 = vmatpush1.bf16.msra.mxu0 %v4014
        %5891 = vmatprep.subr.bf16.mxu0 %v4025
        %5892 = vmatpush1.bf16.msra.mxu0 %v4024
        %5893 = vmatprep.subr.bf16.mxu0 %v4035
        %5894 = vmatpush1.bf16.msra.mxu0 %v4034
        %5895 = vmatprep.subr.bf16.mxu0 %v4045
        %5896 = vmatpush1.bf16.msra.mxu0 %v4044
        %5897 = vmatprep.mubr.bf16.mxu0 %v1153
        %5898 = vmatmul.mubr.bf16.gmra.mrb[0].mxu0 %v1152
        %v5899 = vpop.f32.mrb[0].mxu0
        %v5900 = vadd.f32 %v5859, %v5899
        %v5901 = vpop.f32.mrb[0].mxu0
        %v5902 = vadd.f32 %v5861, %v5901
        %v5903 = vpop.f32.mrb[0].mxu0
        %v5904 = vpop.f32.mrb[0].mxu0
        %5905 = vdwg.mxu0
        %5906 = vmatprep.subr.bf16.mxu0 %v4055
        %5907 = vmatpush1.bf16.msra.mxu0 %v4054
        %5908 = vmatprep.subr.bf16.mxu0 %v4065
        %5909 = vmatpush1.bf16.msra.mxu0 %v4064
        %5910 = vmatprep.subr.bf16.mxu0 %v4075
        %5911 = vmatpush1.bf16.msra.mxu0 %v4074
        %5912 = vmatprep.subr.bf16.mxu0 %v4085
        %5913 = vmatpush1.bf16.msra.mxu0 %v4084
        %5914 = vmatprep.subr.bf16.mxu0 %v4095
        %5915 = vmatpush1.bf16.msra.mxu0 %v4094
        %5916 = vmatprep.subr.bf16.mxu0 %v4105
        %5917 = vmatpush1.bf16.msra.mxu0 %v4104
        %5918 = vmatprep.subr.bf16.mxu0 %v4115
        %5919 = vmatpush1.bf16.msra.mxu0 %v4114
        %5920 = vmatprep.subr.bf16.mxu0 %v4125
        %5921 = vmatpush1.bf16.msra.mxu0 %v4124
        %5922 = vmatprep.subr.bf16.mxu0 %v4135
        %5923 = vmatpush1.bf16.msra.mxu0 %v4134
        %5924 = vmatprep.subr.bf16.mxu0 %v4145
        %5925 = vmatpush1.bf16.msra.mxu0 %v4144
        %5926 = vmatprep.subr.bf16.mxu0 %v4155
        %5927 = vmatpush1.bf16.msra.mxu0 %v4154
        %5928 = vmatprep.subr.bf16.mxu0 %v4165
        %5929 = vmatpush1.bf16.msra.mxu0 %v4164
        %5930 = vmatprep.subr.bf16.mxu0 %v4175
        %5931 = vmatpush1.bf16.msra.mxu0 %v4174
        %5932 = vmatprep.subr.bf16.mxu0 %v4185
        %5933 = vmatpush1.bf16.msra.mxu0 %v4184
        %5934 = vmatprep.subr.bf16.mxu0 %v4195
        %5935 = vmatpush1.bf16.msra.mxu0 %v4194
        %5936 = vmatprep.subr.bf16.mxu0 %v4205
        %5937 = vmatpush1.bf16.msra.mxu0 %v4204
        %5938 = vmatprep.mubr.bf16.mxu0 %v1155
        %5939 = vmatmul.mubr.bf16.gmra.mrb[0].mxu0 %v1154
        %v5940 = vpop.f32.mrb[0].mxu0
        %v5941 = vadd.f32 %v5900, %v5940
        %v5942 = vpop.f32.mrb[0].mxu0
        %v5943 = vadd.f32 %v5902, %v5942
        %v5944 = vpop.f32.mrb[0].mxu0
        %v5945 = vpop.f32.mrb[0].mxu0
        %5946 = vdwg.mxu0
        %5947 = vmatprep.subr.bf16.mxu0 %v4215
        %5948 = vmatpush1.bf16.msra.mxu0 %v4214
        %5949 = vmatprep.subr.bf16.mxu0 %v4225
        %5950 = vmatpush1.bf16.msra.mxu0 %v4224
        %5951 = vmatprep.subr.bf16.mxu0 %v4235
        %5952 = vmatpush1.bf16.msra.mxu0 %v4234
        %5953 = vmatprep.subr.bf16.mxu0 %v4245
        %5954 = vmatpush1.bf16.msra.mxu0 %v4244
        %5955 = vmatprep.subr.bf16.mxu0 %v4255
        %5956 = vmatpush1.bf16.msra.mxu0 %v4254
        %5957 = vmatprep.subr.bf16.mxu0 %v4265
        %5958 = vmatpush1.bf16.msra.mxu0 %v4264
        %5959 = vmatprep.subr.bf16.mxu0 %v4275
        %5960 = vmatpush1.bf16.msra.mxu0 %v4274
        %5961 = vmatprep.subr.bf16.mxu0 %v4285
        %5962 = vmatpush1.bf16.msra.mxu0 %v4284
        %5963 = vmatprep.subr.bf16.mxu0 %v4295
        %5964 = vmatpush1.bf16.msra.mxu0 %v4294
        %5965 = vmatprep.subr.bf16.mxu0 %v4305
        %5966 = vmatpush1.bf16.msra.mxu0 %v4304
        %5967 = vmatprep.subr.bf16.mxu0 %v4315
        %5968 = vmatpush1.bf16.msra.mxu0 %v4314
        %5969 = vmatprep.subr.bf16.mxu0 %v4325
        %5970 = vmatpush1.bf16.msra.mxu0 %v4324
        %5971 = vmatprep.subr.bf16.mxu0 %v4335
        %5972 = vmatpush1.bf16.msra.mxu0 %v4334
        %5973 = vmatprep.subr.bf16.mxu0 %v4345
        %5974 = vmatpush1.bf16.msra.mxu0 %v4344
        %5975 = vmatprep.subr.bf16.mxu0 %v4355
        %5976 = vmatpush1.bf16.msra.mxu0 %v4354
        %5977 = vmatprep.subr.bf16.mxu0 %v4365
        %5978 = vmatpush1.bf16.msra.mxu0 %v4364
        %5979 = vmatprep.mubr.bf16.mxu0 %v1157
        %5980 = vmatmul.mubr.bf16.gmra.mrb[0].mxu0 %v1156
        %v5981 = vpop.f32.mrb[0].mxu0
        %v5982 = vadd.f32 %v5941, %v5981
        %v5983 = vpop.f32.mrb[0].mxu0
        %v5984 = vadd.f32 %v5943, %v5983
        %v5985 = vpop.f32.mrb[0].mxu0
        %v5986 = vpop.f32.mrb[0].mxu0
        %5987 = vdwg.mxu0
        %5988 = vmatprep.subr.bf16.mxu0 %v3577
        %5989 = vmatpush1.bf16.msra.mxu0 %v3576
        %5990 = vmatprep.subr.bf16.mxu0 %v3587
        %5991 = vmatpush1.bf16.msra.mxu0 %v3586
        %5992 = vmatprep.subr.bf16.mxu0 %v3597
        %5993 = vmatpush1.bf16.msra.mxu0 %v3596
        %5994 = vmatprep.subr.bf16.mxu0 %v3607
        %5995 = vmatpush1.bf16.msra.mxu0 %v3606
        %5996 = vmatprep.subr.bf16.mxu0 %v3617
        %5997 = vmatpush1.bf16.msra.mxu0 %v3616
        %5998 = vmatprep.subr.bf16.mxu0 %v3627
        %5999 = vmatpush1.bf16.msra.mxu0 %v3626
        %6000 = vmatprep.subr.bf16.mxu0 %v3637
        %6001 = vmatpush1.bf16.msra.mxu0 %v3636
        %6002 = vmatprep.subr.bf16.mxu0 %v3647
        %6003 = vmatpush1.bf16.msra.mxu0 %v3646
        %6004 = vmatprep.subr.bf16.mxu0 %v3657
        %6005 = vmatpush1.bf16.msra.mxu0 %v3656
        %6006 = vmatprep.subr.bf16.mxu0 %v3667
        %6007 = vmatpush1.bf16.msra.mxu0 %v3666
        %6008 = vmatprep.subr.bf16.mxu0 %v3677
        %6009 = vmatpush1.bf16.msra.mxu0 %v3676
        %6010 = vmatprep.subr.bf16.mxu0 %v3687
        %6011 = vmatpush1.bf16.msra.mxu0 %v3686
        %6012 = vmatprep.subr.bf16.mxu0 %v3697
        %6013 = vmatpush1.bf16.msra.mxu0 %v3696
        %6014 = vmatprep.subr.bf16.mxu0 %v3707
        %6015 = vmatpush1.bf16.msra.mxu0 %v3706
        %6016 = vmatprep.subr.bf16.mxu0 %v3717
        %6017 = vmatpush1.bf16.msra.mxu0 %v3716
        %6018 = vmatprep.subr.bf16.mxu0 %v3727
        %6019 = vmatpush1.bf16.msra.mxu0 %v3726
        %6020 = vmatprep.mubr.bf16.mxu0 %v1149
        %6021 = vmatmul.mubr.bf16.gmra.mrb[0].mxu0 %v1148
        %v6022 = vpop.f32.mrb[0].mxu0
        %v6023 = vadd.f32 %v1118, %v6022
        %v6024 = vpop.f32.mrb[0].mxu0
        %v6025 = vadd.f32 %v1122, %v6024
        %v6026 = vpop.f32.mrb[0].mxu0
        %v6027 = vpop.f32.mrb[0].mxu0
        %6028 = vdwg.mxu0
        %6029 = vmatprep.subr.bf16.mxu0 %v3737
        %6030 = vmatpush1.bf16.msra.mxu0 %v3736
        %6031 = vmatprep.subr.bf16.mxu0 %v3747
        %6032 = vmatpush1.bf16.msra.mxu0 %v3746
        %6033 = vmatprep.subr.bf16.mxu0 %v3757
        %6034 = vmatpush1.bf16.msra.mxu0 %v3756
        %6035 = vmatprep.subr.bf16.mxu0 %v3767
        %6036 = vmatpush1.bf16.msra.mxu0 %v3766
        %6037 = vmatprep.subr.bf16.mxu0 %v3777
        %6038 = vmatpush1.bf16.msra.mxu0 %v3776
        %6039 = vmatprep.subr.bf16.mxu0 %v3787
        %6040 = vmatpush1.bf16.msra.mxu0 %v3786
        %6041 = vmatprep.subr.bf16.mxu0 %v3797
        %6042 = vmatpush1.bf16.msra.mxu0 %v3796
        %6043 = vmatprep.subr.bf16.mxu0 %v3807
        %6044 = vmatpush1.bf16.msra.mxu0 %v3806
        %6045 = vmatprep.subr.bf16.mxu0 %v3817
        %6046 = vmatpush1.bf16.msra.mxu0 %v3816
        %6047 = vmatprep.subr.bf16.mxu0 %v3827
        %6048 = vmatpush1.bf16.msra.mxu0 %v3826
        %6049 = vmatprep.subr.bf16.mxu0 %v3837
        %6050 = vmatpush1.bf16.msra.mxu0 %v3836
        %6051 = vmatprep.subr.bf16.mxu0 %v3847
        %6052 = vmatpush1.bf16.msra.mxu0 %v3846
        %6053 = vmatprep.subr.bf16.mxu0 %v3857
        %6054 = vmatpush1.bf16.msra.mxu0 %v3856
        %6055 = vmatprep.subr.bf16.mxu0 %v3867
        %6056 = vmatpush1.bf16.msra.mxu0 %v3866
        %6057 = vmatprep.subr.bf16.mxu0 %v3877
        %6058 = vmatpush1.bf16.msra.mxu0 %v3876
        %6059 = vmatprep.subr.bf16.mxu0 %v3887
        %6060 = vmatpush1.bf16.msra.mxu0 %v3886
        %6061 = vmatprep.mubr.bf16.mxu0 %v1151
        %6062 = vmatmul.mubr.bf16.gmra.mrb[0].mxu0 %v1150
        %v6063 = vpop.f32.mrb[0].mxu0
        %v6064 = vadd.f32 %v6023, %v6063
        %v6065 = vpop.f32.mrb[0].mxu0
        %v6066 = vadd.f32 %v6025, %v6065
        %v6067 = vpop.f32.mrb[0].mxu0
        %v6068 = vpop.f32.mrb[0].mxu0
        %6069 = vdwg.mxu0
        %6070 = vmatprep.subr.bf16.mxu0 %v3897
        %6071 = vmatpush1.bf16.msra.mxu0 %v3896
        %6072 = vmatprep.subr.bf16.mxu0 %v3907
        %6073 = vmatpush1.bf16.msra.mxu0 %v3906
        %6074 = vmatprep.subr.bf16.mxu0 %v3917
        %6075 = vmatpush1.bf16.msra.mxu0 %v3916
        %6076 = vmatprep.subr.bf16.mxu0 %v3927
        %6077 = vmatpush1.bf16.msra.mxu0 %v3926
        %6078 = vmatprep.subr.bf16.mxu0 %v3937
        %6079 = vmatpush1.bf16.msra.mxu0 %v3936
        %6080 = vmatprep.subr.bf16.mxu0 %v3947
        %6081 = vmatpush1.bf16.msra.mxu0 %v3946
        %6082 = vmatprep.subr.bf16.mxu0 %v3957
        %6083 = vmatpush1.bf16.msra.mxu0 %v3956
        %6084 = vmatprep.subr.bf16.mxu0 %v3967
        %6085 = vmatpush1.bf16.msra.mxu0 %v3966
        %6086 = vmatprep.subr.bf16.mxu0 %v3977
        %6087 = vmatpush1.bf16.msra.mxu0 %v3976
        %6088 = vmatprep.subr.bf16.mxu0 %v3987
        %6089 = vmatpush1.bf16.msra.mxu0 %v3986
        %6090 = vmatprep.subr.bf16.mxu0 %v3997
        %6091 = vmatpush1.bf16.msra.mxu0 %v3996
        %6092 = vmatprep.subr.bf16.mxu0 %v4007
        %6093 = vmatpush1.bf16.msra.mxu0 %v4006
        %6094 = vmatprep.subr.bf16.mxu0 %v4017
        %6095 = vmatpush1.bf16.msra.mxu0 %v4016
        %6096 = vmatprep.subr.bf16.mxu0 %v4027
        %6097 = vmatpush1.bf16.msra.mxu0 %v4026
        %6098 = vmatprep.subr.bf16.mxu0 %v4037
        %6099 = vmatpush1.bf16.msra.mxu0 %v4036
        %6100 = vmatprep.subr.bf16.mxu0 %v4047
        %6101 = vmatpush1.bf16.msra.mxu0 %v4046
        %6102 = vmatprep.mubr.bf16.mxu0 %v1153
        %6103 = vmatmul.mubr.bf16.gmra.mrb[0].mxu0 %v1152
        %v6104 = vpop.f32.mrb[0].mxu0
        %v6105 = vadd.f32 %v6064, %v6104
        %v6106 = vpop.f32.mrb[0].mxu0
        %v6107 = vadd.f32 %v6066, %v6106
        %v6108 = vpop.f32.mrb[0].mxu0
        %v6109 = vpop.f32.mrb[0].mxu0
        %6110 = vdwg.mxu0
        %6111 = vmatprep.subr.bf16.mxu0 %v4057
        %6112 = vmatpush1.bf16.msra.mxu0 %v4056
        %6113 = vmatprep.subr.bf16.mxu0 %v4067
        %6114 = vmatpush1.bf16.msra.mxu0 %v4066
        %6115 = vmatprep.subr.bf16.mxu0 %v4077
        %6116 = vmatpush1.bf16.msra.mxu0 %v4076
        %6117 = vmatprep.subr.bf16.mxu0 %v4087
        %6118 = vmatpush1.bf16.msra.mxu0 %v4086
        %6119 = vmatprep.subr.bf16.mxu0 %v4097
        %6120 = vmatpush1.bf16.msra.mxu0 %v4096
        %6121 = vmatprep.subr.bf16.mxu0 %v4107
        %6122 = vmatpush1.bf16.msra.mxu0 %v4106
        %6123 = vmatprep.subr.bf16.mxu0 %v4117
        %6124 = vmatpush1.bf16.msra.mxu0 %v4116
        %6125 = vmatprep.subr.bf16.mxu0 %v4127
        %6126 = vmatpush1.bf16.msra.mxu0 %v4126
        %6127 = vmatprep.subr.bf16.mxu0 %v4137
        %6128 = vmatpush1.bf16.msra.mxu0 %v4136
        %6129 = vmatprep.subr.bf16.mxu0 %v4147
        %6130 = vmatpush1.bf16.msra.mxu0 %v4146
        %6131 = vmatprep.subr.bf16.mxu0 %v4157
        %6132 = vmatpush1.bf16.msra.mxu0 %v4156
        %6133 = vmatprep.subr.bf16.mxu0 %v4167
        %6134 = vmatpush1.bf16.msra.mxu0 %v4166
        %6135 = vmatprep.subr.bf16.mxu0 %v4177
        %6136 = vmatpush1.bf16.msra.mxu0 %v4176
        %6137 = vmatprep.subr.bf16.mxu0 %v4187
        %6138 = vmatpush1.bf16.msra.mxu0 %v4186
        %6139 = vmatprep.subr.bf16.mxu0 %v4197
        %6140 = vmatpush1.bf16.msra.mxu0 %v4196
        %6141 = vmatprep.subr.bf16.mxu0 %v4207
        %6142 = vmatpush1.bf16.msra.mxu0 %v4206
        %6143 = vmatprep.mubr.bf16.mxu0 %v1155
        %6144 = vmatmul.mubr.bf16.gmra.mrb[0].mxu0 %v1154
        %v6145 = vpop.f32.mrb[0].mxu0
        %v6146 = vadd.f32 %v6105, %v6145
        %v6147 = vpop.f32.mrb[0].mxu0
        %v6148 = vadd.f32 %v6107, %v6147
        %v6149 = vpop.f32.mrb[0].mxu0
        %v6150 = vpop.f32.mrb[0].mxu0
        %6151 = vdwg.mxu0
        %6152 = vmatprep.subr.bf16.mxu0 %v4217
        %6153 = vmatpush1.bf16.msra.mxu0 %v4216
        %6154 = vmatprep.subr.bf16.mxu0 %v4227
        %6155 = vmatpush1.bf16.msra.mxu0 %v4226
        %6156 = vmatprep.subr.bf16.mxu0 %v4237
        %6157 = vmatpush1.bf16.msra.mxu0 %v4236
        %6158 = vmatprep.subr.bf16.mxu0 %v4247
        %6159 = vmatpush1.bf16.msra.mxu0 %v4246
        %6160 = vmatprep.subr.bf16.mxu0 %v4257
        %6161 = vmatpush1.bf16.msra.mxu0 %v4256
        %6162 = vmatprep.subr.bf16.mxu0 %v4267
        %6163 = vmatpush1.bf16.msra.mxu0 %v4266
        %6164 = vmatprep.subr.bf16.mxu0 %v4277
        %6165 = vmatpush1.bf16.msra.mxu0 %v4276
        %6166 = vmatprep.subr.bf16.mxu0 %v4287
        %6167 = vmatpush1.bf16.msra.mxu0 %v4286
        %6168 = vmatprep.subr.bf16.mxu0 %v4297
        %6169 = vmatpush1.bf16.msra.mxu0 %v4296
        %6170 = vmatprep.subr.bf16.mxu0 %v4307
        %6171 = vmatpush1.bf16.msra.mxu0 %v4306
        %6172 = vmatprep.subr.bf16.mxu0 %v4317
        %6173 = vmatpush1.bf16.msra.mxu0 %v4316
        %6174 = vmatprep.subr.bf16.mxu0 %v4327
        %6175 = vmatpush1.bf16.msra.mxu0 %v4326
        %6176 = vmatprep.subr.bf16.mxu0 %v4337
        %6177 = vmatpush1.bf16.msra.mxu0 %v4336
        %6178 = vmatprep.subr.bf16.mxu0 %v4347
        %6179 = vmatpush1.bf16.msra.mxu0 %v4346
        %6180 = vmatprep.subr.bf16.mxu0 %v4357
        %6181 = vmatpush1.bf16.msra.mxu0 %v4356
        %6182 = vmatprep.subr.bf16.mxu0 %v4367
        %6183 = vmatpush1.bf16.msra.mxu0 %v4366
        %6184 = vmatprep.mubr.bf16.mxu0 %v1157
        %6185 = vmatmul.mubr.bf16.gmra.mrb[0].mxu0 %v1156
        %v6186 = vpop.f32.mrb[0].mxu0
        %v6187 = vadd.f32 %v6146, %v6186
        %v6188 = vpop.f32.mrb[0].mxu0
        %v6189 = vadd.f32 %v6148, %v6188
        %v6190 = vpop.f32.mrb[0].mxu0
        %v6191 = vpop.f32.mrb[0].mxu0
        %6192 = vdwg.mxu0
        %v6193 = vpack.c.bf16 %v5367, %v5367
        %v6194 = vpack.c.bf16 %v5369, %v5369
        %v6195 = vpack.c.bf16 %v5572, %v5572
        %v6196 = vpack.c.bf16 %v5574, %v5574
        %v6197 = vpack.c.bf16 %v5777, %v5777
        %v6198 = vpack.c.bf16 %v5779, %v5779
        %v6199 = vpack.c.bf16 %v5982, %v5982
        %v6200 = vpack.c.bf16 %v5984, %v5984
        %v6201 = vpack.c.bf16 %v6187, %v6187
        %v6202 = vpack.c.bf16 %v6189, %v6189
        %v6213 = vunpack.c.l.b16 %v6193
        %v6214 = vunpack.c.l.b16 %v6194
        %v6215 = vunpack.c.l.b16 %v6195
        %v6216 = vunpack.c.l.b16 %v6196
        %v6217 = vunpack.c.l.b16 %v6197
        %v6218 = vunpack.c.l.b16 %v6198
        %v6219 = vunpack.c.l.b16 %v6199
        %v6220 = vunpack.c.l.b16 %v6200
        %v6221 = vunpack.c.l.b16 %v6201
        %v6222 = vunpack.c.l.b16 %v6202
        %v6223 = vpack.c.b16 %v6214, %v6213
        %v6224 = vpack.c.b16 %v6216, %v6215
        %v6225 = vpack.c.b16 %v6218, %v6217
        %v6226 = vpack.c.b16 %v6220, %v6219
        %v6227 = vpack.c.b16 %v6222, %v6221
        %6233 = vst [vmem:[%s272] sm:$0xff] %v6223
        %6234 = vst [vmem:[%s272 + $0x8] sm:$0xff] %v6224
        %6235 = vst [vmem:[%s272 + $0x10] sm:$0xff] %v6225
        %6236 = vst [vmem:[%s272 + $0x18] sm:$0xff] %v6226
        %6237 = vst [vmem:[%s272 + $0x20] sm:$0xff] %v6227
        %s6238 = smul.u32 10, %s25
        %p6239 = scmp.lt.s32.totalorder %s24, 0
        %s6240 = scalar_select %p6239, %s24, 0
        %p6241 = scmp.lt.s32.totalorder %s6238, 19
        %s6242 = scalar_select %p6241, %s6238, 19
        %s6243 = smul.addr %s6240, 20
        %s6244 = sadd.s32 %s6242, %s6243
        %s6245 = smul.addr %s6244, 4
        %s6246 = scalar_lea.vmem %s3, %s6245
        // Predicated region
        $region41: #{finetune_forward.2} parent=31 // pred_check
          %p6247 = pneg %p130
        $region42: #{finetune_forward.2} parent=31 // pred_check_branch
          %6249 = sbr.rel (%p6247) target = $region44
        $region43: #{finetune_forward.2} parent=31 // pred_region
          %s6250 = smul.u32 10, %s25
        $region44: #{finetune_forward.2} parent=31 // pred_fallthru
          _
      $region32: #{finetune_forward.2} parent=5 // pred_fallthru
        _
      %p6251 = scmp.le.s32.totalorder 2, %s15
      // Predicated region
      $region45: #{finetune_forward.2} parent=5 // pred_check
        %p6252 = pneg %p6251
      $region46: #{finetune_forward.2} parent=5 // pred_check_branch
        %6254 = sbr.rel (%p6252) target = $region48
      $region47: #{finetune_forward.2} parent=5 // pred_region
        %s6255 = ssub.s32 %s15, 2
        // Predicated region
        $region49: #{finetune_forward.2} parent=47 // pred_check
          %p6256 = pneg %p136
        $region50: #{finetune_forward.2} parent=47 // pred_check_branch
          %6258 = sbr.rel (%p6256) target = $region52
        $region51: #{finetune_forward.2} parent=47 // pred_region
          %s6259 = smul.u32 10, %s27
          %p6260 = scmp.lt.s32.totalorder %s26, 0
          %s6261 = scalar_select %p6260, %s26, 0
          %p6262 = scmp.lt.s32.totalorder %s6259, 19
          %s6263 = scalar_select %p6262, %s6259, 19
          %s6264 = smul.addr %s6261, 20
          %s6265 = sadd.s32 %s6263, %s6264
          %s6266 = smul.addr %s6265, 4
          %s6267 = scalar_lea.vmem %s3, %s6266
        $region52: #{finetune_forward.2} parent=47 // pred_fallthru
          _
      $region48: #{finetune_forward.2} parent=5 // pred_fallthru
        _
    $region6: #{finetune_forward.2} parent=1 // loop_footer
      %s19 = sadd.s32 1, %s15
    $region7: #{finetune_forward.2} parent=1 // loop_footer_branch
      %14 = sbr.rel target = $region3
    $region8: #{finetune_forward.2} parent=1 // loop_exit
      _
    %6268 = vsyncpa [#allocation3], 1
    %s6269 = scalar_lea.sflag [#allocation3], 1
    %6270 = vsyncpa %s6269, 1
    %6271 = vsyncpa [#allocation5], 1
    %s6272 = scalar_lea.sflag [#allocation5], 1
    %6273 = vsyncpa %s6272, 1

</llo_original>
